<compile_context>
chip_gen: v5e
topology: v5e:2x2
jax: 0.10.0
libtpu: 0.0.40
codegen_flags: <defaults>
</compile_context>

<pallas_src>
import jax
import jax.numpy as jnp
import numpy as np
from jax.experimental import pallas as pl
from jax.experimental.pallas import tpu as pltpu


_VMEM_LIMIT = 64 * 1024 * 1024     # explicit scoped-VMEM limit
_VMEM_BUDGET = 24 * 1024 * 1024    # per-grid-step budget we assert against


def _cdiv(a, b):
    return (a + b - 1) // b


def _plan_layers(conv_layers, H, W):
    """Static per-layer geometry + polyphase factors.

    Q[l]  = product of strides of layers l..L-1 (phase split of layer l input)
    Qn[l] = Q[l+1]                              (phase grouping of its output)
    """
    L = len(conv_layers)
    Q = [1] * (L + 1)
    for l in range(L - 1, -1, -1):
        Q[l] = conv_layers[l][3] * Q[l + 1]
    plans = []
    h, w = H, W
    for l, (cin, cout, k, s, p) in enumerate(conv_layers):
        hp, wp = h + 2 * p, w + 2 * p
        ho, wo = (hp - k) // s + 1, (wp - k) // s + 1
        plans.append(dict(
            cin=cin, cout=cout, k=k, s=s, p=p,
            hp=hp, wp=wp, ho=ho, wo=wo,
            Q=Q[l], Qn=Q[l + 1],
            hq=_cdiv(hp, Q[l]), wq=_cdiv(wp, Q[l]),
            p_next=conv_layers[l + 1][4] if l + 1 < L else 0))
        h, w = ho, wo
    return plans


def _make_encoder_kernel(plans):
    """relu(conv_L-1(...relu(conv_0(x))...)) for one image, all in VMEM.

    Ref layout (per grid step = one image):
      x_ref : (Q0*Q0, Hq0, Wq0, C0)        bf16  polyphase-split padded input
      w_l   : (K*K, Cin_l, Cout_l)         bf16  per-tap weight matrices
      b_l   : (1, Cout_l)                  f32
      o_ref : (1, Ho_L*Wo_L, Cout_L)       f32   NHWC-flat last-layer output
      buf_l : (Q_l*Q_l, Hq_l, Wq_l, Cin_l) bf16  VMEM scratch = layer-l input
    """
    L = len(plans)

    def kernel(*refs):
        x_ref = refs[0]
        w_refs = [refs[1 + 2 * l] for l in range(L)]
        b_refs = [refs[2 + 2 * l] for l in range(L)]
        o_ref = refs[1 + 2 * L]
        bufs = list(refs[2 + 2 * L:])          # staging buffers, layers 1..L-1

        # Padding / slack regions of the staging buffers must read as zero.
        for buf in bufs:
            buf[...] = jnp.zeros(buf.shape, buf.dtype)

        for l, cfg in enumerate(plans):
            k, s = cfg["k"], cfg["s"]
            Q, Qn = cfg["Q"], cfg["Qn"]
            ho, wo = cfg["ho"], cfg["wo"]
            cin, cout = cfg["cin"], cfg["cout"]
            pn = cfg["p_next"]
            in_ref = x_ref if l == 0 else bufs[l - 1]
            bias = b_refs[l][...]                          # (1, cout) f32

            # Output positions are enumerated grouped by phase (u, v) modulo
            # the NEXT layer's polyphase factor Qn, so that both the tap reads
            # here and the write into the next staging buffer are contiguous
            # static slices.  (Qn == 1 for the last layer -> single phase.)
            for u in range(Qn):
                if ho - u <= 0:
                    continue
                nH = _cdiv(ho - u, Qn)
                for v in range(Qn):
                    if wo - v <= 0:
                        continue
                    nW = _cdiv(wo - v, Qn)

                    # Bias folded into the f32 accumulator init.
                    acc = jnp.zeros((nH * nW, cout), jnp.float32) + bias
                    t = 0
                    for a in range(k):                     # static tap unroll
                        alpha_i, rho_i = divmod(s * u + a, Q)
                        for b in range(k):
                            alpha_j, rho_j = divmod(s * v + b, Q)
                            xs = in_ref[rho_i * Q + rho_j,
                                        alpha_i:alpha_i + nH,
                                        alpha_j:alpha_j + nW, :]
                            acc = acc + jnp.dot(
                                xs.reshape(nH * nW, cin), w_refs[l][t],
                                preferred_element_type=jnp.float32)
                            t += 1
                    z = jnp.maximum(acc, 0.0)

                    if l == L - 1:
                        # Last layer: single phase covers the whole output.
                        o_ref[0] = z.astype(o_ref.dtype)
                    else:
                        # Deposit this output phase into the next layer's
                        # padded polyphase staging buffer (row-wise 2-D stores
                        # avoid any leading-dim split reshape of the value).
                        pi, ki = (u + pn) % Qn, (u + pn) // Qn
                        pj, kj = (v + pn) % Qn, (v + pn) // Qn
                        dst = bufs[l]
                        for m in range(nH):
                            dst[pi * Qn + pj, ki + m, kj:kj + nW, :] = (
                                z[m * nW:(m + 1) * nW, :].astype(dst.dtype))

    return kernel


def conv_encoder_forward(x_nchw, params, conv_layers):
    """x_nchw: (N,C,H,W); params: [(weight (O,C,KH,KW), bias (O,)), ...]."""
    N, C0, H, W = x_nchw.shape
    plans = _plan_layers(conv_layers, H, W)
    p0 = plans[0]
    Q0, hq0, wq0, pad0 = p0["Q"], p0["hq"], p0["wq"], p0["p"]

    # ---- one-off glue (1x input traffic): NCHW->NHWC, spatial pad, polyphase
    # split by the cumulative stride Q0, bf16 cast ----------------------------
    x = jnp.transpose(x_nchw, (0, 2, 3, 1))
    x = jnp.pad(x, ((0, 0),
                    (pad0, Q0 * hq0 - H - pad0),
                    (pad0, Q0 * wq0 - W - pad0),
                    (0, 0)))
    x = x.reshape(N, hq0, Q0, wq0, Q0, C0)
    x = jnp.transpose(x, (0, 2, 4, 1, 3, 5))          # (N, pi, pj, i, j, c)
    x = x.reshape(N * Q0 * Q0, hq0, wq0, C0).astype(jnp.bfloat16)

    inputs = [x]
    in_specs = [pl.BlockSpec((Q0 * Q0, hq0, wq0, C0), lambda n: (n, 0, 0, 0))]
    for (w, b), cfg in zip(params, plans):
        k, cin, cout = cfg["k"], cfg["cin"], cfg["cout"]
        w_taps = jnp.transpose(w, (2, 3, 1, 0)).reshape(k * k, cin, cout)
        inputs.append(w_taps.astype(jnp.bfloat16))
        in_specs.append(pl.BlockSpec((k * k, cin, cout), lambda n: (0, 0, 0)))
        inputs.append(b.reshape(1, cout).astype(jnp.float32))
        in_specs.append(pl.BlockSpec((1, cout), lambda n: (0, 0)))

    scratch_shapes = [
        pltpu.VMEM((cfg["Q"] * cfg["Q"], cfg["hq"], cfg["wq"], cfg["cin"]),
                   jnp.bfloat16)
        for cfg in plans[1:]
    ]

    last = plans[-1]
    Mo, Co = last["ho"] * last["wo"], last["cout"]

    # ---- VMEM budget check (block = one image; in/out double-buffered) ------
    est = 2 * (Q0 * Q0 * hq0 * wq0 * C0 * 2 + Mo * Co * 4)
    est += sum(2 * (cfg["k"] ** 2 * cfg["cin"] * cfg["cout"] * 2
                    + cfg["cout"] * 4) for cfg in plans)
    est += sum(cfg["Q"] ** 2 * cfg["hq"] * cfg["wq"] * cfg["cin"] * 2
               for cfg in plans[1:])
    assert est < _VMEM_BUDGET, (
        f"per-image VMEM estimate {est} B exceeds budget; tile the H axis")
    # TODO(synk): for large images, add an output-row grid axis (slice halos
    # from a full-H input block with pl.ds) instead of whole-image blocks.

    out = pl.pallas_call(
        _make_encoder_kernel(plans),
        out_shape=jax.ShapeDtypeStruct((N, Mo, Co), jnp.float32),
        grid_spec=pltpu.PrefetchScalarGridSpec(
            num_scalar_prefetch=0,
            grid=(N,),                      # batch-parallel (v7x: 2 TCs)
            in_specs=in_specs,
            out_specs=pl.BlockSpec((1, Mo, Co), lambda n: (n, 0, 0)),
            scratch_shapes=scratch_shapes,
        ),
        compiler_params=pltpu.CompilerParams(
            dimension_semantics=("parallel",),
            vmem_limit_bytes=_VMEM_LIMIT),
    )(*inputs)

    # (N, Ho*Wo, C) -> (N, C, Ho*Wo) -> (N, C*Ho*Wo)  == torch.flatten(NCHW, 1)
    return jnp.transpose(out, (0, 2, 1)).reshape(N, -1)


class ConvEncoderPallas:
    """Mirrors ConvEncoder(conv_layers): [Conv2d(*p) -> ReLU]*, then flatten."""

    def __init__(self, conv_layers, key):
        self.conv_layers = [tuple(p) for p in conv_layers]
        self.params = []
        for (cin, cout, k, stride, pad) in self.conv_layers:
            key, wk, bk = jax.random.split(key, 3)
            bound = 1.0 / np.sqrt(cin * k * k)   # PyTorch default init bound
            w = jax.random.uniform(wk, (cout, cin, k, k), jnp.float32,
                                   -bound, bound)
            b = jax.random.uniform(bk, (cout,), jnp.float32, -bound, bound)
            self.params.append((w, b))

    def __call__(self, x_nchw):
        return conv_encoder_forward(x_nchw, self.params, self.conv_layers)


def reference_forward(model, x_nchw):
    """Pure-JAX f32 reference with exact PyTorch conv semantics (NCHW/OIHW)."""
    x = x_nchw
    for (w, b), (_, _, _, stride, pad) in zip(model.params, model.conv_layers):
        y = jax.lax.conv_general_dilated(
            x, w, window_strides=(stride, stride),
            padding=((pad, pad), (pad, pad)),
            dimension_numbers=("NCHW", "OIHW", "NCHW"))
        x = jnp.maximum(y + b.reshape(1, -1, 1, 1), 0.0)
    return x.reshape(x.shape[0], -1)


if __name__ == "__main__":
    key = jax.random.PRNGKey(0)
    key, xk, pk = jax.random.split(key, 3)

    # (in_ch, out_ch, kernel, stride, padding) per Conv2d(*params)
    conv_layers = [(4, 8, 3, 1, 1), (8, 16, 3, 2, 1)]
    x = jax.random.normal(xk, (2, 4, 16, 16), jnp.float32)   # NCHW like PyTorch

    model = ConvEncoderPallas(conv_layers, pk)
    fwd = jax.jit(lambda inp: model(inp))
    out = jax.block_until_ready(fwd(x))

    # bf16 MXU operands (f32 accumulate) vs. the f32 reference -> loosened tol.
    ref = reference_forward(model, x)
    np.testing.assert_allclose(np.asarray(out), np.asarray(ref),
                               atol=5e-2, rtol=5e-2)
    assert out.shape == (2, 16 * 8 * 8)
    print("KERNEL_OK")
</pallas_src>

<mosaic_0001>
module attributes {stable_mosaic.version = 11 : i64} {
  func.func @kernel(%arg0: i32, %arg1: memref<4x9x9x4xbf16, #tpu.memory_space<vmem>>, %arg2: memref<9x4x8xbf16, #tpu.memory_space<vmem>>, %arg3: memref<1x8xf32, #tpu.memory_space<vmem>>, %arg4: memref<9x8x16xbf16, #tpu.memory_space<vmem>>, %arg5: memref<1x16xf32, #tpu.memory_space<vmem>>, %arg6: memref<1x64x16xf32, #tpu.memory_space<vmem>>, %arg7: memref<4x9x9x8xbf16, #tpu.memory_space<vmem>>) attributes {dimension_semantics = [#tpu.dimension_semantics<parallel>], iteration_bounds = array<i64: 2>, scalar_prefetch = 0 : i64, scratch_operands = 1 : i64, tpu.core_type = #tpu.core_type<tc>, window_params = [{transform_indices = @transform_0, window_bounds = array<i64: 4, 9, 9, 4>}, {pipeline_mode = #tpu.pipeline_mode<synchronous>, transform_indices = @transform_1, window_bounds = array<i64: 9, 4, 8>}, {pipeline_mode = #tpu.pipeline_mode<synchronous>, transform_indices = @transform_2, window_bounds = array<i64: 1, 8>}, {pipeline_mode = #tpu.pipeline_mode<synchronous>, transform_indices = @transform_3, window_bounds = array<i64: 9, 8, 16>}, {pipeline_mode = #tpu.pipeline_mode<synchronous>, transform_indices = @transform_4, window_bounds = array<i64: 1, 16>}, {transform_indices = @transform_5, window_bounds = array<i64: 1, 64, 16>}]} {
    %cst = arith.constant 0.000000e+00 : bf16
    %0 = vector.broadcast %cst : bf16 to vector<4x9x9x8xbf16>
    %c0 = arith.constant 0 : index
    %c0_0 = arith.constant 0 : index
    %c0_1 = arith.constant 0 : index
    %c0_2 = arith.constant 0 : index
    %1 = vector.load %arg7[%c0, %c0_0, %c0_1, %c0_2] : memref<4x9x9x8xbf16, #tpu.memory_space<vmem>>, vector<4x9x9x8xbf16>
    tpu.vector_store %arg7[%c0, %c0_0, %c0_1, %c0_2], %0 {strides = array<i32>} : memref<4x9x9x8xbf16, #tpu.memory_space<vmem>>, vector<4x9x9x8xbf16>,
    %c0_3 = arith.constant 0 : index
    %c0_4 = arith.constant 0 : index
    %2 = vector.load %arg3[%c0_3, %c0_4] : memref<1x8xf32, #tpu.memory_space<vmem>>, vector<1x8xf32>
    %cst_5 = arith.constant 0.000000e+00 : f32
    %3 = vector.broadcast %cst_5 : f32 to vector<64x8xf32>
    %4 = vector.broadcast %2 : vector<1x8xf32> to vector<64x8xf32>
    %5 = arith.addf %3, %4 : vector<64x8xf32>
    %c0_6 = arith.constant 0 : index
    %c0_7 = arith.constant 0 : index
    %c0_8 = arith.constant 0 : index
    %c0_9 = arith.constant 0 : index
    %6 = vector.load %arg1[%c0_6, %c0_7, %c0_8, %c0_9] : memref<4x9x9x4xbf16, #tpu.memory_space<vmem>>, vector<1x8x8x4xbf16>
    %7 = vector.shape_cast %6 : vector<1x8x8x4xbf16> to vector<8x8x4xbf16>
    %8 = vector.shape_cast %7 : vector<8x8x4xbf16> to vector<64x4xbf16>
    %c0_10 = arith.constant 0 : index
    %c0_11 = arith.constant 0 : index
    %c0_12 = arith.constant 0 : index
    %9 = vector.load %arg2[%c0_10, %c0_11, %c0_12] : memref<9x4x8xbf16, #tpu.memory_space<vmem>>, vector<1x4x8xbf16>
    %10 = vector.shape_cast %9 : vector<1x4x8xbf16> to vector<4x8xbf16>
    %cst_13 = arith.constant dense<0.000000e+00> : vector<64x8xf32>
    %11 = tpu.matmul %8, %10, %cst_13 {dimension_numbers = #tpu.dot_dimension_numbers<[1], [0], [0], [1], [0, 0, 1, 1], [], []>} : vector<64x4xbf16>, vector<4x8xbf16>, vector<64x8xf32> -> vector<64x8xf32>
    %12 = arith.addf %5, %11 : vector<64x8xf32>
    %c1 = arith.constant 1 : index
    %c0_14 = arith.constant 0 : index
    %c0_15 = arith.constant 0 : index
    %c0_16 = arith.constant 0 : index
    %13 = vector.load %arg1[%c1, %c0_14, %c0_15, %c0_16] : memref<4x9x9x4xbf16, #tpu.memory_space<vmem>>, vector<1x8x8x4xbf16>
    %14 = vector.shape_cast %13 : vector<1x8x8x4xbf16> to vector<8x8x4xbf16>
    %15 = vector.shape_cast %14 : vector<8x8x4xbf16> to vector<64x4xbf16>
    %c1_17 = arith.constant 1 : index
    %c0_18 = arith.constant 0 : index
    %c0_19 = arith.constant 0 : index
    %16 = vector.load %arg2[%c1_17, %c0_18, %c0_19] : memref<9x4x8xbf16, #tpu.memory_space<vmem>>, vector<1x4x8xbf16>
    %17 = vector.shape_cast %16 : vector<1x4x8xbf16> to vector<4x8xbf16>
    %cst_20 = arith.constant dense<0.000000e+00> : vector<64x8xf32>
    %18 = tpu.matmul %15, %17, %cst_20 {dimension_numbers = #tpu.dot_dimension_numbers<[1], [0], [0], [1], [0, 0, 1, 1], [], []>} : vector<64x4xbf16>, vector<4x8xbf16>, vector<64x8xf32> -> vector<64x8xf32>
    %19 = arith.addf %12, %18 : vector<64x8xf32>
    %c0_21 = arith.constant 0 : index
    %c0_22 = arith.constant 0 : index
    %c1_23 = arith.constant 1 : index
    %c0_24 = arith.constant 0 : index
    %20 = vector.load %arg1[%c0_21, %c0_22, %c1_23, %c0_24] : memref<4x9x9x4xbf16, #tpu.memory_space<vmem>>, vector<1x8x8x4xbf16>
    %21 = vector.shape_cast %20 : vector<1x8x8x4xbf16> to vector<8x8x4xbf16>
    %22 = vector.shape_cast %21 : vector<8x8x4xbf16> to vector<64x4xbf16>
    %c2 = arith.constant 2 : index
    %c0_25 = arith.constant 0 : index
    %c0_26 = arith.constant 0 : index
    %23 = vector.load %arg2[%c2, %c0_25, %c0_26] : memref<9x4x8xbf16, #tpu.memory_space<vmem>>, vector<1x4x8xbf16>
    %24 = vector.shape_cast %23 : vector<1x4x8xbf16> to vector<4x8xbf16>
    %cst_27 = arith.constant dense<0.000000e+00> : vector<64x8xf32>
    %25 = tpu.matmul %22, %24, %cst_27 {dimension_numbers = #tpu.dot_dimension_numbers<[1], [0], [0], [1], [0, 0, 1, 1], [], []>} : vector<64x4xbf16>, vector<4x8xbf16>, vector<64x8xf32> -> vector<64x8xf32>
    %26 = arith.addf %19, %25 : vector<64x8xf32>
    %c2_28 = arith.constant 2 : index
    %c0_29 = arith.constant 0 : index
    %c0_30 = arith.constant 0 : index
    %c0_31 = arith.constant 0 : index
    %27 = vector.load %arg1[%c2_28, %c0_29, %c0_30, %c0_31] : memref<4x9x9x4xbf16, #tpu.memory_space<vmem>>, vector<1x8x8x4xbf16>
    %28 = vector.shape_cast %27 : vector<1x8x8x4xbf16> to vector<8x8x4xbf16>
    %29 = vector.shape_cast %28 : vector<8x8x4xbf16> to vector<64x4xbf16>
    %c3 = arith.constant 3 : index
    %c0_32 = arith.constant 0 : index
    %c0_33 = arith.constant 0 : index
    %30 = vector.load %arg2[%c3, %c0_32, %c0_33] : memref<9x4x8xbf16, #tpu.memory_space<vmem>>, vector<1x4x8xbf16>
    %31 = vector.shape_cast %30 : vector<1x4x8xbf16> to vector<4x8xbf16>
    %cst_34 = arith.constant dense<0.000000e+00> : vector<64x8xf32>
    %32 = tpu.matmul %29, %31, %cst_34 {dimension_numbers = #tpu.dot_dimension_numbers<[1], [0], [0], [1], [0, 0, 1, 1], [], []>} : vector<64x4xbf16>, vector<4x8xbf16>, vector<64x8xf32> -> vector<64x8xf32>
    %33 = arith.addf %26, %32 : vector<64x8xf32>
    %c3_35 = arith.constant 3 : index
    %c0_36 = arith.constant 0 : index
    %c0_37 = arith.constant 0 : index
    %c0_38 = arith.constant 0 : index
    %34 = vector.load %arg1[%c3_35, %c0_36, %c0_37, %c0_38] : memref<4x9x9x4xbf16, #tpu.memory_space<vmem>>, vector<1x8x8x4xbf16>
    %35 = vector.shape_cast %34 : vector<1x8x8x4xbf16> to vector<8x8x4xbf16>
    %36 = vector.shape_cast %35 : vector<8x8x4xbf16> to vector<64x4xbf16>
    %c4 = arith.constant 4 : index
    %c0_39 = arith.constant 0 : index
    %c0_40 = arith.constant 0 : index
    %37 = vector.load %arg2[%c4, %c0_39, %c0_40] : memref<9x4x8xbf16, #tpu.memory_space<vmem>>, vector<1x4x8xbf16>
    %38 = vector.shape_cast %37 : vector<1x4x8xbf16> to vector<4x8xbf16>
    %cst_41 = arith.constant dense<0.000000e+00> : vector<64x8xf32>
    %39 = tpu.matmul %36, %38, %cst_41 {dimension_numbers = #tpu.dot_dimension_numbers<[1], [0], [0], [1], [0, 0, 1, 1], [], []>} : vector<64x4xbf16>, vector<4x8xbf16>, vector<64x8xf32> -> vector<64x8xf32>
    %40 = arith.addf %33, %39 : vector<64x8xf32>
    %c2_42 = arith.constant 2 : index
    %c0_43 = arith.constant 0 : index
    %c1_44 = arith.constant 1 : index
    %c0_45 = arith.constant 0 : index
    %41 = vector.load %arg1[%c2_42, %c0_43, %c1_44, %c0_45] : memref<4x9x9x4xbf16, #tpu.memory_space<vmem>>, vector<1x8x8x4xbf16>
    %42 = vector.shape_cast %41 : vector<1x8x8x4xbf16> to vector<8x8x4xbf16>
    %43 = vector.shape_cast %42 : vector<8x8x4xbf16> to vector<64x4xbf16>
    %c5 = arith.constant 5 : index
    %c0_46 = arith.constant 0 : index
    %c0_47 = arith.constant 0 : index
    %44 = vector.load %arg2[%c5, %c0_46, %c0_47] : memref<9x4x8xbf16, #tpu.memory_space<vmem>>, vector<1x4x8xbf16>
    %45 = vector.shape_cast %44 : vector<1x4x8xbf16> to vector<4x8xbf16>
    %cst_48 = arith.constant dense<0.000000e+00> : vector<64x8xf32>
    %46 = tpu.matmul %43, %45, %cst_48 {dimension_numbers = #tpu.dot_dimension_numbers<[1], [0], [0], [1], [0, 0, 1, 1], [], []>} : vector<64x4xbf16>, vector<4x8xbf16>, vector<64x8xf32> -> vector<64x8xf32>
    %47 = arith.addf %40, %46 : vector<64x8xf32>
    %c0_49 = arith.constant 0 : index
    %c1_50 = arith.constant 1 : index
    %c0_51 = arith.constant 0 : index
    %c0_52 = arith.constant 0 : index
    %48 = vector.load %arg1[%c0_49, %c1_50, %c0_51, %c0_52] : memref<4x9x9x4xbf16, #tpu.memory_space<vmem>>, vector<1x8x8x4xbf16>
    %49 = vector.shape_cast %48 : vector<1x8x8x4xbf16> to vector<8x8x4xbf16>
    %50 = vector.shape_cast %49 : vector<8x8x4xbf16> to vector<64x4xbf16>
    %c6 = arith.constant 6 : index
    %c0_53 = arith.constant 0 : index
    %c0_54 = arith.constant 0 : index
    %51 = vector.load %arg2[%c6, %c0_53, %c0_54] : memref<9x4x8xbf16, #tpu.memory_space<vmem>>, vector<1x4x8xbf16>
    %52 = vector.shape_cast %51 : vector<1x4x8xbf16> to vector<4x8xbf16>
    %cst_55 = arith.constant dense<0.000000e+00> : vector<64x8xf32>
    %53 = tpu.matmul %50, %52, %cst_55 {dimension_numbers = #tpu.dot_dimension_numbers<[1], [0], [0], [1], [0, 0, 1, 1], [], []>} : vector<64x4xbf16>, vector<4x8xbf16>, vector<64x8xf32> -> vector<64x8xf32>
    %54 = arith.addf %47, %53 : vector<64x8xf32>
    %c1_56 = arith.constant 1 : index
    %c1_57 = arith.constant 1 : index
    %c0_58 = arith.constant 0 : index
    %c0_59 = arith.constant 0 : index
    %55 = vector.load %arg1[%c1_56, %c1_57, %c0_58, %c0_59] : memref<4x9x9x4xbf16, #tpu.memory_space<vmem>>, vector<1x8x8x4xbf16>
    %56 = vector.shape_cast %55 : vector<1x8x8x4xbf16> to vector<8x8x4xbf16>
    %57 = vector.shape_cast %56 : vector<8x8x4xbf16> to vector<64x4xbf16>
    %c7 = arith.constant 7 : index
    %c0_60 = arith.constant 0 : index
    %c0_61 = arith.constant 0 : index
    %58 = vector.load %arg2[%c7, %c0_60, %c0_61] : memref<9x4x8xbf16, #tpu.memory_space<vmem>>, vector<1x4x8xbf16>
    %59 = vector.shape_cast %58 : vector<1x4x8xbf16> to vector<4x8xbf16>
    %cst_62 = arith.constant dense<0.000000e+00> : vector<64x8xf32>
    %60 = tpu.matmul %57, %59, %cst_62 {dimension_numbers = #tpu.dot_dimension_numbers<[1], [0], [0], [1], [0, 0, 1, 1], [], []>} : vector<64x4xbf16>, vector<4x8xbf16>, vector<64x8xf32> -> vector<64x8xf32>
    %61 = arith.addf %54, %60 : vector<64x8xf32>
    %c0_63 = arith.constant 0 : index
    %c1_64 = arith.constant 1 : index
    %c1_65 = arith.constant 1 : index
    %c0_66 = arith.constant 0 : index
    %62 = vector.load %arg1[%c0_63, %c1_64, %c1_65, %c0_66] : memref<4x9x9x4xbf16, #tpu.memory_space<vmem>>, vector<1x8x8x4xbf16>
    %63 = vector.shape_cast %62 : vector<1x8x8x4xbf16> to vector<8x8x4xbf16>
    %64 = vector.shape_cast %63 : vector<8x8x4xbf16> to vector<64x4xbf16>
    %c8 = arith.constant 8 : index
    %c0_67 = arith.constant 0 : index
    %c0_68 = arith.constant 0 : index
    %65 = vector.load %arg2[%c8, %c0_67, %c0_68] : memref<9x4x8xbf16, #tpu.memory_space<vmem>>, vector<1x4x8xbf16>
    %66 = vector.shape_cast %65 : vector<1x4x8xbf16> to vector<4x8xbf16>
    %cst_69 = arith.constant dense<0.000000e+00> : vector<64x8xf32>
    %67 = tpu.matmul %64, %66, %cst_69 {dimension_numbers = #tpu.dot_dimension_numbers<[1], [0], [0], [1], [0, 0, 1, 1], [], []>} : vector<64x4xbf16>, vector<4x8xbf16>, vector<64x8xf32> -> vector<64x8xf32>
    %68 = arith.addf %61, %67 : vector<64x8xf32>
    %cst_70 = arith.constant 0.000000e+00 : f32
    %69 = vector.broadcast %cst_70 : f32 to vector<64x8xf32>
    %70 = arith.maximumf %68, %69 : vector<64x8xf32>
    %71 = vector.extract_strided_slice %70 {offsets = [0, 0], sizes = [8, 8], strides = [1, 1]} : vector<64x8xf32> to vector<8x8xf32>
    %72 = arith.truncf %71 : vector<8x8xf32> to vector<8x8xbf16>
    %c3_71 = arith.constant 3 : index
    %c0_72 = arith.constant 0 : index
    %c0_73 = arith.constant 0 : index
    %c0_74 = arith.constant 0 : index
    %73 = vector.load %arg7[%c3_71, %c0_72, %c0_73, %c0_74] : memref<4x9x9x8xbf16, #tpu.memory_space<vmem>>, vector<1x1x8x8xbf16>
    %74 = vector.shape_cast %73 : vector<1x1x8x8xbf16> to vector<8x8xbf16>
    %75 = vector.shape_cast %72 : vector<8x8xbf16> to vector<1x1x8x8xbf16>
    tpu.vector_store %arg7[%c3_71, %c0_72, %c0_73, %c0_74], %75 {strides = array<i32>} : memref<4x9x9x8xbf16, #tpu.memory_space<vmem>>, vector<1x1x8x8xbf16>,
    %76 = vector.extract_strided_slice %70 {offsets = [8, 0], sizes = [8, 8], strides = [1, 1]} : vector<64x8xf32> to vector<8x8xf32>
    %77 = arith.truncf %76 : vector<8x8xf32> to vector<8x8xbf16>
    %c3_75 = arith.constant 3 : index
    %c1_76 = arith.constant 1 : index
    %c0_77 = arith.constant 0 : index
    %c0_78 = arith.constant 0 : index
    %78 = vector.load %arg7[%c3_75, %c1_76, %c0_77, %c0_78] : memref<4x9x9x8xbf16, #tpu.memory_space<vmem>>, vector<1x1x8x8xbf16>
    %79 = vector.shape_cast %78 : vector<1x1x8x8xbf16> to vector<8x8xbf16>
    %80 = vector.shape_cast %77 : vector<8x8xbf16> to vector<1x1x8x8xbf16>
    tpu.vector_store %arg7[%c3_75, %c1_76, %c0_77, %c0_78], %80 {strides = array<i32>} : memref<4x9x9x8xbf16, #tpu.memory_space<vmem>>, vector<1x1x8x8xbf16>,
    %81 = vector.extract_strided_slice %70 {offsets = [16, 0], sizes = [8, 8], strides = [1, 1]} : vector<64x8xf32> to vector<8x8xf32>
    %82 = arith.truncf %81 : vector<8x8xf32> to vector<8x8xbf16>
    %c3_79 = arith.constant 3 : index
    %c2_80 = arith.constant 2 : index
    %c0_81 = arith.constant 0 : index
    %c0_82 = arith.constant 0 : index
    %83 = vector.load %arg7[%c3_79, %c2_80, %c0_81, %c0_82] : memref<4x9x9x8xbf16, #tpu.memory_space<vmem>>, vector<1x1x8x8xbf16>
    %84 = vector.shape_cast %83 : vector<1x1x8x8xbf16> to vector<8x8xbf16>
    %85 = vector.shape_cast %82 : vector<8x8xbf16> to vector<1x1x8x8xbf16>
    tpu.vector_store %arg7[%c3_79, %c2_80, %c0_81, %c0_82], %85 {strides = array<i32>} : memref<4x9x9x8xbf16, #tpu.memory_space<vmem>>, vector<1x1x8x8xbf16>,
    %86 = vector.extract_strided_slice %70 {offsets = [24, 0], sizes = [8, 8], strides = [1, 1]} : vector<64x8xf32> to vector<8x8xf32>
    %87 = arith.truncf %86 : vector<8x8xf32> to vector<8x8xbf16>
    %c3_83 = arith.constant 3 : index
    %c3_84 = arith.constant 3 : index
    %c0_85 = arith.constant 0 : index
    %c0_86 = arith.constant 0 : index
    %88 = vector.load %arg7[%c3_83, %c3_84, %c0_85, %c0_86] : memref<4x9x9x8xbf16, #tpu.memory_space<vmem>>, vector<1x1x8x8xbf16>
    %89 = vector.shape_cast %88 : vector<1x1x8x8xbf16> to vector<8x8xbf16>
    %90 = vector.shape_cast %87 : vector<8x8xbf16> to vector<1x1x8x8xbf16>
    tpu.vector_store %arg7[%c3_83, %c3_84, %c0_85, %c0_86], %90 {strides = array<i32>} : memref<4x9x9x8xbf16, #tpu.memory_space<vmem>>, vector<1x1x8x8xbf16>,
    %91 = vector.extract_strided_slice %70 {offsets = [32, 0], sizes = [8, 8], strides = [1, 1]} : vector<64x8xf32> to vector<8x8xf32>
    %92 = arith.truncf %91 : vector<8x8xf32> to vector<8x8xbf16>
    %c3_87 = arith.constant 3 : index
    %c4_88 = arith.constant 4 : index
    %c0_89 = arith.constant 0 : index
    %c0_90 = arith.constant 0 : index
    %93 = vector.load %arg7[%c3_87, %c4_88, %c0_89, %c0_90] : memref<4x9x9x8xbf16, #tpu.memory_space<vmem>>, vector<1x1x8x8xbf16>
    %94 = vector.shape_cast %93 : vector<1x1x8x8xbf16> to vector<8x8xbf16>
    %95 = vector.shape_cast %92 : vector<8x8xbf16> to vector<1x1x8x8xbf16>
    tpu.vector_store %arg7[%c3_87, %c4_88, %c0_89, %c0_90], %95 {strides = array<i32>} : memref<4x9x9x8xbf16, #tpu.memory_space<vmem>>, vector<1x1x8x8xbf16>,
    %96 = vector.extract_strided_slice %70 {offsets = [40, 0], sizes = [8, 8], strides = [1, 1]} : vector<64x8xf32> to vector<8x8xf32>
    %97 = arith.truncf %96 : vector<8x8xf32> to vector<8x8xbf16>
    %c3_91 = arith.constant 3 : index
    %c5_92 = arith.constant 5 : index
    %c0_93 = arith.constant 0 : index
    %c0_94 = arith.constant 0 : index
    %98 = vector.load %arg7[%c3_91, %c5_92, %c0_93, %c0_94] : memref<4x9x9x8xbf16, #tpu.memory_space<vmem>>, vector<1x1x8x8xbf16>
    %99 = vector.shape_cast %98 : vector<1x1x8x8xbf16> to vector<8x8xbf16>
    %100 = vector.shape_cast %97 : vector<8x8xbf16> to vector<1x1x8x8xbf16>
    tpu.vector_store %arg7[%c3_91, %c5_92, %c0_93, %c0_94], %100 {strides = array<i32>} : memref<4x9x9x8xbf16, #tpu.memory_space<vmem>>, vector<1x1x8x8xbf16>,
    %101 = vector.extract_strided_slice %70 {offsets = [48, 0], sizes = [8, 8], strides = [1, 1]} : vector<64x8xf32> to vector<8x8xf32>
    %102 = arith.truncf %101 : vector<8x8xf32> to vector<8x8xbf16>
    %c3_95 = arith.constant 3 : index
    %c6_96 = arith.constant 6 : index
    %c0_97 = arith.constant 0 : index
    %c0_98 = arith.constant 0 : index
    %103 = vector.load %arg7[%c3_95, %c6_96, %c0_97, %c0_98] : memref<4x9x9x8xbf16, #tpu.memory_space<vmem>>, vector<1x1x8x8xbf16>
    %104 = vector.shape_cast %103 : vector<1x1x8x8xbf16> to vector<8x8xbf16>
    %105 = vector.shape_cast %102 : vector<8x8xbf16> to vector<1x1x8x8xbf16>
    tpu.vector_store %arg7[%c3_95, %c6_96, %c0_97, %c0_98], %105 {strides = array<i32>} : memref<4x9x9x8xbf16, #tpu.memory_space<vmem>>, vector<1x1x8x8xbf16>,
    %106 = vector.extract_strided_slice %70 {offsets = [56, 0], sizes = [8, 8], strides = [1, 1]} : vector<64x8xf32> to vector<8x8xf32>
    %107 = arith.truncf %106 : vector<8x8xf32> to vector<8x8xbf16>
    %c3_99 = arith.constant 3 : index
    %c7_100 = arith.constant 7 : index
    %c0_101 = arith.constant 0 : index
    %c0_102 = arith.constant 0 : index
    %108 = vector.load %arg7[%c3_99, %c7_100, %c0_101, %c0_102] : memref<4x9x9x8xbf16, #tpu.memory_space<vmem>>, vector<1x1x8x8xbf16>
    %109 = vector.shape_cast %108 : vector<1x1x8x8xbf16> to vector<8x8xbf16>
    %110 = vector.shape_cast %107 : vector<8x8xbf16> to vector<1x1x8x8xbf16>
    tpu.vector_store %arg7[%c3_99, %c7_100, %c0_101, %c0_102], %110 {strides = array<i32>} : memref<4x9x9x8xbf16, #tpu.memory_space<vmem>>, vector<1x1x8x8xbf16>,
    %cst_103 = arith.constant 0.000000e+00 : f32
    %111 = vector.broadcast %cst_103 : f32 to vector<64x8xf32>
    %112 = vector.broadcast %2 : vector<1x8xf32> to vector<64x8xf32>
    %113 = arith.addf %111, %112 : vector<64x8xf32>
    %c1_104 = arith.constant 1 : index
    %c0_105 = arith.constant 0 : index
    %c0_106 = arith.constant 0 : index
    %c0_107 = arith.constant 0 : index
    %114 = vector.load %arg1[%c1_104, %c0_105, %c0_106, %c0_107] : memref<4x9x9x4xbf16, #tpu.memory_space<vmem>>, vector<1x8x8x4xbf16>
    %115 = vector.shape_cast %114 : vector<1x8x8x4xbf16> to vector<8x8x4xbf16>
    %116 = vector.shape_cast %115 : vector<8x8x4xbf16> to vector<64x4xbf16>
    %c0_108 = arith.constant 0 : index
    %c0_109 = arith.constant 0 : index
    %c0_110 = arith.constant 0 : index
    %117 = vector.load %arg2[%c0_108, %c0_109, %c0_110] : memref<9x4x8xbf16, #tpu.memory_space<vmem>>, vector<1x4x8xbf16>
    %118 = vector.shape_cast %117 : vector<1x4x8xbf16> to vector<4x8xbf16>
    %cst_111 = arith.constant dense<0.000000e+00> : vector<64x8xf32>
    %119 = tpu.matmul %116, %118, %cst_111 {dimension_numbers = #tpu.dot_dimension_numbers<[1], [0], [0], [1], [0, 0, 1, 1], [], []>} : vector<64x4xbf16>, vector<4x8xbf16>, vector<64x8xf32> -> vector<64x8xf32>
    %120 = arith.addf %113, %119 : vector<64x8xf32>
    %c0_112 = arith.constant 0 : index
    %c0_113 = arith.constant 0 : index
    %c1_114 = arith.constant 1 : index
    %c0_115 = arith.constant 0 : index
    %121 = vector.load %arg1[%c0_112, %c0_113, %c1_114, %c0_115] : memref<4x9x9x4xbf16, #tpu.memory_space<vmem>>, vector<1x8x8x4xbf16>
    %122 = vector.shape_cast %121 : vector<1x8x8x4xbf16> to vector<8x8x4xbf16>
    %123 = vector.shape_cast %122 : vector<8x8x4xbf16> to vector<64x4xbf16>
    %c1_116 = arith.constant 1 : index
    %c0_117 = arith.constant 0 : index
    %c0_118 = arith.constant 0 : index
    %124 = vector.load %arg2[%c1_116, %c0_117, %c0_118] : memref<9x4x8xbf16, #tpu.memory_space<vmem>>, vector<1x4x8xbf16>
    %125 = vector.shape_cast %124 : vector<1x4x8xbf16> to vector<4x8xbf16>
    %cst_119 = arith.constant dense<0.000000e+00> : vector<64x8xf32>
    %126 = tpu.matmul %123, %125, %cst_119 {dimension_numbers = #tpu.dot_dimension_numbers<[1], [0], [0], [1], [0, 0, 1, 1], [], []>} : vector<64x4xbf16>, vector<4x8xbf16>, vector<64x8xf32> -> vector<64x8xf32>
    %127 = arith.addf %120, %126 : vector<64x8xf32>
    %c1_120 = arith.constant 1 : index
    %c0_121 = arith.constant 0 : index
    %c1_122 = arith.constant 1 : index
    %c0_123 = arith.constant 0 : index
    %128 = vector.load %arg1[%c1_120, %c0_121, %c1_122, %c0_123] : memref<4x9x9x4xbf16, #tpu.memory_space<vmem>>, vector<1x8x8x4xbf16>
    %129 = vector.shape_cast %128 : vector<1x8x8x4xbf16> to vector<8x8x4xbf16>
    %130 = vector.shape_cast %129 : vector<8x8x4xbf16> to vector<64x4xbf16>
    %c2_124 = arith.constant 2 : index
    %c0_125 = arith.constant 0 : index
    %c0_126 = arith.constant 0 : index
    %131 = vector.load %arg2[%c2_124, %c0_125, %c0_126] : memref<9x4x8xbf16, #tpu.memory_space<vmem>>, vector<1x4x8xbf16>
    %132 = vector.shape_cast %131 : vector<1x4x8xbf16> to vector<4x8xbf16>
    %cst_127 = arith.constant dense<0.000000e+00> : vector<64x8xf32>
    %133 = tpu.matmul %130, %132, %cst_127 {dimension_numbers = #tpu.dot_dimension_numbers<[1], [0], [0], [1], [0, 0, 1, 1], [], []>} : vector<64x4xbf16>, vector<4x8xbf16>, vector<64x8xf32> -> vector<64x8xf32>
    %134 = arith.addf %127, %133 : vector<64x8xf32>
    %c3_128 = arith.constant 3 : index
    %c0_129 = arith.constant 0 : index
    %c0_130 = arith.constant 0 : index
    %c0_131 = arith.constant 0 : index
    %135 = vector.load %arg1[%c3_128, %c0_129, %c0_130, %c0_131] : memref<4x9x9x4xbf16, #tpu.memory_space<vmem>>, vector<1x8x8x4xbf16>
    %136 = vector.shape_cast %135 : vector<1x8x8x4xbf16> to vector<8x8x4xbf16>
    %137 = vector.shape_cast %136 : vector<8x8x4xbf16> to vector<64x4xbf16>
    %c3_132 = arith.constant 3 : index
    %c0_133 = arith.constant 0 : index
    %c0_134 = arith.constant 0 : index
    %138 = vector.load %arg2[%c3_132, %c0_133, %c0_134] : memref<9x4x8xbf16, #tpu.memory_space<vmem>>, vector<1x4x8xbf16>
    %139 = vector.shape_cast %138 : vector<1x4x8xbf16> to vector<4x8xbf16>
    %cst_135 = arith.constant dense<0.000000e+00> : vector<64x8xf32>
    %140 = tpu.matmul %137, %139, %cst_135 {dimension_numbers = #tpu.dot_dimension_numbers<[1], [0], [0], [1], [0, 0, 1, 1], [], []>} : vector<64x4xbf16>, vector<4x8xbf16>, vector<64x8xf32> -> vector<64x8xf32>
    %141 = arith.addf %134, %140 : vector<64x8xf32>
    %c2_136 = arith.constant 2 : index
    %c0_137 = arith.constant 0 : index
    %c1_138 = arith.constant 1 : index
    %c0_139 = arith.constant 0 : index
    %142 = vector.load %arg1[%c2_136, %c0_137, %c1_138, %c0_139] : memref<4x9x9x4xbf16, #tpu.memory_space<vmem>>, vector<1x8x8x4xbf16>
    %143 = vector.shape_cast %142 : vector<1x8x8x4xbf16> to vector<8x8x4xbf16>
    %144 = vector.shape_cast %143 : vector<8x8x4xbf16> to vector<64x4xbf16>
    %c4_140 = arith.constant 4 : index
    %c0_141 = arith.constant 0 : index
    %c0_142 = arith.constant 0 : index
    %145 = vector.load %arg2[%c4_140, %c0_141, %c0_142] : memref<9x4x8xbf16, #tpu.memory_space<vmem>>, vector<1x4x8xbf16>
    %146 = vector.shape_cast %145 : vector<1x4x8xbf16> to vector<4x8xbf16>
    %cst_143 = arith.constant dense<0.000000e+00> : vector<64x8xf32>
    %147 = tpu.matmul %144, %146, %cst_143 {dimension_numbers = #tpu.dot_dimension_numbers<[1], [0], [0], [1], [0, 0, 1, 1], [], []>} : vector<64x4xbf16>, vector<4x8xbf16>, vector<64x8xf32> -> vector<64x8xf32>
    %148 = arith.addf %141, %147 : vector<64x8xf32>
    %c3_144 = arith.constant 3 : index
    %c0_145 = arith.constant 0 : index
    %c1_146 = arith.constant 1 : index
    %c0_147 = arith.constant 0 : index
    %149 = vector.load %arg1[%c3_144, %c0_145, %c1_146, %c0_147] : memref<4x9x9x4xbf16, #tpu.memory_space<vmem>>, vector<1x8x8x4xbf16>
    %150 = vector.shape_cast %149 : vector<1x8x8x4xbf16> to vector<8x8x4xbf16>
    %151 = vector.shape_cast %150 : vector<8x8x4xbf16> to vector<64x4xbf16>
    %c5_148 = arith.constant 5 : index
    %c0_149 = arith.constant 0 : index
    %c0_150 = arith.constant 0 : index
    %152 = vector.load %arg2[%c5_148, %c0_149, %c0_150] : memref<9x4x8xbf16, #tpu.memory_space<vmem>>, vector<1x4x8xbf16>
    %153 = vector.shape_cast %152 : vector<1x4x8xbf16> to vector<4x8xbf16>
    %cst_151 = arith.constant dense<0.000000e+00> : vector<64x8xf32>
    %154 = tpu.matmul %151, %153, %cst_151 {dimension_numbers = #tpu.dot_dimension_numbers<[1], [0], [0], [1], [0, 0, 1, 1], [], []>} : vector<64x4xbf16>, vector<4x8xbf16>, vector<64x8xf32> -> vector<64x8xf32>
    %155 = arith.addf %148, %154 : vector<64x8xf32>
    %c1_152 = arith.constant 1 : index
    %c1_153 = arith.constant 1 : index
    %c0_154 = arith.constant 0 : index
    %c0_155 = arith.constant 0 : index
    %156 = vector.load %arg1[%c1_152, %c1_153, %c0_154, %c0_155] : memref<4x9x9x4xbf16, #tpu.memory_space<vmem>>, vector<1x8x8x4xbf16>
    %157 = vector.shape_cast %156 : vector<1x8x8x4xbf16> to vector<8x8x4xbf16>
    %158 = vector.shape_cast %157 : vector<8x8x4xbf16> to vector<64x4xbf16>
    %c6_156 = arith.constant 6 : index
    %c0_157 = arith.constant 0 : index
    %c0_158 = arith.constant 0 : index
    %159 = vector.load %arg2[%c6_156, %c0_157, %c0_158] : memref<9x4x8xbf16, #tpu.memory_space<vmem>>, vector<1x4x8xbf16>
    %160 = vector.shape_cast %159 : vector<1x4x8xbf16> to vector<4x8xbf16>
    %cst_159 = arith.constant dense<0.000000e+00> : vector<64x8xf32>
    %161 = tpu.matmul %158, %160, %cst_159 {dimension_numbers = #tpu.dot_dimension_numbers<[1], [0], [0], [1], [0, 0, 1, 1], [], []>} : vector<64x4xbf16>, vector<4x8xbf16>, vector<64x8xf32> -> vector<64x8xf32>
    %162 = arith.addf %155, %161 : vector<64x8xf32>
    %c0_160 = arith.constant 0 : index
    %c1_161 = arith.constant 1 : index
    %c1_162 = arith.constant 1 : index
    %c0_163 = arith.constant 0 : index
    %163 = vector.load %arg1[%c0_160, %c1_161, %c1_162, %c0_163] : memref<4x9x9x4xbf16, #tpu.memory_space<vmem>>, vector<1x8x8x4xbf16>
    %164 = vector.shape_cast %163 : vector<1x8x8x4xbf16> to vector<8x8x4xbf16>
    %165 = vector.shape_cast %164 : vector<8x8x4xbf16> to vector<64x4xbf16>
    %c7_164 = arith.constant 7 : index
    %c0_165 = arith.constant 0 : index
    %c0_166 = arith.constant 0 : index
    %166 = vector.load %arg2[%c7_164, %c0_165, %c0_166] : memref<9x4x8xbf16, #tpu.memory_space<vmem>>, vector<1x4x8xbf16>
    %167 = vector.shape_cast %166 : vector<1x4x8xbf16> to vector<4x8xbf16>
    %cst_167 = arith.constant dense<0.000000e+00> : vector<64x8xf32>
    %168 = tpu.matmul %165, %167, %cst_167 {dimension_numbers = #tpu.dot_dimension_numbers<[1], [0], [0], [1], [0, 0, 1, 1], [], []>} : vector<64x4xbf16>, vector<4x8xbf16>, vector<64x8xf32> -> vector<64x8xf32>
    %169 = arith.addf %162, %168 : vector<64x8xf32>
    %c1_168 = arith.constant 1 : index
    %c1_169 = arith.constant 1 : index
    %c1_170 = arith.constant 1 : index
    %c0_171 = arith.constant 0 : index
    %170 = vector.load %arg1[%c1_168, %c1_169, %c1_170, %c0_171] : memref<4x9x9x4xbf16, #tpu.memory_space<vmem>>, vector<1x8x8x4xbf16>
    %171 = vector.shape_cast %170 : vector<1x8x8x4xbf16> to vector<8x8x4xbf16>
    %172 = vector.shape_cast %171 : vector<8x8x4xbf16> to vector<64x4xbf16>
    %c8_172 = arith.constant 8 : index
    %c0_173 = arith.constant 0 : index
    %c0_174 = arith.constant 0 : index
    %173 = vector.load %arg2[%c8_172, %c0_173, %c0_174] : memref<9x4x8xbf16, #tpu.memory_space<vmem>>, vector<1x4x8xbf16>
    %174 = vector.shape_cast %173 : vector<1x4x8xbf16> to vector<4x8xbf16>
    %cst_175 = arith.constant dense<0.000000e+00> : vector<64x8xf32>
    %175 = tpu.matmul %172, %174, %cst_175 {dimension_numbers = #tpu.dot_dimension_numbers<[1], [0], [0], [1], [0, 0, 1, 1], [], []>} : vector<64x4xbf16>, vector<4x8xbf16>, vector<64x8xf32> -> vector<64x8xf32>
    %176 = arith.addf %169, %175 : vector<64x8xf32>
    %cst_176 = arith.constant 0.000000e+00 : f32
    %177 = vector.broadcast %cst_176 : f32 to vector<64x8xf32>
    %178 = arith.maximumf %176, %177 : vector<64x8xf32>
    %179 = vector.extract_strided_slice %178 {offsets = [0, 0], sizes = [8, 8], strides = [1, 1]} : vector<64x8xf32> to vector<8x8xf32>
    %180 = arith.truncf %179 : vector<8x8xf32> to vector<8x8xbf16>
    %c2_177 = arith.constant 2 : index
    %c0_178 = arith.constant 0 : index
    %c1_179 = arith.constant 1 : index
    %c0_180 = arith.constant 0 : index
    %181 = vector.load %arg7[%c2_177, %c0_178, %c1_179, %c0_180] : memref<4x9x9x8xbf16, #tpu.memory_space<vmem>>, vector<1x1x8x8xbf16>
    %182 = vector.shape_cast %181 : vector<1x1x8x8xbf16> to vector<8x8xbf16>
    %183 = vector.shape_cast %180 : vector<8x8xbf16> to vector<1x1x8x8xbf16>
    tpu.vector_store %arg7[%c2_177, %c0_178, %c1_179, %c0_180], %183 {strides = array<i32>} : memref<4x9x9x8xbf16, #tpu.memory_space<vmem>>, vector<1x1x8x8xbf16>,
    %184 = vector.extract_strided_slice %178 {offsets = [8, 0], sizes = [8, 8], strides = [1, 1]} : vector<64x8xf32> to vector<8x8xf32>
    %185 = arith.truncf %184 : vector<8x8xf32> to vector<8x8xbf16>
    %c2_181 = arith.constant 2 : index
    %c1_182 = arith.constant 1 : index
    %c1_183 = arith.constant 1 : index
    %c0_184 = arith.constant 0 : index
    %186 = vector.load %arg7[%c2_181, %c1_182, %c1_183, %c0_184] : memref<4x9x9x8xbf16, #tpu.memory_space<vmem>>, vector<1x1x8x8xbf16>
    %187 = vector.shape_cast %186 : vector<1x1x8x8xbf16> to vector<8x8xbf16>
    %188 = vector.shape_cast %185 : vector<8x8xbf16> to vector<1x1x8x8xbf16>
    tpu.vector_store %arg7[%c2_181, %c1_182, %c1_183, %c0_184], %188 {strides = array<i32>} : memref<4x9x9x8xbf16, #tpu.memory_space<vmem>>, vector<1x1x8x8xbf16>,
    %189 = vector.extract_strided_slice %178 {offsets = [16, 0], sizes = [8, 8], strides = [1, 1]} : vector<64x8xf32> to vector<8x8xf32>
    %190 = arith.truncf %189 : vector<8x8xf32> to vector<8x8xbf16>
    %c2_185 = arith.constant 2 : index
    %c2_186 = arith.constant 2 : index
    %c1_187 = arith.constant 1 : index
    %c0_188 = arith.constant 0 : index
    %191 = vector.load %arg7[%c2_185, %c2_186, %c1_187, %c0_188] : memref<4x9x9x8xbf16, #tpu.memory_space<vmem>>, vector<1x1x8x8xbf16>
    %192 = vector.shape_cast %191 : vector<1x1x8x8xbf16> to vector<8x8xbf16>
    %193 = vector.shape_cast %190 : vector<8x8xbf16> to vector<1x1x8x8xbf16>
    tpu.vector_store %arg7[%c2_185, %c2_186, %c1_187, %c0_188], %193 {strides = array<i32>} : memref<4x9x9x8xbf16, #tpu.memory_space<vmem>>, vector<1x1x8x8xbf16>,
    %194 = vector.extract_strided_slice %178 {offsets = [24, 0], sizes = [8, 8], strides = [1, 1]} : vector<64x8xf32> to vector<8x8xf32>
    %195 = arith.truncf %194 : vector<8x8xf32> to vector<8x8xbf16>
    %c2_189 = arith.constant 2 : index
    %c3_190 = arith.constant 3 : index
    %c1_191 = arith.constant 1 : index
    %c0_192 = arith.constant 0 : index
    %196 = vector.load %arg7[%c2_189, %c3_190, %c1_191, %c0_192] : memref<4x9x9x8xbf16, #tpu.memory_space<vmem>>, vector<1x1x8x8xbf16>
    %197 = vector.shape_cast %196 : vector<1x1x8x8xbf16> to vector<8x8xbf16>
    %198 = vector.shape_cast %195 : vector<8x8xbf16> to vector<1x1x8x8xbf16>
    tpu.vector_store %arg7[%c2_189, %c3_190, %c1_191, %c0_192], %198 {strides = array<i32>} : memref<4x9x9x8xbf16, #tpu.memory_space<vmem>>, vector<1x1x8x8xbf16>,
    %199 = vector.extract_strided_slice %178 {offsets = [32, 0], sizes = [8, 8], strides = [1, 1]} : vector<64x8xf32> to vector<8x8xf32>
    %200 = arith.truncf %199 : vector<8x8xf32> to vector<8x8xbf16>
    %c2_193 = arith.constant 2 : index
    %c4_194 = arith.constant 4 : index
    %c1_195 = arith.constant 1 : index
    %c0_196 = arith.constant 0 : index
    %201 = vector.load %arg7[%c2_193, %c4_194, %c1_195, %c0_196] : memref<4x9x9x8xbf16, #tpu.memory_space<vmem>>, vector<1x1x8x8xbf16>
    %202 = vector.shape_cast %201 : vector<1x1x8x8xbf16> to vector<8x8xbf16>
    %203 = vector.shape_cast %200 : vector<8x8xbf16> to vector<1x1x8x8xbf16>
    tpu.vector_store %arg7[%c2_193, %c4_194, %c1_195, %c0_196], %203 {strides = array<i32>} : memref<4x9x9x8xbf16, #tpu.memory_space<vmem>>, vector<1x1x8x8xbf16>,
    %204 = vector.extract_strided_slice %178 {offsets = [40, 0], sizes = [8, 8], strides = [1, 1]} : vector<64x8xf32> to vector<8x8xf32>
    %205 = arith.truncf %204 : vector<8x8xf32> to vector<8x8xbf16>
    %c2_197 = arith.constant 2 : index
    %c5_198 = arith.constant 5 : index
    %c1_199 = arith.constant 1 : index
    %c0_200 = arith.constant 0 : index
    %206 = vector.load %arg7[%c2_197, %c5_198, %c1_199, %c0_200] : memref<4x9x9x8xbf16, #tpu.memory_space<vmem>>, vector<1x1x8x8xbf16>
    %207 = vector.shape_cast %206 : vector<1x1x8x8xbf16> to vector<8x8xbf16>
    %208 = vector.shape_cast %205 : vector<8x8xbf16> to vector<1x1x8x8xbf16>
    tpu.vector_store %arg7[%c2_197, %c5_198, %c1_199, %c0_200], %208 {strides = array<i32>} : memref<4x9x9x8xbf16, #tpu.memory_space<vmem>>, vector<1x1x8x8xbf16>,
    %209 = vector.extract_strided_slice %178 {offsets = [48, 0], sizes = [8, 8], strides = [1, 1]} : vector<64x8xf32> to vector<8x8xf32>
    %210 = arith.truncf %209 : vector<8x8xf32> to vector<8x8xbf16>
    %c2_201 = arith.constant 2 : index
    %c6_202 = arith.constant 6 : index
    %c1_203 = arith.constant 1 : index
    %c0_204 = arith.constant 0 : index
    %211 = vector.load %arg7[%c2_201, %c6_202, %c1_203, %c0_204] : memref<4x9x9x8xbf16, #tpu.memory_space<vmem>>, vector<1x1x8x8xbf16>
    %212 = vector.shape_cast %211 : vector<1x1x8x8xbf16> to vector<8x8xbf16>
    %213 = vector.shape_cast %210 : vector<8x8xbf16> to vector<1x1x8x8xbf16>
    tpu.vector_store %arg7[%c2_201, %c6_202, %c1_203, %c0_204], %213 {strides = array<i32>} : memref<4x9x9x8xbf16, #tpu.memory_space<vmem>>, vector<1x1x8x8xbf16>,
    %214 = vector.extract_strided_slice %178 {offsets = [56, 0], sizes = [8, 8], strides = [1, 1]} : vector<64x8xf32> to vector<8x8xf32>
    %215 = arith.truncf %214 : vector<8x8xf32> to vector<8x8xbf16>
    %c2_205 = arith.constant 2 : index
    %c7_206 = arith.constant 7 : index
    %c1_207 = arith.constant 1 : index
    %c0_208 = arith.constant 0 : index
    %216 = vector.load %arg7[%c2_205, %c7_206, %c1_207, %c0_208] : memref<4x9x9x8xbf16, #tpu.memory_space<vmem>>, vector<1x1x8x8xbf16>
    %217 = vector.shape_cast %216 : vector<1x1x8x8xbf16> to vector<8x8xbf16>
    %218 = vector.shape_cast %215 : vector<8x8xbf16> to vector<1x1x8x8xbf16>
    tpu.vector_store %arg7[%c2_205, %c7_206, %c1_207, %c0_208], %218 {strides = array<i32>} : memref<4x9x9x8xbf16, #tpu.memory_space<vmem>>, vector<1x1x8x8xbf16>,
    %cst_209 = arith.constant 0.000000e+00 : f32
    %219 = vector.broadcast %cst_209 : f32 to vector<64x8xf32>
    %220 = vector.broadcast %2 : vector<1x8xf32> to vector<64x8xf32>
    %221 = arith.addf %219, %220 : vector<64x8xf32>
    %c2_210 = arith.constant 2 : index
    %c0_211 = arith.constant 0 : index
    %c0_212 = arith.constant 0 : index
    %c0_213 = arith.constant 0 : index
    %222 = vector.load %arg1[%c2_210, %c0_211, %c0_212, %c0_213] : memref<4x9x9x4xbf16, #tpu.memory_space<vmem>>, vector<1x8x8x4xbf16>
    %223 = vector.shape_cast %222 : vector<1x8x8x4xbf16> to vector<8x8x4xbf16>
    %224 = vector.shape_cast %223 : vector<8x8x4xbf16> to vector<64x4xbf16>
    %c0_214 = arith.constant 0 : index
    %c0_215 = arith.constant 0 : index
    %c0_216 = arith.constant 0 : index
    %225 = vector.load %arg2[%c0_214, %c0_215, %c0_216] : memref<9x4x8xbf16, #tpu.memory_space<vmem>>, vector<1x4x8xbf16>
    %226 = vector.shape_cast %225 : vector<1x4x8xbf16> to vector<4x8xbf16>
    %cst_217 = arith.constant dense<0.000000e+00> : vector<64x8xf32>
    %227 = tpu.matmul %224, %226, %cst_217 {dimension_numbers = #tpu.dot_dimension_numbers<[1], [0], [0], [1], [0, 0, 1, 1], [], []>} : vector<64x4xbf16>, vector<4x8xbf16>, vector<64x8xf32> -> vector<64x8xf32>
    %228 = arith.addf %221, %227 : vector<64x8xf32>
    %c3_218 = arith.constant 3 : index
    %c0_219 = arith.constant 0 : index
    %c0_220 = arith.constant 0 : index
    %c0_221 = arith.constant 0 : index
    %229 = vector.load %arg1[%c3_218, %c0_219, %c0_220, %c0_221] : memref<4x9x9x4xbf16, #tpu.memory_space<vmem>>, vector<1x8x8x4xbf16>
    %230 = vector.shape_cast %229 : vector<1x8x8x4xbf16> to vector<8x8x4xbf16>
    %231 = vector.shape_cast %230 : vector<8x8x4xbf16> to vector<64x4xbf16>
    %c1_222 = arith.constant 1 : index
    %c0_223 = arith.constant 0 : index
    %c0_224 = arith.constant 0 : index
    %232 = vector.load %arg2[%c1_222, %c0_223, %c0_224] : memref<9x4x8xbf16, #tpu.memory_space<vmem>>, vector<1x4x8xbf16>
    %233 = vector.shape_cast %232 : vector<1x4x8xbf16> to vector<4x8xbf16>
    %cst_225 = arith.constant dense<0.000000e+00> : vector<64x8xf32>
    %234 = tpu.matmul %231, %233, %cst_225 {dimension_numbers = #tpu.dot_dimension_numbers<[1], [0], [0], [1], [0, 0, 1, 1], [], []>} : vector<64x4xbf16>, vector<4x8xbf16>, vector<64x8xf32> -> vector<64x8xf32>
    %235 = arith.addf %228, %234 : vector<64x8xf32>
    %c2_226 = arith.constant 2 : index
    %c0_227 = arith.constant 0 : index
    %c1_228 = arith.constant 1 : index
    %c0_229 = arith.constant 0 : index
    %236 = vector.load %arg1[%c2_226, %c0_227, %c1_228, %c0_229] : memref<4x9x9x4xbf16, #tpu.memory_space<vmem>>, vector<1x8x8x4xbf16>
    %237 = vector.shape_cast %236 : vector<1x8x8x4xbf16> to vector<8x8x4xbf16>
    %238 = vector.shape_cast %237 : vector<8x8x4xbf16> to vector<64x4xbf16>
    %c2_230 = arith.constant 2 : index
    %c0_231 = arith.constant 0 : index
    %c0_232 = arith.constant 0 : index
    %239 = vector.load %arg2[%c2_230, %c0_231, %c0_232] : memref<9x4x8xbf16, #tpu.memory_space<vmem>>, vector<1x4x8xbf16>
    %240 = vector.shape_cast %239 : vector<1x4x8xbf16> to vector<4x8xbf16>
    %cst_233 = arith.constant dense<0.000000e+00> : vector<64x8xf32>
    %241 = tpu.matmul %238, %240, %cst_233 {dimension_numbers = #tpu.dot_dimension_numbers<[1], [0], [0], [1], [0, 0, 1, 1], [], []>} : vector<64x4xbf16>, vector<4x8xbf16>, vector<64x8xf32> -> vector<64x8xf32>
    %242 = arith.addf %235, %241 : vector<64x8xf32>
    %c0_234 = arith.constant 0 : index
    %c1_235 = arith.constant 1 : index
    %c0_236 = arith.constant 0 : index
    %c0_237 = arith.constant 0 : index
    %243 = vector.load %arg1[%c0_234, %c1_235, %c0_236, %c0_237] : memref<4x9x9x4xbf16, #tpu.memory_space<vmem>>, vector<1x8x8x4xbf16>
    %244 = vector.shape_cast %243 : vector<1x8x8x4xbf16> to vector<8x8x4xbf16>
    %245 = vector.shape_cast %244 : vector<8x8x4xbf16> to vector<64x4xbf16>
    %c3_238 = arith.constant 3 : index
    %c0_239 = arith.constant 0 : index
    %c0_240 = arith.constant 0 : index
    %246 = vector.load %arg2[%c3_238, %c0_239, %c0_240] : memref<9x4x8xbf16, #tpu.memory_space<vmem>>, vector<1x4x8xbf16>
    %247 = vector.shape_cast %246 : vector<1x4x8xbf16> to vector<4x8xbf16>
    %cst_241 = arith.constant dense<0.000000e+00> : vector<64x8xf32>
    %248 = tpu.matmul %245, %247, %cst_241 {dimension_numbers = #tpu.dot_dimension_numbers<[1], [0], [0], [1], [0, 0, 1, 1], [], []>} : vector<64x4xbf16>, vector<4x8xbf16>, vector<64x8xf32> -> vector<64x8xf32>
    %249 = arith.addf %242, %248 : vector<64x8xf32>
    %c1_242 = arith.constant 1 : index
    %c1_243 = arith.constant 1 : index
    %c0_244 = arith.constant 0 : index
    %c0_245 = arith.constant 0 : index
    %250 = vector.load %arg1[%c1_242, %c1_243, %c0_244, %c0_245] : memref<4x9x9x4xbf16, #tpu.memory_space<vmem>>, vector<1x8x8x4xbf16>
    %251 = vector.shape_cast %250 : vector<1x8x8x4xbf16> to vector<8x8x4xbf16>
    %252 = vector.shape_cast %251 : vector<8x8x4xbf16> to vector<64x4xbf16>
    %c4_246 = arith.constant 4 : index
    %c0_247 = arith.constant 0 : index
    %c0_248 = arith.constant 0 : index
    %253 = vector.load %arg2[%c4_246, %c0_247, %c0_248] : memref<9x4x8xbf16, #tpu.memory_space<vmem>>, vector<1x4x8xbf16>
    %254 = vector.shape_cast %253 : vector<1x4x8xbf16> to vector<4x8xbf16>
    %cst_249 = arith.constant dense<0.000000e+00> : vector<64x8xf32>
    %255 = tpu.matmul %252, %254, %cst_249 {dimension_numbers = #tpu.dot_dimension_numbers<[1], [0], [0], [1], [0, 0, 1, 1], [], []>} : vector<64x4xbf16>, vector<4x8xbf16>, vector<64x8xf32> -> vector<64x8xf32>
    %256 = arith.addf %249, %255 : vector<64x8xf32>
    %c0_250 = arith.constant 0 : index
    %c1_251 = arith.constant 1 : index
    %c1_252 = arith.constant 1 : index
    %c0_253 = arith.constant 0 : index
    %257 = vector.load %arg1[%c0_250, %c1_251, %c1_252, %c0_253] : memref<4x9x9x4xbf16, #tpu.memory_space<vmem>>, vector<1x8x8x4xbf16>
    %258 = vector.shape_cast %257 : vector<1x8x8x4xbf16> to vector<8x8x4xbf16>
    %259 = vector.shape_cast %258 : vector<8x8x4xbf16> to vector<64x4xbf16>
    %c5_254 = arith.constant 5 : index
    %c0_255 = arith.constant 0 : index
    %c0_256 = arith.constant 0 : index
    %260 = vector.load %arg2[%c5_254, %c0_255, %c0_256] : memref<9x4x8xbf16, #tpu.memory_space<vmem>>, vector<1x4x8xbf16>
    %261 = vector.shape_cast %260 : vector<1x4x8xbf16> to vector<4x8xbf16>
    %cst_257 = arith.constant dense<0.000000e+00> : vector<64x8xf32>
    %262 = tpu.matmul %259, %261, %cst_257 {dimension_numbers = #tpu.dot_dimension_numbers<[1], [0], [0], [1], [0, 0, 1, 1], [], []>} : vector<64x4xbf16>, vector<4x8xbf16>, vector<64x8xf32> -> vector<64x8xf32>
    %263 = arith.addf %256, %262 : vector<64x8xf32>
    %c2_258 = arith.constant 2 : index
    %c1_259 = arith.constant 1 : index
    %c0_260 = arith.constant 0 : index
    %c0_261 = arith.constant 0 : index
    %264 = vector.load %arg1[%c2_258, %c1_259, %c0_260, %c0_261] : memref<4x9x9x4xbf16, #tpu.memory_space<vmem>>, vector<1x8x8x4xbf16>
    %265 = vector.shape_cast %264 : vector<1x8x8x4xbf16> to vector<8x8x4xbf16>
    %266 = vector.shape_cast %265 : vector<8x8x4xbf16> to vector<64x4xbf16>
    %c6_262 = arith.constant 6 : index
    %c0_263 = arith.constant 0 : index
    %c0_264 = arith.constant 0 : index
    %267 = vector.load %arg2[%c6_262, %c0_263, %c0_264] : memref<9x4x8xbf16, #tpu.memory_space<vmem>>, vector<1x4x8xbf16>
    %268 = vector.shape_cast %267 : vector<1x4x8xbf16> to vector<4x8xbf16>
    %cst_265 = arith.constant dense<0.000000e+00> : vector<64x8xf32>
    %269 = tpu.matmul %266, %268, %cst_265 {dimension_numbers = #tpu.dot_dimension_numbers<[1], [0], [0], [1], [0, 0, 1, 1], [], []>} : vector<64x4xbf16>, vector<4x8xbf16>, vector<64x8xf32> -> vector<64x8xf32>
    %270 = arith.addf %263, %269 : vector<64x8xf32>
    %c3_266 = arith.constant 3 : index
    %c1_267 = arith.constant 1 : index
    %c0_268 = arith.constant 0 : index
    %c0_269 = arith.constant 0 : index
    %271 = vector.load %arg1[%c3_266, %c1_267, %c0_268, %c0_269] : memref<4x9x9x4xbf16, #tpu.memory_space<vmem>>, vector<1x8x8x4xbf16>
    %272 = vector.shape_cast %271 : vector<1x8x8x4xbf16> to vector<8x8x4xbf16>
    %273 = vector.shape_cast %272 : vector<8x8x4xbf16> to vector<64x4xbf16>
    %c7_270 = arith.constant 7 : index
    %c0_271 = arith.constant 0 : index
    %c0_272 = arith.constant 0 : index
    %274 = vector.load %arg2[%c7_270, %c0_271, %c0_272] : memref<9x4x8xbf16, #tpu.memory_space<vmem>>, vector<1x4x8xbf16>
    %275 = vector.shape_cast %274 : vector<1x4x8xbf16> to vector<4x8xbf16>
    %cst_273 = arith.constant dense<0.000000e+00> : vector<64x8xf32>
    %276 = tpu.matmul %273, %275, %cst_273 {dimension_numbers = #tpu.dot_dimension_numbers<[1], [0], [0], [1], [0, 0, 1, 1], [], []>} : vector<64x4xbf16>, vector<4x8xbf16>, vector<64x8xf32> -> vector<64x8xf32>
    %277 = arith.addf %270, %276 : vector<64x8xf32>
    %c2_274 = arith.constant 2 : index
    %c1_275 = arith.constant 1 : index
    %c1_276 = arith.constant 1 : index
    %c0_277 = arith.constant 0 : index
    %278 = vector.load %arg1[%c2_274, %c1_275, %c1_276, %c0_277] : memref<4x9x9x4xbf16, #tpu.memory_space<vmem>>, vector<1x8x8x4xbf16>
    %279 = vector.shape_cast %278 : vector<1x8x8x4xbf16> to vector<8x8x4xbf16>
    %280 = vector.shape_cast %279 : vector<8x8x4xbf16> to vector<64x4xbf16>
    %c8_278 = arith.constant 8 : index
    %c0_279 = arith.constant 0 : index
    %c0_280 = arith.constant 0 : index
    %281 = vector.load %arg2[%c8_278, %c0_279, %c0_280] : memref<9x4x8xbf16, #tpu.memory_space<vmem>>, vector<1x4x8xbf16>
    %282 = vector.shape_cast %281 : vector<1x4x8xbf16> to vector<4x8xbf16>
    %cst_281 = arith.constant dense<0.000000e+00> : vector<64x8xf32>
    %283 = tpu.matmul %280, %282, %cst_281 {dimension_numbers = #tpu.dot_dimension_numbers<[1], [0], [0], [1], [0, 0, 1, 1], [], []>} : vector<64x4xbf16>, vector<4x8xbf16>, vector<64x8xf32> -> vector<64x8xf32>
    %284 = arith.addf %277, %283 : vector<64x8xf32>
    %cst_282 = arith.constant 0.000000e+00 : f32
    %285 = vector.broadcast %cst_282 : f32 to vector<64x8xf32>
    %286 = arith.maximumf %284, %285 : vector<64x8xf32>
    %287 = vector.extract_strided_slice %286 {offsets = [0, 0], sizes = [8, 8], strides = [1, 1]} : vector<64x8xf32> to vector<8x8xf32>
    %288 = arith.truncf %287 : vector<8x8xf32> to vector<8x8xbf16>
    %c1_283 = arith.constant 1 : index
    %c1_284 = arith.constant 1 : index
    %c0_285 = arith.constant 0 : index
    %c0_286 = arith.constant 0 : index
    %289 = vector.load %arg7[%c1_283, %c1_284, %c0_285, %c0_286] : memref<4x9x9x8xbf16, #tpu.memory_space<vmem>>, vector<1x1x8x8xbf16>
    %290 = vector.shape_cast %289 : vector<1x1x8x8xbf16> to vector<8x8xbf16>
    %291 = vector.shape_cast %288 : vector<8x8xbf16> to vector<1x1x8x8xbf16>
    tpu.vector_store %arg7[%c1_283, %c1_284, %c0_285, %c0_286], %291 {strides = array<i32>} : memref<4x9x9x8xbf16, #tpu.memory_space<vmem>>, vector<1x1x8x8xbf16>,
    %292 = vector.extract_strided_slice %286 {offsets = [8, 0], sizes = [8, 8], strides = [1, 1]} : vector<64x8xf32> to vector<8x8xf32>
    %293 = arith.truncf %292 : vector<8x8xf32> to vector<8x8xbf16>
    %c1_287 = arith.constant 1 : index
    %c2_288 = arith.constant 2 : index
    %c0_289 = arith.constant 0 : index
    %c0_290 = arith.constant 0 : index
    %294 = vector.load %arg7[%c1_287, %c2_288, %c0_289, %c0_290] : memref<4x9x9x8xbf16, #tpu.memory_space<vmem>>, vector<1x1x8x8xbf16>
    %295 = vector.shape_cast %294 : vector<1x1x8x8xbf16> to vector<8x8xbf16>
    %296 = vector.shape_cast %293 : vector<8x8xbf16> to vector<1x1x8x8xbf16>
    tpu.vector_store %arg7[%c1_287, %c2_288, %c0_289, %c0_290], %296 {strides = array<i32>} : memref<4x9x9x8xbf16, #tpu.memory_space<vmem>>, vector<1x1x8x8xbf16>,
    %297 = vector.extract_strided_slice %286 {offsets = [16, 0], sizes = [8, 8], strides = [1, 1]} : vector<64x8xf32> to vector<8x8xf32>
    %298 = arith.truncf %297 : vector<8x8xf32> to vector<8x8xbf16>
    %c1_291 = arith.constant 1 : index
    %c3_292 = arith.constant 3 : index
    %c0_293 = arith.constant 0 : index
    %c0_294 = arith.constant 0 : index
    %299 = vector.load %arg7[%c1_291, %c3_292, %c0_293, %c0_294] : memref<4x9x9x8xbf16, #tpu.memory_space<vmem>>, vector<1x1x8x8xbf16>
    %300 = vector.shape_cast %299 : vector<1x1x8x8xbf16> to vector<8x8xbf16>
    %301 = vector.shape_cast %298 : vector<8x8xbf16> to vector<1x1x8x8xbf16>
    tpu.vector_store %arg7[%c1_291, %c3_292, %c0_293, %c0_294], %301 {strides = array<i32>} : memref<4x9x9x8xbf16, #tpu.memory_space<vmem>>, vector<1x1x8x8xbf16>,
    %302 = vector.extract_strided_slice %286 {offsets = [24, 0], sizes = [8, 8], strides = [1, 1]} : vector<64x8xf32> to vector<8x8xf32>
    %303 = arith.truncf %302 : vector<8x8xf32> to vector<8x8xbf16>
    %c1_295 = arith.constant 1 : index
    %c4_296 = arith.constant 4 : index
    %c0_297 = arith.constant 0 : index
    %c0_298 = arith.constant 0 : index
    %304 = vector.load %arg7[%c1_295, %c4_296, %c0_297, %c0_298] : memref<4x9x9x8xbf16, #tpu.memory_space<vmem>>, vector<1x1x8x8xbf16>
    %305 = vector.shape_cast %304 : vector<1x1x8x8xbf16> to vector<8x8xbf16>
    %306 = vector.shape_cast %303 : vector<8x8xbf16> to vector<1x1x8x8xbf16>
    tpu.vector_store %arg7[%c1_295, %c4_296, %c0_297, %c0_298], %306 {strides = array<i32>} : memref<4x9x9x8xbf16, #tpu.memory_space<vmem>>, vector<1x1x8x8xbf16>,
    %307 = vector.extract_strided_slice %286 {offsets = [32, 0], sizes = [8, 8], strides = [1, 1]} : vector<64x8xf32> to vector<8x8xf32>
    %308 = arith.truncf %307 : vector<8x8xf32> to vector<8x8xbf16>
    %c1_299 = arith.constant 1 : index
    %c5_300 = arith.constant 5 : index
    %c0_301 = arith.constant 0 : index
    %c0_302 = arith.constant 0 : index
    %309 = vector.load %arg7[%c1_299, %c5_300, %c0_301, %c0_302] : memref<4x9x9x8xbf16, #tpu.memory_space<vmem>>, vector<1x1x8x8xbf16>
    %310 = vector.shape_cast %309 : vector<1x1x8x8xbf16> to vector<8x8xbf16>
    %311 = vector.shape_cast %308 : vector<8x8xbf16> to vector<1x1x8x8xbf16>
    tpu.vector_store %arg7[%c1_299, %c5_300, %c0_301, %c0_302], %311 {strides = array<i32>} : memref<4x9x9x8xbf16, #tpu.memory_space<vmem>>, vector<1x1x8x8xbf16>,
    %312 = vector.extract_strided_slice %286 {offsets = [40, 0], sizes = [8, 8], strides = [1, 1]} : vector<64x8xf32> to vector<8x8xf32>
    %313 = arith.truncf %312 : vector<8x8xf32> to vector<8x8xbf16>
    %c1_303 = arith.constant 1 : index
    %c6_304 = arith.constant 6 : index
    %c0_305 = arith.constant 0 : index
    %c0_306 = arith.constant 0 : index
    %314 = vector.load %arg7[%c1_303, %c6_304, %c0_305, %c0_306] : memref<4x9x9x8xbf16, #tpu.memory_space<vmem>>, vector<1x1x8x8xbf16>
    %315 = vector.shape_cast %314 : vector<1x1x8x8xbf16> to vector<8x8xbf16>
    %316 = vector.shape_cast %313 : vector<8x8xbf16> to vector<1x1x8x8xbf16>
    tpu.vector_store %arg7[%c1_303, %c6_304, %c0_305, %c0_306], %316 {strides = array<i32>} : memref<4x9x9x8xbf16, #tpu.memory_space<vmem>>, vector<1x1x8x8xbf16>,
    %317 = vector.extract_strided_slice %286 {offsets = [48, 0], sizes = [8, 8], strides = [1, 1]} : vector<64x8xf32> to vector<8x8xf32>
    %318 = arith.truncf %317 : vector<8x8xf32> to vector<8x8xbf16>
    %c1_307 = arith.constant 1 : index
    %c7_308 = arith.constant 7 : index
    %c0_309 = arith.constant 0 : index
    %c0_310 = arith.constant 0 : index
    %319 = vector.load %arg7[%c1_307, %c7_308, %c0_309, %c0_310] : memref<4x9x9x8xbf16, #tpu.memory_space<vmem>>, vector<1x1x8x8xbf16>
    %320 = vector.shape_cast %319 : vector<1x1x8x8xbf16> to vector<8x8xbf16>
    %321 = vector.shape_cast %318 : vector<8x8xbf16> to vector<1x1x8x8xbf16>
    tpu.vector_store %arg7[%c1_307, %c7_308, %c0_309, %c0_310], %321 {strides = array<i32>} : memref<4x9x9x8xbf16, #tpu.memory_space<vmem>>, vector<1x1x8x8xbf16>,
    %322 = vector.extract_strided_slice %286 {offsets = [56, 0], sizes = [8, 8], strides = [1, 1]} : vector<64x8xf32> to vector<8x8xf32>
    %323 = arith.truncf %322 : vector<8x8xf32> to vector<8x8xbf16>
    %c1_311 = arith.constant 1 : index
    %c8_312 = arith.constant 8 : index
    %c0_313 = arith.constant 0 : index
    %c0_314 = arith.constant 0 : index
    %324 = vector.load %arg7[%c1_311, %c8_312, %c0_313, %c0_314] : memref<4x9x9x8xbf16, #tpu.memory_space<vmem>>, vector<1x1x8x8xbf16>
    %325 = vector.shape_cast %324 : vector<1x1x8x8xbf16> to vector<8x8xbf16>
    %326 = vector.shape_cast %323 : vector<8x8xbf16> to vector<1x1x8x8xbf16>
    tpu.vector_store %arg7[%c1_311, %c8_312, %c0_313, %c0_314], %326 {strides = array<i32>} : memref<4x9x9x8xbf16, #tpu.memory_space<vmem>>, vector<1x1x8x8xbf16>,
    %cst_315 = arith.constant 0.000000e+00 : f32
    %327 = vector.broadcast %cst_315 : f32 to vector<64x8xf32>
    %328 = vector.broadcast %2 : vector<1x8xf32> to vector<64x8xf32>
    %329 = arith.addf %327, %328 : vector<64x8xf32>
    %c3_316 = arith.constant 3 : index
    %c0_317 = arith.constant 0 : index
    %c0_318 = arith.constant 0 : index
    %c0_319 = arith.constant 0 : index
    %330 = vector.load %arg1[%c3_316, %c0_317, %c0_318, %c0_319] : memref<4x9x9x4xbf16, #tpu.memory_space<vmem>>, vector<1x8x8x4xbf16>
    %331 = vector.shape_cast %330 : vector<1x8x8x4xbf16> to vector<8x8x4xbf16>
    %332 = vector.shape_cast %331 : vector<8x8x4xbf16> to vector<64x4xbf16>
    %c0_320 = arith.constant 0 : index
    %c0_321 = arith.constant 0 : index
    %c0_322 = arith.constant 0 : index
    %333 = vector.load %arg2[%c0_320, %c0_321, %c0_322] : memref<9x4x8xbf16, #tpu.memory_space<vmem>>, vector<1x4x8xbf16>
    %334 = vector.shape_cast %333 : vector<1x4x8xbf16> to vector<4x8xbf16>
    %cst_323 = arith.constant dense<0.000000e+00> : vector<64x8xf32>
    %335 = tpu.matmul %332, %334, %cst_323 {dimension_numbers = #tpu.dot_dimension_numbers<[1], [0], [0], [1], [0, 0, 1, 1], [], []>} : vector<64x4xbf16>, vector<4x8xbf16>, vector<64x8xf32> -> vector<64x8xf32>
    %336 = arith.addf %329, %335 : vector<64x8xf32>
    %c2_324 = arith.constant 2 : index
    %c0_325 = arith.constant 0 : index
    %c1_326 = arith.constant 1 : index
    %c0_327 = arith.constant 0 : index
    %337 = vector.load %arg1[%c2_324, %c0_325, %c1_326, %c0_327] : memref<4x9x9x4xbf16, #tpu.memory_space<vmem>>, vector<1x8x8x4xbf16>
    %338 = vector.shape_cast %337 : vector<1x8x8x4xbf16> to vector<8x8x4xbf16>
    %339 = vector.shape_cast %338 : vector<8x8x4xbf16> to vector<64x4xbf16>
    %c1_328 = arith.constant 1 : index
    %c0_329 = arith.constant 0 : index
    %c0_330 = arith.constant 0 : index
    %340 = vector.load %arg2[%c1_328, %c0_329, %c0_330] : memref<9x4x8xbf16, #tpu.memory_space<vmem>>, vector<1x4x8xbf16>
    %341 = vector.shape_cast %340 : vector<1x4x8xbf16> to vector<4x8xbf16>
    %cst_331 = arith.constant dense<0.000000e+00> : vector<64x8xf32>
    %342 = tpu.matmul %339, %341, %cst_331 {dimension_numbers = #tpu.dot_dimension_numbers<[1], [0], [0], [1], [0, 0, 1, 1], [], []>} : vector<64x4xbf16>, vector<4x8xbf16>, vector<64x8xf32> -> vector<64x8xf32>
    %343 = arith.addf %336, %342 : vector<64x8xf32>
    %c3_332 = arith.constant 3 : index
    %c0_333 = arith.constant 0 : index
    %c1_334 = arith.constant 1 : index
    %c0_335 = arith.constant 0 : index
    %344 = vector.load %arg1[%c3_332, %c0_333, %c1_334, %c0_335] : memref<4x9x9x4xbf16, #tpu.memory_space<vmem>>, vector<1x8x8x4xbf16>
    %345 = vector.shape_cast %344 : vector<1x8x8x4xbf16> to vector<8x8x4xbf16>
    %346 = vector.shape_cast %345 : vector<8x8x4xbf16> to vector<64x4xbf16>
    %c2_336 = arith.constant 2 : index
    %c0_337 = arith.constant 0 : index
    %c0_338 = arith.constant 0 : index
    %347 = vector.load %arg2[%c2_336, %c0_337, %c0_338] : memref<9x4x8xbf16, #tpu.memory_space<vmem>>, vector<1x4x8xbf16>
    %348 = vector.shape_cast %347 : vector<1x4x8xbf16> to vector<4x8xbf16>
    %cst_339 = arith.constant dense<0.000000e+00> : vector<64x8xf32>
    %349 = tpu.matmul %346, %348, %cst_339 {dimension_numbers = #tpu.dot_dimension_numbers<[1], [0], [0], [1], [0, 0, 1, 1], [], []>} : vector<64x4xbf16>, vector<4x8xbf16>, vector<64x8xf32> -> vector<64x8xf32>
    %350 = arith.addf %343, %349 : vector<64x8xf32>
    %c1_340 = arith.constant 1 : index
    %c1_341 = arith.constant 1 : index
    %c0_342 = arith.constant 0 : index
    %c0_343 = arith.constant 0 : index
    %351 = vector.load %arg1[%c1_340, %c1_341, %c0_342, %c0_343] : memref<4x9x9x4xbf16, #tpu.memory_space<vmem>>, vector<1x8x8x4xbf16>
    %352 = vector.shape_cast %351 : vector<1x8x8x4xbf16> to vector<8x8x4xbf16>
    %353 = vector.shape_cast %352 : vector<8x8x4xbf16> to vector<64x4xbf16>
    %c3_344 = arith.constant 3 : index
    %c0_345 = arith.constant 0 : index
    %c0_346 = arith.constant 0 : index
    %354 = vector.load %arg2[%c3_344, %c0_345, %c0_346] : memref<9x4x8xbf16, #tpu.memory_space<vmem>>, vector<1x4x8xbf16>
    %355 = vector.shape_cast %354 : vector<1x4x8xbf16> to vector<4x8xbf16>
    %cst_347 = arith.constant dense<0.000000e+00> : vector<64x8xf32>
    %356 = tpu.matmul %353, %355, %cst_347 {dimension_numbers = #tpu.dot_dimension_numbers<[1], [0], [0], [1], [0, 0, 1, 1], [], []>} : vector<64x4xbf16>, vector<4x8xbf16>, vector<64x8xf32> -> vector<64x8xf32>
    %357 = arith.addf %350, %356 : vector<64x8xf32>
    %c0_348 = arith.constant 0 : index
    %c1_349 = arith.constant 1 : index
    %c1_350 = arith.constant 1 : index
    %c0_351 = arith.constant 0 : index
    %358 = vector.load %arg1[%c0_348, %c1_349, %c1_350, %c0_351] : memref<4x9x9x4xbf16, #tpu.memory_space<vmem>>, vector<1x8x8x4xbf16>
    %359 = vector.shape_cast %358 : vector<1x8x8x4xbf16> to vector<8x8x4xbf16>
    %360 = vector.shape_cast %359 : vector<8x8x4xbf16> to vector<64x4xbf16>
    %c4_352 = arith.constant 4 : index
    %c0_353 = arith.constant 0 : index
    %c0_354 = arith.constant 0 : index
    %361 = vector.load %arg2[%c4_352, %c0_353, %c0_354] : memref<9x4x8xbf16, #tpu.memory_space<vmem>>, vector<1x4x8xbf16>
    %362 = vector.shape_cast %361 : vector<1x4x8xbf16> to vector<4x8xbf16>
    %cst_355 = arith.constant dense<0.000000e+00> : vector<64x8xf32>
    %363 = tpu.matmul %360, %362, %cst_355 {dimension_numbers = #tpu.dot_dimension_numbers<[1], [0], [0], [1], [0, 0, 1, 1], [], []>} : vector<64x4xbf16>, vector<4x8xbf16>, vector<64x8xf32> -> vector<64x8xf32>
    %364 = arith.addf %357, %363 : vector<64x8xf32>
    %c1_356 = arith.constant 1 : index
    %c1_357 = arith.constant 1 : index
    %c1_358 = arith.constant 1 : index
    %c0_359 = arith.constant 0 : index
    %365 = vector.load %arg1[%c1_356, %c1_357, %c1_358, %c0_359] : memref<4x9x9x4xbf16, #tpu.memory_space<vmem>>, vector<1x8x8x4xbf16>
    %366 = vector.shape_cast %365 : vector<1x8x8x4xbf16> to vector<8x8x4xbf16>
    %367 = vector.shape_cast %366 : vector<8x8x4xbf16> to vector<64x4xbf16>
    %c5_360 = arith.constant 5 : index
    %c0_361 = arith.constant 0 : index
    %c0_362 = arith.constant 0 : index
    %368 = vector.load %arg2[%c5_360, %c0_361, %c0_362] : memref<9x4x8xbf16, #tpu.memory_space<vmem>>, vector<1x4x8xbf16>
    %369 = vector.shape_cast %368 : vector<1x4x8xbf16> to vector<4x8xbf16>
    %cst_363 = arith.constant dense<0.000000e+00> : vector<64x8xf32>
    %370 = tpu.matmul %367, %369, %cst_363 {dimension_numbers = #tpu.dot_dimension_numbers<[1], [0], [0], [1], [0, 0, 1, 1], [], []>} : vector<64x4xbf16>, vector<4x8xbf16>, vector<64x8xf32> -> vector<64x8xf32>
    %371 = arith.addf %364, %370 : vector<64x8xf32>
    %c3_364 = arith.constant 3 : index
    %c1_365 = arith.constant 1 : index
    %c0_366 = arith.constant 0 : index
    %c0_367 = arith.constant 0 : index
    %372 = vector.load %arg1[%c3_364, %c1_365, %c0_366, %c0_367] : memref<4x9x9x4xbf16, #tpu.memory_space<vmem>>, vector<1x8x8x4xbf16>
    %373 = vector.shape_cast %372 : vector<1x8x8x4xbf16> to vector<8x8x4xbf16>
    %374 = vector.shape_cast %373 : vector<8x8x4xbf16> to vector<64x4xbf16>
    %c6_368 = arith.constant 6 : index
    %c0_369 = arith.constant 0 : index
    %c0_370 = arith.constant 0 : index
    %375 = vector.load %arg2[%c6_368, %c0_369, %c0_370] : memref<9x4x8xbf16, #tpu.memory_space<vmem>>, vector<1x4x8xbf16>
    %376 = vector.shape_cast %375 : vector<1x4x8xbf16> to vector<4x8xbf16>
    %cst_371 = arith.constant dense<0.000000e+00> : vector<64x8xf32>
    %377 = tpu.matmul %374, %376, %cst_371 {dimension_numbers = #tpu.dot_dimension_numbers<[1], [0], [0], [1], [0, 0, 1, 1], [], []>} : vector<64x4xbf16>, vector<4x8xbf16>, vector<64x8xf32> -> vector<64x8xf32>
    %378 = arith.addf %371, %377 : vector<64x8xf32>
    %c2_372 = arith.constant 2 : index
    %c1_373 = arith.constant 1 : index
    %c1_374 = arith.constant 1 : index
    %c0_375 = arith.constant 0 : index
    %379 = vector.load %arg1[%c2_372, %c1_373, %c1_374, %c0_375] : memref<4x9x9x4xbf16, #tpu.memory_space<vmem>>, vector<1x8x8x4xbf16>
    %380 = vector.shape_cast %379 : vector<1x8x8x4xbf16> to vector<8x8x4xbf16>
    %381 = vector.shape_cast %380 : vector<8x8x4xbf16> to vector<64x4xbf16>
    %c7_376 = arith.constant 7 : index
    %c0_377 = arith.constant 0 : index
    %c0_378 = arith.constant 0 : index
    %382 = vector.load %arg2[%c7_376, %c0_377, %c0_378] : memref<9x4x8xbf16, #tpu.memory_space<vmem>>, vector<1x4x8xbf16>
    %383 = vector.shape_cast %382 : vector<1x4x8xbf16> to vector<4x8xbf16>
    %cst_379 = arith.constant dense<0.000000e+00> : vector<64x8xf32>
    %384 = tpu.matmul %381, %383, %cst_379 {dimension_numbers = #tpu.dot_dimension_numbers<[1], [0], [0], [1], [0, 0, 1, 1], [], []>} : vector<64x4xbf16>, vector<4x8xbf16>, vector<64x8xf32> -> vector<64x8xf32>
    %385 = arith.addf %378, %384 : vector<64x8xf32>
    %c3_380 = arith.constant 3 : index
    %c1_381 = arith.constant 1 : index
    %c1_382 = arith.constant 1 : index
    %c0_383 = arith.constant 0 : index
    %386 = vector.load %arg1[%c3_380, %c1_381, %c1_382, %c0_383] : memref<4x9x9x4xbf16, #tpu.memory_space<vmem>>, vector<1x8x8x4xbf16>
    %387 = vector.shape_cast %386 : vector<1x8x8x4xbf16> to vector<8x8x4xbf16>
    %388 = vector.shape_cast %387 : vector<8x8x4xbf16> to vector<64x4xbf16>
    %c8_384 = arith.constant 8 : index
    %c0_385 = arith.constant 0 : index
    %c0_386 = arith.constant 0 : index
    %389 = vector.load %arg2[%c8_384, %c0_385, %c0_386] : memref<9x4x8xbf16, #tpu.memory_space<vmem>>, vector<1x4x8xbf16>
    %390 = vector.shape_cast %389 : vector<1x4x8xbf16> to vector<4x8xbf16>
    %cst_387 = arith.constant dense<0.000000e+00> : vector<64x8xf32>
    %391 = tpu.matmul %388, %390, %cst_387 {dimension_numbers = #tpu.dot_dimension_numbers<[1], [0], [0], [1], [0, 0, 1, 1], [], []>} : vector<64x4xbf16>, vector<4x8xbf16>, vector<64x8xf32> -> vector<64x8xf32>
    %392 = arith.addf %385, %391 : vector<64x8xf32>
    %cst_388 = arith.constant 0.000000e+00 : f32
    %393 = vector.broadcast %cst_388 : f32 to vector<64x8xf32>
    %394 = arith.maximumf %392, %393 : vector<64x8xf32>
    %395 = vector.extract_strided_slice %394 {offsets = [0, 0], sizes = [8, 8], strides = [1, 1]} : vector<64x8xf32> to vector<8x8xf32>
    %396 = arith.truncf %395 : vector<8x8xf32> to vector<8x8xbf16>
    %c0_389 = arith.constant 0 : index
    %c1_390 = arith.constant 1 : index
    %c1_391 = arith.constant 1 : index
    %c0_392 = arith.constant 0 : index
    %397 = vector.load %arg7[%c0_389, %c1_390, %c1_391, %c0_392] : memref<4x9x9x8xbf16, #tpu.memory_space<vmem>>, vector<1x1x8x8xbf16>
    %398 = vector.shape_cast %397 : vector<1x1x8x8xbf16> to vector<8x8xbf16>
    %399 = vector.shape_cast %396 : vector<8x8xbf16> to vector<1x1x8x8xbf16>
    tpu.vector_store %arg7[%c0_389, %c1_390, %c1_391, %c0_392], %399 {strides = array<i32>} : memref<4x9x9x8xbf16, #tpu.memory_space<vmem>>, vector<1x1x8x8xbf16>,
    %400 = vector.extract_strided_slice %394 {offsets = [8, 0], sizes = [8, 8], strides = [1, 1]} : vector<64x8xf32> to vector<8x8xf32>
    %401 = arith.truncf %400 : vector<8x8xf32> to vector<8x8xbf16>
    %c0_393 = arith.constant 0 : index
    %c2_394 = arith.constant 2 : index
    %c1_395 = arith.constant 1 : index
    %c0_396 = arith.constant 0 : index
    %402 = vector.load %arg7[%c0_393, %c2_394, %c1_395, %c0_396] : memref<4x9x9x8xbf16, #tpu.memory_space<vmem>>, vector<1x1x8x8xbf16>
    %403 = vector.shape_cast %402 : vector<1x1x8x8xbf16> to vector<8x8xbf16>
    %404 = vector.shape_cast %401 : vector<8x8xbf16> to vector<1x1x8x8xbf16>
    tpu.vector_store %arg7[%c0_393, %c2_394, %c1_395, %c0_396], %404 {strides = array<i32>} : memref<4x9x9x8xbf16, #tpu.memory_space<vmem>>, vector<1x1x8x8xbf16>,
    %405 = vector.extract_strided_slice %394 {offsets = [16, 0], sizes = [8, 8], strides = [1, 1]} : vector<64x8xf32> to vector<8x8xf32>
    %406 = arith.truncf %405 : vector<8x8xf32> to vector<8x8xbf16>
    %c0_397 = arith.constant 0 : index
    %c3_398 = arith.constant 3 : index
    %c1_399 = arith.constant 1 : index
    %c0_400 = arith.constant 0 : index
    %407 = vector.load %arg7[%c0_397, %c3_398, %c1_399, %c0_400] : memref<4x9x9x8xbf16, #tpu.memory_space<vmem>>, vector<1x1x8x8xbf16>
    %408 = vector.shape_cast %407 : vector<1x1x8x8xbf16> to vector<8x8xbf16>
    %409 = vector.shape_cast %406 : vector<8x8xbf16> to vector<1x1x8x8xbf16>
    tpu.vector_store %arg7[%c0_397, %c3_398, %c1_399, %c0_400], %409 {strides = array<i32>} : memref<4x9x9x8xbf16, #tpu.memory_space<vmem>>, vector<1x1x8x8xbf16>,
    %410 = vector.extract_strided_slice %394 {offsets = [24, 0], sizes = [8, 8], strides = [1, 1]} : vector<64x8xf32> to vector<8x8xf32>
    %411 = arith.truncf %410 : vector<8x8xf32> to vector<8x8xbf16>
    %c0_401 = arith.constant 0 : index
    %c4_402 = arith.constant 4 : index
    %c1_403 = arith.constant 1 : index
    %c0_404 = arith.constant 0 : index
    %412 = vector.load %arg7[%c0_401, %c4_402, %c1_403, %c0_404] : memref<4x9x9x8xbf16, #tpu.memory_space<vmem>>, vector<1x1x8x8xbf16>
    %413 = vector.shape_cast %412 : vector<1x1x8x8xbf16> to vector<8x8xbf16>
    %414 = vector.shape_cast %411 : vector<8x8xbf16> to vector<1x1x8x8xbf16>
    tpu.vector_store %arg7[%c0_401, %c4_402, %c1_403, %c0_404], %414 {strides = array<i32>} : memref<4x9x9x8xbf16, #tpu.memory_space<vmem>>, vector<1x1x8x8xbf16>,
    %415 = vector.extract_strided_slice %394 {offsets = [32, 0], sizes = [8, 8], strides = [1, 1]} : vector<64x8xf32> to vector<8x8xf32>
    %416 = arith.truncf %415 : vector<8x8xf32> to vector<8x8xbf16>
    %c0_405 = arith.constant 0 : index
    %c5_406 = arith.constant 5 : index
    %c1_407 = arith.constant 1 : index
    %c0_408 = arith.constant 0 : index
    %417 = vector.load %arg7[%c0_405, %c5_406, %c1_407, %c0_408] : memref<4x9x9x8xbf16, #tpu.memory_space<vmem>>, vector<1x1x8x8xbf16>
    %418 = vector.shape_cast %417 : vector<1x1x8x8xbf16> to vector<8x8xbf16>
    %419 = vector.shape_cast %416 : vector<8x8xbf16> to vector<1x1x8x8xbf16>
    tpu.vector_store %arg7[%c0_405, %c5_406, %c1_407, %c0_408], %419 {strides = array<i32>} : memref<4x9x9x8xbf16, #tpu.memory_space<vmem>>, vector<1x1x8x8xbf16>,
    %420 = vector.extract_strided_slice %394 {offsets = [40, 0], sizes = [8, 8], strides = [1, 1]} : vector<64x8xf32> to vector<8x8xf32>
    %421 = arith.truncf %420 : vector<8x8xf32> to vector<8x8xbf16>
    %c0_409 = arith.constant 0 : index
    %c6_410 = arith.constant 6 : index
    %c1_411 = arith.constant 1 : index
    %c0_412 = arith.constant 0 : index
    %422 = vector.load %arg7[%c0_409, %c6_410, %c1_411, %c0_412] : memref<4x9x9x8xbf16, #tpu.memory_space<vmem>>, vector<1x1x8x8xbf16>
    %423 = vector.shape_cast %422 : vector<1x1x8x8xbf16> to vector<8x8xbf16>
    %424 = vector.shape_cast %421 : vector<8x8xbf16> to vector<1x1x8x8xbf16>
    tpu.vector_store %arg7[%c0_409, %c6_410, %c1_411, %c0_412], %424 {strides = array<i32>} : memref<4x9x9x8xbf16, #tpu.memory_space<vmem>>, vector<1x1x8x8xbf16>,
    %425 = vector.extract_strided_slice %394 {offsets = [48, 0], sizes = [8, 8], strides = [1, 1]} : vector<64x8xf32> to vector<8x8xf32>
    %426 = arith.truncf %425 : vector<8x8xf32> to vector<8x8xbf16>
    %c0_413 = arith.constant 0 : index
    %c7_414 = arith.constant 7 : index
    %c1_415 = arith.constant 1 : index
    %c0_416 = arith.constant 0 : index
    %427 = vector.load %arg7[%c0_413, %c7_414, %c1_415, %c0_416] : memref<4x9x9x8xbf16, #tpu.memory_space<vmem>>, vector<1x1x8x8xbf16>
    %428 = vector.shape_cast %427 : vector<1x1x8x8xbf16> to vector<8x8xbf16>
    %429 = vector.shape_cast %426 : vector<8x8xbf16> to vector<1x1x8x8xbf16>
    tpu.vector_store %arg7[%c0_413, %c7_414, %c1_415, %c0_416], %429 {strides = array<i32>} : memref<4x9x9x8xbf16, #tpu.memory_space<vmem>>, vector<1x1x8x8xbf16>,
    %430 = vector.extract_strided_slice %394 {offsets = [56, 0], sizes = [8, 8], strides = [1, 1]} : vector<64x8xf32> to vector<8x8xf32>
    %431 = arith.truncf %430 : vector<8x8xf32> to vector<8x8xbf16>
    %c0_417 = arith.constant 0 : index
    %c8_418 = arith.constant 8 : index
    %c1_419 = arith.constant 1 : index
    %c0_420 = arith.constant 0 : index
    %432 = vector.load %arg7[%c0_417, %c8_418, %c1_419, %c0_420] : memref<4x9x9x8xbf16, #tpu.memory_space<vmem>>, vector<1x1x8x8xbf16>
    %433 = vector.shape_cast %432 : vector<1x1x8x8xbf16> to vector<8x8xbf16>
    %434 = vector.shape_cast %431 : vector<8x8xbf16> to vector<1x1x8x8xbf16>
    tpu.vector_store %arg7[%c0_417, %c8_418, %c1_419, %c0_420], %434 {strides = array<i32>} : memref<4x9x9x8xbf16, #tpu.memory_space<vmem>>, vector<1x1x8x8xbf16>,
    %c0_421 = arith.constant 0 : index
    %c0_422 = arith.constant 0 : index
    %435 = vector.load %arg5[%c0_421, %c0_422] : memref<1x16xf32, #tpu.memory_space<vmem>>, vector<1x16xf32>
    %cst_423 = arith.constant 0.000000e+00 : f32
    %436 = vector.broadcast %cst_423 : f32 to vector<64x16xf32>
    %437 = vector.broadcast %435 : vector<1x16xf32> to vector<64x16xf32>
    %438 = arith.addf %436, %437 : vector<64x16xf32>
    %c0_424 = arith.constant 0 : index
    %c0_425 = arith.constant 0 : index
    %c0_426 = arith.constant 0 : index
    %c0_427 = arith.constant 0 : index
    %439 = vector.load %arg7[%c0_424, %c0_425, %c0_426, %c0_427] : memref<4x9x9x8xbf16, #tpu.memory_space<vmem>>, vector<1x8x8x8xbf16>
    %440 = vector.shape_cast %439 : vector<1x8x8x8xbf16> to vector<8x8x8xbf16>
    %441 = vector.shape_cast %440 : vector<8x8x8xbf16> to vector<64x8xbf16>
    %c0_428 = arith.constant 0 : index
    %c0_429 = arith.constant 0 : index
    %c0_430 = arith.constant 0 : index
    %442 = vector.load %arg4[%c0_428, %c0_429, %c0_430] : memref<9x8x16xbf16, #tpu.memory_space<vmem>>, vector<1x8x16xbf16>
    %443 = vector.shape_cast %442 : vector<1x8x16xbf16> to vector<8x16xbf16>
    %cst_431 = arith.constant dense<0.000000e+00> : vector<64x16xf32>
    %444 = tpu.matmul %441, %443, %cst_431 {dimension_numbers = #tpu.dot_dimension_numbers<[1], [0], [0], [1], [0, 0, 1, 1], [], []>} : vector<64x8xbf16>, vector<8x16xbf16>, vector<64x16xf32> -> vector<64x16xf32>
    %445 = arith.addf %438, %444 : vector<64x16xf32>
    %c1_432 = arith.constant 1 : index
    %c0_433 = arith.constant 0 : index
    %c0_434 = arith.constant 0 : index
    %c0_435 = arith.constant 0 : index
    %446 = vector.load %arg7[%c1_432, %c0_433, %c0_434, %c0_435] : memref<4x9x9x8xbf16, #tpu.memory_space<vmem>>, vector<1x8x8x8xbf16>
    %447 = vector.shape_cast %446 : vector<1x8x8x8xbf16> to vector<8x8x8xbf16>
    %448 = vector.shape_cast %447 : vector<8x8x8xbf16> to vector<64x8xbf16>
    %c1_436 = arith.constant 1 : index
    %c0_437 = arith.constant 0 : index
    %c0_438 = arith.constant 0 : index
    %449 = vector.load %arg4[%c1_436, %c0_437, %c0_438] : memref<9x8x16xbf16, #tpu.memory_space<vmem>>, vector<1x8x16xbf16>
    %450 = vector.shape_cast %449 : vector<1x8x16xbf16> to vector<8x16xbf16>
    %cst_439 = arith.constant dense<0.000000e+00> : vector<64x16xf32>
    %451 = tpu.matmul %448, %450, %cst_439 {dimension_numbers = #tpu.dot_dimension_numbers<[1], [0], [0], [1], [0, 0, 1, 1], [], []>} : vector<64x8xbf16>, vector<8x16xbf16>, vector<64x16xf32> -> vector<64x16xf32>
    %452 = arith.addf %445, %451 : vector<64x16xf32>
    %c0_440 = arith.constant 0 : index
    %c0_441 = arith.constant 0 : index
    %c1_442 = arith.constant 1 : index
    %c0_443 = arith.constant 0 : index
    %453 = vector.load %arg7[%c0_440, %c0_441, %c1_442, %c0_443] : memref<4x9x9x8xbf16, #tpu.memory_space<vmem>>, vector<1x8x8x8xbf16>
    %454 = vector.shape_cast %453 : vector<1x8x8x8xbf16> to vector<8x8x8xbf16>
    %455 = vector.shape_cast %454 : vector<8x8x8xbf16> to vector<64x8xbf16>
    %c2_444 = arith.constant 2 : index
    %c0_445 = arith.constant 0 : index
    %c0_446 = arith.constant 0 : index
    %456 = vector.load %arg4[%c2_444, %c0_445, %c0_446] : memref<9x8x16xbf16, #tpu.memory_space<vmem>>, vector<1x8x16xbf16>
    %457 = vector.shape_cast %456 : vector<1x8x16xbf16> to vector<8x16xbf16>
    %cst_447 = arith.constant dense<0.000000e+00> : vector<64x16xf32>
    %458 = tpu.matmul %455, %457, %cst_447 {dimension_numbers = #tpu.dot_dimension_numbers<[1], [0], [0], [1], [0, 0, 1, 1], [], []>} : vector<64x8xbf16>, vector<8x16xbf16>, vector<64x16xf32> -> vector<64x16xf32>
    %459 = arith.addf %452, %458 : vector<64x16xf32>
    %c2_448 = arith.constant 2 : index
    %c0_449 = arith.constant 0 : index
    %c0_450 = arith.constant 0 : index
    %c0_451 = arith.constant 0 : index
    %460 = vector.load %arg7[%c2_448, %c0_449, %c0_450, %c0_451] : memref<4x9x9x8xbf16, #tpu.memory_space<vmem>>, vector<1x8x8x8xbf16>
    %461 = vector.shape_cast %460 : vector<1x8x8x8xbf16> to vector<8x8x8xbf16>
    %462 = vector.shape_cast %461 : vector<8x8x8xbf16> to vector<64x8xbf16>
    %c3_452 = arith.constant 3 : index
    %c0_453 = arith.constant 0 : index
    %c0_454 = arith.constant 0 : index
    %463 = vector.load %arg4[%c3_452, %c0_453, %c0_454] : memref<9x8x16xbf16, #tpu.memory_space<vmem>>, vector<1x8x16xbf16>
    %464 = vector.shape_cast %463 : vector<1x8x16xbf16> to vector<8x16xbf16>
    %cst_455 = arith.constant dense<0.000000e+00> : vector<64x16xf32>
    %465 = tpu.matmul %462, %464, %cst_455 {dimension_numbers = #tpu.dot_dimension_numbers<[1], [0], [0], [1], [0, 0, 1, 1], [], []>} : vector<64x8xbf16>, vector<8x16xbf16>, vector<64x16xf32> -> vector<64x16xf32>
    %466 = arith.addf %459, %465 : vector<64x16xf32>
    %c3_456 = arith.constant 3 : index
    %c0_457 = arith.constant 0 : index
    %c0_458 = arith.constant 0 : index
    %c0_459 = arith.constant 0 : index
    %467 = vector.load %arg7[%c3_456, %c0_457, %c0_458, %c0_459] : memref<4x9x9x8xbf16, #tpu.memory_space<vmem>>, vector<1x8x8x8xbf16>
    %468 = vector.shape_cast %467 : vector<1x8x8x8xbf16> to vector<8x8x8xbf16>
    %469 = vector.shape_cast %468 : vector<8x8x8xbf16> to vector<64x8xbf16>
    %c4_460 = arith.constant 4 : index
    %c0_461 = arith.constant 0 : index
    %c0_462 = arith.constant 0 : index
    %470 = vector.load %arg4[%c4_460, %c0_461, %c0_462] : memref<9x8x16xbf16, #tpu.memory_space<vmem>>, vector<1x8x16xbf16>
    %471 = vector.shape_cast %470 : vector<1x8x16xbf16> to vector<8x16xbf16>
    %cst_463 = arith.constant dense<0.000000e+00> : vector<64x16xf32>
    %472 = tpu.matmul %469, %471, %cst_463 {dimension_numbers = #tpu.dot_dimension_numbers<[1], [0], [0], [1], [0, 0, 1, 1], [], []>} : vector<64x8xbf16>, vector<8x16xbf16>, vector<64x16xf32> -> vector<64x16xf32>
    %473 = arith.addf %466, %472 : vector<64x16xf32>
    %c2_464 = arith.constant 2 : index
    %c0_465 = arith.constant 0 : index
    %c1_466 = arith.constant 1 : index
    %c0_467 = arith.constant 0 : index
    %474 = vector.load %arg7[%c2_464, %c0_465, %c1_466, %c0_467] : memref<4x9x9x8xbf16, #tpu.memory_space<vmem>>, vector<1x8x8x8xbf16>
    %475 = vector.shape_cast %474 : vector<1x8x8x8xbf16> to vector<8x8x8xbf16>
    %476 = vector.shape_cast %475 : vector<8x8x8xbf16> to vector<64x8xbf16>
    %c5_468 = arith.constant 5 : index
    %c0_469 = arith.constant 0 : index
    %c0_470 = arith.constant 0 : index
    %477 = vector.load %arg4[%c5_468, %c0_469, %c0_470] : memref<9x8x16xbf16, #tpu.memory_space<vmem>>, vector<1x8x16xbf16>
    %478 = vector.shape_cast %477 : vector<1x8x16xbf16> to vector<8x16xbf16>
    %cst_471 = arith.constant dense<0.000000e+00> : vector<64x16xf32>
    %479 = tpu.matmul %476, %478, %cst_471 {dimension_numbers = #tpu.dot_dimension_numbers<[1], [0], [0], [1], [0, 0, 1, 1], [], []>} : vector<64x8xbf16>, vector<8x16xbf16>, vector<64x16xf32> -> vector<64x16xf32>
    %480 = arith.addf %473, %479 : vector<64x16xf32>
    %c0_472 = arith.constant 0 : index
    %c1_473 = arith.constant 1 : index
    %c0_474 = arith.constant 0 : index
    %c0_475 = arith.constant 0 : index
    %481 = vector.load %arg7[%c0_472, %c1_473, %c0_474, %c0_475] : memref<4x9x9x8xbf16, #tpu.memory_space<vmem>>, vector<1x8x8x8xbf16>
    %482 = vector.shape_cast %481 : vector<1x8x8x8xbf16> to vector<8x8x8xbf16>
    %483 = vector.shape_cast %482 : vector<8x8x8xbf16> to vector<64x8xbf16>
    %c6_476 = arith.constant 6 : index
    %c0_477 = arith.constant 0 : index
    %c0_478 = arith.constant 0 : index
    %484 = vector.load %arg4[%c6_476, %c0_477, %c0_478] : memref<9x8x16xbf16, #tpu.memory_space<vmem>>, vector<1x8x16xbf16>
    %485 = vector.shape_cast %484 : vector<1x8x16xbf16> to vector<8x16xbf16>
    %cst_479 = arith.constant dense<0.000000e+00> : vector<64x16xf32>
    %486 = tpu.matmul %483, %485, %cst_479 {dimension_numbers = #tpu.dot_dimension_numbers<[1], [0], [0], [1], [0, 0, 1, 1], [], []>} : vector<64x8xbf16>, vector<8x16xbf16>, vector<64x16xf32> -> vector<64x16xf32>
    %487 = arith.addf %480, %486 : vector<64x16xf32>
    %c1_480 = arith.constant 1 : index
    %c1_481 = arith.constant 1 : index
    %c0_482 = arith.constant 0 : index
    %c0_483 = arith.constant 0 : index
    %488 = vector.load %arg7[%c1_480, %c1_481, %c0_482, %c0_483] : memref<4x9x9x8xbf16, #tpu.memory_space<vmem>>, vector<1x8x8x8xbf16>
    %489 = vector.shape_cast %488 : vector<1x8x8x8xbf16> to vector<8x8x8xbf16>
    %490 = vector.shape_cast %489 : vector<8x8x8xbf16> to vector<64x8xbf16>
    %c7_484 = arith.constant 7 : index
    %c0_485 = arith.constant 0 : index
    %c0_486 = arith.constant 0 : index
    %491 = vector.load %arg4[%c7_484, %c0_485, %c0_486] : memref<9x8x16xbf16, #tpu.memory_space<vmem>>, vector<1x8x16xbf16>
    %492 = vector.shape_cast %491 : vector<1x8x16xbf16> to vector<8x16xbf16>
    %cst_487 = arith.constant dense<0.000000e+00> : vector<64x16xf32>
    %493 = tpu.matmul %490, %492, %cst_487 {dimension_numbers = #tpu.dot_dimension_numbers<[1], [0], [0], [1], [0, 0, 1, 1], [], []>} : vector<64x8xbf16>, vector<8x16xbf16>, vector<64x16xf32> -> vector<64x16xf32>
    %494 = arith.addf %487, %493 : vector<64x16xf32>
    %c0_488 = arith.constant 0 : index
    %c1_489 = arith.constant 1 : index
    %c1_490 = arith.constant 1 : index
    %c0_491 = arith.constant 0 : index
    %495 = vector.load %arg7[%c0_488, %c1_489, %c1_490, %c0_491] : memref<4x9x9x8xbf16, #tpu.memory_space<vmem>>, vector<1x8x8x8xbf16>
    %496 = vector.shape_cast %495 : vector<1x8x8x8xbf16> to vector<8x8x8xbf16>
    %497 = vector.shape_cast %496 : vector<8x8x8xbf16> to vector<64x8xbf16>
    %c8_492 = arith.constant 8 : index
    %c0_493 = arith.constant 0 : index
    %c0_494 = arith.constant 0 : index
    %498 = vector.load %arg4[%c8_492, %c0_493, %c0_494] : memref<9x8x16xbf16, #tpu.memory_space<vmem>>, vector<1x8x16xbf16>
    %499 = vector.shape_cast %498 : vector<1x8x16xbf16> to vector<8x16xbf16>
    %cst_495 = arith.constant dense<0.000000e+00> : vector<64x16xf32>
    %500 = tpu.matmul %497, %499, %cst_495 {dimension_numbers = #tpu.dot_dimension_numbers<[1], [0], [0], [1], [0, 0, 1, 1], [], []>} : vector<64x8xbf16>, vector<8x16xbf16>, vector<64x16xf32> -> vector<64x16xf32>
    %501 = arith.addf %494, %500 : vector<64x16xf32>
    %cst_496 = arith.constant 0.000000e+00 : f32
    %502 = vector.broadcast %cst_496 : f32 to vector<64x16xf32>
    %503 = arith.maximumf %501, %502 : vector<64x16xf32>
    %c0_497 = arith.constant 0 : index
    %c0_498 = arith.constant 0 : index
    %c0_499 = arith.constant 0 : index
    %504 = vector.load %arg6[%c0_497, %c0_498, %c0_499] : memref<1x64x16xf32, #tpu.memory_space<vmem>>, vector<1x64x16xf32>
    %505 = vector.shape_cast %504 : vector<1x64x16xf32> to vector<64x16xf32>
    %506 = vector.shape_cast %503 : vector<64x16xf32> to vector<1x64x16xf32>
    tpu.vector_store %arg6[%c0_497, %c0_498, %c0_499], %506 {strides = array<i32>} : memref<1x64x16xf32, #tpu.memory_space<vmem>>, vector<1x64x16xf32>,
    return
  }
  func.func @transform_0(%arg0: i32) -> (i32, i32, i32, i32) {
    %c0_i32 = arith.constant 0 : i32
    %c0_i32_0 = arith.constant 0 : i32
    %c0_i32_1 = arith.constant 0 : i32
    %c0_i32_2 = arith.constant 0 : i32
    return %arg0, %c0_i32, %c0_i32_0, %c0_i32_1 : i32, i32, i32, i32
  }
  func.func @transform_1(%arg0: i32) -> (i32, i32, i32) {
    %c0_i32 = arith.constant 0 : i32
    %c0_i32_0 = arith.constant 0 : i32
    %c0_i32_1 = arith.constant 0 : i32
    %c0_i32_2 = arith.constant 0 : i32
    return %c0_i32, %c0_i32_0, %c0_i32_1 : i32, i32, i32
  }
  func.func @transform_2(%arg0: i32) -> (i32, i32) {
    %c0_i32 = arith.constant 0 : i32
    %c0_i32_0 = arith.constant 0 : i32
    %c0_i32_1 = arith.constant 0 : i32
    return %c0_i32, %c0_i32_0 : i32, i32
  }
  func.func @transform_3(%arg0: i32) -> (i32, i32, i32) {
    %c0_i32 = arith.constant 0 : i32
    %c0_i32_0 = arith.constant 0 : i32
    %c0_i32_1 = arith.constant 0 : i32
    %c0_i32_2 = arith.constant 0 : i32
    return %c0_i32, %c0_i32_0, %c0_i32_1 : i32, i32, i32
  }
  func.func @transform_4(%arg0: i32) -> (i32, i32) {
    %c0_i32 = arith.constant 0 : i32
    %c0_i32_0 = arith.constant 0 : i32
    %c0_i32_1 = arith.constant 0 : i32
    return %c0_i32, %c0_i32_0 : i32, i32
  }
  func.func @transform_5(%arg0: i32) -> (i32, i32, i32) {
    %c0_i32 = arith.constant 0 : i32
    %c0_i32_0 = arith.constant 0 : i32
    %c0_i32_1 = arith.constant 0 : i32
    return %arg0, %c0_i32, %c0_i32_0 : i32, i32, i32
  }
}

</mosaic_0001>

<llo_original>
// kernel: _lambda_.1
$region0: #{_lambda_.1}
  #allocation0 [shape = 'u32[]', space=smem, size = 0x4, offset = 0x4, fixed_abs, tag = 'smem constant byte address 0x4 - core index']
  #allocation1 [shape = 'u32[72,128]{1,0:T(1,128)}', space=vmem, size = 0x9000, scoped, tag = 'internal scratch']
  #allocation2 [shape = 'bf16[4,9,9,8]{3,2,1,0:T(8,128)(2,1)}', space=vmem, size = 0x24000, scoped, tag = 'scratch operand']
  %s0 = inlined_call_operand.vmem [shape: bf16[8,9,9,4], index: 0, kind: input, shape index: {}]
  %s1 = inlined_call_operand.vmem [shape: bf16[9,4,8], index: 1, kind: input, shape index: {}]
  %s2 = inlined_call_operand.vmem [shape: f32[1,8], index: 2, kind: input, shape index: {}]
  %s3 = inlined_call_operand.vmem [shape: bf16[9,8,16], index: 3, kind: input, shape index: {}]
  %s4 = inlined_call_operand.vmem [shape: f32[1,16], index: 4, kind: input, shape index: {}]
  %s5 = inlined_call_operand.vmem [shape: f32[2,64,16], index: 5, kind: output, shape index: {}]
  %s6 = sld [smem:[#allocation0]]
  $region53: #{_lambda_.1} parent=0
    _
  %s8 = ssub.s32 1, %s6
  %s9 = scalar_select 0, %s8, %s6
  loop: start=0, step=1, limit=4
  $region2: #{_lambda_.1} parent=0 // loop_pre_header
    _
  $region3: #{_lambda_.1} parent=0 // loop_header
    %s11 = sphi 0, %s15
    %p12 = scmp.ge.s32.totalorder %s11, 4
    %s21 = sphi 0, %s23
    %s24 = sphi 0, %s21
    %s25 = sphi 0, %s24
    %s41 = sphi 0, %s25
    %s45 = sphi 0, %s45
    %s47 = sphi 0, %s45
    %s48 = sphi 0, %s47
    %s62 = sphi 0, %s48
    %s66 = sphi 0, %s66
    %s68 = sphi 0, %s66
    %s69 = sphi 0, %s68
    %s83 = sphi 0, %s69
    %s87 = sphi 0, %s87
    %s89 = sphi 0, %s87
    %s90 = sphi 0, %s89
    %s104 = sphi 0, %s90
    %s108 = sphi 0, %s108
    %s110 = sphi 0, %s108
    %s111 = sphi 0, %s110
    %s125 = sphi 0, %s111
    %s131 = sphi 0, %s133
    %s134 = sphi 0, %s131
    %s135 = sphi 0, %s134
    %s151 = sphi 0, %s135
  $region4: #{_lambda_.1} parent=0 // loop_header_branch
    %14 = sbr.rel (%p12) target = $region8
  $region5: #{_lambda_.1} parent=0 // loop_body
    %s16 = ssub.s32 %s11, 1
    %s17 = ssub.s32 %s11, 2
    %s18 = sadd.s32 %s11, 1
    %s19 = ssub.s32 %s11, %s18
    %p20 = scmp.eq.s32.totalorder %s19, 0
    %s22 = sadd.s32 %s21, 1
    %s23 = scalar_select %p20, %s21, %s22
    %p26 = pneg %p20
    %p27 = scmp.eq.s32.totalorder %s11, 1
    %p28 = por %p26, %p27
    %p29 = scmp.ne.s32.totalorder %s21, %s24
    %p30 = scmp.eq.s32.totalorder %s11, 0
    %p31 = por %p29, %p30
    %p32 = scmp.ne.s32.totalorder %s21, %s24
    %p33 = scmp.eq.s32.totalorder %s16, 1
    %p34 = por %p32, %p33
    %p35 = scmp.ne.s32.totalorder %s24, %s25
    %p36 = scmp.eq.s32.totalorder %s16, 0
    %p37 = por %p35, %p36
    %p38 = scmp.ne.s32.totalorder %s24, %s25
    %p39 = scmp.eq.s32.totalorder %s17, 1
    %p40 = por %p38, %p39
    %p42 = scmp.ne.s32.totalorder %s25, %s41
    %p43 = scmp.eq.s32.totalorder %s17, 0
    %p44 = por %p42, %p43
    %s46 = sadd.s32 %s45, 1
    %p49 = scmp.eq.s32.totalorder %s11, 1
    %p50 = scmp.ne.s32.totalorder %s45, %s47
    %p51 = scmp.eq.s32.totalorder %s11, 0
    %p52 = por %p50, %p51
    %p53 = scmp.ne.s32.totalorder %s45, %s47
    %p54 = scmp.eq.s32.totalorder %s16, 1
    %p55 = por %p53, %p54
    %p56 = scmp.ne.s32.totalorder %s47, %s48
    %p57 = scmp.eq.s32.totalorder %s16, 0
    %p58 = por %p56, %p57
    %p59 = scmp.ne.s32.totalorder %s47, %s48
    %p60 = scmp.eq.s32.totalorder %s17, 1
    %p61 = por %p59, %p60
    %p63 = scmp.ne.s32.totalorder %s48, %s62
    %p64 = scmp.eq.s32.totalorder %s17, 0
    %p65 = por %p63, %p64
    %s67 = sadd.s32 %s66, 1
    %p70 = scmp.eq.s32.totalorder %s11, 1
    %p71 = scmp.ne.s32.totalorder %s66, %s68
    %p72 = scmp.eq.s32.totalorder %s11, 0
    %p73 = por %p71, %p72
    %p74 = scmp.ne.s32.totalorder %s66, %s68
    %p75 = scmp.eq.s32.totalorder %s16, 1
    %p76 = por %p74, %p75
    %p77 = scmp.ne.s32.totalorder %s68, %s69
    %p78 = scmp.eq.s32.totalorder %s16, 0
    %p79 = por %p77, %p78
    %p80 = scmp.ne.s32.totalorder %s68, %s69
    %p81 = scmp.eq.s32.totalorder %s17, 1
    %p82 = por %p80, %p81
    %p84 = scmp.ne.s32.totalorder %s69, %s83
    %p85 = scmp.eq.s32.totalorder %s17, 0
    %p86 = por %p84, %p85
    %s88 = sadd.s32 %s87, 1
    %p91 = scmp.eq.s32.totalorder %s11, 1
    %p92 = scmp.ne.s32.totalorder %s87, %s89
    %p93 = scmp.eq.s32.totalorder %s11, 0
    %p94 = por %p92, %p93
    %p95 = scmp.ne.s32.totalorder %s87, %s89
    %p96 = scmp.eq.s32.totalorder %s16, 1
    %p97 = por %p95, %p96
    %p98 = scmp.ne.s32.totalorder %s89, %s90
    %p99 = scmp.eq.s32.totalorder %s16, 0
    %p100 = por %p98, %p99
    %p101 = scmp.ne.s32.totalorder %s89, %s90
    %p102 = scmp.eq.s32.totalorder %s17, 1
    %p103 = por %p101, %p102
    %p105 = scmp.ne.s32.totalorder %s90, %s104
    %p106 = scmp.eq.s32.totalorder %s17, 0
    %p107 = por %p105, %p106
    %s109 = sadd.s32 %s108, 1
    %p112 = scmp.eq.s32.totalorder %s11, 1
    %p113 = scmp.ne.s32.totalorder %s108, %s110
    %p114 = scmp.eq.s32.totalorder %s11, 0
    %p115 = por %p113, %p114
    %p116 = scmp.ne.s32.totalorder %s108, %s110
    %p117 = scmp.eq.s32.totalorder %s16, 1
    %p118 = por %p116, %p117
    %p119 = scmp.ne.s32.totalorder %s110, %s111
    %p120 = scmp.eq.s32.totalorder %s16, 0
    %p121 = por %p119, %p120
    %p122 = scmp.ne.s32.totalorder %s110, %s111
    %p123 = scmp.eq.s32.totalorder %s17, 1
    %p124 = por %p122, %p123
    %p126 = scmp.ne.s32.totalorder %s111, %s125
    %p127 = scmp.eq.s32.totalorder %s17, 0
    %p128 = por %p126, %p127
    %s129 = ssub.s32 %s11, %s18
    %p130 = scmp.eq.s32.totalorder %s129, 0
    %s132 = sadd.s32 %s131, 1
    %s133 = scalar_select %p130, %s131, %s132
    %p136 = pneg %p130
    %p137 = scmp.eq.s32.totalorder %s11, 1
    %p138 = por %p136, %p137
    %p139 = scmp.ne.s32.totalorder %s131, %s134
    %p140 = scmp.eq.s32.totalorder %s11, 0
    %p141 = por %p139, %p140
    %p142 = scmp.ne.s32.totalorder %s131, %s134
    %p143 = scmp.eq.s32.totalorder %s16, 1
    %p144 = por %p142, %p143
    %p145 = scmp.ne.s32.totalorder %s134, %s135
    %p146 = scmp.eq.s32.totalorder %s16, 0
    %p147 = por %p145, %p146
    %p148 = scmp.ne.s32.totalorder %s134, %s135
    %p149 = scmp.eq.s32.totalorder %s17, 1
    %p150 = por %p148, %p149
    %p152 = scmp.ne.s32.totalorder %s135, %s151
    %p153 = scmp.eq.s32.totalorder %s17, 0
    %p154 = por %p152, %p153
    %p155 = scmp.le.s32.totalorder 1, %s11
    %p156 = scmp.lt.s32.totalorder %s11, 3
    %p157 = pnand %p155, %p156
    %p158 = pneg %p157
    // Predicated region
    $region9: #{_lambda_.1} parent=5 // pred_check
      _
    $region10: #{_lambda_.1} parent=5 // pred_check_branch
      %160 = sbr.rel (%p157) target = $region12
    $region11: #{_lambda_.1} parent=5 // pred_region
      %s161 = ssub.s32 %s11, 1
      // Predicated region
      $region13: #{_lambda_.1} parent=11 // pred_check
        %p162 = pneg %p58
      $region14: #{_lambda_.1} parent=11 // pred_check_branch
        %164 = sbr.rel (%p162) target = $region16
      $region15: #{_lambda_.1} parent=11 // pred_region
        _
      $region16: #{_lambda_.1} parent=11 // pred_fallthru
        _
      // Predicated region
      $region17: #{_lambda_.1} parent=11 // pred_check
        %p165 = pneg %p79
      $region18: #{_lambda_.1} parent=11 // pred_check_branch
        %167 = sbr.rel (%p165) target = $region20
      $region19: #{_lambda_.1} parent=11 // pred_region
        _
      $region20: #{_lambda_.1} parent=11 // pred_fallthru
        _
      // Predicated region
      $region21: #{_lambda_.1} parent=11 // pred_check
        %p168 = pneg %p100
      $region22: #{_lambda_.1} parent=11 // pred_check_branch
        %170 = sbr.rel (%p168) target = $region24
      $region23: #{_lambda_.1} parent=11 // pred_region
        _
      $region24: #{_lambda_.1} parent=11 // pred_fallthru
        _
      // Predicated region
      $region25: #{_lambda_.1} parent=11 // pred_check
        %p171 = pneg %p121
      $region26: #{_lambda_.1} parent=11 // pred_check_branch
        %173 = sbr.rel (%p171) target = $region28
      $region27: #{_lambda_.1} parent=11 // pred_region
        _
      $region28: #{_lambda_.1} parent=11 // pred_fallthru
        _
    $region12: #{_lambda_.1} parent=5 // pred_fallthru
      _
    %p174 = scmp.lt.s32.totalorder %s11, 2
    // Predicated region
    $region29: #{_lambda_.1} parent=5 // pred_check
      %p175 = pneg %p174
    $region30: #{_lambda_.1} parent=5 // pred_check_branch
      %177 = sbr.rel (%p175) target = $region32
    $region31: #{_lambda_.1} parent=5 // pred_region
      // Predicated region
      $region33: #{_lambda_.1} parent=31 // pred_check
        %p178 = pneg %p31
      $region34: #{_lambda_.1} parent=31 // pred_check_branch
        %180 = sbr.rel (%p178) target = $region36
      $region35: #{_lambda_.1} parent=31 // pred_region
        %s181 = smul.u32 4, %s11
        %p182 = scmp.lt.s32.totalorder %s181, 7
        %s183 = scalar_select %p182, %s181, 7
        %s184 = smul.addr %s183, 18
        %s185 = smul.addr %s184, 4
        %s186 = scalar_lea.vmem %s0, %s185
        %s187 = smul.u32 4, %s11
      $region36: #{_lambda_.1} parent=31 // pred_fallthru
        _
    $region32: #{_lambda_.1} parent=5 // pred_fallthru
      _
    %p188 = scmp.le.s32.totalorder 1, %s11
    %p189 = scmp.lt.s32.totalorder %s11, 3
    %p190 = pnand %p188, %p189
    %p191 = pneg %p190
    // Predicated region
    $region37: #{_lambda_.1} parent=5 // pred_check
      _
    $region38: #{_lambda_.1} parent=5 // pred_check_branch
      %193 = sbr.rel (%p190) target = $region40
    $region39: #{_lambda_.1} parent=5 // pred_region
      %s194 = ssub.s32 %s11, 1
      %s195 = smul.u32 4, %s16
      %p196 = scmp.lt.s32.totalorder %s195, 7
      %s197 = scalar_select %p196, %s195, 7
      %s198 = smul.addr %s197, 18
      %s199 = smul.addr %s198, 4
      %s200 = scalar_lea.vmem %s0, %s199
      %p201 = pneg %p37
      %p202 = pneg %p34
      %p203 = pneg %p58
      %p204 = pneg %p55
      %p205 = pneg %p79
      %p206 = pneg %p76
      %p207 = pneg %p100
      %p208 = pneg %p97
      %p209 = pneg %p121
      %p210 = pneg %p118
      %p211 = pneg %p147
      %p212 = pneg %p144
      %p213 = scmp.lt.s32.totalorder %s16, 1
      %s214 = scalar_select %p213, %s16, 1
      %s215 = smul.addr %s214, 8
      %s216 = smul.addr %s215, 8
      %s217 = scalar_lea.vmem %s5, %s216
      %s218 = smul.u32 4, %s16
      %p219 = scmp.lt.s32.totalorder %s218, 7
      %s220 = scalar_select %p219, %s218, 7
      %s221 = smul.addr %s220, 18
      %s222 = smul.addr %s221, 4
      %s223 = scalar_lea.vmem %s0, %s222
      %s224 = smul.u32 4, %s16
      %p225 = scmp.lt.s32.totalorder %s16, 1
      %s226 = scalar_select %p225, %s16, 1
      %s227 = smul.addr %s226, 8
      %s228 = smul.addr %s227, 8
      %s229 = scalar_lea.vmem %s5, %s228
      %vm231 = vcmask 60416
      %232 = vst.msk [vmem:[#allocation2] sm:$0xf] %vm231, 0
      %vm233 = vcmask 57344
      %vm234 = vsmask.f32 256
      %vm235 = vmand %vm233, %vm234
      %v236 = vld [vmem:[#allocation2 + $0x4] sm:$0x1]
      %v237 = vsel %vm235, 0, %v236
      %238 = vst [vmem:[#allocation2 + $0x4] sm:$0x1] %v237
      %239 = vst.msk [vmem:[#allocation2 + $0x8] sm:$0xf] %vm231, 0
      %v240 = vld [vmem:[#allocation2 + $0xc] sm:$0x1]
      %v241 = vsel %vm235, 0, %v240
      %242 = vst [vmem:[#allocation2 + $0xc] sm:$0x1] %v241
      %243 = vst.msk [vmem:[#allocation2 + $0x10] sm:$0xf] %vm231, 0
      %v244 = vld [vmem:[#allocation2 + $0x14] sm:$0x1]
      %v245 = vsel %vm235, 0, %v244
      %246 = vst [vmem:[#allocation2 + $0x14] sm:$0x1] %v245
      %247 = vst.msk [vmem:[#allocation2 + $0x18] sm:$0xf] %vm231, 0
      %v248 = vld [vmem:[#allocation2 + $0x1c] sm:$0x1]
      %v249 = vsel %vm235, 0, %v248
      %250 = vst [vmem:[#allocation2 + $0x1c] sm:$0x1] %v249
      %251 = vst.msk [vmem:[#allocation2 + $0x20] sm:$0xf] %vm231, 0
      %v252 = vld [vmem:[#allocation2 + $0x24] sm:$0x1]
      %v253 = vsel %vm235, 0, %v252
      %254 = vst [vmem:[#allocation2 + $0x24] sm:$0x1] %v253
      %255 = vst.msk [vmem:[#allocation2 + $0x28] sm:$0xf] %vm231, 0
      %v256 = vld [vmem:[#allocation2 + $0x2c] sm:$0x1]
      %v257 = vsel %vm235, 0, %v256
      %258 = vst [vmem:[#allocation2 + $0x2c] sm:$0x1] %v257
      %259 = vst.msk [vmem:[#allocation2 + $0x30] sm:$0xf] %vm231, 0
      %v260 = vld [vmem:[#allocation2 + $0x34] sm:$0x1]
      %v261 = vsel %vm235, 0, %v260
      %262 = vst [vmem:[#allocation2 + $0x34] sm:$0x1] %v261
      %263 = vst.msk [vmem:[#allocation2 + $0x38] sm:$0xf] %vm231, 0
      %v264 = vld [vmem:[#allocation2 + $0x3c] sm:$0x1]
      %v265 = vsel %vm235, 0, %v264
      %266 = vst [vmem:[#allocation2 + $0x3c] sm:$0x1] %v265
      %267 = vst.msk [vmem:[#allocation2 + $0x40] sm:$0xf] %vm231, 0
      %v268 = vld [vmem:[#allocation2 + $0x44] sm:$0x1]
      %v269 = vsel %vm235, 0, %v268
      %270 = vst [vmem:[#allocation2 + $0x44] sm:$0x1] %v269
      %271 = vst.msk [vmem:[#allocation2 + $0x48] sm:$0xf] %vm231, 0
      %v272 = vld [vmem:[#allocation2 + $0x4c] sm:$0x1]
      %v273 = vsel %vm235, 0, %v272
      %274 = vst [vmem:[#allocation2 + $0x4c] sm:$0x1] %v273
      %275 = vst.msk [vmem:[#allocation2 + $0x50] sm:$0xf] %vm231, 0
      %v276 = vld [vmem:[#allocation2 + $0x54] sm:$0x1]
      %v277 = vsel %vm235, 0, %v276
      %278 = vst [vmem:[#allocation2 + $0x54] sm:$0x1] %v277
      %279 = vst.msk [vmem:[#allocation2 + $0x58] sm:$0xf] %vm231, 0
      %v280 = vld [vmem:[#allocation2 + $0x5c] sm:$0x1]
      %v281 = vsel %vm235, 0, %v280
      %282 = vst [vmem:[#allocation2 + $0x5c] sm:$0x1] %v281
      %283 = vst.msk [vmem:[#allocation2 + $0x60] sm:$0xf] %vm231, 0
      %v284 = vld [vmem:[#allocation2 + $0x64] sm:$0x1]
      %v285 = vsel %vm235, 0, %v284
      %286 = vst [vmem:[#allocation2 + $0x64] sm:$0x1] %v285
      %287 = vst.msk [vmem:[#allocation2 + $0x68] sm:$0xf] %vm231, 0
      %v288 = vld [vmem:[#allocation2 + $0x6c] sm:$0x1]
      %v289 = vsel %vm235, 0, %v288
      %290 = vst [vmem:[#allocation2 + $0x6c] sm:$0x1] %v289
      %291 = vst.msk [vmem:[#allocation2 + $0x70] sm:$0xf] %vm231, 0
      %v292 = vld [vmem:[#allocation2 + $0x74] sm:$0x1]
      %v293 = vsel %vm235, 0, %v292
      %294 = vst [vmem:[#allocation2 + $0x74] sm:$0x1] %v293
      %295 = vst.msk [vmem:[#allocation2 + $0x78] sm:$0xf] %vm231, 0
      %v296 = vld [vmem:[#allocation2 + $0x7c] sm:$0x1]
      %v297 = vsel %vm235, 0, %v296
      %298 = vst [vmem:[#allocation2 + $0x7c] sm:$0x1] %v297
      %299 = vst.msk [vmem:[#allocation2 + $0x80] sm:$0xf] %vm231, 0
      %v300 = vld [vmem:[#allocation2 + $0x84] sm:$0x1]
      %v301 = vsel %vm235, 0, %v300
      %302 = vst [vmem:[#allocation2 + $0x84] sm:$0x1] %v301
      %303 = vst.msk [vmem:[#allocation2 + $0x88] sm:$0xf] %vm231, 0
      %v304 = vld [vmem:[#allocation2 + $0x8c] sm:$0x1]
      %v305 = vsel %vm235, 0, %v304
      %306 = vst [vmem:[#allocation2 + $0x8c] sm:$0x1] %v305
      %307 = vst.msk [vmem:[#allocation2 + $0x90] sm:$0xf] %vm231, 0
      %v308 = vld [vmem:[#allocation2 + $0x94] sm:$0x1]
      %v309 = vsel %vm235, 0, %v308
      %310 = vst [vmem:[#allocation2 + $0x94] sm:$0x1] %v309
      %311 = vst.msk [vmem:[#allocation2 + $0x98] sm:$0xf] %vm231, 0
      %v312 = vld [vmem:[#allocation2 + $0x9c] sm:$0x1]
      %v313 = vsel %vm235, 0, %v312
      %314 = vst [vmem:[#allocation2 + $0x9c] sm:$0x1] %v313
      %315 = vst.msk [vmem:[#allocation2 + $0xa0] sm:$0xf] %vm231, 0
      %v316 = vld [vmem:[#allocation2 + $0xa4] sm:$0x1]
      %v317 = vsel %vm235, 0, %v316
      %318 = vst [vmem:[#allocation2 + $0xa4] sm:$0x1] %v317
      %319 = vst.msk [vmem:[#allocation2 + $0xa8] sm:$0xf] %vm231, 0
      %v320 = vld [vmem:[#allocation2 + $0xac] sm:$0x1]
      %v321 = vsel %vm235, 0, %v320
      %322 = vst [vmem:[#allocation2 + $0xac] sm:$0x1] %v321
      %323 = vst.msk [vmem:[#allocation2 + $0xb0] sm:$0xf] %vm231, 0
      %v324 = vld [vmem:[#allocation2 + $0xb4] sm:$0x1]
      %v325 = vsel %vm235, 0, %v324
      %326 = vst [vmem:[#allocation2 + $0xb4] sm:$0x1] %v325
      %327 = vst.msk [vmem:[#allocation2 + $0xb8] sm:$0xf] %vm231, 0
      %v328 = vld [vmem:[#allocation2 + $0xbc] sm:$0x1]
      %v329 = vsel %vm235, 0, %v328
      %330 = vst [vmem:[#allocation2 + $0xbc] sm:$0x1] %v329
      %331 = vst.msk [vmem:[#allocation2 + $0xc0] sm:$0xf] %vm231, 0
      %v332 = vld [vmem:[#allocation2 + $0xc4] sm:$0x1]
      %v333 = vsel %vm235, 0, %v332
      %334 = vst [vmem:[#allocation2 + $0xc4] sm:$0x1] %v333
      %335 = vst.msk [vmem:[#allocation2 + $0xc8] sm:$0xf] %vm231, 0
      %v336 = vld [vmem:[#allocation2 + $0xcc] sm:$0x1]
      %v337 = vsel %vm235, 0, %v336
      %338 = vst [vmem:[#allocation2 + $0xcc] sm:$0x1] %v337
      %339 = vst.msk [vmem:[#allocation2 + $0xd0] sm:$0xf] %vm231, 0
      %v340 = vld [vmem:[#allocation2 + $0xd4] sm:$0x1]
      %v341 = vsel %vm235, 0, %v340
      %342 = vst [vmem:[#allocation2 + $0xd4] sm:$0x1] %v341
      %343 = vst.msk [vmem:[#allocation2 + $0xd8] sm:$0xf] %vm231, 0
      %v344 = vld [vmem:[#allocation2 + $0xdc] sm:$0x1]
      %v345 = vsel %vm235, 0, %v344
      %346 = vst [vmem:[#allocation2 + $0xdc] sm:$0x1] %v345
      %347 = vst.msk [vmem:[#allocation2 + $0xe0] sm:$0xf] %vm231, 0
      %v348 = vld [vmem:[#allocation2 + $0xe4] sm:$0x1]
      %v349 = vsel %vm235, 0, %v348
      %350 = vst [vmem:[#allocation2 + $0xe4] sm:$0x1] %v349
      %351 = vst.msk [vmem:[#allocation2 + $0xe8] sm:$0xf] %vm231, 0
      %v352 = vld [vmem:[#allocation2 + $0xec] sm:$0x1]
      %v353 = vsel %vm235, 0, %v352
      %354 = vst [vmem:[#allocation2 + $0xec] sm:$0x1] %v353
      %355 = vst.msk [vmem:[#allocation2 + $0xf0] sm:$0xf] %vm231, 0
      %v356 = vld [vmem:[#allocation2 + $0xf4] sm:$0x1]
      %v357 = vsel %vm235, 0, %v356
      %358 = vst [vmem:[#allocation2 + $0xf4] sm:$0x1] %v357
      %359 = vst.msk [vmem:[#allocation2 + $0xf8] sm:$0xf] %vm231, 0
      %v360 = vld [vmem:[#allocation2 + $0xfc] sm:$0x1]
      %v361 = vsel %vm235, 0, %v360
      %362 = vst [vmem:[#allocation2 + $0xfc] sm:$0x1] %v361
      %363 = vst.msk [vmem:[#allocation2 + $0x100] sm:$0xf] %vm231, 0
      %v364 = vld [vmem:[#allocation2 + $0x104] sm:$0x1]
      %v365 = vsel %vm235, 0, %v364
      %366 = vst [vmem:[#allocation2 + $0x104] sm:$0x1] %v365
      %367 = vst.msk [vmem:[#allocation2 + $0x108] sm:$0xf] %vm231, 0
      %v368 = vld [vmem:[#allocation2 + $0x10c] sm:$0x1]
      %v369 = vsel %vm235, 0, %v368
      %370 = vst [vmem:[#allocation2 + $0x10c] sm:$0x1] %v369
      %371 = vst.msk [vmem:[#allocation2 + $0x110] sm:$0xf] %vm231, 0
      %v372 = vld [vmem:[#allocation2 + $0x114] sm:$0x1]
      %v373 = vsel %vm235, 0, %v372
      %374 = vst [vmem:[#allocation2 + $0x114] sm:$0x1] %v373
      %375 = vst.msk [vmem:[#allocation2 + $0x118] sm:$0xf] %vm231, 0
      %v376 = vld [vmem:[#allocation2 + $0x11c] sm:$0x1]
      %v377 = vsel %vm235, 0, %v376
      %378 = vst [vmem:[#allocation2 + $0x11c] sm:$0x1] %v377
      %v379 = vld [vmem:[%s2] sm:$0x1]
      %v381 = vperm.slane %v379, 0
      %v383 = vadd.f32 %v381, 0.0
      %v384 = vld [vmem:[%s223] sm:$0xf]
      %v385 = vld [vmem:[%s223 + $0x8] sm:$0xf]
      %v386 = vld [vmem:[%s223 + $0x10] sm:$0xf]
      %v387 = vld [vmem:[%s223 + $0x18] sm:$0xf]
      %v388 = vld [vmem:[%s223 + $0x20] sm:$0xf]
      %v389 = vld [vmem:[%s223 + $0x28] sm:$0xf]
      %v390 = vld [vmem:[%s223 + $0x30] sm:$0xf]
      %v391 = vld [vmem:[%s223 + $0x38] sm:$0xf]
      %v392 = vld [vmem:[%s1] sm:$0x3]
      %v401 = vunpack.c.l.b16 %v384
      %v402 = vunpack.c.l.b16 %v385
      %v403 = vunpack.c.l.b16 %v386
      %v404 = vunpack.c.l.b16 %v387
      %v405 = vunpack.c.l.b16 %v388
      %v406 = vunpack.c.l.b16 %v389
      %v407 = vunpack.c.l.b16 %v390
      %v408 = vunpack.c.l.b16 %v391
      %v409 = vpack.c.b16 %v402, %v401
      %v410 = vpack.c.b16 %v404, %v403
      %v411 = vpack.c.b16 %v406, %v405
      %v412 = vpack.c.b16 %v408, %v407
      %vm413 = vcmask 31744
      %v415 = vsel %vm413, %v409, 0
      %v418 = vsel %vm413, %v410, 0
      %v421 = vsel %vm413, %v411, 0
      %v424 = vsel %vm413, %v412, 0
      %vm426 = vcmask 1041408
      %v428 = vsel %vm426, %v392, 0
      %430 = vmatpush.bf16.msra.mxu0 0
      %431 = vmatpush.bf16.msra.mxu0 0
      %432 = vmatpush.bf16.msra.mxu0 0
      %433 = vmatpush.bf16.msra.mxu0 0
      %434 = vmatpush.bf16.msra.mxu0 0
      %435 = vmatpush.bf16.msra.mxu0 0
      %436 = vmatpush.bf16.msra.mxu0 0
      %437 = vmatpush.bf16.msra.mxu0 %v428
      %438 = vmatmul.bf16.gmra.mxu0 %v415
      %v439 = vpop.f32.mrf.mxu0
      %v440 = vadd.f32 0.0, %v439
      %v441 = vpop.f32.mrf.mxu0
      %v442 = vadd.f32 0.0, %v441
      %443 = vmatmul.bf16.gmra.mxu0 %v418
      %v444 = vpop.f32.mrf.mxu0
      %v445 = vadd.f32 0.0, %v444
      %v446 = vpop.f32.mrf.mxu0
      %v447 = vadd.f32 0.0, %v446
      %448 = vmatmul.bf16.gmra.mxu0 %v421
      %v449 = vpop.f32.mrf.mxu0
      %v450 = vadd.f32 0.0, %v449
      %v451 = vpop.f32.mrf.mxu0
      %v452 = vadd.f32 0.0, %v451
      %453 = vmatmul.bf16.gmra.mxu0 %v424
      %v454 = vpop.f32.mrf.mxu0
      %v455 = vadd.f32 0.0, %v454
      %v456 = vpop.f32.mrf.mxu0
      %v457 = vadd.f32 0.0, %v456
      %458 = vdwg.mxu0
      %v459 = vadd.f32 %v383, %v440
      %v460 = vadd.f32 %v383, %v442
      %v461 = vadd.f32 %v383, %v445
      %v462 = vadd.f32 %v383, %v447
      %v463 = vadd.f32 %v383, %v450
      %v464 = vadd.f32 %v383, %v452
      %v465 = vadd.f32 %v383, %v455
      %v466 = vadd.f32 %v383, %v457
      %s467 = scalar_lea.vmem %s223, 72
      %v468 = vld [vmem:[%s467] sm:$0xf]
      %v469 = vld [vmem:[%s467 + $0x8] sm:$0xf]
      %v470 = vld [vmem:[%s467 + $0x10] sm:$0xf]
      %v471 = vld [vmem:[%s467 + $0x18] sm:$0xf]
      %v472 = vld [vmem:[%s467 + $0x20] sm:$0xf]
      %v473 = vld [vmem:[%s467 + $0x28] sm:$0xf]
      %v474 = vld [vmem:[%s467 + $0x30] sm:$0xf]
      %v475 = vld [vmem:[%s467 + $0x38] sm:$0xf]
      %s476 = scalar_lea.vmem %s1, 2
      %v477 = vld [vmem:[%s476] sm:$0x3]
      %v486 = vunpack.c.l.b16 %v468
      %v487 = vunpack.c.l.b16 %v469
      %v488 = vunpack.c.l.b16 %v470
      %v489 = vunpack.c.l.b16 %v471
      %v490 = vunpack.c.l.b16 %v472
      %v491 = vunpack.c.l.b16 %v473
      %v492 = vunpack.c.l.b16 %v474
      %v493 = vunpack.c.l.b16 %v475
      %v494 = vpack.c.b16 %v487, %v486
      %v495 = vpack.c.b16 %v489, %v488
      %v496 = vpack.c.b16 %v491, %v490
      %v497 = vpack.c.b16 %v493, %v492
      %v499 = vsel %vm413, %v494, 0
      %v502 = vsel %vm413, %v495, 0
      %v505 = vsel %vm413, %v496, 0
      %v508 = vsel %vm413, %v497, 0
      %v511 = vsel %vm426, %v477, 0
      %513 = vmatpush.bf16.msra.mxu0 0
      %514 = vmatpush.bf16.msra.mxu0 0
      %515 = vmatpush.bf16.msra.mxu0 0
      %516 = vmatpush.bf16.msra.mxu0 0
      %517 = vmatpush.bf16.msra.mxu0 0
      %518 = vmatpush.bf16.msra.mxu0 0
      %519 = vmatpush.bf16.msra.mxu0 0
      %520 = vmatpush.bf16.msra.mxu0 %v511
      %521 = vmatmul.bf16.gmra.mxu0 %v499
      %v522 = vpop.f32.mrf.mxu0
      %v523 = vadd.f32 0.0, %v522
      %v524 = vpop.f32.mrf.mxu0
      %v525 = vadd.f32 0.0, %v524
      %526 = vmatmul.bf16.gmra.mxu0 %v502
      %v527 = vpop.f32.mrf.mxu0
      %v528 = vadd.f32 0.0, %v527
      %v529 = vpop.f32.mrf.mxu0
      %v530 = vadd.f32 0.0, %v529
      %531 = vmatmul.bf16.gmra.mxu0 %v505
      %v532 = vpop.f32.mrf.mxu0
      %v533 = vadd.f32 0.0, %v532
      %v534 = vpop.f32.mrf.mxu0
      %v535 = vadd.f32 0.0, %v534
      %536 = vmatmul.bf16.gmra.mxu0 %v508
      %v537 = vpop.f32.mrf.mxu0
      %v538 = vadd.f32 0.0, %v537
      %v539 = vpop.f32.mrf.mxu0
      %v540 = vadd.f32 0.0, %v539
      %541 = vdwg.mxu0
      %v542 = vadd.f32 %v459, %v523
      %v543 = vadd.f32 %v460, %v525
      %v544 = vadd.f32 %v461, %v528
      %v545 = vadd.f32 %v462, %v530
      %v546 = vadd.f32 %v463, %v533
      %v547 = vadd.f32 %v464, %v535
      %v548 = vadd.f32 %v465, %v538
      %v549 = vadd.f32 %v466, %v540
      %v550 = vld [vmem:[%s223] sm:$0xf]
      %v551 = vld [vmem:[%s223 + $0x4] sm:$0x1]
      %v552 = vld [vmem:[%s223 + $0x8] sm:$0xf]
      %v553 = vld [vmem:[%s223 + $0xc] sm:$0x1]
      %v554 = vld [vmem:[%s223 + $0x10] sm:$0xf]
      %v555 = vld [vmem:[%s223 + $0x14] sm:$0x1]
      %v556 = vld [vmem:[%s223 + $0x18] sm:$0xf]
      %v557 = vld [vmem:[%s223 + $0x1c] sm:$0x1]
      %v558 = vld [vmem:[%s223 + $0x20] sm:$0xf]
      %v559 = vld [vmem:[%s223 + $0x24] sm:$0x1]
      %v560 = vld [vmem:[%s223 + $0x28] sm:$0xf]
      %v561 = vld [vmem:[%s223 + $0x2c] sm:$0x1]
      %v562 = vld [vmem:[%s223 + $0x30] sm:$0xf]
      %v563 = vld [vmem:[%s223 + $0x34] sm:$0x1]
      %v564 = vld [vmem:[%s223 + $0x38] sm:$0xf]
      %v565 = vld [vmem:[%s223 + $0x3c] sm:$0x1]
      %vm566 = vsmask.f32 3328
      %vm567 = vsmask.f32 7440
      %vm568 = vmor %vm566, %vm567
      %v570 = vshrl.u32 %v550, 16
      %v572 = vrot.slane %v570, 4
      %v573 = vshll.u32 %v550, 16
      %v575 = vrot.slane %v573, 5
      %v576 = vor.u32 %v572, %v575
      %v577 = vrot.slane %v576, 4
      %v579 = vshll.u32 %v551, 16
      %v581 = vrot.slane %v579, 5
      %v582 = vsel %vm568, %v577, %v581
      %v584 = vshrl.u32 %v552, 16
      %v586 = vrot.slane %v584, 4
      %v587 = vshll.u32 %v552, 16
      %v589 = vrot.slane %v587, 5
      %v590 = vor.u32 %v586, %v589
      %v591 = vrot.slane %v590, 4
      %v593 = vshll.u32 %v553, 16
      %v595 = vrot.slane %v593, 5
      %v596 = vsel %vm568, %v591, %v595
      %v598 = vshrl.u32 %v554, 16
      %v600 = vrot.slane %v598, 4
      %v601 = vshll.u32 %v554, 16
      %v603 = vrot.slane %v601, 5
      %v604 = vor.u32 %v600, %v603
      %v605 = vrot.slane %v604, 4
      %v607 = vshll.u32 %v555, 16
      %v609 = vrot.slane %v607, 5
      %v610 = vsel %vm568, %v605, %v609
      %v612 = vshrl.u32 %v556, 16
      %v614 = vrot.slane %v612, 4
      %v615 = vshll.u32 %v556, 16
      %v617 = vrot.slane %v615, 5
      %v618 = vor.u32 %v614, %v617
      %v619 = vrot.slane %v618, 4
      %v621 = vshll.u32 %v557, 16
      %v623 = vrot.slane %v621, 5
      %v624 = vsel %vm568, %v619, %v623
      %v626 = vshrl.u32 %v558, 16
      %v628 = vrot.slane %v626, 4
      %v629 = vshll.u32 %v558, 16
      %v631 = vrot.slane %v629, 5
      %v632 = vor.u32 %v628, %v631
      %v633 = vrot.slane %v632, 4
      %v635 = vshll.u32 %v559, 16
      %v637 = vrot.slane %v635, 5
      %v638 = vsel %vm568, %v633, %v637
      %v640 = vshrl.u32 %v560, 16
      %v642 = vrot.slane %v640, 4
      %v643 = vshll.u32 %v560, 16
      %v645 = vrot.slane %v643, 5
      %v646 = vor.u32 %v642, %v645
      %v647 = vrot.slane %v646, 4
      %v649 = vshll.u32 %v561, 16
      %v651 = vrot.slane %v649, 5
      %v652 = vsel %vm568, %v647, %v651
      %v654 = vshrl.u32 %v562, 16
      %v656 = vrot.slane %v654, 4
      %v657 = vshll.u32 %v562, 16
      %v659 = vrot.slane %v657, 5
      %v660 = vor.u32 %v656, %v659
      %v661 = vrot.slane %v660, 4
      %v663 = vshll.u32 %v563, 16
      %v665 = vrot.slane %v663, 5
      %v666 = vsel %vm568, %v661, %v665
      %v668 = vshrl.u32 %v564, 16
      %v670 = vrot.slane %v668, 4
      %v671 = vshll.u32 %v564, 16
      %v673 = vrot.slane %v671, 5
      %v674 = vor.u32 %v670, %v673
      %v675 = vrot.slane %v674, 4
      %v677 = vshll.u32 %v565, 16
      %v679 = vrot.slane %v677, 5
      %v680 = vsel %vm568, %v675, %v679
      %s681 = scalar_lea.vmem %s1, 4
      %v682 = vld [vmem:[%s681] sm:$0x3]
      %v683 = vunpack.c.l.b16 %v582
      %v684 = vunpack.c.l.b16 %v596
      %v685 = vunpack.c.l.b16 %v610
      %v686 = vunpack.c.l.b16 %v624
      %v687 = vunpack.c.l.b16 %v638
      %v688 = vunpack.c.l.b16 %v652
      %v689 = vunpack.c.l.b16 %v666
      %v690 = vunpack.c.l.b16 %v680
      %v691 = vpack.c.b16 %v684, %v683
      %v692 = vpack.c.b16 %v686, %v685
      %v693 = vpack.c.b16 %v688, %v687
      %v694 = vpack.c.b16 %v690, %v689
      %v696 = vsel %vm413, %v691, 0
      %v699 = vsel %vm413, %v692, 0
      %v702 = vsel %vm413, %v693, 0
      %v705 = vsel %vm413, %v694, 0
      %v708 = vsel %vm426, %v682, 0
      %710 = vmatpush.bf16.msra.mxu0 0
      %711 = vmatpush.bf16.msra.mxu0 0
      %712 = vmatpush.bf16.msra.mxu0 0
      %713 = vmatpush.bf16.msra.mxu0 0
      %714 = vmatpush.bf16.msra.mxu0 0
      %715 = vmatpush.bf16.msra.mxu0 0
      %716 = vmatpush.bf16.msra.mxu0 0
      %717 = vmatpush.bf16.msra.mxu0 %v708
      %718 = vmatmul.bf16.gmra.mxu0 %v696
      %v719 = vpop.f32.mrf.mxu0
      %v720 = vadd.f32 0.0, %v719
      %v721 = vpop.f32.mrf.mxu0
      %v722 = vadd.f32 0.0, %v721
      %723 = vmatmul.bf16.gmra.mxu0 %v699
      %v724 = vpop.f32.mrf.mxu0
      %v725 = vadd.f32 0.0, %v724
      %v726 = vpop.f32.mrf.mxu0
      %v727 = vadd.f32 0.0, %v726
      %728 = vmatmul.bf16.gmra.mxu0 %v702
      %v729 = vpop.f32.mrf.mxu0
      %v730 = vadd.f32 0.0, %v729
      %v731 = vpop.f32.mrf.mxu0
      %v732 = vadd.f32 0.0, %v731
      %733 = vmatmul.bf16.gmra.mxu0 %v705
      %v734 = vpop.f32.mrf.mxu0
      %v735 = vadd.f32 0.0, %v734
      %v736 = vpop.f32.mrf.mxu0
      %v737 = vadd.f32 0.0, %v736
      %738 = vdwg.mxu0
      %v739 = vadd.f32 %v542, %v720
      %v740 = vadd.f32 %v543, %v722
      %v741 = vadd.f32 %v544, %v725
      %v742 = vadd.f32 %v545, %v727
      %v743 = vadd.f32 %v546, %v730
      %v744 = vadd.f32 %v547, %v732
      %v745 = vadd.f32 %v548, %v735
      %v746 = vadd.f32 %v549, %v737
      %s747 = scalar_lea.vmem %s223, 144
      %v748 = vld [vmem:[%s747] sm:$0xf]
      %v749 = vld [vmem:[%s747 + $0x8] sm:$0xf]
      %v750 = vld [vmem:[%s747 + $0x10] sm:$0xf]
      %v751 = vld [vmem:[%s747 + $0x18] sm:$0xf]
      %v752 = vld [vmem:[%s747 + $0x20] sm:$0xf]
      %v753 = vld [vmem:[%s747 + $0x28] sm:$0xf]
      %v754 = vld [vmem:[%s747 + $0x30] sm:$0xf]
      %v755 = vld [vmem:[%s747 + $0x38] sm:$0xf]
      %s756 = scalar_lea.vmem %s1, 6
      %v757 = vld [vmem:[%s756] sm:$0x3]
      %v766 = vunpack.c.l.b16 %v748
      %v767 = vunpack.c.l.b16 %v749
      %v768 = vunpack.c.l.b16 %v750
      %v769 = vunpack.c.l.b16 %v751
      %v770 = vunpack.c.l.b16 %v752
      %v771 = vunpack.c.l.b16 %v753
      %v772 = vunpack.c.l.b16 %v754
      %v773 = vunpack.c.l.b16 %v755
      %v774 = vpack.c.b16 %v767, %v766
      %v775 = vpack.c.b16 %v769, %v768
      %v776 = vpack.c.b16 %v771, %v770
      %v777 = vpack.c.b16 %v773, %v772
      %v779 = vsel %vm413, %v774, 0
      %v782 = vsel %vm413, %v775, 0
      %v785 = vsel %vm413, %v776, 0
      %v788 = vsel %vm413, %v777, 0
      %v791 = vsel %vm426, %v757, 0
      %793 = vmatpush.bf16.msra.mxu0 0
      %794 = vmatpush.bf16.msra.mxu0 0
      %795 = vmatpush.bf16.msra.mxu0 0
      %796 = vmatpush.bf16.msra.mxu0 0
      %797 = vmatpush.bf16.msra.mxu0 0
      %798 = vmatpush.bf16.msra.mxu0 0
      %799 = vmatpush.bf16.msra.mxu0 0
      %800 = vmatpush.bf16.msra.mxu0 %v791
      %801 = vmatmul.bf16.gmra.mxu0 %v779
      %v802 = vpop.f32.mrf.mxu0
      %v803 = vadd.f32 0.0, %v802
      %v804 = vpop.f32.mrf.mxu0
      %v805 = vadd.f32 0.0, %v804
      %806 = vmatmul.bf16.gmra.mxu0 %v782
      %v807 = vpop.f32.mrf.mxu0
      %v808 = vadd.f32 0.0, %v807
      %v809 = vpop.f32.mrf.mxu0
      %v810 = vadd.f32 0.0, %v809
      %811 = vmatmul.bf16.gmra.mxu0 %v785
      %v812 = vpop.f32.mrf.mxu0
      %v813 = vadd.f32 0.0, %v812
      %v814 = vpop.f32.mrf.mxu0
      %v815 = vadd.f32 0.0, %v814
      %816 = vmatmul.bf16.gmra.mxu0 %v788
      %v817 = vpop.f32.mrf.mxu0
      %v818 = vadd.f32 0.0, %v817
      %v819 = vpop.f32.mrf.mxu0
      %v820 = vadd.f32 0.0, %v819
      %821 = vdwg.mxu0
      %v822 = vadd.f32 %v739, %v803
      %v823 = vadd.f32 %v740, %v805
      %v824 = vadd.f32 %v741, %v808
      %v825 = vadd.f32 %v742, %v810
      %v826 = vadd.f32 %v743, %v813
      %v827 = vadd.f32 %v744, %v815
      %v828 = vadd.f32 %v745, %v818
      %v829 = vadd.f32 %v746, %v820
      %s830 = scalar_lea.vmem %s223, 216
      %v831 = vld [vmem:[%s830] sm:$0xf]
      %v832 = vld [vmem:[%s830 + $0x8] sm:$0xf]
      %v833 = vld [vmem:[%s830 + $0x10] sm:$0xf]
      %v834 = vld [vmem:[%s830 + $0x18] sm:$0xf]
      %v835 = vld [vmem:[%s830 + $0x20] sm:$0xf]
      %v836 = vld [vmem:[%s830 + $0x28] sm:$0xf]
      %v837 = vld [vmem:[%s830 + $0x30] sm:$0xf]
      %v838 = vld [vmem:[%s830 + $0x38] sm:$0xf]
      %s839 = scalar_lea.vmem %s1, 8
      %v840 = vld [vmem:[%s839] sm:$0x3]
      %v849 = vunpack.c.l.b16 %v831
      %v850 = vunpack.c.l.b16 %v832
      %v851 = vunpack.c.l.b16 %v833
      %v852 = vunpack.c.l.b16 %v834
      %v853 = vunpack.c.l.b16 %v835
      %v854 = vunpack.c.l.b16 %v836
      %v855 = vunpack.c.l.b16 %v837
      %v856 = vunpack.c.l.b16 %v838
      %v857 = vpack.c.b16 %v850, %v849
      %v858 = vpack.c.b16 %v852, %v851
      %v859 = vpack.c.b16 %v854, %v853
      %v860 = vpack.c.b16 %v856, %v855
      %v862 = vsel %vm413, %v857, 0
      %v865 = vsel %vm413, %v858, 0
      %v868 = vsel %vm413, %v859, 0
      %v871 = vsel %vm413, %v860, 0
      %v874 = vsel %vm426, %v840, 0
      %876 = vmatpush.bf16.msra.mxu0 0
      %877 = vmatpush.bf16.msra.mxu0 0
      %878 = vmatpush.bf16.msra.mxu0 0
      %879 = vmatpush.bf16.msra.mxu0 0
      %880 = vmatpush.bf16.msra.mxu0 0
      %881 = vmatpush.bf16.msra.mxu0 0
      %882 = vmatpush.bf16.msra.mxu0 0
      %883 = vmatpush.bf16.msra.mxu0 %v874
      %884 = vmatmul.bf16.gmra.mxu0 %v862
      %v885 = vpop.f32.mrf.mxu0
      %v886 = vadd.f32 0.0, %v885
      %v887 = vpop.f32.mrf.mxu0
      %v888 = vadd.f32 0.0, %v887
      %889 = vmatmul.bf16.gmra.mxu0 %v865
      %v890 = vpop.f32.mrf.mxu0
      %v891 = vadd.f32 0.0, %v890
      %v892 = vpop.f32.mrf.mxu0
      %v893 = vadd.f32 0.0, %v892
      %894 = vmatmul.bf16.gmra.mxu0 %v868
      %v895 = vpop.f32.mrf.mxu0
      %v896 = vadd.f32 0.0, %v895
      %v897 = vpop.f32.mrf.mxu0
      %v898 = vadd.f32 0.0, %v897
      %899 = vmatmul.bf16.gmra.mxu0 %v871
      %v900 = vpop.f32.mrf.mxu0
      %v901 = vadd.f32 0.0, %v900
      %v902 = vpop.f32.mrf.mxu0
      %v903 = vadd.f32 0.0, %v902
      %904 = vdwg.mxu0
      %v905 = vadd.f32 %v822, %v886
      %v906 = vadd.f32 %v823, %v888
      %v907 = vadd.f32 %v824, %v891
      %v908 = vadd.f32 %v825, %v893
      %v909 = vadd.f32 %v826, %v896
      %v910 = vadd.f32 %v827, %v898
      %v911 = vadd.f32 %v828, %v901
      %v912 = vadd.f32 %v829, %v903
      %v913 = vld [vmem:[%s747] sm:$0xf]
      %v914 = vld [vmem:[%s747 + $0x4] sm:$0x1]
      %v915 = vld [vmem:[%s747 + $0x8] sm:$0xf]
      %v916 = vld [vmem:[%s747 + $0xc] sm:$0x1]
      %v917 = vld [vmem:[%s747 + $0x10] sm:$0xf]
      %v918 = vld [vmem:[%s747 + $0x14] sm:$0x1]
      %v919 = vld [vmem:[%s747 + $0x18] sm:$0xf]
      %v920 = vld [vmem:[%s747 + $0x1c] sm:$0x1]
      %v921 = vld [vmem:[%s747 + $0x20] sm:$0xf]
      %v922 = vld [vmem:[%s747 + $0x24] sm:$0x1]
      %v923 = vld [vmem:[%s747 + $0x28] sm:$0xf]
      %v924 = vld [vmem:[%s747 + $0x2c] sm:$0x1]
      %v925 = vld [vmem:[%s747 + $0x30] sm:$0xf]
      %v926 = vld [vmem:[%s747 + $0x34] sm:$0x1]
      %v927 = vld [vmem:[%s747 + $0x38] sm:$0xf]
      %v928 = vld [vmem:[%s747 + $0x3c] sm:$0x1]
      %v930 = vshrl.u32 %v913, 16
      %v932 = vrot.slane %v930, 4
      %v933 = vshll.u32 %v913, 16
      %v935 = vrot.slane %v933, 5
      %v936 = vor.u32 %v932, %v935
      %v937 = vrot.slane %v936, 4
      %v939 = vshll.u32 %v914, 16
      %v941 = vrot.slane %v939, 5
      %v942 = vsel %vm568, %v937, %v941
      %v944 = vshrl.u32 %v915, 16
      %v946 = vrot.slane %v944, 4
      %v947 = vshll.u32 %v915, 16
      %v949 = vrot.slane %v947, 5
      %v950 = vor.u32 %v946, %v949
      %v951 = vrot.slane %v950, 4
      %v953 = vshll.u32 %v916, 16
      %v955 = vrot.slane %v953, 5
      %v956 = vsel %vm568, %v951, %v955
      %v958 = vshrl.u32 %v917, 16
      %v960 = vrot.slane %v958, 4
      %v961 = vshll.u32 %v917, 16
      %v963 = vrot.slane %v961, 5
      %v964 = vor.u32 %v960, %v963
      %v965 = vrot.slane %v964, 4
      %v967 = vshll.u32 %v918, 16
      %v969 = vrot.slane %v967, 5
      %v970 = vsel %vm568, %v965, %v969
      %v972 = vshrl.u32 %v919, 16
      %v974 = vrot.slane %v972, 4
      %v975 = vshll.u32 %v919, 16
      %v977 = vrot.slane %v975, 5
      %v978 = vor.u32 %v974, %v977
      %v979 = vrot.slane %v978, 4
      %v981 = vshll.u32 %v920, 16
      %v983 = vrot.slane %v981, 5
      %v984 = vsel %vm568, %v979, %v983
      %v986 = vshrl.u32 %v921, 16
      %v988 = vrot.slane %v986, 4
      %v989 = vshll.u32 %v921, 16
      %v991 = vrot.slane %v989, 5
      %v992 = vor.u32 %v988, %v991
      %v993 = vrot.slane %v992, 4
      %v995 = vshll.u32 %v922, 16
      %v997 = vrot.slane %v995, 5
      %v998 = vsel %vm568, %v993, %v997
      %v1000 = vshrl.u32 %v923, 16
      %v1002 = vrot.slane %v1000, 4
      %v1003 = vshll.u32 %v923, 16
      %v1005 = vrot.slane %v1003, 5
      %v1006 = vor.u32 %v1002, %v1005
      %v1007 = vrot.slane %v1006, 4
      %v1009 = vshll.u32 %v924, 16
      %v1011 = vrot.slane %v1009, 5
      %v1012 = vsel %vm568, %v1007, %v1011
      %v1014 = vshrl.u32 %v925, 16
      %v1016 = vrot.slane %v1014, 4
      %v1017 = vshll.u32 %v925, 16
      %v1019 = vrot.slane %v1017, 5
      %v1020 = vor.u32 %v1016, %v1019
      %v1021 = vrot.slane %v1020, 4
      %v1023 = vshll.u32 %v926, 16
      %v1025 = vrot.slane %v1023, 5
      %v1026 = vsel %vm568, %v1021, %v1025
      %v1028 = vshrl.u32 %v927, 16
      %v1030 = vrot.slane %v1028, 4
      %v1031 = vshll.u32 %v927, 16
      %v1033 = vrot.slane %v1031, 5
      %v1034 = vor.u32 %v1030, %v1033
      %v1035 = vrot.slane %v1034, 4
      %v1037 = vshll.u32 %v928, 16
      %v1039 = vrot.slane %v1037, 5
      %v1040 = vsel %vm568, %v1035, %v1039
      %s1041 = scalar_lea.vmem %s1, 10
      %v1042 = vld [vmem:[%s1041] sm:$0x3]
      %v1043 = vunpack.c.l.b16 %v942
      %v1044 = vunpack.c.l.b16 %v956
      %v1045 = vunpack.c.l.b16 %v970
      %v1046 = vunpack.c.l.b16 %v984
      %v1047 = vunpack.c.l.b16 %v998
      %v1048 = vunpack.c.l.b16 %v1012
      %v1049 = vunpack.c.l.b16 %v1026
      %v1050 = vunpack.c.l.b16 %v1040
      %v1051 = vpack.c.b16 %v1044, %v1043
      %v1052 = vpack.c.b16 %v1046, %v1045
      %v1053 = vpack.c.b16 %v1048, %v1047
      %v1054 = vpack.c.b16 %v1050, %v1049
      %v1056 = vsel %vm413, %v1051, 0
      %v1059 = vsel %vm413, %v1052, 0
      %v1062 = vsel %vm413, %v1053, 0
      %v1065 = vsel %vm413, %v1054, 0
      %v1068 = vsel %vm426, %v1042, 0
      %1070 = vmatpush.bf16.msra.mxu0 0
      %1071 = vmatpush.bf16.msra.mxu0 0
      %1072 = vmatpush.bf16.msra.mxu0 0
      %1073 = vmatpush.bf16.msra.mxu0 0
      %1074 = vmatpush.bf16.msra.mxu0 0
      %1075 = vmatpush.bf16.msra.mxu0 0
      %1076 = vmatpush.bf16.msra.mxu0 0
      %1077 = vmatpush.bf16.msra.mxu0 %v1068
      %1078 = vmatmul.bf16.gmra.mxu0 %v1056
      %v1079 = vpop.f32.mrf.mxu0
      %v1080 = vadd.f32 0.0, %v1079
      %v1081 = vpop.f32.mrf.mxu0
      %v1082 = vadd.f32 0.0, %v1081
      %1083 = vmatmul.bf16.gmra.mxu0 %v1059
      %v1084 = vpop.f32.mrf.mxu0
      %v1085 = vadd.f32 0.0, %v1084
      %v1086 = vpop.f32.mrf.mxu0
      %v1087 = vadd.f32 0.0, %v1086
      %1088 = vmatmul.bf16.gmra.mxu0 %v1062
      %v1089 = vpop.f32.mrf.mxu0
      %v1090 = vadd.f32 0.0, %v1089
      %v1091 = vpop.f32.mrf.mxu0
      %v1092 = vadd.f32 0.0, %v1091
      %1093 = vmatmul.bf16.gmra.mxu0 %v1065
      %v1094 = vpop.f32.mrf.mxu0
      %v1095 = vadd.f32 0.0, %v1094
      %v1096 = vpop.f32.mrf.mxu0
      %v1097 = vadd.f32 0.0, %v1096
      %1098 = vdwg.mxu0
      %v1099 = vadd.f32 %v905, %v1080
      %v1100 = vadd.f32 %v906, %v1082
      %v1101 = vadd.f32 %v907, %v1085
      %v1102 = vadd.f32 %v908, %v1087
      %v1103 = vadd.f32 %v909, %v1090
      %v1104 = vadd.f32 %v910, %v1092
      %v1105 = vadd.f32 %v911, %v1095
      %v1106 = vadd.f32 %v912, %v1097
      %s1107 = scalar_lea.vmem %s223, 8
      %v1108 = vld [vmem:[%s1107] sm:$0xf]
      %v1109 = vld [vmem:[%s1107 + $0x8] sm:$0xf]
      %v1110 = vld [vmem:[%s1107 + $0x10] sm:$0xf]
      %v1111 = vld [vmem:[%s1107 + $0x18] sm:$0xf]
      %v1112 = vld [vmem:[%s1107 + $0x20] sm:$0xf]
      %v1113 = vld [vmem:[%s1107 + $0x28] sm:$0xf]
      %v1114 = vld [vmem:[%s1107 + $0x30] sm:$0xf]
      %v1115 = vld [vmem:[%s1107 + $0x38] sm:$0xf]
      %s1116 = scalar_lea.vmem %s1, 12
      %v1117 = vld [vmem:[%s1116] sm:$0x3]
      %v1126 = vunpack.c.l.b16 %v1108
      %v1127 = vunpack.c.l.b16 %v1109
      %v1128 = vunpack.c.l.b16 %v1110
      %v1129 = vunpack.c.l.b16 %v1111
      %v1130 = vunpack.c.l.b16 %v1112
      %v1131 = vunpack.c.l.b16 %v1113
      %v1132 = vunpack.c.l.b16 %v1114
      %v1133 = vunpack.c.l.b16 %v1115
      %v1134 = vpack.c.b16 %v1127, %v1126
      %v1135 = vpack.c.b16 %v1129, %v1128
      %v1136 = vpack.c.b16 %v1131, %v1130
      %v1137 = vpack.c.b16 %v1133, %v1132
      %v1139 = vsel %vm413, %v1134, 0
      %v1142 = vsel %vm413, %v1135, 0
      %v1145 = vsel %vm413, %v1136, 0
      %v1148 = vsel %vm413, %v1137, 0
      %v1151 = vsel %vm426, %v1117, 0
      %1153 = vmatpush.bf16.msra.mxu0 0
      %1154 = vmatpush.bf16.msra.mxu0 0
      %1155 = vmatpush.bf16.msra.mxu0 0
      %1156 = vmatpush.bf16.msra.mxu0 0
      %1157 = vmatpush.bf16.msra.mxu0 0
      %1158 = vmatpush.bf16.msra.mxu0 0
      %1159 = vmatpush.bf16.msra.mxu0 0
      %1160 = vmatpush.bf16.msra.mxu0 %v1151
      %1161 = vmatmul.bf16.gmra.mxu0 %v1139
      %v1162 = vpop.f32.mrf.mxu0
      %v1163 = vadd.f32 0.0, %v1162
      %v1164 = vpop.f32.mrf.mxu0
      %v1165 = vadd.f32 0.0, %v1164
      %1166 = vmatmul.bf16.gmra.mxu0 %v1142
      %v1167 = vpop.f32.mrf.mxu0
      %v1168 = vadd.f32 0.0, %v1167
      %v1169 = vpop.f32.mrf.mxu0
      %v1170 = vadd.f32 0.0, %v1169
      %1171 = vmatmul.bf16.gmra.mxu0 %v1145
      %v1172 = vpop.f32.mrf.mxu0
      %v1173 = vadd.f32 0.0, %v1172
      %v1174 = vpop.f32.mrf.mxu0
      %v1175 = vadd.f32 0.0, %v1174
      %1176 = vmatmul.bf16.gmra.mxu0 %v1148
      %v1177 = vpop.f32.mrf.mxu0
      %v1178 = vadd.f32 0.0, %v1177
      %v1179 = vpop.f32.mrf.mxu0
      %v1180 = vadd.f32 0.0, %v1179
      %1181 = vdwg.mxu0
      %v1182 = vadd.f32 %v1099, %v1163
      %v1183 = vadd.f32 %v1100, %v1165
      %v1184 = vadd.f32 %v1101, %v1168
      %v1185 = vadd.f32 %v1102, %v1170
      %v1186 = vadd.f32 %v1103, %v1173
      %v1187 = vadd.f32 %v1104, %v1175
      %v1188 = vadd.f32 %v1105, %v1178
      %v1189 = vadd.f32 %v1106, %v1180
      %s1190 = scalar_lea.vmem %s223, 80
      %v1191 = vld [vmem:[%s1190] sm:$0xf]
      %v1192 = vld [vmem:[%s1190 + $0x8] sm:$0xf]
      %v1193 = vld [vmem:[%s1190 + $0x10] sm:$0xf]
      %v1194 = vld [vmem:[%s1190 + $0x18] sm:$0xf]
      %v1195 = vld [vmem:[%s1190 + $0x20] sm:$0xf]
      %v1196 = vld [vmem:[%s1190 + $0x28] sm:$0xf]
      %v1197 = vld [vmem:[%s1190 + $0x30] sm:$0xf]
      %v1198 = vld [vmem:[%s1190 + $0x38] sm:$0xf]
      %s1199 = scalar_lea.vmem %s1, 14
      %v1200 = vld [vmem:[%s1199] sm:$0x3]
      %v1209 = vunpack.c.l.b16 %v1191
      %v1210 = vunpack.c.l.b16 %v1192
      %v1211 = vunpack.c.l.b16 %v1193
      %v1212 = vunpack.c.l.b16 %v1194
      %v1213 = vunpack.c.l.b16 %v1195
      %v1214 = vunpack.c.l.b16 %v1196
      %v1215 = vunpack.c.l.b16 %v1197
      %v1216 = vunpack.c.l.b16 %v1198
      %v1217 = vpack.c.b16 %v1210, %v1209
      %v1218 = vpack.c.b16 %v1212, %v1211
      %v1219 = vpack.c.b16 %v1214, %v1213
      %v1220 = vpack.c.b16 %v1216, %v1215
      %v1222 = vsel %vm413, %v1217, 0
      %v1225 = vsel %vm413, %v1218, 0
      %v1228 = vsel %vm413, %v1219, 0
      %v1231 = vsel %vm413, %v1220, 0
      %v1234 = vsel %vm426, %v1200, 0
      %1236 = vmatpush.bf16.msra.mxu0 0
      %1237 = vmatpush.bf16.msra.mxu0 0
      %1238 = vmatpush.bf16.msra.mxu0 0
      %1239 = vmatpush.bf16.msra.mxu0 0
      %1240 = vmatpush.bf16.msra.mxu0 0
      %1241 = vmatpush.bf16.msra.mxu0 0
      %1242 = vmatpush.bf16.msra.mxu0 0
      %1243 = vmatpush.bf16.msra.mxu0 %v1234
      %1244 = vmatmul.bf16.gmra.mxu0 %v1222
      %v1245 = vpop.f32.mrf.mxu0
      %v1246 = vadd.f32 0.0, %v1245
      %v1247 = vpop.f32.mrf.mxu0
      %v1248 = vadd.f32 0.0, %v1247
      %1249 = vmatmul.bf16.gmra.mxu0 %v1225
      %v1250 = vpop.f32.mrf.mxu0
      %v1251 = vadd.f32 0.0, %v1250
      %v1252 = vpop.f32.mrf.mxu0
      %v1253 = vadd.f32 0.0, %v1252
      %1254 = vmatmul.bf16.gmra.mxu0 %v1228
      %v1255 = vpop.f32.mrf.mxu0
      %v1256 = vadd.f32 0.0, %v1255
      %v1257 = vpop.f32.mrf.mxu0
      %v1258 = vadd.f32 0.0, %v1257
      %1259 = vmatmul.bf16.gmra.mxu0 %v1231
      %v1260 = vpop.f32.mrf.mxu0
      %v1261 = vadd.f32 0.0, %v1260
      %v1262 = vpop.f32.mrf.mxu0
      %v1263 = vadd.f32 0.0, %v1262
      %1264 = vdwg.mxu0
      %v1265 = vadd.f32 %v1182, %v1246
      %v1266 = vadd.f32 %v1183, %v1248
      %v1267 = vadd.f32 %v1184, %v1251
      %v1268 = vadd.f32 %v1185, %v1253
      %v1269 = vadd.f32 %v1186, %v1256
      %v1270 = vadd.f32 %v1187, %v1258
      %v1271 = vadd.f32 %v1188, %v1261
      %v1272 = vadd.f32 %v1189, %v1263
      %v1273 = vld [vmem:[%s1107] sm:$0xf]
      %v1274 = vld [vmem:[%s1107 + $0x4] sm:$0x1]
      %v1275 = vld [vmem:[%s1107 + $0x8] sm:$0xf]
      %v1276 = vld [vmem:[%s1107 + $0xc] sm:$0x1]
      %v1277 = vld [vmem:[%s1107 + $0x10] sm:$0xf]
      %v1278 = vld [vmem:[%s1107 + $0x14] sm:$0x1]
      %v1279 = vld [vmem:[%s1107 + $0x18] sm:$0xf]
      %v1280 = vld [vmem:[%s1107 + $0x1c] sm:$0x1]
      %v1281 = vld [vmem:[%s1107 + $0x20] sm:$0xf]
      %v1282 = vld [vmem:[%s1107 + $0x24] sm:$0x1]
      %v1283 = vld [vmem:[%s1107 + $0x28] sm:$0xf]
      %v1284 = vld [vmem:[%s1107 + $0x2c] sm:$0x1]
      %v1285 = vld [vmem:[%s1107 + $0x30] sm:$0xf]
      %v1286 = vld [vmem:[%s1107 + $0x34] sm:$0x1]
      %v1287 = vld [vmem:[%s1107 + $0x38] sm:$0xf]
      %v1288 = vld [vmem:[%s1107 + $0x3c] sm:$0x1]
      %v1290 = vshrl.u32 %v1273, 16
      %v1292 = vrot.slane %v1290, 4
      %v1293 = vshll.u32 %v1273, 16
      %v1295 = vrot.slane %v1293, 5
      %v1296 = vor.u32 %v1292, %v1295
      %v1297 = vrot.slane %v1296, 4
      %v1299 = vshll.u32 %v1274, 16
      %v1301 = vrot.slane %v1299, 5
      %v1302 = vsel %vm568, %v1297, %v1301
      %v1304 = vshrl.u32 %v1275, 16
      %v1306 = vrot.slane %v1304, 4
      %v1307 = vshll.u32 %v1275, 16
      %v1309 = vrot.slane %v1307, 5
      %v1310 = vor.u32 %v1306, %v1309
      %v1311 = vrot.slane %v1310, 4
      %v1313 = vshll.u32 %v1276, 16
      %v1315 = vrot.slane %v1313, 5
      %v1316 = vsel %vm568, %v1311, %v1315
      %v1318 = vshrl.u32 %v1277, 16
      %v1320 = vrot.slane %v1318, 4
      %v1321 = vshll.u32 %v1277, 16
      %v1323 = vrot.slane %v1321, 5
      %v1324 = vor.u32 %v1320, %v1323
      %v1325 = vrot.slane %v1324, 4
      %v1327 = vshll.u32 %v1278, 16
      %v1329 = vrot.slane %v1327, 5
      %v1330 = vsel %vm568, %v1325, %v1329
      %v1332 = vshrl.u32 %v1279, 16
      %v1334 = vrot.slane %v1332, 4
      %v1335 = vshll.u32 %v1279, 16
      %v1337 = vrot.slane %v1335, 5
      %v1338 = vor.u32 %v1334, %v1337
      %v1339 = vrot.slane %v1338, 4
      %v1341 = vshll.u32 %v1280, 16
      %v1343 = vrot.slane %v1341, 5
      %v1344 = vsel %vm568, %v1339, %v1343
      %v1346 = vshrl.u32 %v1281, 16
      %v1348 = vrot.slane %v1346, 4
      %v1349 = vshll.u32 %v1281, 16
      %v1351 = vrot.slane %v1349, 5
      %v1352 = vor.u32 %v1348, %v1351
      %v1353 = vrot.slane %v1352, 4
      %v1355 = vshll.u32 %v1282, 16
      %v1357 = vrot.slane %v1355, 5
      %v1358 = vsel %vm568, %v1353, %v1357
      %v1360 = vshrl.u32 %v1283, 16
      %v1362 = vrot.slane %v1360, 4
      %v1363 = vshll.u32 %v1283, 16
      %v1365 = vrot.slane %v1363, 5
      %v1366 = vor.u32 %v1362, %v1365
      %v1367 = vrot.slane %v1366, 4
      %v1369 = vshll.u32 %v1284, 16
      %v1371 = vrot.slane %v1369, 5
      %v1372 = vsel %vm568, %v1367, %v1371
      %v1374 = vshrl.u32 %v1285, 16
      %v1376 = vrot.slane %v1374, 4
      %v1377 = vshll.u32 %v1285, 16
      %v1379 = vrot.slane %v1377, 5
      %v1380 = vor.u32 %v1376, %v1379
      %v1381 = vrot.slane %v1380, 4
      %v1383 = vshll.u32 %v1286, 16
      %v1385 = vrot.slane %v1383, 5
      %v1386 = vsel %vm568, %v1381, %v1385
      %v1388 = vshrl.u32 %v1287, 16
      %v1390 = vrot.slane %v1388, 4
      %v1391 = vshll.u32 %v1287, 16
      %v1393 = vrot.slane %v1391, 5
      %v1394 = vor.u32 %v1390, %v1393
      %v1395 = vrot.slane %v1394, 4
      %v1397 = vshll.u32 %v1288, 16
      %v1399 = vrot.slane %v1397, 5
      %v1400 = vsel %vm568, %v1395, %v1399
      %s1401 = scalar_lea.vmem %s1, 16
      %v1402 = vld [vmem:[%s1401] sm:$0x3]
      %v1403 = vunpack.c.l.b16 %v1302
      %v1404 = vunpack.c.l.b16 %v1316
      %v1405 = vunpack.c.l.b16 %v1330
      %v1406 = vunpack.c.l.b16 %v1344
      %v1407 = vunpack.c.l.b16 %v1358
      %v1408 = vunpack.c.l.b16 %v1372
      %v1409 = vunpack.c.l.b16 %v1386
      %v1410 = vunpack.c.l.b16 %v1400
      %v1411 = vpack.c.b16 %v1404, %v1403
      %v1412 = vpack.c.b16 %v1406, %v1405
      %v1413 = vpack.c.b16 %v1408, %v1407
      %v1414 = vpack.c.b16 %v1410, %v1409
      %v1416 = vsel %vm413, %v1411, 0
      %v1419 = vsel %vm413, %v1412, 0
      %v1422 = vsel %vm413, %v1413, 0
      %v1425 = vsel %vm413, %v1414, 0
      %v1428 = vsel %vm426, %v1402, 0
      %1430 = vmatpush.bf16.msra.mxu0 0
      %1431 = vmatpush.bf16.msra.mxu0 0
      %1432 = vmatpush.bf16.msra.mxu0 0
      %1433 = vmatpush.bf16.msra.mxu0 0
      %1434 = vmatpush.bf16.msra.mxu0 0
      %1435 = vmatpush.bf16.msra.mxu0 0
      %1436 = vmatpush.bf16.msra.mxu0 0
      %1437 = vmatpush.bf16.msra.mxu0 %v1428
      %1438 = vmatmul.bf16.gmra.mxu0 %v1416
      %v1439 = vpop.f32.mrf.mxu0
      %v1440 = vadd.f32 0.0, %v1439
      %v1441 = vpop.f32.mrf.mxu0
      %v1442 = vadd.f32 0.0, %v1441
      %1443 = vmatmul.bf16.gmra.mxu0 %v1419
      %v1444 = vpop.f32.mrf.mxu0
      %v1445 = vadd.f32 0.0, %v1444
      %v1446 = vpop.f32.mrf.mxu0
      %v1447 = vadd.f32 0.0, %v1446
      %1448 = vmatmul.bf16.gmra.mxu0 %v1422
      %v1449 = vpop.f32.mrf.mxu0
      %v1450 = vadd.f32 0.0, %v1449
      %v1451 = vpop.f32.mrf.mxu0
      %v1452 = vadd.f32 0.0, %v1451
      %1453 = vmatmul.bf16.gmra.mxu0 %v1425
      %v1454 = vpop.f32.mrf.mxu0
      %v1455 = vadd.f32 0.0, %v1454
      %v1456 = vpop.f32.mrf.mxu0
      %v1457 = vadd.f32 0.0, %v1456
      %1458 = vdwg.mxu0
      %v1459 = vadd.f32 %v1265, %v1440
      %v1460 = vadd.f32 %v1266, %v1442
      %v1461 = vadd.f32 %v1267, %v1445
      %v1462 = vadd.f32 %v1268, %v1447
      %v1463 = vadd.f32 %v1269, %v1450
      %v1464 = vadd.f32 %v1270, %v1452
      %v1465 = vadd.f32 %v1271, %v1455
      %v1466 = vadd.f32 %v1272, %v1457
      %v1467 = vmax.f32 %v1459, 0.0
      %v1468 = vmax.f32 %v1460, 0.0
      %v1469 = vmax.f32 %v1461, 0.0
      %v1470 = vmax.f32 %v1462, 0.0
      %v1471 = vmax.f32 %v1463, 0.0
      %v1472 = vmax.f32 %v1464, 0.0
      %v1473 = vmax.f32 %v1465, 0.0
      %v1474 = vmax.f32 %v1466, 0.0
      %v1475 = vpack.c.bf16 %v1467, %v1467
      %s1476 = scalar_lea.vmem [#allocation2], 216
      %1477 = vst.msk [vmem:[%s1476] sm:$0xf] %vm231, %v1475
      %v1478 = vpack.c.bf16 %v1468, %v1468
      %s1479 = scalar_lea.vmem [#allocation2], 224
      %1480 = vst.msk [vmem:[%s1479] sm:$0xf] %vm231, %v1478
      %v1481 = vpack.c.bf16 %v1469, %v1469
      %s1482 = scalar_lea.vmem [#allocation2], 232
      %1483 = vst.msk [vmem:[%s1482] sm:$0xf] %vm231, %v1481
      %v1484 = vpack.c.bf16 %v1470, %v1470
      %s1485 = scalar_lea.vmem [#allocation2], 240
      %1486 = vst.msk [vmem:[%s1485] sm:$0xf] %vm231, %v1484
      %v1487 = vpack.c.bf16 %v1471, %v1471
      %s1488 = scalar_lea.vmem [#allocation2], 248
      %1489 = vst.msk [vmem:[%s1488] sm:$0xf] %vm231, %v1487
      %v1490 = vpack.c.bf16 %v1472, %v1472
      %s1491 = scalar_lea.vmem [#allocation2], 256
      %1492 = vst.msk [vmem:[%s1491] sm:$0xf] %vm231, %v1490
      %v1493 = vpack.c.bf16 %v1473, %v1473
      %s1494 = scalar_lea.vmem [#allocation2], 264
      %1495 = vst.msk [vmem:[%s1494] sm:$0xf] %vm231, %v1493
      %v1496 = vpack.c.bf16 %v1474, %v1474
      %s1497 = scalar_lea.vmem [#allocation2], 272
      %1498 = vst.msk [vmem:[%s1497] sm:$0xf] %vm231, %v1496
      %v1499 = vld [vmem:[%s467] sm:$0xf]
      %v1500 = vld [vmem:[%s467 + $0x8] sm:$0xf]
      %v1501 = vld [vmem:[%s467 + $0x10] sm:$0xf]
      %v1502 = vld [vmem:[%s467 + $0x18] sm:$0xf]
      %v1503 = vld [vmem:[%s467 + $0x20] sm:$0xf]
      %v1504 = vld [vmem:[%s467 + $0x28] sm:$0xf]
      %v1505 = vld [vmem:[%s467 + $0x30] sm:$0xf]
      %v1506 = vld [vmem:[%s467 + $0x38] sm:$0xf]
      %v1507 = vld [vmem:[%s1] sm:$0x3]
      %v1516 = vunpack.c.l.b16 %v1499
      %v1517 = vunpack.c.l.b16 %v1500
      %v1518 = vunpack.c.l.b16 %v1501
      %v1519 = vunpack.c.l.b16 %v1502
      %v1520 = vunpack.c.l.b16 %v1503
      %v1521 = vunpack.c.l.b16 %v1504
      %v1522 = vunpack.c.l.b16 %v1505
      %v1523 = vunpack.c.l.b16 %v1506
      %v1524 = vpack.c.b16 %v1517, %v1516
      %v1525 = vpack.c.b16 %v1519, %v1518
      %v1526 = vpack.c.b16 %v1521, %v1520
      %v1527 = vpack.c.b16 %v1523, %v1522
      %v1529 = vsel %vm413, %v1524, 0
      %v1532 = vsel %vm413, %v1525, 0
      %v1535 = vsel %vm413, %v1526, 0
      %v1538 = vsel %vm413, %v1527, 0
      %v1541 = vsel %vm426, %v1507, 0
      %1543 = vmatpush.bf16.msra.mxu0 0
      %1544 = vmatpush.bf16.msra.mxu0 0
      %1545 = vmatpush.bf16.msra.mxu0 0
      %1546 = vmatpush.bf16.msra.mxu0 0
      %1547 = vmatpush.bf16.msra.mxu0 0
      %1548 = vmatpush.bf16.msra.mxu0 0
      %1549 = vmatpush.bf16.msra.mxu0 0
      %1550 = vmatpush.bf16.msra.mxu0 %v1541
      %1551 = vmatmul.bf16.gmra.mxu0 %v1529
      %v1552 = vpop.f32.mrf.mxu0
      %v1553 = vadd.f32 0.0, %v1552
      %v1554 = vpop.f32.mrf.mxu0
      %v1555 = vadd.f32 0.0, %v1554
      %1556 = vmatmul.bf16.gmra.mxu0 %v1532
      %v1557 = vpop.f32.mrf.mxu0
      %v1558 = vadd.f32 0.0, %v1557
      %v1559 = vpop.f32.mrf.mxu0
      %v1560 = vadd.f32 0.0, %v1559
      %1561 = vmatmul.bf16.gmra.mxu0 %v1535
      %v1562 = vpop.f32.mrf.mxu0
      %v1563 = vadd.f32 0.0, %v1562
      %v1564 = vpop.f32.mrf.mxu0
      %v1565 = vadd.f32 0.0, %v1564
      %1566 = vmatmul.bf16.gmra.mxu0 %v1538
      %v1567 = vpop.f32.mrf.mxu0
      %v1568 = vadd.f32 0.0, %v1567
      %v1569 = vpop.f32.mrf.mxu0
      %v1570 = vadd.f32 0.0, %v1569
      %1571 = vdwg.mxu0
      %v1572 = vadd.f32 %v383, %v1553
      %v1573 = vadd.f32 %v383, %v1555
      %v1574 = vadd.f32 %v383, %v1558
      %v1575 = vadd.f32 %v383, %v1560
      %v1576 = vadd.f32 %v383, %v1563
      %v1577 = vadd.f32 %v383, %v1565
      %v1578 = vadd.f32 %v383, %v1568
      %v1579 = vadd.f32 %v383, %v1570
      %v1580 = vld [vmem:[%s223] sm:$0xf]
      %v1581 = vld [vmem:[%s223 + $0x4] sm:$0x1]
      %v1582 = vld [vmem:[%s223 + $0x8] sm:$0xf]
      %v1583 = vld [vmem:[%s223 + $0xc] sm:$0x1]
      %v1584 = vld [vmem:[%s223 + $0x10] sm:$0xf]
      %v1585 = vld [vmem:[%s223 + $0x14] sm:$0x1]
      %v1586 = vld [vmem:[%s223 + $0x18] sm:$0xf]
      %v1587 = vld [vmem:[%s223 + $0x1c] sm:$0x1]
      %v1588 = vld [vmem:[%s223 + $0x20] sm:$0xf]
      %v1589 = vld [vmem:[%s223 + $0x24] sm:$0x1]
      %v1590 = vld [vmem:[%s223 + $0x28] sm:$0xf]
      %v1591 = vld [vmem:[%s223 + $0x2c] sm:$0x1]
      %v1592 = vld [vmem:[%s223 + $0x30] sm:$0xf]
      %v1593 = vld [vmem:[%s223 + $0x34] sm:$0x1]
      %v1594 = vld [vmem:[%s223 + $0x38] sm:$0xf]
      %v1595 = vld [vmem:[%s223 + $0x3c] sm:$0x1]
      %v1597 = vshrl.u32 %v1580, 16
      %v1599 = vrot.slane %v1597, 4
      %v1600 = vshll.u32 %v1580, 16
      %v1602 = vrot.slane %v1600, 5
      %v1603 = vor.u32 %v1599, %v1602
      %v1604 = vrot.slane %v1603, 4
      %v1606 = vshll.u32 %v1581, 16
      %v1608 = vrot.slane %v1606, 5
      %v1609 = vsel %vm568, %v1604, %v1608
      %v1611 = vshrl.u32 %v1582, 16
      %v1613 = vrot.slane %v1611, 4
      %v1614 = vshll.u32 %v1582, 16
      %v1616 = vrot.slane %v1614, 5
      %v1617 = vor.u32 %v1613, %v1616
      %v1618 = vrot.slane %v1617, 4
      %v1620 = vshll.u32 %v1583, 16
      %v1622 = vrot.slane %v1620, 5
      %v1623 = vsel %vm568, %v1618, %v1622
      %v1625 = vshrl.u32 %v1584, 16
      %v1627 = vrot.slane %v1625, 4
      %v1628 = vshll.u32 %v1584, 16
      %v1630 = vrot.slane %v1628, 5
      %v1631 = vor.u32 %v1627, %v1630
      %v1632 = vrot.slane %v1631, 4
      %v1634 = vshll.u32 %v1585, 16
      %v1636 = vrot.slane %v1634, 5
      %v1637 = vsel %vm568, %v1632, %v1636
      %v1639 = vshrl.u32 %v1586, 16
      %v1641 = vrot.slane %v1639, 4
      %v1642 = vshll.u32 %v1586, 16
      %v1644 = vrot.slane %v1642, 5
      %v1645 = vor.u32 %v1641, %v1644
      %v1646 = vrot.slane %v1645, 4
      %v1648 = vshll.u32 %v1587, 16
      %v1650 = vrot.slane %v1648, 5
      %v1651 = vsel %vm568, %v1646, %v1650
      %v1653 = vshrl.u32 %v1588, 16
      %v1655 = vrot.slane %v1653, 4
      %v1656 = vshll.u32 %v1588, 16
      %v1658 = vrot.slane %v1656, 5
      %v1659 = vor.u32 %v1655, %v1658
      %v1660 = vrot.slane %v1659, 4
      %v1662 = vshll.u32 %v1589, 16
      %v1664 = vrot.slane %v1662, 5
      %v1665 = vsel %vm568, %v1660, %v1664
      %v1667 = vshrl.u32 %v1590, 16
      %v1669 = vrot.slane %v1667, 4
      %v1670 = vshll.u32 %v1590, 16
      %v1672 = vrot.slane %v1670, 5
      %v1673 = vor.u32 %v1669, %v1672
      %v1674 = vrot.slane %v1673, 4
      %v1676 = vshll.u32 %v1591, 16
      %v1678 = vrot.slane %v1676, 5
      %v1679 = vsel %vm568, %v1674, %v1678
      %v1681 = vshrl.u32 %v1592, 16
      %v1683 = vrot.slane %v1681, 4
      %v1684 = vshll.u32 %v1592, 16
      %v1686 = vrot.slane %v1684, 5
      %v1687 = vor.u32 %v1683, %v1686
      %v1688 = vrot.slane %v1687, 4
      %v1690 = vshll.u32 %v1593, 16
      %v1692 = vrot.slane %v1690, 5
      %v1693 = vsel %vm568, %v1688, %v1692
      %v1695 = vshrl.u32 %v1594, 16
      %v1697 = vrot.slane %v1695, 4
      %v1698 = vshll.u32 %v1594, 16
      %v1700 = vrot.slane %v1698, 5
      %v1701 = vor.u32 %v1697, %v1700
      %v1702 = vrot.slane %v1701, 4
      %v1704 = vshll.u32 %v1595, 16
      %v1706 = vrot.slane %v1704, 5
      %v1707 = vsel %vm568, %v1702, %v1706
      %v1708 = vld [vmem:[%s476] sm:$0x3]
      %v1709 = vunpack.c.l.b16 %v1609
      %v1710 = vunpack.c.l.b16 %v1623
      %v1711 = vunpack.c.l.b16 %v1637
      %v1712 = vunpack.c.l.b16 %v1651
      %v1713 = vunpack.c.l.b16 %v1665
      %v1714 = vunpack.c.l.b16 %v1679
      %v1715 = vunpack.c.l.b16 %v1693
      %v1716 = vunpack.c.l.b16 %v1707
      %v1717 = vpack.c.b16 %v1710, %v1709
      %v1718 = vpack.c.b16 %v1712, %v1711
      %v1719 = vpack.c.b16 %v1714, %v1713
      %v1720 = vpack.c.b16 %v1716, %v1715
      %v1722 = vsel %vm413, %v1717, 0
      %v1725 = vsel %vm413, %v1718, 0
      %v1728 = vsel %vm413, %v1719, 0
      %v1731 = vsel %vm413, %v1720, 0
      %v1734 = vsel %vm426, %v1708, 0
      %1736 = vmatpush.bf16.msra.mxu0 0
      %1737 = vmatpush.bf16.msra.mxu0 0
      %1738 = vmatpush.bf16.msra.mxu0 0
      %1739 = vmatpush.bf16.msra.mxu0 0
      %1740 = vmatpush.bf16.msra.mxu0 0
      %1741 = vmatpush.bf16.msra.mxu0 0
      %1742 = vmatpush.bf16.msra.mxu0 0
      %1743 = vmatpush.bf16.msra.mxu0 %v1734
      %1744 = vmatmul.bf16.gmra.mxu0 %v1722
      %v1745 = vpop.f32.mrf.mxu0
      %v1746 = vadd.f32 0.0, %v1745
      %v1747 = vpop.f32.mrf.mxu0
      %v1748 = vadd.f32 0.0, %v1747
      %1749 = vmatmul.bf16.gmra.mxu0 %v1725
      %v1750 = vpop.f32.mrf.mxu0
      %v1751 = vadd.f32 0.0, %v1750
      %v1752 = vpop.f32.mrf.mxu0
      %v1753 = vadd.f32 0.0, %v1752
      %1754 = vmatmul.bf16.gmra.mxu0 %v1728
      %v1755 = vpop.f32.mrf.mxu0
      %v1756 = vadd.f32 0.0, %v1755
      %v1757 = vpop.f32.mrf.mxu0
      %v1758 = vadd.f32 0.0, %v1757
      %1759 = vmatmul.bf16.gmra.mxu0 %v1731
      %v1760 = vpop.f32.mrf.mxu0
      %v1761 = vadd.f32 0.0, %v1760
      %v1762 = vpop.f32.mrf.mxu0
      %v1763 = vadd.f32 0.0, %v1762
      %1764 = vdwg.mxu0
      %v1765 = vadd.f32 %v1572, %v1746
      %v1766 = vadd.f32 %v1573, %v1748
      %v1767 = vadd.f32 %v1574, %v1751
      %v1768 = vadd.f32 %v1575, %v1753
      %v1769 = vadd.f32 %v1576, %v1756
      %v1770 = vadd.f32 %v1577, %v1758
      %v1771 = vadd.f32 %v1578, %v1761
      %v1772 = vadd.f32 %v1579, %v1763
      %v1773 = vld [vmem:[%s467] sm:$0xf]
      %v1774 = vld [vmem:[%s467 + $0x4] sm:$0x1]
      %v1775 = vld [vmem:[%s467 + $0x8] sm:$0xf]
      %v1776 = vld [vmem:[%s467 + $0xc] sm:$0x1]
      %v1777 = vld [vmem:[%s467 + $0x10] sm:$0xf]
      %v1778 = vld [vmem:[%s467 + $0x14] sm:$0x1]
      %v1779 = vld [vmem:[%s467 + $0x18] sm:$0xf]
      %v1780 = vld [vmem:[%s467 + $0x1c] sm:$0x1]
      %v1781 = vld [vmem:[%s467 + $0x20] sm:$0xf]
      %v1782 = vld [vmem:[%s467 + $0x24] sm:$0x1]
      %v1783 = vld [vmem:[%s467 + $0x28] sm:$0xf]
      %v1784 = vld [vmem:[%s467 + $0x2c] sm:$0x1]
      %v1785 = vld [vmem:[%s467 + $0x30] sm:$0xf]
      %v1786 = vld [vmem:[%s467 + $0x34] sm:$0x1]
      %v1787 = vld [vmem:[%s467 + $0x38] sm:$0xf]
      %v1788 = vld [vmem:[%s467 + $0x3c] sm:$0x1]
      %v1790 = vshrl.u32 %v1773, 16
      %v1792 = vrot.slane %v1790, 4
      %v1793 = vshll.u32 %v1773, 16
      %v1795 = vrot.slane %v1793, 5
      %v1796 = vor.u32 %v1792, %v1795
      %v1797 = vrot.slane %v1796, 4
      %v1799 = vshll.u32 %v1774, 16
      %v1801 = vrot.slane %v1799, 5
      %v1802 = vsel %vm568, %v1797, %v1801
      %v1804 = vshrl.u32 %v1775, 16
      %v1806 = vrot.slane %v1804, 4
      %v1807 = vshll.u32 %v1775, 16
      %v1809 = vrot.slane %v1807, 5
      %v1810 = vor.u32 %v1806, %v1809
      %v1811 = vrot.slane %v1810, 4
      %v1813 = vshll.u32 %v1776, 16
      %v1815 = vrot.slane %v1813, 5
      %v1816 = vsel %vm568, %v1811, %v1815
      %v1818 = vshrl.u32 %v1777, 16
      %v1820 = vrot.slane %v1818, 4
      %v1821 = vshll.u32 %v1777, 16
      %v1823 = vrot.slane %v1821, 5
      %v1824 = vor.u32 %v1820, %v1823
      %v1825 = vrot.slane %v1824, 4
      %v1827 = vshll.u32 %v1778, 16
      %v1829 = vrot.slane %v1827, 5
      %v1830 = vsel %vm568, %v1825, %v1829
      %v1832 = vshrl.u32 %v1779, 16
      %v1834 = vrot.slane %v1832, 4
      %v1835 = vshll.u32 %v1779, 16
      %v1837 = vrot.slane %v1835, 5
      %v1838 = vor.u32 %v1834, %v1837
      %v1839 = vrot.slane %v1838, 4
      %v1841 = vshll.u32 %v1780, 16
      %v1843 = vrot.slane %v1841, 5
      %v1844 = vsel %vm568, %v1839, %v1843
      %v1846 = vshrl.u32 %v1781, 16
      %v1848 = vrot.slane %v1846, 4
      %v1849 = vshll.u32 %v1781, 16
      %v1851 = vrot.slane %v1849, 5
      %v1852 = vor.u32 %v1848, %v1851
      %v1853 = vrot.slane %v1852, 4
      %v1855 = vshll.u32 %v1782, 16
      %v1857 = vrot.slane %v1855, 5
      %v1858 = vsel %vm568, %v1853, %v1857
      %v1860 = vshrl.u32 %v1783, 16
      %v1862 = vrot.slane %v1860, 4
      %v1863 = vshll.u32 %v1783, 16
      %v1865 = vrot.slane %v1863, 5
      %v1866 = vor.u32 %v1862, %v1865
      %v1867 = vrot.slane %v1866, 4
      %v1869 = vshll.u32 %v1784, 16
      %v1871 = vrot.slane %v1869, 5
      %v1872 = vsel %vm568, %v1867, %v1871
      %v1874 = vshrl.u32 %v1785, 16
      %v1876 = vrot.slane %v1874, 4
      %v1877 = vshll.u32 %v1785, 16
      %v1879 = vrot.slane %v1877, 5
      %v1880 = vor.u32 %v1876, %v1879
      %v1881 = vrot.slane %v1880, 4
      %v1883 = vshll.u32 %v1786, 16
      %v1885 = vrot.slane %v1883, 5
      %v1886 = vsel %vm568, %v1881, %v1885
      %v1888 = vshrl.u32 %v1787, 16
      %v1890 = vrot.slane %v1888, 4
      %v1891 = vshll.u32 %v1787, 16
      %v1893 = vrot.slane %v1891, 5
      %v1894 = vor.u32 %v1890, %v1893
      %v1895 = vrot.slane %v1894, 4
      %v1897 = vshll.u32 %v1788, 16
      %v1899 = vrot.slane %v1897, 5
      %v1900 = vsel %vm568, %v1895, %v1899
      %v1901 = vld [vmem:[%s681] sm:$0x3]
      %v1902 = vunpack.c.l.b16 %v1802
      %v1903 = vunpack.c.l.b16 %v1816
      %v1904 = vunpack.c.l.b16 %v1830
      %v1905 = vunpack.c.l.b16 %v1844
      %v1906 = vunpack.c.l.b16 %v1858
      %v1907 = vunpack.c.l.b16 %v1872
      %v1908 = vunpack.c.l.b16 %v1886
      %v1909 = vunpack.c.l.b16 %v1900
      %v1910 = vpack.c.b16 %v1903, %v1902
      %v1911 = vpack.c.b16 %v1905, %v1904
      %v1912 = vpack.c.b16 %v1907, %v1906
      %v1913 = vpack.c.b16 %v1909, %v1908
      %v1915 = vsel %vm413, %v1910, 0
      %v1918 = vsel %vm413, %v1911, 0
      %v1921 = vsel %vm413, %v1912, 0
      %v1924 = vsel %vm413, %v1913, 0
      %v1927 = vsel %vm426, %v1901, 0
      %1929 = vmatpush.bf16.msra.mxu0 0
      %1930 = vmatpush.bf16.msra.mxu0 0
      %1931 = vmatpush.bf16.msra.mxu0 0
      %1932 = vmatpush.bf16.msra.mxu0 0
      %1933 = vmatpush.bf16.msra.mxu0 0
      %1934 = vmatpush.bf16.msra.mxu0 0
      %1935 = vmatpush.bf16.msra.mxu0 0
      %1936 = vmatpush.bf16.msra.mxu0 %v1927
      %1937 = vmatmul.bf16.gmra.mxu0 %v1915
      %v1938 = vpop.f32.mrf.mxu0
      %v1939 = vadd.f32 0.0, %v1938
      %v1940 = vpop.f32.mrf.mxu0
      %v1941 = vadd.f32 0.0, %v1940
      %1942 = vmatmul.bf16.gmra.mxu0 %v1918
      %v1943 = vpop.f32.mrf.mxu0
      %v1944 = vadd.f32 0.0, %v1943
      %v1945 = vpop.f32.mrf.mxu0
      %v1946 = vadd.f32 0.0, %v1945
      %1947 = vmatmul.bf16.gmra.mxu0 %v1921
      %v1948 = vpop.f32.mrf.mxu0
      %v1949 = vadd.f32 0.0, %v1948
      %v1950 = vpop.f32.mrf.mxu0
      %v1951 = vadd.f32 0.0, %v1950
      %1952 = vmatmul.bf16.gmra.mxu0 %v1924
      %v1953 = vpop.f32.mrf.mxu0
      %v1954 = vadd.f32 0.0, %v1953
      %v1955 = vpop.f32.mrf.mxu0
      %v1956 = vadd.f32 0.0, %v1955
      %1957 = vdwg.mxu0
      %v1958 = vadd.f32 %v1765, %v1939
      %v1959 = vadd.f32 %v1766, %v1941
      %v1960 = vadd.f32 %v1767, %v1944
      %v1961 = vadd.f32 %v1768, %v1946
      %v1962 = vadd.f32 %v1769, %v1949
      %v1963 = vadd.f32 %v1770, %v1951
      %v1964 = vadd.f32 %v1771, %v1954
      %v1965 = vadd.f32 %v1772, %v1956
      %v1966 = vld [vmem:[%s830] sm:$0xf]
      %v1967 = vld [vmem:[%s830 + $0x8] sm:$0xf]
      %v1968 = vld [vmem:[%s830 + $0x10] sm:$0xf]
      %v1969 = vld [vmem:[%s830 + $0x18] sm:$0xf]
      %v1970 = vld [vmem:[%s830 + $0x20] sm:$0xf]
      %v1971 = vld [vmem:[%s830 + $0x28] sm:$0xf]
      %v1972 = vld [vmem:[%s830 + $0x30] sm:$0xf]
      %v1973 = vld [vmem:[%s830 + $0x38] sm:$0xf]
      %v1974 = vld [vmem:[%s756] sm:$0x3]
      %v1983 = vunpack.c.l.b16 %v1966
      %v1984 = vunpack.c.l.b16 %v1967
      %v1985 = vunpack.c.l.b16 %v1968
      %v1986 = vunpack.c.l.b16 %v1969
      %v1987 = vunpack.c.l.b16 %v1970
      %v1988 = vunpack.c.l.b16 %v1971
      %v1989 = vunpack.c.l.b16 %v1972
      %v1990 = vunpack.c.l.b16 %v1973
      %v1991 = vpack.c.b16 %v1984, %v1983
      %v1992 = vpack.c.b16 %v1986, %v1985
      %v1993 = vpack.c.b16 %v1988, %v1987
      %v1994 = vpack.c.b16 %v1990, %v1989
      %v1996 = vsel %vm413, %v1991, 0
      %v1999 = vsel %vm413, %v1992, 0
      %v2002 = vsel %vm413, %v1993, 0
      %v2005 = vsel %vm413, %v1994, 0
      %v2008 = vsel %vm426, %v1974, 0
      %2010 = vmatpush.bf16.msra.mxu0 0
      %2011 = vmatpush.bf16.msra.mxu0 0
      %2012 = vmatpush.bf16.msra.mxu0 0
      %2013 = vmatpush.bf16.msra.mxu0 0
      %2014 = vmatpush.bf16.msra.mxu0 0
      %2015 = vmatpush.bf16.msra.mxu0 0
      %2016 = vmatpush.bf16.msra.mxu0 0
      %2017 = vmatpush.bf16.msra.mxu0 %v2008
      %2018 = vmatmul.bf16.gmra.mxu0 %v1996
      %v2019 = vpop.f32.mrf.mxu0
      %v2020 = vadd.f32 0.0, %v2019
      %v2021 = vpop.f32.mrf.mxu0
      %v2022 = vadd.f32 0.0, %v2021
      %2023 = vmatmul.bf16.gmra.mxu0 %v1999
      %v2024 = vpop.f32.mrf.mxu0
      %v2025 = vadd.f32 0.0, %v2024
      %v2026 = vpop.f32.mrf.mxu0
      %v2027 = vadd.f32 0.0, %v2026
      %2028 = vmatmul.bf16.gmra.mxu0 %v2002
      %v2029 = vpop.f32.mrf.mxu0
      %v2030 = vadd.f32 0.0, %v2029
      %v2031 = vpop.f32.mrf.mxu0
      %v2032 = vadd.f32 0.0, %v2031
      %2033 = vmatmul.bf16.gmra.mxu0 %v2005
      %v2034 = vpop.f32.mrf.mxu0
      %v2035 = vadd.f32 0.0, %v2034
      %v2036 = vpop.f32.mrf.mxu0
      %v2037 = vadd.f32 0.0, %v2036
      %2038 = vdwg.mxu0
      %v2039 = vadd.f32 %v1958, %v2020
      %v2040 = vadd.f32 %v1959, %v2022
      %v2041 = vadd.f32 %v1960, %v2025
      %v2042 = vadd.f32 %v1961, %v2027
      %v2043 = vadd.f32 %v1962, %v2030
      %v2044 = vadd.f32 %v1963, %v2032
      %v2045 = vadd.f32 %v1964, %v2035
      %v2046 = vadd.f32 %v1965, %v2037
      %v2047 = vld [vmem:[%s747] sm:$0xf]
      %v2048 = vld [vmem:[%s747 + $0x4] sm:$0x1]
      %v2049 = vld [vmem:[%s747 + $0x8] sm:$0xf]
      %v2050 = vld [vmem:[%s747 + $0xc] sm:$0x1]
      %v2051 = vld [vmem:[%s747 + $0x10] sm:$0xf]
      %v2052 = vld [vmem:[%s747 + $0x14] sm:$0x1]
      %v2053 = vld [vmem:[%s747 + $0x18] sm:$0xf]
      %v2054 = vld [vmem:[%s747 + $0x1c] sm:$0x1]
      %v2055 = vld [vmem:[%s747 + $0x20] sm:$0xf]
      %v2056 = vld [vmem:[%s747 + $0x24] sm:$0x1]
      %v2057 = vld [vmem:[%s747 + $0x28] sm:$0xf]
      %v2058 = vld [vmem:[%s747 + $0x2c] sm:$0x1]
      %v2059 = vld [vmem:[%s747 + $0x30] sm:$0xf]
      %v2060 = vld [vmem:[%s747 + $0x34] sm:$0x1]
      %v2061 = vld [vmem:[%s747 + $0x38] sm:$0xf]
      %v2062 = vld [vmem:[%s747 + $0x3c] sm:$0x1]
      %v2064 = vshrl.u32 %v2047, 16
      %v2066 = vrot.slane %v2064, 4
      %v2067 = vshll.u32 %v2047, 16
      %v2069 = vrot.slane %v2067, 5
      %v2070 = vor.u32 %v2066, %v2069
      %v2071 = vrot.slane %v2070, 4
      %v2073 = vshll.u32 %v2048, 16
      %v2075 = vrot.slane %v2073, 5
      %v2076 = vsel %vm568, %v2071, %v2075
      %v2078 = vshrl.u32 %v2049, 16
      %v2080 = vrot.slane %v2078, 4
      %v2081 = vshll.u32 %v2049, 16
      %v2083 = vrot.slane %v2081, 5
      %v2084 = vor.u32 %v2080, %v2083
      %v2085 = vrot.slane %v2084, 4
      %v2087 = vshll.u32 %v2050, 16
      %v2089 = vrot.slane %v2087, 5
      %v2090 = vsel %vm568, %v2085, %v2089
      %v2092 = vshrl.u32 %v2051, 16
      %v2094 = vrot.slane %v2092, 4
      %v2095 = vshll.u32 %v2051, 16
      %v2097 = vrot.slane %v2095, 5
      %v2098 = vor.u32 %v2094, %v2097
      %v2099 = vrot.slane %v2098, 4
      %v2101 = vshll.u32 %v2052, 16
      %v2103 = vrot.slane %v2101, 5
      %v2104 = vsel %vm568, %v2099, %v2103
      %v2106 = vshrl.u32 %v2053, 16
      %v2108 = vrot.slane %v2106, 4
      %v2109 = vshll.u32 %v2053, 16
      %v2111 = vrot.slane %v2109, 5
      %v2112 = vor.u32 %v2108, %v2111
      %v2113 = vrot.slane %v2112, 4
      %v2115 = vshll.u32 %v2054, 16
      %v2117 = vrot.slane %v2115, 5
      %v2118 = vsel %vm568, %v2113, %v2117
      %v2120 = vshrl.u32 %v2055, 16
      %v2122 = vrot.slane %v2120, 4
      %v2123 = vshll.u32 %v2055, 16
      %v2125 = vrot.slane %v2123, 5
      %v2126 = vor.u32 %v2122, %v2125
      %v2127 = vrot.slane %v2126, 4
      %v2129 = vshll.u32 %v2056, 16
      %v2131 = vrot.slane %v2129, 5
      %v2132 = vsel %vm568, %v2127, %v2131
      %v2134 = vshrl.u32 %v2057, 16
      %v2136 = vrot.slane %v2134, 4
      %v2137 = vshll.u32 %v2057, 16
      %v2139 = vrot.slane %v2137, 5
      %v2140 = vor.u32 %v2136, %v2139
      %v2141 = vrot.slane %v2140, 4
      %v2143 = vshll.u32 %v2058, 16
      %v2145 = vrot.slane %v2143, 5
      %v2146 = vsel %vm568, %v2141, %v2145
      %v2148 = vshrl.u32 %v2059, 16
      %v2150 = vrot.slane %v2148, 4
      %v2151 = vshll.u32 %v2059, 16
      %v2153 = vrot.slane %v2151, 5
      %v2154 = vor.u32 %v2150, %v2153
      %v2155 = vrot.slane %v2154, 4
      %v2157 = vshll.u32 %v2060, 16
      %v2159 = vrot.slane %v2157, 5
      %v2160 = vsel %vm568, %v2155, %v2159
      %v2162 = vshrl.u32 %v2061, 16
      %v2164 = vrot.slane %v2162, 4
      %v2165 = vshll.u32 %v2061, 16
      %v2167 = vrot.slane %v2165, 5
      %v2168 = vor.u32 %v2164, %v2167
      %v2169 = vrot.slane %v2168, 4
      %v2171 = vshll.u32 %v2062, 16
      %v2173 = vrot.slane %v2171, 5
      %v2174 = vsel %vm568, %v2169, %v2173
      %v2175 = vld [vmem:[%s839] sm:$0x3]
      %v2176 = vunpack.c.l.b16 %v2076
      %v2177 = vunpack.c.l.b16 %v2090
      %v2178 = vunpack.c.l.b16 %v2104
      %v2179 = vunpack.c.l.b16 %v2118
      %v2180 = vunpack.c.l.b16 %v2132
      %v2181 = vunpack.c.l.b16 %v2146
      %v2182 = vunpack.c.l.b16 %v2160
      %v2183 = vunpack.c.l.b16 %v2174
      %v2184 = vpack.c.b16 %v2177, %v2176
      %v2185 = vpack.c.b16 %v2179, %v2178
      %v2186 = vpack.c.b16 %v2181, %v2180
      %v2187 = vpack.c.b16 %v2183, %v2182
      %v2189 = vsel %vm413, %v2184, 0
      %v2192 = vsel %vm413, %v2185, 0
      %v2195 = vsel %vm413, %v2186, 0
      %v2198 = vsel %vm413, %v2187, 0
      %v2201 = vsel %vm426, %v2175, 0
      %2203 = vmatpush.bf16.msra.mxu0 0
      %2204 = vmatpush.bf16.msra.mxu0 0
      %2205 = vmatpush.bf16.msra.mxu0 0
      %2206 = vmatpush.bf16.msra.mxu0 0
      %2207 = vmatpush.bf16.msra.mxu0 0
      %2208 = vmatpush.bf16.msra.mxu0 0
      %2209 = vmatpush.bf16.msra.mxu0 0
      %2210 = vmatpush.bf16.msra.mxu0 %v2201
      %2211 = vmatmul.bf16.gmra.mxu0 %v2189
      %v2212 = vpop.f32.mrf.mxu0
      %v2213 = vadd.f32 0.0, %v2212
      %v2214 = vpop.f32.mrf.mxu0
      %v2215 = vadd.f32 0.0, %v2214
      %2216 = vmatmul.bf16.gmra.mxu0 %v2192
      %v2217 = vpop.f32.mrf.mxu0
      %v2218 = vadd.f32 0.0, %v2217
      %v2219 = vpop.f32.mrf.mxu0
      %v2220 = vadd.f32 0.0, %v2219
      %2221 = vmatmul.bf16.gmra.mxu0 %v2195
      %v2222 = vpop.f32.mrf.mxu0
      %v2223 = vadd.f32 0.0, %v2222
      %v2224 = vpop.f32.mrf.mxu0
      %v2225 = vadd.f32 0.0, %v2224
      %2226 = vmatmul.bf16.gmra.mxu0 %v2198
      %v2227 = vpop.f32.mrf.mxu0
      %v2228 = vadd.f32 0.0, %v2227
      %v2229 = vpop.f32.mrf.mxu0
      %v2230 = vadd.f32 0.0, %v2229
      %2231 = vdwg.mxu0
      %v2232 = vadd.f32 %v2039, %v2213
      %v2233 = vadd.f32 %v2040, %v2215
      %v2234 = vadd.f32 %v2041, %v2218
      %v2235 = vadd.f32 %v2042, %v2220
      %v2236 = vadd.f32 %v2043, %v2223
      %v2237 = vadd.f32 %v2044, %v2225
      %v2238 = vadd.f32 %v2045, %v2228
      %v2239 = vadd.f32 %v2046, %v2230
      %v2240 = vld [vmem:[%s830] sm:$0xf]
      %v2241 = vld [vmem:[%s830 + $0x4] sm:$0x1]
      %v2242 = vld [vmem:[%s830 + $0x8] sm:$0xf]
      %v2243 = vld [vmem:[%s830 + $0xc] sm:$0x1]
      %v2244 = vld [vmem:[%s830 + $0x10] sm:$0xf]
      %v2245 = vld [vmem:[%s830 + $0x14] sm:$0x1]
      %v2246 = vld [vmem:[%s830 + $0x18] sm:$0xf]
      %v2247 = vld [vmem:[%s830 + $0x1c] sm:$0x1]
      %v2248 = vld [vmem:[%s830 + $0x20] sm:$0xf]
      %v2249 = vld [vmem:[%s830 + $0x24] sm:$0x1]
      %v2250 = vld [vmem:[%s830 + $0x28] sm:$0xf]
      %v2251 = vld [vmem:[%s830 + $0x2c] sm:$0x1]
      %v2252 = vld [vmem:[%s830 + $0x30] sm:$0xf]
      %v2253 = vld [vmem:[%s830 + $0x34] sm:$0x1]
      %v2254 = vld [vmem:[%s830 + $0x38] sm:$0xf]
      %v2255 = vld [vmem:[%s830 + $0x3c] sm:$0x1]
      %v2257 = vshrl.u32 %v2240, 16
      %v2259 = vrot.slane %v2257, 4
      %v2260 = vshll.u32 %v2240, 16
      %v2262 = vrot.slane %v2260, 5
      %v2263 = vor.u32 %v2259, %v2262
      %v2264 = vrot.slane %v2263, 4
      %v2266 = vshll.u32 %v2241, 16
      %v2268 = vrot.slane %v2266, 5
      %v2269 = vsel %vm568, %v2264, %v2268
      %v2271 = vshrl.u32 %v2242, 16
      %v2273 = vrot.slane %v2271, 4
      %v2274 = vshll.u32 %v2242, 16
      %v2276 = vrot.slane %v2274, 5
      %v2277 = vor.u32 %v2273, %v2276
      %v2278 = vrot.slane %v2277, 4
      %v2280 = vshll.u32 %v2243, 16
      %v2282 = vrot.slane %v2280, 5
      %v2283 = vsel %vm568, %v2278, %v2282
      %v2285 = vshrl.u32 %v2244, 16
      %v2287 = vrot.slane %v2285, 4
      %v2288 = vshll.u32 %v2244, 16
      %v2290 = vrot.slane %v2288, 5
      %v2291 = vor.u32 %v2287, %v2290
      %v2292 = vrot.slane %v2291, 4
      %v2294 = vshll.u32 %v2245, 16
      %v2296 = vrot.slane %v2294, 5
      %v2297 = vsel %vm568, %v2292, %v2296
      %v2299 = vshrl.u32 %v2246, 16
      %v2301 = vrot.slane %v2299, 4
      %v2302 = vshll.u32 %v2246, 16
      %v2304 = vrot.slane %v2302, 5
      %v2305 = vor.u32 %v2301, %v2304
      %v2306 = vrot.slane %v2305, 4
      %v2308 = vshll.u32 %v2247, 16
      %v2310 = vrot.slane %v2308, 5
      %v2311 = vsel %vm568, %v2306, %v2310
      %v2313 = vshrl.u32 %v2248, 16
      %v2315 = vrot.slane %v2313, 4
      %v2316 = vshll.u32 %v2248, 16
      %v2318 = vrot.slane %v2316, 5
      %v2319 = vor.u32 %v2315, %v2318
      %v2320 = vrot.slane %v2319, 4
      %v2322 = vshll.u32 %v2249, 16
      %v2324 = vrot.slane %v2322, 5
      %v2325 = vsel %vm568, %v2320, %v2324
      %v2327 = vshrl.u32 %v2250, 16
      %v2329 = vrot.slane %v2327, 4
      %v2330 = vshll.u32 %v2250, 16
      %v2332 = vrot.slane %v2330, 5
      %v2333 = vor.u32 %v2329, %v2332
      %v2334 = vrot.slane %v2333, 4
      %v2336 = vshll.u32 %v2251, 16
      %v2338 = vrot.slane %v2336, 5
      %v2339 = vsel %vm568, %v2334, %v2338
      %v2341 = vshrl.u32 %v2252, 16
      %v2343 = vrot.slane %v2341, 4
      %v2344 = vshll.u32 %v2252, 16
      %v2346 = vrot.slane %v2344, 5
      %v2347 = vor.u32 %v2343, %v2346
      %v2348 = vrot.slane %v2347, 4
      %v2350 = vshll.u32 %v2253, 16
      %v2352 = vrot.slane %v2350, 5
      %v2353 = vsel %vm568, %v2348, %v2352
      %v2355 = vshrl.u32 %v2254, 16
      %v2357 = vrot.slane %v2355, 4
      %v2358 = vshll.u32 %v2254, 16
      %v2360 = vrot.slane %v2358, 5
      %v2361 = vor.u32 %v2357, %v2360
      %v2362 = vrot.slane %v2361, 4
      %v2364 = vshll.u32 %v2255, 16
      %v2366 = vrot.slane %v2364, 5
      %v2367 = vsel %vm568, %v2362, %v2366
      %v2368 = vld [vmem:[%s1041] sm:$0x3]
      %v2369 = vunpack.c.l.b16 %v2269
      %v2370 = vunpack.c.l.b16 %v2283
      %v2371 = vunpack.c.l.b16 %v2297
      %v2372 = vunpack.c.l.b16 %v2311
      %v2373 = vunpack.c.l.b16 %v2325
      %v2374 = vunpack.c.l.b16 %v2339
      %v2375 = vunpack.c.l.b16 %v2353
      %v2376 = vunpack.c.l.b16 %v2367
      %v2377 = vpack.c.b16 %v2370, %v2369
      %v2378 = vpack.c.b16 %v2372, %v2371
      %v2379 = vpack.c.b16 %v2374, %v2373
      %v2380 = vpack.c.b16 %v2376, %v2375
      %v2382 = vsel %vm413, %v2377, 0
      %v2385 = vsel %vm413, %v2378, 0
      %v2388 = vsel %vm413, %v2379, 0
      %v2391 = vsel %vm413, %v2380, 0
      %v2394 = vsel %vm426, %v2368, 0
      %2396 = vmatpush.bf16.msra.mxu0 0
      %2397 = vmatpush.bf16.msra.mxu0 0
      %2398 = vmatpush.bf16.msra.mxu0 0
      %2399 = vmatpush.bf16.msra.mxu0 0
      %2400 = vmatpush.bf16.msra.mxu0 0
      %2401 = vmatpush.bf16.msra.mxu0 0
      %2402 = vmatpush.bf16.msra.mxu0 0
      %2403 = vmatpush.bf16.msra.mxu0 %v2394
      %2404 = vmatmul.bf16.gmra.mxu0 %v2382
      %v2405 = vpop.f32.mrf.mxu0
      %v2406 = vadd.f32 0.0, %v2405
      %v2407 = vpop.f32.mrf.mxu0
      %v2408 = vadd.f32 0.0, %v2407
      %2409 = vmatmul.bf16.gmra.mxu0 %v2385
      %v2410 = vpop.f32.mrf.mxu0
      %v2411 = vadd.f32 0.0, %v2410
      %v2412 = vpop.f32.mrf.mxu0
      %v2413 = vadd.f32 0.0, %v2412
      %2414 = vmatmul.bf16.gmra.mxu0 %v2388
      %v2415 = vpop.f32.mrf.mxu0
      %v2416 = vadd.f32 0.0, %v2415
      %v2417 = vpop.f32.mrf.mxu0
      %v2418 = vadd.f32 0.0, %v2417
      %2419 = vmatmul.bf16.gmra.mxu0 %v2391
      %v2420 = vpop.f32.mrf.mxu0
      %v2421 = vadd.f32 0.0, %v2420
      %v2422 = vpop.f32.mrf.mxu0
      %v2423 = vadd.f32 0.0, %v2422
      %2424 = vdwg.mxu0
      %v2425 = vadd.f32 %v2232, %v2406
      %v2426 = vadd.f32 %v2233, %v2408
      %v2427 = vadd.f32 %v2234, %v2411
      %v2428 = vadd.f32 %v2235, %v2413
      %v2429 = vadd.f32 %v2236, %v2416
      %v2430 = vadd.f32 %v2237, %v2418
      %v2431 = vadd.f32 %v2238, %v2421
      %v2432 = vadd.f32 %v2239, %v2423
      %v2433 = vld [vmem:[%s1190] sm:$0xf]
      %v2434 = vld [vmem:[%s1190 + $0x8] sm:$0xf]
      %v2435 = vld [vmem:[%s1190 + $0x10] sm:$0xf]
      %v2436 = vld [vmem:[%s1190 + $0x18] sm:$0xf]
      %v2437 = vld [vmem:[%s1190 + $0x20] sm:$0xf]
      %v2438 = vld [vmem:[%s1190 + $0x28] sm:$0xf]
      %v2439 = vld [vmem:[%s1190 + $0x30] sm:$0xf]
      %v2440 = vld [vmem:[%s1190 + $0x38] sm:$0xf]
      %v2441 = vld [vmem:[%s1116] sm:$0x3]
      %v2450 = vunpack.c.l.b16 %v2433
      %v2451 = vunpack.c.l.b16 %v2434
      %v2452 = vunpack.c.l.b16 %v2435
      %v2453 = vunpack.c.l.b16 %v2436
      %v2454 = vunpack.c.l.b16 %v2437
      %v2455 = vunpack.c.l.b16 %v2438
      %v2456 = vunpack.c.l.b16 %v2439
      %v2457 = vunpack.c.l.b16 %v2440
      %v2458 = vpack.c.b16 %v2451, %v2450
      %v2459 = vpack.c.b16 %v2453, %v2452
      %v2460 = vpack.c.b16 %v2455, %v2454
      %v2461 = vpack.c.b16 %v2457, %v2456
      %v2463 = vsel %vm413, %v2458, 0
      %v2466 = vsel %vm413, %v2459, 0
      %v2469 = vsel %vm413, %v2460, 0
      %v2472 = vsel %vm413, %v2461, 0
      %v2475 = vsel %vm426, %v2441, 0
      %2477 = vmatpush.bf16.msra.mxu0 0
      %2478 = vmatpush.bf16.msra.mxu0 0
      %2479 = vmatpush.bf16.msra.mxu0 0
      %2480 = vmatpush.bf16.msra.mxu0 0
      %2481 = vmatpush.bf16.msra.mxu0 0
      %2482 = vmatpush.bf16.msra.mxu0 0
      %2483 = vmatpush.bf16.msra.mxu0 0
      %2484 = vmatpush.bf16.msra.mxu0 %v2475
      %2485 = vmatmul.bf16.gmra.mxu0 %v2463
      %v2486 = vpop.f32.mrf.mxu0
      %v2487 = vadd.f32 0.0, %v2486
      %v2488 = vpop.f32.mrf.mxu0
      %v2489 = vadd.f32 0.0, %v2488
      %2490 = vmatmul.bf16.gmra.mxu0 %v2466
      %v2491 = vpop.f32.mrf.mxu0
      %v2492 = vadd.f32 0.0, %v2491
      %v2493 = vpop.f32.mrf.mxu0
      %v2494 = vadd.f32 0.0, %v2493
      %2495 = vmatmul.bf16.gmra.mxu0 %v2469
      %v2496 = vpop.f32.mrf.mxu0
      %v2497 = vadd.f32 0.0, %v2496
      %v2498 = vpop.f32.mrf.mxu0
      %v2499 = vadd.f32 0.0, %v2498
      %2500 = vmatmul.bf16.gmra.mxu0 %v2472
      %v2501 = vpop.f32.mrf.mxu0
      %v2502 = vadd.f32 0.0, %v2501
      %v2503 = vpop.f32.mrf.mxu0
      %v2504 = vadd.f32 0.0, %v2503
      %2505 = vdwg.mxu0
      %v2506 = vadd.f32 %v2425, %v2487
      %v2507 = vadd.f32 %v2426, %v2489
      %v2508 = vadd.f32 %v2427, %v2492
      %v2509 = vadd.f32 %v2428, %v2494
      %v2510 = vadd.f32 %v2429, %v2497
      %v2511 = vadd.f32 %v2430, %v2499
      %v2512 = vadd.f32 %v2431, %v2502
      %v2513 = vadd.f32 %v2432, %v2504
      %v2514 = vld [vmem:[%s1107] sm:$0xf]
      %v2515 = vld [vmem:[%s1107 + $0x4] sm:$0x1]
      %v2516 = vld [vmem:[%s1107 + $0x8] sm:$0xf]
      %v2517 = vld [vmem:[%s1107 + $0xc] sm:$0x1]
      %v2518 = vld [vmem:[%s1107 + $0x10] sm:$0xf]
      %v2519 = vld [vmem:[%s1107 + $0x14] sm:$0x1]
      %v2520 = vld [vmem:[%s1107 + $0x18] sm:$0xf]
      %v2521 = vld [vmem:[%s1107 + $0x1c] sm:$0x1]
      %v2522 = vld [vmem:[%s1107 + $0x20] sm:$0xf]
      %v2523 = vld [vmem:[%s1107 + $0x24] sm:$0x1]
      %v2524 = vld [vmem:[%s1107 + $0x28] sm:$0xf]
      %v2525 = vld [vmem:[%s1107 + $0x2c] sm:$0x1]
      %v2526 = vld [vmem:[%s1107 + $0x30] sm:$0xf]
      %v2527 = vld [vmem:[%s1107 + $0x34] sm:$0x1]
      %v2528 = vld [vmem:[%s1107 + $0x38] sm:$0xf]
      %v2529 = vld [vmem:[%s1107 + $0x3c] sm:$0x1]
      %v2531 = vshrl.u32 %v2514, 16
      %v2533 = vrot.slane %v2531, 4
      %v2534 = vshll.u32 %v2514, 16
      %v2536 = vrot.slane %v2534, 5
      %v2537 = vor.u32 %v2533, %v2536
      %v2538 = vrot.slane %v2537, 4
      %v2540 = vshll.u32 %v2515, 16
      %v2542 = vrot.slane %v2540, 5
      %v2543 = vsel %vm568, %v2538, %v2542
      %v2545 = vshrl.u32 %v2516, 16
      %v2547 = vrot.slane %v2545, 4
      %v2548 = vshll.u32 %v2516, 16
      %v2550 = vrot.slane %v2548, 5
      %v2551 = vor.u32 %v2547, %v2550
      %v2552 = vrot.slane %v2551, 4
      %v2554 = vshll.u32 %v2517, 16
      %v2556 = vrot.slane %v2554, 5
      %v2557 = vsel %vm568, %v2552, %v2556
      %v2559 = vshrl.u32 %v2518, 16
      %v2561 = vrot.slane %v2559, 4
      %v2562 = vshll.u32 %v2518, 16
      %v2564 = vrot.slane %v2562, 5
      %v2565 = vor.u32 %v2561, %v2564
      %v2566 = vrot.slane %v2565, 4
      %v2568 = vshll.u32 %v2519, 16
      %v2570 = vrot.slane %v2568, 5
      %v2571 = vsel %vm568, %v2566, %v2570
      %v2573 = vshrl.u32 %v2520, 16
      %v2575 = vrot.slane %v2573, 4
      %v2576 = vshll.u32 %v2520, 16
      %v2578 = vrot.slane %v2576, 5
      %v2579 = vor.u32 %v2575, %v2578
      %v2580 = vrot.slane %v2579, 4
      %v2582 = vshll.u32 %v2521, 16
      %v2584 = vrot.slane %v2582, 5
      %v2585 = vsel %vm568, %v2580, %v2584
      %v2587 = vshrl.u32 %v2522, 16
      %v2589 = vrot.slane %v2587, 4
      %v2590 = vshll.u32 %v2522, 16
      %v2592 = vrot.slane %v2590, 5
      %v2593 = vor.u32 %v2589, %v2592
      %v2594 = vrot.slane %v2593, 4
      %v2596 = vshll.u32 %v2523, 16
      %v2598 = vrot.slane %v2596, 5
      %v2599 = vsel %vm568, %v2594, %v2598
      %v2601 = vshrl.u32 %v2524, 16
      %v2603 = vrot.slane %v2601, 4
      %v2604 = vshll.u32 %v2524, 16
      %v2606 = vrot.slane %v2604, 5
      %v2607 = vor.u32 %v2603, %v2606
      %v2608 = vrot.slane %v2607, 4
      %v2610 = vshll.u32 %v2525, 16
      %v2612 = vrot.slane %v2610, 5
      %v2613 = vsel %vm568, %v2608, %v2612
      %v2615 = vshrl.u32 %v2526, 16
      %v2617 = vrot.slane %v2615, 4
      %v2618 = vshll.u32 %v2526, 16
      %v2620 = vrot.slane %v2618, 5
      %v2621 = vor.u32 %v2617, %v2620
      %v2622 = vrot.slane %v2621, 4
      %v2624 = vshll.u32 %v2527, 16
      %v2626 = vrot.slane %v2624, 5
      %v2627 = vsel %vm568, %v2622, %v2626
      %v2629 = vshrl.u32 %v2528, 16
      %v2631 = vrot.slane %v2629, 4
      %v2632 = vshll.u32 %v2528, 16
      %v2634 = vrot.slane %v2632, 5
      %v2635 = vor.u32 %v2631, %v2634
      %v2636 = vrot.slane %v2635, 4
      %v2638 = vshll.u32 %v2529, 16
      %v2640 = vrot.slane %v2638, 5
      %v2641 = vsel %vm568, %v2636, %v2640
      %v2642 = vld [vmem:[%s1199] sm:$0x3]
      %v2643 = vunpack.c.l.b16 %v2543
      %v2644 = vunpack.c.l.b16 %v2557
      %v2645 = vunpack.c.l.b16 %v2571
      %v2646 = vunpack.c.l.b16 %v2585
      %v2647 = vunpack.c.l.b16 %v2599
      %v2648 = vunpack.c.l.b16 %v2613
      %v2649 = vunpack.c.l.b16 %v2627
      %v2650 = vunpack.c.l.b16 %v2641
      %v2651 = vpack.c.b16 %v2644, %v2643
      %v2652 = vpack.c.b16 %v2646, %v2645
      %v2653 = vpack.c.b16 %v2648, %v2647
      %v2654 = vpack.c.b16 %v2650, %v2649
      %v2656 = vsel %vm413, %v2651, 0
      %v2659 = vsel %vm413, %v2652, 0
      %v2662 = vsel %vm413, %v2653, 0
      %v2665 = vsel %vm413, %v2654, 0
      %v2668 = vsel %vm426, %v2642, 0
      %2670 = vmatpush.bf16.msra.mxu0 0
      %2671 = vmatpush.bf16.msra.mxu0 0
      %2672 = vmatpush.bf16.msra.mxu0 0
      %2673 = vmatpush.bf16.msra.mxu0 0
      %2674 = vmatpush.bf16.msra.mxu0 0
      %2675 = vmatpush.bf16.msra.mxu0 0
      %2676 = vmatpush.bf16.msra.mxu0 0
      %2677 = vmatpush.bf16.msra.mxu0 %v2668
      %2678 = vmatmul.bf16.gmra.mxu0 %v2656
      %v2679 = vpop.f32.mrf.mxu0
      %v2680 = vadd.f32 0.0, %v2679
      %v2681 = vpop.f32.mrf.mxu0
      %v2682 = vadd.f32 0.0, %v2681
      %2683 = vmatmul.bf16.gmra.mxu0 %v2659
      %v2684 = vpop.f32.mrf.mxu0
      %v2685 = vadd.f32 0.0, %v2684
      %v2686 = vpop.f32.mrf.mxu0
      %v2687 = vadd.f32 0.0, %v2686
      %2688 = vmatmul.bf16.gmra.mxu0 %v2662
      %v2689 = vpop.f32.mrf.mxu0
      %v2690 = vadd.f32 0.0, %v2689
      %v2691 = vpop.f32.mrf.mxu0
      %v2692 = vadd.f32 0.0, %v2691
      %2693 = vmatmul.bf16.gmra.mxu0 %v2665
      %v2694 = vpop.f32.mrf.mxu0
      %v2695 = vadd.f32 0.0, %v2694
      %v2696 = vpop.f32.mrf.mxu0
      %v2697 = vadd.f32 0.0, %v2696
      %2698 = vdwg.mxu0
      %v2699 = vadd.f32 %v2506, %v2680
      %v2700 = vadd.f32 %v2507, %v2682
      %v2701 = vadd.f32 %v2508, %v2685
      %v2702 = vadd.f32 %v2509, %v2687
      %v2703 = vadd.f32 %v2510, %v2690
      %v2704 = vadd.f32 %v2511, %v2692
      %v2705 = vadd.f32 %v2512, %v2695
      %v2706 = vadd.f32 %v2513, %v2697
      %v2707 = vld [vmem:[%s1190] sm:$0xf]
      %v2708 = vld [vmem:[%s1190 + $0x4] sm:$0x1]
      %v2709 = vld [vmem:[%s1190 + $0x8] sm:$0xf]
      %v2710 = vld [vmem:[%s1190 + $0xc] sm:$0x1]
      %v2711 = vld [vmem:[%s1190 + $0x10] sm:$0xf]
      %v2712 = vld [vmem:[%s1190 + $0x14] sm:$0x1]
      %v2713 = vld [vmem:[%s1190 + $0x18] sm:$0xf]
      %v2714 = vld [vmem:[%s1190 + $0x1c] sm:$0x1]
      %v2715 = vld [vmem:[%s1190 + $0x20] sm:$0xf]
      %v2716 = vld [vmem:[%s1190 + $0x24] sm:$0x1]
      %v2717 = vld [vmem:[%s1190 + $0x28] sm:$0xf]
      %v2718 = vld [vmem:[%s1190 + $0x2c] sm:$0x1]
      %v2719 = vld [vmem:[%s1190 + $0x30] sm:$0xf]
      %v2720 = vld [vmem:[%s1190 + $0x34] sm:$0x1]
      %v2721 = vld [vmem:[%s1190 + $0x38] sm:$0xf]
      %v2722 = vld [vmem:[%s1190 + $0x3c] sm:$0x1]
      %v2724 = vshrl.u32 %v2707, 16
      %v2726 = vrot.slane %v2724, 4
      %v2727 = vshll.u32 %v2707, 16
      %v2729 = vrot.slane %v2727, 5
      %v2730 = vor.u32 %v2726, %v2729
      %v2731 = vrot.slane %v2730, 4
      %v2733 = vshll.u32 %v2708, 16
      %v2735 = vrot.slane %v2733, 5
      %v2736 = vsel %vm568, %v2731, %v2735
      %v2738 = vshrl.u32 %v2709, 16
      %v2740 = vrot.slane %v2738, 4
      %v2741 = vshll.u32 %v2709, 16
      %v2743 = vrot.slane %v2741, 5
      %v2744 = vor.u32 %v2740, %v2743
      %v2745 = vrot.slane %v2744, 4
      %v2747 = vshll.u32 %v2710, 16
      %v2749 = vrot.slane %v2747, 5
      %v2750 = vsel %vm568, %v2745, %v2749
      %v2752 = vshrl.u32 %v2711, 16
      %v2754 = vrot.slane %v2752, 4
      %v2755 = vshll.u32 %v2711, 16
      %v2757 = vrot.slane %v2755, 5
      %v2758 = vor.u32 %v2754, %v2757
      %v2759 = vrot.slane %v2758, 4
      %v2761 = vshll.u32 %v2712, 16
      %v2763 = vrot.slane %v2761, 5
      %v2764 = vsel %vm568, %v2759, %v2763
      %v2766 = vshrl.u32 %v2713, 16
      %v2768 = vrot.slane %v2766, 4
      %v2769 = vshll.u32 %v2713, 16
      %v2771 = vrot.slane %v2769, 5
      %v2772 = vor.u32 %v2768, %v2771
      %v2773 = vrot.slane %v2772, 4
      %v2775 = vshll.u32 %v2714, 16
      %v2777 = vrot.slane %v2775, 5
      %v2778 = vsel %vm568, %v2773, %v2777
      %v2780 = vshrl.u32 %v2715, 16
      %v2782 = vrot.slane %v2780, 4
      %v2783 = vshll.u32 %v2715, 16
      %v2785 = vrot.slane %v2783, 5
      %v2786 = vor.u32 %v2782, %v2785
      %v2787 = vrot.slane %v2786, 4
      %v2789 = vshll.u32 %v2716, 16
      %v2791 = vrot.slane %v2789, 5
      %v2792 = vsel %vm568, %v2787, %v2791
      %v2794 = vshrl.u32 %v2717, 16
      %v2796 = vrot.slane %v2794, 4
      %v2797 = vshll.u32 %v2717, 16
      %v2799 = vrot.slane %v2797, 5
      %v2800 = vor.u32 %v2796, %v2799
      %v2801 = vrot.slane %v2800, 4
      %v2803 = vshll.u32 %v2718, 16
      %v2805 = vrot.slane %v2803, 5
      %v2806 = vsel %vm568, %v2801, %v2805
      %v2808 = vshrl.u32 %v2719, 16
      %v2810 = vrot.slane %v2808, 4
      %v2811 = vshll.u32 %v2719, 16
      %v2813 = vrot.slane %v2811, 5
      %v2814 = vor.u32 %v2810, %v2813
      %v2815 = vrot.slane %v2814, 4
      %v2817 = vshll.u32 %v2720, 16
      %v2819 = vrot.slane %v2817, 5
      %v2820 = vsel %vm568, %v2815, %v2819
      %v2822 = vshrl.u32 %v2721, 16
      %v2824 = vrot.slane %v2822, 4
      %v2825 = vshll.u32 %v2721, 16
      %v2827 = vrot.slane %v2825, 5
      %v2828 = vor.u32 %v2824, %v2827
      %v2829 = vrot.slane %v2828, 4
      %v2831 = vshll.u32 %v2722, 16
      %v2833 = vrot.slane %v2831, 5
      %v2834 = vsel %vm568, %v2829, %v2833
      %v2835 = vld [vmem:[%s1401] sm:$0x3]
      %v2836 = vunpack.c.l.b16 %v2736
      %v2837 = vunpack.c.l.b16 %v2750
      %v2838 = vunpack.c.l.b16 %v2764
      %v2839 = vunpack.c.l.b16 %v2778
      %v2840 = vunpack.c.l.b16 %v2792
      %v2841 = vunpack.c.l.b16 %v2806
      %v2842 = vunpack.c.l.b16 %v2820
      %v2843 = vunpack.c.l.b16 %v2834
      %v2844 = vpack.c.b16 %v2837, %v2836
      %v2845 = vpack.c.b16 %v2839, %v2838
      %v2846 = vpack.c.b16 %v2841, %v2840
      %v2847 = vpack.c.b16 %v2843, %v2842
      %v2849 = vsel %vm413, %v2844, 0
      %v2852 = vsel %vm413, %v2845, 0
      %v2855 = vsel %vm413, %v2846, 0
      %v2858 = vsel %vm413, %v2847, 0
      %v2861 = vsel %vm426, %v2835, 0
      %2863 = vmatpush.bf16.msra.mxu0 0
      %2864 = vmatpush.bf16.msra.mxu0 0
      %2865 = vmatpush.bf16.msra.mxu0 0
      %2866 = vmatpush.bf16.msra.mxu0 0
      %2867 = vmatpush.bf16.msra.mxu0 0
      %2868 = vmatpush.bf16.msra.mxu0 0
      %2869 = vmatpush.bf16.msra.mxu0 0
      %2870 = vmatpush.bf16.msra.mxu0 %v2861
      %2871 = vmatmul.bf16.gmra.mxu0 %v2849
      %v2872 = vpop.f32.mrf.mxu0
      %v2873 = vadd.f32 0.0, %v2872
      %v2874 = vpop.f32.mrf.mxu0
      %v2875 = vadd.f32 0.0, %v2874
      %2876 = vmatmul.bf16.gmra.mxu0 %v2852
      %v2877 = vpop.f32.mrf.mxu0
      %v2878 = vadd.f32 0.0, %v2877
      %v2879 = vpop.f32.mrf.mxu0
      %v2880 = vadd.f32 0.0, %v2879
      %2881 = vmatmul.bf16.gmra.mxu0 %v2855
      %v2882 = vpop.f32.mrf.mxu0
      %v2883 = vadd.f32 0.0, %v2882
      %v2884 = vpop.f32.mrf.mxu0
      %v2885 = vadd.f32 0.0, %v2884
      %2886 = vmatmul.bf16.gmra.mxu0 %v2858
      %v2887 = vpop.f32.mrf.mxu0
      %v2888 = vadd.f32 0.0, %v2887
      %v2889 = vpop.f32.mrf.mxu0
      %v2890 = vadd.f32 0.0, %v2889
      %2891 = vdwg.mxu0
      %v2892 = vadd.f32 %v2699, %v2873
      %v2893 = vadd.f32 %v2700, %v2875
      %v2894 = vadd.f32 %v2701, %v2878
      %v2895 = vadd.f32 %v2702, %v2880
      %v2896 = vadd.f32 %v2703, %v2883
      %v2897 = vadd.f32 %v2704, %v2885
      %v2898 = vadd.f32 %v2705, %v2888
      %v2899 = vadd.f32 %v2706, %v2890
      %v2900 = vmax.f32 %v2892, 0.0
      %v2901 = vmax.f32 %v2893, 0.0
      %v2902 = vmax.f32 %v2894, 0.0
      %v2903 = vmax.f32 %v2895, 0.0
      %v2904 = vmax.f32 %v2896, 0.0
      %v2905 = vmax.f32 %v2897, 0.0
      %v2906 = vmax.f32 %v2898, 0.0
      %v2907 = vmax.f32 %v2899, 0.0
      %v2908 = vpack.c.bf16 %v2900, %v2900
      %v2910 = vshrl.u32 %v2908, 16
      %v2912 = vrot.slane %v2910, 7
      %v2913 = vshll.u32 %v2908, 16
      %v2915 = vor.u32 %v2912, %v2913
      %v2916 = vrot.slane %v2912, 4
      %s2919 = scalar_lea.vmem [#allocation2], 144
      %vm2920 = vcmask 60416
      %vm2921 = vsmask.f32 7938
      %vm2922 = vmand %vm2920, %vm2921
      %v2923 = vld [vmem:[%s2919] sm:$0xf]
      %v2924 = vsel %vm2922, %v2915, %v2923
      %2925 = vst [vmem:[%s2919] sm:$0xf] %v2924
      %v2926 = vld [vmem:[%s2919 + $0x4] sm:$0x1]
      %v2927 = vsel %vm235, %v2916, %v2926
      %2928 = vst [vmem:[%s2919 + $0x4] sm:$0x1] %v2927
      %v2929 = vpack.c.bf16 %v2901, %v2901
      %v2931 = vshrl.u32 %v2929, 16
      %v2933 = vrot.slane %v2931, 7
      %v2934 = vshll.u32 %v2929, 16
      %v2936 = vor.u32 %v2933, %v2934
      %v2937 = vrot.slane %v2933, 4
      %s2940 = scalar_lea.vmem [#allocation2], 152
      %v2941 = vld [vmem:[%s2940] sm:$0xf]
      %v2942 = vsel %vm2922, %v2936, %v2941
      %2943 = vst [vmem:[%s2940] sm:$0xf] %v2942
      %v2944 = vld [vmem:[%s2940 + $0x4] sm:$0x1]
      %v2945 = vsel %vm235, %v2937, %v2944
      %2946 = vst [vmem:[%s2940 + $0x4] sm:$0x1] %v2945
      %v2947 = vpack.c.bf16 %v2902, %v2902
      %v2949 = vshrl.u32 %v2947, 16
      %v2951 = vrot.slane %v2949, 7
      %v2952 = vshll.u32 %v2947, 16
      %v2954 = vor.u32 %v2951, %v2952
      %v2955 = vrot.slane %v2951, 4
      %s2958 = scalar_lea.vmem [#allocation2], 160
      %v2959 = vld [vmem:[%s2958] sm:$0xf]
      %v2960 = vsel %vm2922, %v2954, %v2959
      %2961 = vst [vmem:[%s2958] sm:$0xf] %v2960
      %v2962 = vld [vmem:[%s2958 + $0x4] sm:$0x1]
      %v2963 = vsel %vm235, %v2955, %v2962
      %2964 = vst [vmem:[%s2958 + $0x4] sm:$0x1] %v2963
      %v2965 = vpack.c.bf16 %v2903, %v2903
      %v2967 = vshrl.u32 %v2965, 16
      %v2969 = vrot.slane %v2967, 7
      %v2970 = vshll.u32 %v2965, 16
      %v2972 = vor.u32 %v2969, %v2970
      %v2973 = vrot.slane %v2969, 4
      %s2976 = scalar_lea.vmem [#allocation2], 168
      %v2977 = vld [vmem:[%s2976] sm:$0xf]
      %v2978 = vsel %vm2922, %v2972, %v2977
      %2979 = vst [vmem:[%s2976] sm:$0xf] %v2978
      %v2980 = vld [vmem:[%s2976 + $0x4] sm:$0x1]
      %v2981 = vsel %vm235, %v2973, %v2980
      %2982 = vst [vmem:[%s2976 + $0x4] sm:$0x1] %v2981
      %v2983 = vpack.c.bf16 %v2904, %v2904
      %v2985 = vshrl.u32 %v2983, 16
      %v2987 = vrot.slane %v2985, 7
      %v2988 = vshll.u32 %v2983, 16
      %v2990 = vor.u32 %v2987, %v2988
      %v2991 = vrot.slane %v2987, 4
      %s2994 = scalar_lea.vmem [#allocation2], 176
      %v2995 = vld [vmem:[%s2994] sm:$0xf]
      %v2996 = vsel %vm2922, %v2990, %v2995
      %2997 = vst [vmem:[%s2994] sm:$0xf] %v2996
      %v2998 = vld [vmem:[%s2994 + $0x4] sm:$0x1]
      %v2999 = vsel %vm235, %v2991, %v2998
      %3000 = vst [vmem:[%s2994 + $0x4] sm:$0x1] %v2999
      %v3001 = vpack.c.bf16 %v2905, %v2905
      %v3003 = vshrl.u32 %v3001, 16
      %v3005 = vrot.slane %v3003, 7
      %v3006 = vshll.u32 %v3001, 16
      %v3008 = vor.u32 %v3005, %v3006
      %v3009 = vrot.slane %v3005, 4
      %s3012 = scalar_lea.vmem [#allocation2], 184
      %v3013 = vld [vmem:[%s3012] sm:$0xf]
      %v3014 = vsel %vm2922, %v3008, %v3013
      %3015 = vst [vmem:[%s3012] sm:$0xf] %v3014
      %v3016 = vld [vmem:[%s3012 + $0x4] sm:$0x1]
      %v3017 = vsel %vm235, %v3009, %v3016
      %3018 = vst [vmem:[%s3012 + $0x4] sm:$0x1] %v3017
      %v3019 = vpack.c.bf16 %v2906, %v2906
      %v3021 = vshrl.u32 %v3019, 16
      %v3023 = vrot.slane %v3021, 7
      %v3024 = vshll.u32 %v3019, 16
      %v3026 = vor.u32 %v3023, %v3024
      %v3027 = vrot.slane %v3023, 4
      %s3030 = scalar_lea.vmem [#allocation2], 192
      %v3031 = vld [vmem:[%s3030] sm:$0xf]
      %v3032 = vsel %vm2922, %v3026, %v3031
      %3033 = vst [vmem:[%s3030] sm:$0xf] %v3032
      %v3034 = vld [vmem:[%s3030 + $0x4] sm:$0x1]
      %v3035 = vsel %vm235, %v3027, %v3034
      %3036 = vst [vmem:[%s3030 + $0x4] sm:$0x1] %v3035
      %v3037 = vpack.c.bf16 %v2907, %v2907
      %v3039 = vshrl.u32 %v3037, 16
      %v3041 = vrot.slane %v3039, 7
      %v3042 = vshll.u32 %v3037, 16
      %v3044 = vor.u32 %v3041, %v3042
      %v3045 = vrot.slane %v3041, 4
      %s3048 = scalar_lea.vmem [#allocation2], 200
      %v3049 = vld [vmem:[%s3048] sm:$0xf]
      %v3050 = vsel %vm2922, %v3044, %v3049
      %3051 = vst [vmem:[%s3048] sm:$0xf] %v3050
      %v3052 = vld [vmem:[%s3048 + $0x4] sm:$0x1]
      %v3053 = vsel %vm235, %v3045, %v3052
      %3054 = vst [vmem:[%s3048 + $0x4] sm:$0x1] %v3053
      %v3055 = vld [vmem:[%s747] sm:$0xf]
      %v3056 = vld [vmem:[%s747 + $0x8] sm:$0xf]
      %v3057 = vld [vmem:[%s747 + $0x10] sm:$0xf]
      %v3058 = vld [vmem:[%s747 + $0x18] sm:$0xf]
      %v3059 = vld [vmem:[%s747 + $0x20] sm:$0xf]
      %v3060 = vld [vmem:[%s747 + $0x28] sm:$0xf]
      %v3061 = vld [vmem:[%s747 + $0x30] sm:$0xf]
      %v3062 = vld [vmem:[%s747 + $0x38] sm:$0xf]
      %v3063 = vld [vmem:[%s1] sm:$0x3]
      %v3072 = vunpack.c.l.b16 %v3055
      %v3073 = vunpack.c.l.b16 %v3056
      %v3074 = vunpack.c.l.b16 %v3057
      %v3075 = vunpack.c.l.b16 %v3058
      %v3076 = vunpack.c.l.b16 %v3059
      %v3077 = vunpack.c.l.b16 %v3060
      %v3078 = vunpack.c.l.b16 %v3061
      %v3079 = vunpack.c.l.b16 %v3062
      %v3080 = vpack.c.b16 %v3073, %v3072
      %v3081 = vpack.c.b16 %v3075, %v3074
      %v3082 = vpack.c.b16 %v3077, %v3076
      %v3083 = vpack.c.b16 %v3079, %v3078
      %v3085 = vsel %vm413, %v3080, 0
      %v3088 = vsel %vm413, %v3081, 0
      %v3091 = vsel %vm413, %v3082, 0
      %v3094 = vsel %vm413, %v3083, 0
      %v3097 = vsel %vm426, %v3063, 0
      %3099 = vmatpush.bf16.msra.mxu0 0
      %3100 = vmatpush.bf16.msra.mxu0 0
      %3101 = vmatpush.bf16.msra.mxu0 0
      %3102 = vmatpush.bf16.msra.mxu0 0
      %3103 = vmatpush.bf16.msra.mxu0 0
      %3104 = vmatpush.bf16.msra.mxu0 0
      %3105 = vmatpush.bf16.msra.mxu0 0
      %3106 = vmatpush.bf16.msra.mxu0 %v3097
      %3107 = vmatmul.bf16.gmra.mxu0 %v3085
      %v3108 = vpop.f32.mrf.mxu0
      %v3109 = vadd.f32 0.0, %v3108
      %v3110 = vpop.f32.mrf.mxu0
      %v3111 = vadd.f32 0.0, %v3110
      %3112 = vmatmul.bf16.gmra.mxu0 %v3088
      %v3113 = vpop.f32.mrf.mxu0
      %v3114 = vadd.f32 0.0, %v3113
      %v3115 = vpop.f32.mrf.mxu0
      %v3116 = vadd.f32 0.0, %v3115
      %3117 = vmatmul.bf16.gmra.mxu0 %v3091
      %v3118 = vpop.f32.mrf.mxu0
      %v3119 = vadd.f32 0.0, %v3118
      %v3120 = vpop.f32.mrf.mxu0
      %v3121 = vadd.f32 0.0, %v3120
      %3122 = vmatmul.bf16.gmra.mxu0 %v3094
      %v3123 = vpop.f32.mrf.mxu0
      %v3124 = vadd.f32 0.0, %v3123
      %v3125 = vpop.f32.mrf.mxu0
      %v3126 = vadd.f32 0.0, %v3125
      %3127 = vdwg.mxu0
      %v3128 = vadd.f32 %v383, %v3109
      %v3129 = vadd.f32 %v383, %v3111
      %v3130 = vadd.f32 %v383, %v3114
      %v3131 = vadd.f32 %v383, %v3116
      %v3132 = vadd.f32 %v383, %v3119
      %v3133 = vadd.f32 %v383, %v3121
      %v3134 = vadd.f32 %v383, %v3124
      %v3135 = vadd.f32 %v383, %v3126
      %v3136 = vld [vmem:[%s830] sm:$0xf]
      %v3137 = vld [vmem:[%s830 + $0x8] sm:$0xf]
      %v3138 = vld [vmem:[%s830 + $0x10] sm:$0xf]
      %v3139 = vld [vmem:[%s830 + $0x18] sm:$0xf]
      %v3140 = vld [vmem:[%s830 + $0x20] sm:$0xf]
      %v3141 = vld [vmem:[%s830 + $0x28] sm:$0xf]
      %v3142 = vld [vmem:[%s830 + $0x30] sm:$0xf]
      %v3143 = vld [vmem:[%s830 + $0x38] sm:$0xf]
      %v3144 = vld [vmem:[%s476] sm:$0x3]
      %v3153 = vunpack.c.l.b16 %v3136
      %v3154 = vunpack.c.l.b16 %v3137
      %v3155 = vunpack.c.l.b16 %v3138
      %v3156 = vunpack.c.l.b16 %v3139
      %v3157 = vunpack.c.l.b16 %v3140
      %v3158 = vunpack.c.l.b16 %v3141
      %v3159 = vunpack.c.l.b16 %v3142
      %v3160 = vunpack.c.l.b16 %v3143
      %v3161 = vpack.c.b16 %v3154, %v3153
      %v3162 = vpack.c.b16 %v3156, %v3155
      %v3163 = vpack.c.b16 %v3158, %v3157
      %v3164 = vpack.c.b16 %v3160, %v3159
      %v3166 = vsel %vm413, %v3161, 0
      %v3169 = vsel %vm413, %v3162, 0
      %v3172 = vsel %vm413, %v3163, 0
      %v3175 = vsel %vm413, %v3164, 0
      %v3178 = vsel %vm426, %v3144, 0
      %3180 = vmatpush.bf16.msra.mxu0 0
      %3181 = vmatpush.bf16.msra.mxu0 0
      %3182 = vmatpush.bf16.msra.mxu0 0
      %3183 = vmatpush.bf16.msra.mxu0 0
      %3184 = vmatpush.bf16.msra.mxu0 0
      %3185 = vmatpush.bf16.msra.mxu0 0
      %3186 = vmatpush.bf16.msra.mxu0 0
      %3187 = vmatpush.bf16.msra.mxu0 %v3178
      %3188 = vmatmul.bf16.gmra.mxu0 %v3166
      %v3189 = vpop.f32.mrf.mxu0
      %v3190 = vadd.f32 0.0, %v3189
      %v3191 = vpop.f32.mrf.mxu0
      %v3192 = vadd.f32 0.0, %v3191
      %3193 = vmatmul.bf16.gmra.mxu0 %v3169
      %v3194 = vpop.f32.mrf.mxu0
      %v3195 = vadd.f32 0.0, %v3194
      %v3196 = vpop.f32.mrf.mxu0
      %v3197 = vadd.f32 0.0, %v3196
      %3198 = vmatmul.bf16.gmra.mxu0 %v3172
      %v3199 = vpop.f32.mrf.mxu0
      %v3200 = vadd.f32 0.0, %v3199
      %v3201 = vpop.f32.mrf.mxu0
      %v3202 = vadd.f32 0.0, %v3201
      %3203 = vmatmul.bf16.gmra.mxu0 %v3175
      %v3204 = vpop.f32.mrf.mxu0
      %v3205 = vadd.f32 0.0, %v3204
      %v3206 = vpop.f32.mrf.mxu0
      %v3207 = vadd.f32 0.0, %v3206
      %3208 = vdwg.mxu0
      %v3209 = vadd.f32 %v3128, %v3190
      %v3210 = vadd.f32 %v3129, %v3192
      %v3211 = vadd.f32 %v3130, %v3195
      %v3212 = vadd.f32 %v3131, %v3197
      %v3213 = vadd.f32 %v3132, %v3200
      %v3214 = vadd.f32 %v3133, %v3202
      %v3215 = vadd.f32 %v3134, %v3205
      %v3216 = vadd.f32 %v3135, %v3207
      %v3217 = vld [vmem:[%s747] sm:$0xf]
      %v3218 = vld [vmem:[%s747 + $0x4] sm:$0x1]
      %v3219 = vld [vmem:[%s747 + $0x8] sm:$0xf]
      %v3220 = vld [vmem:[%s747 + $0xc] sm:$0x1]
      %v3221 = vld [vmem:[%s747 + $0x10] sm:$0xf]
      %v3222 = vld [vmem:[%s747 + $0x14] sm:$0x1]
      %v3223 = vld [vmem:[%s747 + $0x18] sm:$0xf]
      %v3224 = vld [vmem:[%s747 + $0x1c] sm:$0x1]
      %v3225 = vld [vmem:[%s747 + $0x20] sm:$0xf]
      %v3226 = vld [vmem:[%s747 + $0x24] sm:$0x1]
      %v3227 = vld [vmem:[%s747 + $0x28] sm:$0xf]
      %v3228 = vld [vmem:[%s747 + $0x2c] sm:$0x1]
      %v3229 = vld [vmem:[%s747 + $0x30] sm:$0xf]
      %v3230 = vld [vmem:[%s747 + $0x34] sm:$0x1]
      %v3231 = vld [vmem:[%s747 + $0x38] sm:$0xf]
      %v3232 = vld [vmem:[%s747 + $0x3c] sm:$0x1]
      %v3234 = vshrl.u32 %v3217, 16
      %v3236 = vrot.slane %v3234, 4
      %v3237 = vshll.u32 %v3217, 16
      %v3239 = vrot.slane %v3237, 5
      %v3240 = vor.u32 %v3236, %v3239
      %v3241 = vrot.slane %v3240, 4
      %v3243 = vshll.u32 %v3218, 16
      %v3245 = vrot.slane %v3243, 5
      %v3246 = vsel %vm568, %v3241, %v3245
      %v3248 = vshrl.u32 %v3219, 16
      %v3250 = vrot.slane %v3248, 4
      %v3251 = vshll.u32 %v3219, 16
      %v3253 = vrot.slane %v3251, 5
      %v3254 = vor.u32 %v3250, %v3253
      %v3255 = vrot.slane %v3254, 4
      %v3257 = vshll.u32 %v3220, 16
      %v3259 = vrot.slane %v3257, 5
      %v3260 = vsel %vm568, %v3255, %v3259
      %v3262 = vshrl.u32 %v3221, 16
      %v3264 = vrot.slane %v3262, 4
      %v3265 = vshll.u32 %v3221, 16
      %v3267 = vrot.slane %v3265, 5
      %v3268 = vor.u32 %v3264, %v3267
      %v3269 = vrot.slane %v3268, 4
      %v3271 = vshll.u32 %v3222, 16
      %v3273 = vrot.slane %v3271, 5
      %v3274 = vsel %vm568, %v3269, %v3273
      %v3276 = vshrl.u32 %v3223, 16
      %v3278 = vrot.slane %v3276, 4
      %v3279 = vshll.u32 %v3223, 16
      %v3281 = vrot.slane %v3279, 5
      %v3282 = vor.u32 %v3278, %v3281
      %v3283 = vrot.slane %v3282, 4
      %v3285 = vshll.u32 %v3224, 16
      %v3287 = vrot.slane %v3285, 5
      %v3288 = vsel %vm568, %v3283, %v3287
      %v3290 = vshrl.u32 %v3225, 16
      %v3292 = vrot.slane %v3290, 4
      %v3293 = vshll.u32 %v3225, 16
      %v3295 = vrot.slane %v3293, 5
      %v3296 = vor.u32 %v3292, %v3295
      %v3297 = vrot.slane %v3296, 4
      %v3299 = vshll.u32 %v3226, 16
      %v3301 = vrot.slane %v3299, 5
      %v3302 = vsel %vm568, %v3297, %v3301
      %v3304 = vshrl.u32 %v3227, 16
      %v3306 = vrot.slane %v3304, 4
      %v3307 = vshll.u32 %v3227, 16
      %v3309 = vrot.slane %v3307, 5
      %v3310 = vor.u32 %v3306, %v3309
      %v3311 = vrot.slane %v3310, 4
      %v3313 = vshll.u32 %v3228, 16
      %v3315 = vrot.slane %v3313, 5
      %v3316 = vsel %vm568, %v3311, %v3315
      %v3318 = vshrl.u32 %v3229, 16
      %v3320 = vrot.slane %v3318, 4
      %v3321 = vshll.u32 %v3229, 16
      %v3323 = vrot.slane %v3321, 5
      %v3324 = vor.u32 %v3320, %v3323
      %v3325 = vrot.slane %v3324, 4
      %v3327 = vshll.u32 %v3230, 16
      %v3329 = vrot.slane %v3327, 5
      %v3330 = vsel %vm568, %v3325, %v3329
      %v3332 = vshrl.u32 %v3231, 16
      %v3334 = vrot.slane %v3332, 4
      %v3335 = vshll.u32 %v3231, 16
      %v3337 = vrot.slane %v3335, 5
      %v3338 = vor.u32 %v3334, %v3337
      %v3339 = vrot.slane %v3338, 4
      %v3341 = vshll.u32 %v3232, 16
      %v3343 = vrot.slane %v3341, 5
      %v3344 = vsel %vm568, %v3339, %v3343
      %v3345 = vld [vmem:[%s681] sm:$0x3]
      %v3346 = vunpack.c.l.b16 %v3246
      %v3347 = vunpack.c.l.b16 %v3260
      %v3348 = vunpack.c.l.b16 %v3274
      %v3349 = vunpack.c.l.b16 %v3288
      %v3350 = vunpack.c.l.b16 %v3302
      %v3351 = vunpack.c.l.b16 %v3316
      %v3352 = vunpack.c.l.b16 %v3330
      %v3353 = vunpack.c.l.b16 %v3344
      %v3354 = vpack.c.b16 %v3347, %v3346
      %v3355 = vpack.c.b16 %v3349, %v3348
      %v3356 = vpack.c.b16 %v3351, %v3350
      %v3357 = vpack.c.b16 %v3353, %v3352
      %v3359 = vsel %vm413, %v3354, 0
      %v3362 = vsel %vm413, %v3355, 0
      %v3365 = vsel %vm413, %v3356, 0
      %v3368 = vsel %vm413, %v3357, 0
      %v3371 = vsel %vm426, %v3345, 0
      %3373 = vmatpush.bf16.msra.mxu0 0
      %3374 = vmatpush.bf16.msra.mxu0 0
      %3375 = vmatpush.bf16.msra.mxu0 0
      %3376 = vmatpush.bf16.msra.mxu0 0
      %3377 = vmatpush.bf16.msra.mxu0 0
      %3378 = vmatpush.bf16.msra.mxu0 0
      %3379 = vmatpush.bf16.msra.mxu0 0
      %3380 = vmatpush.bf16.msra.mxu0 %v3371
      %3381 = vmatmul.bf16.gmra.mxu0 %v3359
      %v3382 = vpop.f32.mrf.mxu0
      %v3383 = vadd.f32 0.0, %v3382
      %v3384 = vpop.f32.mrf.mxu0
      %v3385 = vadd.f32 0.0, %v3384
      %3386 = vmatmul.bf16.gmra.mxu0 %v3362
      %v3387 = vpop.f32.mrf.mxu0
      %v3388 = vadd.f32 0.0, %v3387
      %v3389 = vpop.f32.mrf.mxu0
      %v3390 = vadd.f32 0.0, %v3389
      %3391 = vmatmul.bf16.gmra.mxu0 %v3365
      %v3392 = vpop.f32.mrf.mxu0
      %v3393 = vadd.f32 0.0, %v3392
      %v3394 = vpop.f32.mrf.mxu0
      %v3395 = vadd.f32 0.0, %v3394
      %3396 = vmatmul.bf16.gmra.mxu0 %v3368
      %v3397 = vpop.f32.mrf.mxu0
      %v3398 = vadd.f32 0.0, %v3397
      %v3399 = vpop.f32.mrf.mxu0
      %v3400 = vadd.f32 0.0, %v3399
      %3401 = vdwg.mxu0
      %v3402 = vadd.f32 %v3209, %v3383
      %v3403 = vadd.f32 %v3210, %v3385
      %v3404 = vadd.f32 %v3211, %v3388
      %v3405 = vadd.f32 %v3212, %v3390
      %v3406 = vadd.f32 %v3213, %v3393
      %v3407 = vadd.f32 %v3214, %v3395
      %v3408 = vadd.f32 %v3215, %v3398
      %v3409 = vadd.f32 %v3216, %v3400
      %v3410 = vld [vmem:[%s1107] sm:$0xf]
      %v3411 = vld [vmem:[%s1107 + $0x8] sm:$0xf]
      %v3412 = vld [vmem:[%s1107 + $0x10] sm:$0xf]
      %v3413 = vld [vmem:[%s1107 + $0x18] sm:$0xf]
      %v3414 = vld [vmem:[%s1107 + $0x20] sm:$0xf]
      %v3415 = vld [vmem:[%s1107 + $0x28] sm:$0xf]
      %v3416 = vld [vmem:[%s1107 + $0x30] sm:$0xf]
      %v3417 = vld [vmem:[%s1107 + $0x38] sm:$0xf]
      %v3418 = vld [vmem:[%s756] sm:$0x3]
      %v3427 = vunpack.c.l.b16 %v3410
      %v3428 = vunpack.c.l.b16 %v3411
      %v3429 = vunpack.c.l.b16 %v3412
      %v3430 = vunpack.c.l.b16 %v3413
      %v3431 = vunpack.c.l.b16 %v3414
      %v3432 = vunpack.c.l.b16 %v3415
      %v3433 = vunpack.c.l.b16 %v3416
      %v3434 = vunpack.c.l.b16 %v3417
      %v3435 = vpack.c.b16 %v3428, %v3427
      %v3436 = vpack.c.b16 %v3430, %v3429
      %v3437 = vpack.c.b16 %v3432, %v3431
      %v3438 = vpack.c.b16 %v3434, %v3433
      %v3440 = vsel %vm413, %v3435, 0
      %v3443 = vsel %vm413, %v3436, 0
      %v3446 = vsel %vm413, %v3437, 0
      %v3449 = vsel %vm413, %v3438, 0
      %v3452 = vsel %vm426, %v3418, 0
      %3454 = vmatpush.bf16.msra.mxu0 0
      %3455 = vmatpush.bf16.msra.mxu0 0
      %3456 = vmatpush.bf16.msra.mxu0 0
      %3457 = vmatpush.bf16.msra.mxu0 0
      %3458 = vmatpush.bf16.msra.mxu0 0
      %3459 = vmatpush.bf16.msra.mxu0 0
      %3460 = vmatpush.bf16.msra.mxu0 0
      %3461 = vmatpush.bf16.msra.mxu0 %v3452
      %3462 = vmatmul.bf16.gmra.mxu0 %v3440
      %v3463 = vpop.f32.mrf.mxu0
      %v3464 = vadd.f32 0.0, %v3463
      %v3465 = vpop.f32.mrf.mxu0
      %v3466 = vadd.f32 0.0, %v3465
      %3467 = vmatmul.bf16.gmra.mxu0 %v3443
      %v3468 = vpop.f32.mrf.mxu0
      %v3469 = vadd.f32 0.0, %v3468
      %v3470 = vpop.f32.mrf.mxu0
      %v3471 = vadd.f32 0.0, %v3470
      %3472 = vmatmul.bf16.gmra.mxu0 %v3446
      %v3473 = vpop.f32.mrf.mxu0
      %v3474 = vadd.f32 0.0, %v3473
      %v3475 = vpop.f32.mrf.mxu0
      %v3476 = vadd.f32 0.0, %v3475
      %3477 = vmatmul.bf16.gmra.mxu0 %v3449
      %v3478 = vpop.f32.mrf.mxu0
      %v3479 = vadd.f32 0.0, %v3478
      %v3480 = vpop.f32.mrf.mxu0
      %v3481 = vadd.f32 0.0, %v3480
      %3482 = vdwg.mxu0
      %v3483 = vadd.f32 %v3402, %v3464
      %v3484 = vadd.f32 %v3403, %v3466
      %v3485 = vadd.f32 %v3404, %v3469
      %v3486 = vadd.f32 %v3405, %v3471
      %v3487 = vadd.f32 %v3406, %v3474
      %v3488 = vadd.f32 %v3407, %v3476
      %v3489 = vadd.f32 %v3408, %v3479
      %v3490 = vadd.f32 %v3409, %v3481
      %v3491 = vld [vmem:[%s1190] sm:$0xf]
      %v3492 = vld [vmem:[%s1190 + $0x8] sm:$0xf]
      %v3493 = vld [vmem:[%s1190 + $0x10] sm:$0xf]
      %v3494 = vld [vmem:[%s1190 + $0x18] sm:$0xf]
      %v3495 = vld [vmem:[%s1190 + $0x20] sm:$0xf]
      %v3496 = vld [vmem:[%s1190 + $0x28] sm:$0xf]
      %v3497 = vld [vmem:[%s1190 + $0x30] sm:$0xf]
      %v3498 = vld [vmem:[%s1190 + $0x38] sm:$0xf]
      %v3499 = vld [vmem:[%s839] sm:$0x3]
      %v3508 = vunpack.c.l.b16 %v3491
      %v3509 = vunpack.c.l.b16 %v3492
      %v3510 = vunpack.c.l.b16 %v3493
      %v3511 = vunpack.c.l.b16 %v3494
      %v3512 = vunpack.c.l.b16 %v3495
      %v3513 = vunpack.c.l.b16 %v3496
      %v3514 = vunpack.c.l.b16 %v3497
      %v3515 = vunpack.c.l.b16 %v3498
      %v3516 = vpack.c.b16 %v3509, %v3508
      %v3517 = vpack.c.b16 %v3511, %v3510
      %v3518 = vpack.c.b16 %v3513, %v3512
      %v3519 = vpack.c.b16 %v3515, %v3514
      %v3521 = vsel %vm413, %v3516, 0
      %v3524 = vsel %vm413, %v3517, 0
      %v3527 = vsel %vm413, %v3518, 0
      %v3530 = vsel %vm413, %v3519, 0
      %v3533 = vsel %vm426, %v3499, 0
      %3535 = vmatpush.bf16.msra.mxu0 0
      %3536 = vmatpush.bf16.msra.mxu0 0
      %3537 = vmatpush.bf16.msra.mxu0 0
      %3538 = vmatpush.bf16.msra.mxu0 0
      %3539 = vmatpush.bf16.msra.mxu0 0
      %3540 = vmatpush.bf16.msra.mxu0 0
      %3541 = vmatpush.bf16.msra.mxu0 0
      %3542 = vmatpush.bf16.msra.mxu0 %v3533
      %3543 = vmatmul.bf16.gmra.mxu0 %v3521
      %v3544 = vpop.f32.mrf.mxu0
      %v3545 = vadd.f32 0.0, %v3544
      %v3546 = vpop.f32.mrf.mxu0
      %v3547 = vadd.f32 0.0, %v3546
      %3548 = vmatmul.bf16.gmra.mxu0 %v3524
      %v3549 = vpop.f32.mrf.mxu0
      %v3550 = vadd.f32 0.0, %v3549
      %v3551 = vpop.f32.mrf.mxu0
      %v3552 = vadd.f32 0.0, %v3551
      %3553 = vmatmul.bf16.gmra.mxu0 %v3527
      %v3554 = vpop.f32.mrf.mxu0
      %v3555 = vadd.f32 0.0, %v3554
      %v3556 = vpop.f32.mrf.mxu0
      %v3557 = vadd.f32 0.0, %v3556
      %3558 = vmatmul.bf16.gmra.mxu0 %v3530
      %v3559 = vpop.f32.mrf.mxu0
      %v3560 = vadd.f32 0.0, %v3559
      %v3561 = vpop.f32.mrf.mxu0
      %v3562 = vadd.f32 0.0, %v3561
      %3563 = vdwg.mxu0
      %v3564 = vadd.f32 %v3483, %v3545
      %v3565 = vadd.f32 %v3484, %v3547
      %v3566 = vadd.f32 %v3485, %v3550
      %v3567 = vadd.f32 %v3486, %v3552
      %v3568 = vadd.f32 %v3487, %v3555
      %v3569 = vadd.f32 %v3488, %v3557
      %v3570 = vadd.f32 %v3489, %v3560
      %v3571 = vadd.f32 %v3490, %v3562
      %v3572 = vld [vmem:[%s1107] sm:$0xf]
      %v3573 = vld [vmem:[%s1107 + $0x4] sm:$0x1]
      %v3574 = vld [vmem:[%s1107 + $0x8] sm:$0xf]
      %v3575 = vld [vmem:[%s1107 + $0xc] sm:$0x1]
      %v3576 = vld [vmem:[%s1107 + $0x10] sm:$0xf]
      %v3577 = vld [vmem:[%s1107 + $0x14] sm:$0x1]
      %v3578 = vld [vmem:[%s1107 + $0x18] sm:$0xf]
      %v3579 = vld [vmem:[%s1107 + $0x1c] sm:$0x1]
      %v3580 = vld [vmem:[%s1107 + $0x20] sm:$0xf]
      %v3581 = vld [vmem:[%s1107 + $0x24] sm:$0x1]
      %v3582 = vld [vmem:[%s1107 + $0x28] sm:$0xf]
      %v3583 = vld [vmem:[%s1107 + $0x2c] sm:$0x1]
      %v3584 = vld [vmem:[%s1107 + $0x30] sm:$0xf]
      %v3585 = vld [vmem:[%s1107 + $0x34] sm:$0x1]
      %v3586 = vld [vmem:[%s1107 + $0x38] sm:$0xf]
      %v3587 = vld [vmem:[%s1107 + $0x3c] sm:$0x1]
      %v3589 = vshrl.u32 %v3572, 16
      %v3591 = vrot.slane %v3589, 4
      %v3592 = vshll.u32 %v3572, 16
      %v3594 = vrot.slane %v3592, 5
      %v3595 = vor.u32 %v3591, %v3594
      %v3596 = vrot.slane %v3595, 4
      %v3598 = vshll.u32 %v3573, 16
      %v3600 = vrot.slane %v3598, 5
      %v3601 = vsel %vm568, %v3596, %v3600
      %v3603 = vshrl.u32 %v3574, 16
      %v3605 = vrot.slane %v3603, 4
      %v3606 = vshll.u32 %v3574, 16
      %v3608 = vrot.slane %v3606, 5
      %v3609 = vor.u32 %v3605, %v3608
      %v3610 = vrot.slane %v3609, 4
      %v3612 = vshll.u32 %v3575, 16
      %v3614 = vrot.slane %v3612, 5
      %v3615 = vsel %vm568, %v3610, %v3614
      %v3617 = vshrl.u32 %v3576, 16
      %v3619 = vrot.slane %v3617, 4
      %v3620 = vshll.u32 %v3576, 16
      %v3622 = vrot.slane %v3620, 5
      %v3623 = vor.u32 %v3619, %v3622
      %v3624 = vrot.slane %v3623, 4
      %v3626 = vshll.u32 %v3577, 16
      %v3628 = vrot.slane %v3626, 5
      %v3629 = vsel %vm568, %v3624, %v3628
      %v3631 = vshrl.u32 %v3578, 16
      %v3633 = vrot.slane %v3631, 4
      %v3634 = vshll.u32 %v3578, 16
      %v3636 = vrot.slane %v3634, 5
      %v3637 = vor.u32 %v3633, %v3636
      %v3638 = vrot.slane %v3637, 4
      %v3640 = vshll.u32 %v3579, 16
      %v3642 = vrot.slane %v3640, 5
      %v3643 = vsel %vm568, %v3638, %v3642
      %v3645 = vshrl.u32 %v3580, 16
      %v3647 = vrot.slane %v3645, 4
      %v3648 = vshll.u32 %v3580, 16
      %v3650 = vrot.slane %v3648, 5
      %v3651 = vor.u32 %v3647, %v3650
      %v3652 = vrot.slane %v3651, 4
      %v3654 = vshll.u32 %v3581, 16
      %v3656 = vrot.slane %v3654, 5
      %v3657 = vsel %vm568, %v3652, %v3656
      %v3659 = vshrl.u32 %v3582, 16
      %v3661 = vrot.slane %v3659, 4
      %v3662 = vshll.u32 %v3582, 16
      %v3664 = vrot.slane %v3662, 5
      %v3665 = vor.u32 %v3661, %v3664
      %v3666 = vrot.slane %v3665, 4
      %v3668 = vshll.u32 %v3583, 16
      %v3670 = vrot.slane %v3668, 5
      %v3671 = vsel %vm568, %v3666, %v3670
      %v3673 = vshrl.u32 %v3584, 16
      %v3675 = vrot.slane %v3673, 4
      %v3676 = vshll.u32 %v3584, 16
      %v3678 = vrot.slane %v3676, 5
      %v3679 = vor.u32 %v3675, %v3678
      %v3680 = vrot.slane %v3679, 4
      %v3682 = vshll.u32 %v3585, 16
      %v3684 = vrot.slane %v3682, 5
      %v3685 = vsel %vm568, %v3680, %v3684
      %v3687 = vshrl.u32 %v3586, 16
      %v3689 = vrot.slane %v3687, 4
      %v3690 = vshll.u32 %v3586, 16
      %v3692 = vrot.slane %v3690, 5
      %v3693 = vor.u32 %v3689, %v3692
      %v3694 = vrot.slane %v3693, 4
      %v3696 = vshll.u32 %v3587, 16
      %v3698 = vrot.slane %v3696, 5
      %v3699 = vsel %vm568, %v3694, %v3698
      %v3700 = vld [vmem:[%s1041] sm:$0x3]
      %v3701 = vunpack.c.l.b16 %v3601
      %v3702 = vunpack.c.l.b16 %v3615
      %v3703 = vunpack.c.l.b16 %v3629
      %v3704 = vunpack.c.l.b16 %v3643
      %v3705 = vunpack.c.l.b16 %v3657
      %v3706 = vunpack.c.l.b16 %v3671
      %v3707 = vunpack.c.l.b16 %v3685
      %v3708 = vunpack.c.l.b16 %v3699
      %v3709 = vpack.c.b16 %v3702, %v3701
      %v3710 = vpack.c.b16 %v3704, %v3703
      %v3711 = vpack.c.b16 %v3706, %v3705
      %v3712 = vpack.c.b16 %v3708, %v3707
      %v3714 = vsel %vm413, %v3709, 0
      %v3717 = vsel %vm413, %v3710, 0
      %v3720 = vsel %vm413, %v3711, 0
      %v3723 = vsel %vm413, %v3712, 0
      %v3726 = vsel %vm426, %v3700, 0
      %3728 = vmatpush.bf16.msra.mxu0 0
      %3729 = vmatpush.bf16.msra.mxu0 0
      %3730 = vmatpush.bf16.msra.mxu0 0
      %3731 = vmatpush.bf16.msra.mxu0 0
      %3732 = vmatpush.bf16.msra.mxu0 0
      %3733 = vmatpush.bf16.msra.mxu0 0
      %3734 = vmatpush.bf16.msra.mxu0 0
      %3735 = vmatpush.bf16.msra.mxu0 %v3726
      %3736 = vmatmul.bf16.gmra.mxu0 %v3714
      %v3737 = vpop.f32.mrf.mxu0
      %v3738 = vadd.f32 0.0, %v3737
      %v3739 = vpop.f32.mrf.mxu0
      %v3740 = vadd.f32 0.0, %v3739
      %3741 = vmatmul.bf16.gmra.mxu0 %v3717
      %v3742 = vpop.f32.mrf.mxu0
      %v3743 = vadd.f32 0.0, %v3742
      %v3744 = vpop.f32.mrf.mxu0
      %v3745 = vadd.f32 0.0, %v3744
      %3746 = vmatmul.bf16.gmra.mxu0 %v3720
      %v3747 = vpop.f32.mrf.mxu0
      %v3748 = vadd.f32 0.0, %v3747
      %v3749 = vpop.f32.mrf.mxu0
      %v3750 = vadd.f32 0.0, %v3749
      %3751 = vmatmul.bf16.gmra.mxu0 %v3723
      %v3752 = vpop.f32.mrf.mxu0
      %v3753 = vadd.f32 0.0, %v3752
      %v3754 = vpop.f32.mrf.mxu0
      %v3755 = vadd.f32 0.0, %v3754
      %3756 = vdwg.mxu0
      %v3757 = vadd.f32 %v3564, %v3738
      %v3758 = vadd.f32 %v3565, %v3740
      %v3759 = vadd.f32 %v3566, %v3743
      %v3760 = vadd.f32 %v3567, %v3745
      %v3761 = vadd.f32 %v3568, %v3748
      %v3762 = vadd.f32 %v3569, %v3750
      %v3763 = vadd.f32 %v3570, %v3753
      %v3764 = vadd.f32 %v3571, %v3755
      %s3765 = scalar_lea.vmem %s223, 152
      %v3766 = vld [vmem:[%s3765] sm:$0xf]
      %v3767 = vld [vmem:[%s3765 + $0x8] sm:$0xf]
      %v3768 = vld [vmem:[%s3765 + $0x10] sm:$0xf]
      %v3769 = vld [vmem:[%s3765 + $0x18] sm:$0xf]
      %v3770 = vld [vmem:[%s3765 + $0x20] sm:$0xf]
      %v3771 = vld [vmem:[%s3765 + $0x28] sm:$0xf]
      %v3772 = vld [vmem:[%s3765 + $0x30] sm:$0xf]
      %v3773 = vld [vmem:[%s3765 + $0x38] sm:$0xf]
      %v3774 = vld [vmem:[%s1116] sm:$0x3]
      %v3783 = vunpack.c.l.b16 %v3766
      %v3784 = vunpack.c.l.b16 %v3767
      %v3785 = vunpack.c.l.b16 %v3768
      %v3786 = vunpack.c.l.b16 %v3769
      %v3787 = vunpack.c.l.b16 %v3770
      %v3788 = vunpack.c.l.b16 %v3771
      %v3789 = vunpack.c.l.b16 %v3772
      %v3790 = vunpack.c.l.b16 %v3773
      %v3791 = vpack.c.b16 %v3784, %v3783
      %v3792 = vpack.c.b16 %v3786, %v3785
      %v3793 = vpack.c.b16 %v3788, %v3787
      %v3794 = vpack.c.b16 %v3790, %v3789
      %v3796 = vsel %vm413, %v3791, 0
      %v3799 = vsel %vm413, %v3792, 0
      %v3802 = vsel %vm413, %v3793, 0
      %v3805 = vsel %vm413, %v3794, 0
      %v3808 = vsel %vm426, %v3774, 0
      %3810 = vmatpush.bf16.msra.mxu0 0
      %3811 = vmatpush.bf16.msra.mxu0 0
      %3812 = vmatpush.bf16.msra.mxu0 0
      %3813 = vmatpush.bf16.msra.mxu0 0
      %3814 = vmatpush.bf16.msra.mxu0 0
      %3815 = vmatpush.bf16.msra.mxu0 0
      %3816 = vmatpush.bf16.msra.mxu0 0
      %3817 = vmatpush.bf16.msra.mxu0 %v3808
      %3818 = vmatmul.bf16.gmra.mxu0 %v3796
      %v3819 = vpop.f32.mrf.mxu0
      %v3820 = vadd.f32 0.0, %v3819
      %v3821 = vpop.f32.mrf.mxu0
      %v3822 = vadd.f32 0.0, %v3821
      %3823 = vmatmul.bf16.gmra.mxu0 %v3799
      %v3824 = vpop.f32.mrf.mxu0
      %v3825 = vadd.f32 0.0, %v3824
      %v3826 = vpop.f32.mrf.mxu0
      %v3827 = vadd.f32 0.0, %v3826
      %3828 = vmatmul.bf16.gmra.mxu0 %v3802
      %v3829 = vpop.f32.mrf.mxu0
      %v3830 = vadd.f32 0.0, %v3829
      %v3831 = vpop.f32.mrf.mxu0
      %v3832 = vadd.f32 0.0, %v3831
      %3833 = vmatmul.bf16.gmra.mxu0 %v3805
      %v3834 = vpop.f32.mrf.mxu0
      %v3835 = vadd.f32 0.0, %v3834
      %v3836 = vpop.f32.mrf.mxu0
      %v3837 = vadd.f32 0.0, %v3836
      %3838 = vdwg.mxu0
      %v3839 = vadd.f32 %v3757, %v3820
      %v3840 = vadd.f32 %v3758, %v3822
      %v3841 = vadd.f32 %v3759, %v3825
      %v3842 = vadd.f32 %v3760, %v3827
      %v3843 = vadd.f32 %v3761, %v3830
      %v3844 = vadd.f32 %v3762, %v3832
      %v3845 = vadd.f32 %v3763, %v3835
      %v3846 = vadd.f32 %v3764, %v3837
      %s3847 = scalar_lea.vmem %s223, 224
      %v3848 = vld [vmem:[%s3847] sm:$0xf]
      %v3849 = vld [vmem:[%s3847 + $0x8] sm:$0xf]
      %v3850 = vld [vmem:[%s3847 + $0x10] sm:$0xf]
      %v3851 = vld [vmem:[%s3847 + $0x18] sm:$0xf]
      %v3852 = vld [vmem:[%s3847 + $0x20] sm:$0xf]
      %v3853 = vld [vmem:[%s3847 + $0x28] sm:$0xf]
      %v3854 = vld [vmem:[%s3847 + $0x30] sm:$0xf]
      %v3855 = vld [vmem:[%s3847 + $0x38] sm:$0xf]
      %v3856 = vld [vmem:[%s1199] sm:$0x3]
      %v3865 = vunpack.c.l.b16 %v3848
      %v3866 = vunpack.c.l.b16 %v3849
      %v3867 = vunpack.c.l.b16 %v3850
      %v3868 = vunpack.c.l.b16 %v3851
      %v3869 = vunpack.c.l.b16 %v3852
      %v3870 = vunpack.c.l.b16 %v3853
      %v3871 = vunpack.c.l.b16 %v3854
      %v3872 = vunpack.c.l.b16 %v3855
      %v3873 = vpack.c.b16 %v3866, %v3865
      %v3874 = vpack.c.b16 %v3868, %v3867
      %v3875 = vpack.c.b16 %v3870, %v3869
      %v3876 = vpack.c.b16 %v3872, %v3871
      %v3878 = vsel %vm413, %v3873, 0
      %v3881 = vsel %vm413, %v3874, 0
      %v3884 = vsel %vm413, %v3875, 0
      %v3887 = vsel %vm413, %v3876, 0
      %v3890 = vsel %vm426, %v3856, 0
      %3892 = vmatpush.bf16.msra.mxu0 0
      %3893 = vmatpush.bf16.msra.mxu0 0
      %3894 = vmatpush.bf16.msra.mxu0 0
      %3895 = vmatpush.bf16.msra.mxu0 0
      %3896 = vmatpush.bf16.msra.mxu0 0
      %3897 = vmatpush.bf16.msra.mxu0 0
      %3898 = vmatpush.bf16.msra.mxu0 0
      %3899 = vmatpush.bf16.msra.mxu0 %v3890
      %3900 = vmatmul.bf16.gmra.mxu0 %v3878
      %v3901 = vpop.f32.mrf.mxu0
      %v3902 = vadd.f32 0.0, %v3901
      %v3903 = vpop.f32.mrf.mxu0
      %v3904 = vadd.f32 0.0, %v3903
      %3905 = vmatmul.bf16.gmra.mxu0 %v3881
      %v3906 = vpop.f32.mrf.mxu0
      %v3907 = vadd.f32 0.0, %v3906
      %v3908 = vpop.f32.mrf.mxu0
      %v3909 = vadd.f32 0.0, %v3908
      %3910 = vmatmul.bf16.gmra.mxu0 %v3884
      %v3911 = vpop.f32.mrf.mxu0
      %v3912 = vadd.f32 0.0, %v3911
      %v3913 = vpop.f32.mrf.mxu0
      %v3914 = vadd.f32 0.0, %v3913
      %3915 = vmatmul.bf16.gmra.mxu0 %v3887
      %v3916 = vpop.f32.mrf.mxu0
      %v3917 = vadd.f32 0.0, %v3916
      %v3918 = vpop.f32.mrf.mxu0
      %v3919 = vadd.f32 0.0, %v3918
      %3920 = vdwg.mxu0
      %v3921 = vadd.f32 %v3839, %v3902
      %v3922 = vadd.f32 %v3840, %v3904
      %v3923 = vadd.f32 %v3841, %v3907
      %v3924 = vadd.f32 %v3842, %v3909
      %v3925 = vadd.f32 %v3843, %v3912
      %v3926 = vadd.f32 %v3844, %v3914
      %v3927 = vadd.f32 %v3845, %v3917
      %v3928 = vadd.f32 %v3846, %v3919
      %v3929 = vld [vmem:[%s3765] sm:$0xf]
      %v3930 = vld [vmem:[%s3765 + $0x4] sm:$0x1]
      %v3931 = vld [vmem:[%s3765 + $0x8] sm:$0xf]
      %v3932 = vld [vmem:[%s3765 + $0xc] sm:$0x1]
      %v3933 = vld [vmem:[%s3765 + $0x10] sm:$0xf]
      %v3934 = vld [vmem:[%s3765 + $0x14] sm:$0x1]
      %v3935 = vld [vmem:[%s3765 + $0x18] sm:$0xf]
      %v3936 = vld [vmem:[%s3765 + $0x1c] sm:$0x1]
      %v3937 = vld [vmem:[%s3765 + $0x20] sm:$0xf]
      %v3938 = vld [vmem:[%s3765 + $0x24] sm:$0x1]
      %v3939 = vld [vmem:[%s3765 + $0x28] sm:$0xf]
      %v3940 = vld [vmem:[%s3765 + $0x2c] sm:$0x1]
      %v3941 = vld [vmem:[%s3765 + $0x30] sm:$0xf]
      %v3942 = vld [vmem:[%s3765 + $0x34] sm:$0x1]
      %v3943 = vld [vmem:[%s3765 + $0x38] sm:$0xf]
      %v3944 = vld [vmem:[%s3765 + $0x3c] sm:$0x1]
      %v3946 = vshrl.u32 %v3929, 16
      %v3948 = vrot.slane %v3946, 4
      %v3949 = vshll.u32 %v3929, 16
      %v3951 = vrot.slane %v3949, 5
      %v3952 = vor.u32 %v3948, %v3951
      %v3953 = vrot.slane %v3952, 4
      %v3955 = vshll.u32 %v3930, 16
      %v3957 = vrot.slane %v3955, 5
      %v3958 = vsel %vm568, %v3953, %v3957
      %v3960 = vshrl.u32 %v3931, 16
      %v3962 = vrot.slane %v3960, 4
      %v3963 = vshll.u32 %v3931, 16
      %v3965 = vrot.slane %v3963, 5
      %v3966 = vor.u32 %v3962, %v3965
      %v3967 = vrot.slane %v3966, 4
      %v3969 = vshll.u32 %v3932, 16
      %v3971 = vrot.slane %v3969, 5
      %v3972 = vsel %vm568, %v3967, %v3971
      %v3974 = vshrl.u32 %v3933, 16
      %v3976 = vrot.slane %v3974, 4
      %v3977 = vshll.u32 %v3933, 16
      %v3979 = vrot.slane %v3977, 5
      %v3980 = vor.u32 %v3976, %v3979
      %v3981 = vrot.slane %v3980, 4
      %v3983 = vshll.u32 %v3934, 16
      %v3985 = vrot.slane %v3983, 5
      %v3986 = vsel %vm568, %v3981, %v3985
      %v3988 = vshrl.u32 %v3935, 16
      %v3990 = vrot.slane %v3988, 4
      %v3991 = vshll.u32 %v3935, 16
      %v3993 = vrot.slane %v3991, 5
      %v3994 = vor.u32 %v3990, %v3993
      %v3995 = vrot.slane %v3994, 4
      %v3997 = vshll.u32 %v3936, 16
      %v3999 = vrot.slane %v3997, 5
      %v4000 = vsel %vm568, %v3995, %v3999
      %v4002 = vshrl.u32 %v3937, 16
      %v4004 = vrot.slane %v4002, 4
      %v4005 = vshll.u32 %v3937, 16
      %v4007 = vrot.slane %v4005, 5
      %v4008 = vor.u32 %v4004, %v4007
      %v4009 = vrot.slane %v4008, 4
      %v4011 = vshll.u32 %v3938, 16
      %v4013 = vrot.slane %v4011, 5
      %v4014 = vsel %vm568, %v4009, %v4013
      %v4016 = vshrl.u32 %v3939, 16
      %v4018 = vrot.slane %v4016, 4
      %v4019 = vshll.u32 %v3939, 16
      %v4021 = vrot.slane %v4019, 5
      %v4022 = vor.u32 %v4018, %v4021
      %v4023 = vrot.slane %v4022, 4
      %v4025 = vshll.u32 %v3940, 16
      %v4027 = vrot.slane %v4025, 5
      %v4028 = vsel %vm568, %v4023, %v4027
      %v4030 = vshrl.u32 %v3941, 16
      %v4032 = vrot.slane %v4030, 4
      %v4033 = vshll.u32 %v3941, 16
      %v4035 = vrot.slane %v4033, 5
      %v4036 = vor.u32 %v4032, %v4035
      %v4037 = vrot.slane %v4036, 4
      %v4039 = vshll.u32 %v3942, 16
      %v4041 = vrot.slane %v4039, 5
      %v4042 = vsel %vm568, %v4037, %v4041
      %v4044 = vshrl.u32 %v3943, 16
      %v4046 = vrot.slane %v4044, 4
      %v4047 = vshll.u32 %v3943, 16
      %v4049 = vrot.slane %v4047, 5
      %v4050 = vor.u32 %v4046, %v4049
      %v4051 = vrot.slane %v4050, 4
      %v4053 = vshll.u32 %v3944, 16
      %v4055 = vrot.slane %v4053, 5
      %v4056 = vsel %vm568, %v4051, %v4055
      %v4057 = vld [vmem:[%s1401] sm:$0x3]
      %v4058 = vunpack.c.l.b16 %v3958
      %v4059 = vunpack.c.l.b16 %v3972
      %v4060 = vunpack.c.l.b16 %v3986
      %v4061 = vunpack.c.l.b16 %v4000
      %v4062 = vunpack.c.l.b16 %v4014
      %v4063 = vunpack.c.l.b16 %v4028
      %v4064 = vunpack.c.l.b16 %v4042
      %v4065 = vunpack.c.l.b16 %v4056
      %v4066 = vpack.c.b16 %v4059, %v4058
      %v4067 = vpack.c.b16 %v4061, %v4060
      %v4068 = vpack.c.b16 %v4063, %v4062
      %v4069 = vpack.c.b16 %v4065, %v4064
      %v4071 = vsel %vm413, %v4066, 0
      %v4074 = vsel %vm413, %v4067, 0
      %v4077 = vsel %vm413, %v4068, 0
      %v4080 = vsel %vm413, %v4069, 0
      %v4083 = vsel %vm426, %v4057, 0
      %4085 = vmatpush.bf16.msra.mxu0 0
      %4086 = vmatpush.bf16.msra.mxu0 0
      %4087 = vmatpush.bf16.msra.mxu0 0
      %4088 = vmatpush.bf16.msra.mxu0 0
      %4089 = vmatpush.bf16.msra.mxu0 0
      %4090 = vmatpush.bf16.msra.mxu0 0
      %4091 = vmatpush.bf16.msra.mxu0 0
      %4092 = vmatpush.bf16.msra.mxu0 %v4083
      %4093 = vmatmul.bf16.gmra.mxu0 %v4071
      %v4094 = vpop.f32.mrf.mxu0
      %v4095 = vadd.f32 0.0, %v4094
      %v4096 = vpop.f32.mrf.mxu0
      %v4097 = vadd.f32 0.0, %v4096
      %4098 = vmatmul.bf16.gmra.mxu0 %v4074
      %v4099 = vpop.f32.mrf.mxu0
      %v4100 = vadd.f32 0.0, %v4099
      %v4101 = vpop.f32.mrf.mxu0
      %v4102 = vadd.f32 0.0, %v4101
      %4103 = vmatmul.bf16.gmra.mxu0 %v4077
      %v4104 = vpop.f32.mrf.mxu0
      %v4105 = vadd.f32 0.0, %v4104
      %v4106 = vpop.f32.mrf.mxu0
      %v4107 = vadd.f32 0.0, %v4106
      %4108 = vmatmul.bf16.gmra.mxu0 %v4080
      %v4109 = vpop.f32.mrf.mxu0
      %v4110 = vadd.f32 0.0, %v4109
      %v4111 = vpop.f32.mrf.mxu0
      %v4112 = vadd.f32 0.0, %v4111
      %4113 = vdwg.mxu0
      %v4114 = vadd.f32 %v3921, %v4095
      %v4115 = vadd.f32 %v3922, %v4097
      %v4116 = vadd.f32 %v3923, %v4100
      %v4117 = vadd.f32 %v3924, %v4102
      %v4118 = vadd.f32 %v3925, %v4105
      %v4119 = vadd.f32 %v3926, %v4107
      %v4120 = vadd.f32 %v3927, %v4110
      %v4121 = vadd.f32 %v3928, %v4112
      %v4122 = vmax.f32 %v4114, 0.0
      %v4123 = vmax.f32 %v4115, 0.0
      %v4124 = vmax.f32 %v4116, 0.0
      %v4125 = vmax.f32 %v4117, 0.0
      %v4126 = vmax.f32 %v4118, 0.0
      %v4127 = vmax.f32 %v4119, 0.0
      %v4128 = vmax.f32 %v4120, 0.0
      %v4129 = vmax.f32 %v4121, 0.0
      %v4130 = vpack.c.bf16 %v4122, %v4122
      %s4131 = scalar_lea.vmem [#allocation2], 80
      %4132 = vst.msk [vmem:[%s4131] sm:$0xf] %vm231, %v4130
      %v4133 = vpack.c.bf16 %v4123, %v4123
      %s4134 = scalar_lea.vmem [#allocation2], 88
      %4135 = vst.msk [vmem:[%s4134] sm:$0xf] %vm231, %v4133
      %v4136 = vpack.c.bf16 %v4124, %v4124
      %s4137 = scalar_lea.vmem [#allocation2], 96
      %4138 = vst.msk [vmem:[%s4137] sm:$0xf] %vm231, %v4136
      %v4139 = vpack.c.bf16 %v4125, %v4125
      %s4140 = scalar_lea.vmem [#allocation2], 104
      %4141 = vst.msk [vmem:[%s4140] sm:$0xf] %vm231, %v4139
      %v4142 = vpack.c.bf16 %v4126, %v4126
      %s4143 = scalar_lea.vmem [#allocation2], 112
      %4144 = vst.msk [vmem:[%s4143] sm:$0xf] %vm231, %v4142
      %v4145 = vpack.c.bf16 %v4127, %v4127
      %s4146 = scalar_lea.vmem [#allocation2], 120
      %4147 = vst.msk [vmem:[%s4146] sm:$0xf] %vm231, %v4145
      %v4148 = vpack.c.bf16 %v4128, %v4128
      %s4149 = scalar_lea.vmem [#allocation2], 128
      %4150 = vst.msk [vmem:[%s4149] sm:$0xf] %vm231, %v4148
      %v4151 = vpack.c.bf16 %v4129, %v4129
      %s4152 = scalar_lea.vmem [#allocation2], 136
      %4153 = vst.msk [vmem:[%s4152] sm:$0xf] %vm231, %v4151
      %v4154 = vld [vmem:[%s830] sm:$0xf]
      %v4155 = vld [vmem:[%s830 + $0x8] sm:$0xf]
      %v4156 = vld [vmem:[%s830 + $0x10] sm:$0xf]
      %v4157 = vld [vmem:[%s830 + $0x18] sm:$0xf]
      %v4158 = vld [vmem:[%s830 + $0x20] sm:$0xf]
      %v4159 = vld [vmem:[%s830 + $0x28] sm:$0xf]
      %v4160 = vld [vmem:[%s830 + $0x30] sm:$0xf]
      %v4161 = vld [vmem:[%s830 + $0x38] sm:$0xf]
      %v4162 = vld [vmem:[%s1] sm:$0x3]
      %v4171 = vunpack.c.l.b16 %v4154
      %v4172 = vunpack.c.l.b16 %v4155
      %v4173 = vunpack.c.l.b16 %v4156
      %v4174 = vunpack.c.l.b16 %v4157
      %v4175 = vunpack.c.l.b16 %v4158
      %v4176 = vunpack.c.l.b16 %v4159
      %v4177 = vunpack.c.l.b16 %v4160
      %v4178 = vunpack.c.l.b16 %v4161
      %v4179 = vpack.c.b16 %v4172, %v4171
      %v4180 = vpack.c.b16 %v4174, %v4173
      %v4181 = vpack.c.b16 %v4176, %v4175
      %v4182 = vpack.c.b16 %v4178, %v4177
      %v4184 = vsel %vm413, %v4179, 0
      %v4187 = vsel %vm413, %v4180, 0
      %v4190 = vsel %vm413, %v4181, 0
      %v4193 = vsel %vm413, %v4182, 0
      %v4196 = vsel %vm426, %v4162, 0
      %4198 = vmatpush.bf16.msra.mxu0 0
      %4199 = vmatpush.bf16.msra.mxu0 0
      %4200 = vmatpush.bf16.msra.mxu0 0
      %4201 = vmatpush.bf16.msra.mxu0 0
      %4202 = vmatpush.bf16.msra.mxu0 0
      %4203 = vmatpush.bf16.msra.mxu0 0
      %4204 = vmatpush.bf16.msra.mxu0 0
      %4205 = vmatpush.bf16.msra.mxu0 %v4196
      %4206 = vmatmul.bf16.gmra.mxu0 %v4184
      %v4207 = vpop.f32.mrf.mxu0
      %v4208 = vadd.f32 0.0, %v4207
      %v4209 = vpop.f32.mrf.mxu0
      %v4210 = vadd.f32 0.0, %v4209
      %4211 = vmatmul.bf16.gmra.mxu0 %v4187
      %v4212 = vpop.f32.mrf.mxu0
      %v4213 = vadd.f32 0.0, %v4212
      %v4214 = vpop.f32.mrf.mxu0
      %v4215 = vadd.f32 0.0, %v4214
      %4216 = vmatmul.bf16.gmra.mxu0 %v4190
      %v4217 = vpop.f32.mrf.mxu0
      %v4218 = vadd.f32 0.0, %v4217
      %v4219 = vpop.f32.mrf.mxu0
      %v4220 = vadd.f32 0.0, %v4219
      %4221 = vmatmul.bf16.gmra.mxu0 %v4193
      %v4222 = vpop.f32.mrf.mxu0
      %v4223 = vadd.f32 0.0, %v4222
      %v4224 = vpop.f32.mrf.mxu0
      %v4225 = vadd.f32 0.0, %v4224
      %4226 = vdwg.mxu0
      %v4227 = vadd.f32 %v383, %v4208
      %v4228 = vadd.f32 %v383, %v4210
      %v4229 = vadd.f32 %v383, %v4213
      %v4230 = vadd.f32 %v383, %v4215
      %v4231 = vadd.f32 %v383, %v4218
      %v4232 = vadd.f32 %v383, %v4220
      %v4233 = vadd.f32 %v383, %v4223
      %v4234 = vadd.f32 %v383, %v4225
      %v4235 = vld [vmem:[%s747] sm:$0xf]
      %v4236 = vld [vmem:[%s747 + $0x4] sm:$0x1]
      %v4237 = vld [vmem:[%s747 + $0x8] sm:$0xf]
      %v4238 = vld [vmem:[%s747 + $0xc] sm:$0x1]
      %v4239 = vld [vmem:[%s747 + $0x10] sm:$0xf]
      %v4240 = vld [vmem:[%s747 + $0x14] sm:$0x1]
      %v4241 = vld [vmem:[%s747 + $0x18] sm:$0xf]
      %v4242 = vld [vmem:[%s747 + $0x1c] sm:$0x1]
      %v4243 = vld [vmem:[%s747 + $0x20] sm:$0xf]
      %v4244 = vld [vmem:[%s747 + $0x24] sm:$0x1]
      %v4245 = vld [vmem:[%s747 + $0x28] sm:$0xf]
      %v4246 = vld [vmem:[%s747 + $0x2c] sm:$0x1]
      %v4247 = vld [vmem:[%s747 + $0x30] sm:$0xf]
      %v4248 = vld [vmem:[%s747 + $0x34] sm:$0x1]
      %v4249 = vld [vmem:[%s747 + $0x38] sm:$0xf]
      %v4250 = vld [vmem:[%s747 + $0x3c] sm:$0x1]
      %v4252 = vshrl.u32 %v4235, 16
      %v4254 = vrot.slane %v4252, 4
      %v4255 = vshll.u32 %v4235, 16
      %v4257 = vrot.slane %v4255, 5
      %v4258 = vor.u32 %v4254, %v4257
      %v4259 = vrot.slane %v4258, 4
      %v4261 = vshll.u32 %v4236, 16
      %v4263 = vrot.slane %v4261, 5
      %v4264 = vsel %vm568, %v4259, %v4263
      %v4266 = vshrl.u32 %v4237, 16
      %v4268 = vrot.slane %v4266, 4
      %v4269 = vshll.u32 %v4237, 16
      %v4271 = vrot.slane %v4269, 5
      %v4272 = vor.u32 %v4268, %v4271
      %v4273 = vrot.slane %v4272, 4
      %v4275 = vshll.u32 %v4238, 16
      %v4277 = vrot.slane %v4275, 5
      %v4278 = vsel %vm568, %v4273, %v4277
      %v4280 = vshrl.u32 %v4239, 16
      %v4282 = vrot.slane %v4280, 4
      %v4283 = vshll.u32 %v4239, 16
      %v4285 = vrot.slane %v4283, 5
      %v4286 = vor.u32 %v4282, %v4285
      %v4287 = vrot.slane %v4286, 4
      %v4289 = vshll.u32 %v4240, 16
      %v4291 = vrot.slane %v4289, 5
      %v4292 = vsel %vm568, %v4287, %v4291
      %v4294 = vshrl.u32 %v4241, 16
      %v4296 = vrot.slane %v4294, 4
      %v4297 = vshll.u32 %v4241, 16
      %v4299 = vrot.slane %v4297, 5
      %v4300 = vor.u32 %v4296, %v4299
      %v4301 = vrot.slane %v4300, 4
      %v4303 = vshll.u32 %v4242, 16
      %v4305 = vrot.slane %v4303, 5
      %v4306 = vsel %vm568, %v4301, %v4305
      %v4308 = vshrl.u32 %v4243, 16
      %v4310 = vrot.slane %v4308, 4
      %v4311 = vshll.u32 %v4243, 16
      %v4313 = vrot.slane %v4311, 5
      %v4314 = vor.u32 %v4310, %v4313
      %v4315 = vrot.slane %v4314, 4
      %v4317 = vshll.u32 %v4244, 16
      %v4319 = vrot.slane %v4317, 5
      %v4320 = vsel %vm568, %v4315, %v4319
      %v4322 = vshrl.u32 %v4245, 16
      %v4324 = vrot.slane %v4322, 4
      %v4325 = vshll.u32 %v4245, 16
      %v4327 = vrot.slane %v4325, 5
      %v4328 = vor.u32 %v4324, %v4327
      %v4329 = vrot.slane %v4328, 4
      %v4331 = vshll.u32 %v4246, 16
      %v4333 = vrot.slane %v4331, 5
      %v4334 = vsel %vm568, %v4329, %v4333
      %v4336 = vshrl.u32 %v4247, 16
      %v4338 = vrot.slane %v4336, 4
      %v4339 = vshll.u32 %v4247, 16
      %v4341 = vrot.slane %v4339, 5
      %v4342 = vor.u32 %v4338, %v4341
      %v4343 = vrot.slane %v4342, 4
      %v4345 = vshll.u32 %v4248, 16
      %v4347 = vrot.slane %v4345, 5
      %v4348 = vsel %vm568, %v4343, %v4347
      %v4350 = vshrl.u32 %v4249, 16
      %v4352 = vrot.slane %v4350, 4
      %v4353 = vshll.u32 %v4249, 16
      %v4355 = vrot.slane %v4353, 5
      %v4356 = vor.u32 %v4352, %v4355
      %v4357 = vrot.slane %v4356, 4
      %v4359 = vshll.u32 %v4250, 16
      %v4361 = vrot.slane %v4359, 5
      %v4362 = vsel %vm568, %v4357, %v4361
      %v4363 = vld [vmem:[%s476] sm:$0x3]
      %v4364 = vunpack.c.l.b16 %v4264
      %v4365 = vunpack.c.l.b16 %v4278
      %v4366 = vunpack.c.l.b16 %v4292
      %v4367 = vunpack.c.l.b16 %v4306
      %v4368 = vunpack.c.l.b16 %v4320
      %v4369 = vunpack.c.l.b16 %v4334
      %v4370 = vunpack.c.l.b16 %v4348
      %v4371 = vunpack.c.l.b16 %v4362
      %v4372 = vpack.c.b16 %v4365, %v4364
      %v4373 = vpack.c.b16 %v4367, %v4366
      %v4374 = vpack.c.b16 %v4369, %v4368
      %v4375 = vpack.c.b16 %v4371, %v4370
      %v4377 = vsel %vm413, %v4372, 0
      %v4380 = vsel %vm413, %v4373, 0
      %v4383 = vsel %vm413, %v4374, 0
      %v4386 = vsel %vm413, %v4375, 0
      %v4389 = vsel %vm426, %v4363, 0
      %4391 = vmatpush.bf16.msra.mxu0 0
      %4392 = vmatpush.bf16.msra.mxu0 0
      %4393 = vmatpush.bf16.msra.mxu0 0
      %4394 = vmatpush.bf16.msra.mxu0 0
      %4395 = vmatpush.bf16.msra.mxu0 0
      %4396 = vmatpush.bf16.msra.mxu0 0
      %4397 = vmatpush.bf16.msra.mxu0 0
      %4398 = vmatpush.bf16.msra.mxu0 %v4389
      %4399 = vmatmul.bf16.gmra.mxu0 %v4377
      %v4400 = vpop.f32.mrf.mxu0
      %v4401 = vadd.f32 0.0, %v4400
      %v4402 = vpop.f32.mrf.mxu0
      %v4403 = vadd.f32 0.0, %v4402
      %4404 = vmatmul.bf16.gmra.mxu0 %v4380
      %v4405 = vpop.f32.mrf.mxu0
      %v4406 = vadd.f32 0.0, %v4405
      %v4407 = vpop.f32.mrf.mxu0
      %v4408 = vadd.f32 0.0, %v4407
      %4409 = vmatmul.bf16.gmra.mxu0 %v4383
      %v4410 = vpop.f32.mrf.mxu0
      %v4411 = vadd.f32 0.0, %v4410
      %v4412 = vpop.f32.mrf.mxu0
      %v4413 = vadd.f32 0.0, %v4412
      %4414 = vmatmul.bf16.gmra.mxu0 %v4386
      %v4415 = vpop.f32.mrf.mxu0
      %v4416 = vadd.f32 0.0, %v4415
      %v4417 = vpop.f32.mrf.mxu0
      %v4418 = vadd.f32 0.0, %v4417
      %4419 = vdwg.mxu0
      %v4420 = vadd.f32 %v4227, %v4401
      %v4421 = vadd.f32 %v4228, %v4403
      %v4422 = vadd.f32 %v4229, %v4406
      %v4423 = vadd.f32 %v4230, %v4408
      %v4424 = vadd.f32 %v4231, %v4411
      %v4425 = vadd.f32 %v4232, %v4413
      %v4426 = vadd.f32 %v4233, %v4416
      %v4427 = vadd.f32 %v4234, %v4418
      %v4428 = vld [vmem:[%s830] sm:$0xf]
      %v4429 = vld [vmem:[%s830 + $0x4] sm:$0x1]
      %v4430 = vld [vmem:[%s830 + $0x8] sm:$0xf]
      %v4431 = vld [vmem:[%s830 + $0xc] sm:$0x1]
      %v4432 = vld [vmem:[%s830 + $0x10] sm:$0xf]
      %v4433 = vld [vmem:[%s830 + $0x14] sm:$0x1]
      %v4434 = vld [vmem:[%s830 + $0x18] sm:$0xf]
      %v4435 = vld [vmem:[%s830 + $0x1c] sm:$0x1]
      %v4436 = vld [vmem:[%s830 + $0x20] sm:$0xf]
      %v4437 = vld [vmem:[%s830 + $0x24] sm:$0x1]
      %v4438 = vld [vmem:[%s830 + $0x28] sm:$0xf]
      %v4439 = vld [vmem:[%s830 + $0x2c] sm:$0x1]
      %v4440 = vld [vmem:[%s830 + $0x30] sm:$0xf]
      %v4441 = vld [vmem:[%s830 + $0x34] sm:$0x1]
      %v4442 = vld [vmem:[%s830 + $0x38] sm:$0xf]
      %v4443 = vld [vmem:[%s830 + $0x3c] sm:$0x1]
      %v4445 = vshrl.u32 %v4428, 16
      %v4447 = vrot.slane %v4445, 4
      %v4448 = vshll.u32 %v4428, 16
      %v4450 = vrot.slane %v4448, 5
      %v4451 = vor.u32 %v4447, %v4450
      %v4452 = vrot.slane %v4451, 4
      %v4454 = vshll.u32 %v4429, 16
      %v4456 = vrot.slane %v4454, 5
      %v4457 = vsel %vm568, %v4452, %v4456
      %v4459 = vshrl.u32 %v4430, 16
      %v4461 = vrot.slane %v4459, 4
      %v4462 = vshll.u32 %v4430, 16
      %v4464 = vrot.slane %v4462, 5
      %v4465 = vor.u32 %v4461, %v4464
      %v4466 = vrot.slane %v4465, 4
      %v4468 = vshll.u32 %v4431, 16
      %v4470 = vrot.slane %v4468, 5
      %v4471 = vsel %vm568, %v4466, %v4470
      %v4473 = vshrl.u32 %v4432, 16
      %v4475 = vrot.slane %v4473, 4
      %v4476 = vshll.u32 %v4432, 16
      %v4478 = vrot.slane %v4476, 5
      %v4479 = vor.u32 %v4475, %v4478
      %v4480 = vrot.slane %v4479, 4
      %v4482 = vshll.u32 %v4433, 16
      %v4484 = vrot.slane %v4482, 5
      %v4485 = vsel %vm568, %v4480, %v4484
      %v4487 = vshrl.u32 %v4434, 16
      %v4489 = vrot.slane %v4487, 4
      %v4490 = vshll.u32 %v4434, 16
      %v4492 = vrot.slane %v4490, 5
      %v4493 = vor.u32 %v4489, %v4492
      %v4494 = vrot.slane %v4493, 4
      %v4496 = vshll.u32 %v4435, 16
      %v4498 = vrot.slane %v4496, 5
      %v4499 = vsel %vm568, %v4494, %v4498
      %v4501 = vshrl.u32 %v4436, 16
      %v4503 = vrot.slane %v4501, 4
      %v4504 = vshll.u32 %v4436, 16
      %v4506 = vrot.slane %v4504, 5
      %v4507 = vor.u32 %v4503, %v4506
      %v4508 = vrot.slane %v4507, 4
      %v4510 = vshll.u32 %v4437, 16
      %v4512 = vrot.slane %v4510, 5
      %v4513 = vsel %vm568, %v4508, %v4512
      %v4515 = vshrl.u32 %v4438, 16
      %v4517 = vrot.slane %v4515, 4
      %v4518 = vshll.u32 %v4438, 16
      %v4520 = vrot.slane %v4518, 5
      %v4521 = vor.u32 %v4517, %v4520
      %v4522 = vrot.slane %v4521, 4
      %v4524 = vshll.u32 %v4439, 16
      %v4526 = vrot.slane %v4524, 5
      %v4527 = vsel %vm568, %v4522, %v4526
      %v4529 = vshrl.u32 %v4440, 16
      %v4531 = vrot.slane %v4529, 4
      %v4532 = vshll.u32 %v4440, 16
      %v4534 = vrot.slane %v4532, 5
      %v4535 = vor.u32 %v4531, %v4534
      %v4536 = vrot.slane %v4535, 4
      %v4538 = vshll.u32 %v4441, 16
      %v4540 = vrot.slane %v4538, 5
      %v4541 = vsel %vm568, %v4536, %v4540
      %v4543 = vshrl.u32 %v4442, 16
      %v4545 = vrot.slane %v4543, 4
      %v4546 = vshll.u32 %v4442, 16
      %v4548 = vrot.slane %v4546, 5
      %v4549 = vor.u32 %v4545, %v4548
      %v4550 = vrot.slane %v4549, 4
      %v4552 = vshll.u32 %v4443, 16
      %v4554 = vrot.slane %v4552, 5
      %v4555 = vsel %vm568, %v4550, %v4554
      %v4556 = vld [vmem:[%s681] sm:$0x3]
      %v4557 = vunpack.c.l.b16 %v4457
      %v4558 = vunpack.c.l.b16 %v4471
      %v4559 = vunpack.c.l.b16 %v4485
      %v4560 = vunpack.c.l.b16 %v4499
      %v4561 = vunpack.c.l.b16 %v4513
      %v4562 = vunpack.c.l.b16 %v4527
      %v4563 = vunpack.c.l.b16 %v4541
      %v4564 = vunpack.c.l.b16 %v4555
      %v4565 = vpack.c.b16 %v4558, %v4557
      %v4566 = vpack.c.b16 %v4560, %v4559
      %v4567 = vpack.c.b16 %v4562, %v4561
      %v4568 = vpack.c.b16 %v4564, %v4563
      %v4570 = vsel %vm413, %v4565, 0
      %v4573 = vsel %vm413, %v4566, 0
      %v4576 = vsel %vm413, %v4567, 0
      %v4579 = vsel %vm413, %v4568, 0
      %v4582 = vsel %vm426, %v4556, 0
      %4584 = vmatpush.bf16.msra.mxu0 0
      %4585 = vmatpush.bf16.msra.mxu0 0
      %4586 = vmatpush.bf16.msra.mxu0 0
      %4587 = vmatpush.bf16.msra.mxu0 0
      %4588 = vmatpush.bf16.msra.mxu0 0
      %4589 = vmatpush.bf16.msra.mxu0 0
      %4590 = vmatpush.bf16.msra.mxu0 0
      %4591 = vmatpush.bf16.msra.mxu0 %v4582
      %4592 = vmatmul.bf16.gmra.mxu0 %v4570
      %v4593 = vpop.f32.mrf.mxu0
      %v4594 = vadd.f32 0.0, %v4593
      %v4595 = vpop.f32.mrf.mxu0
      %v4596 = vadd.f32 0.0, %v4595
      %4597 = vmatmul.bf16.gmra.mxu0 %v4573
      %v4598 = vpop.f32.mrf.mxu0
      %v4599 = vadd.f32 0.0, %v4598
      %v4600 = vpop.f32.mrf.mxu0
      %v4601 = vadd.f32 0.0, %v4600
      %4602 = vmatmul.bf16.gmra.mxu0 %v4576
      %v4603 = vpop.f32.mrf.mxu0
      %v4604 = vadd.f32 0.0, %v4603
      %v4605 = vpop.f32.mrf.mxu0
      %v4606 = vadd.f32 0.0, %v4605
      %4607 = vmatmul.bf16.gmra.mxu0 %v4579
      %v4608 = vpop.f32.mrf.mxu0
      %v4609 = vadd.f32 0.0, %v4608
      %v4610 = vpop.f32.mrf.mxu0
      %v4611 = vadd.f32 0.0, %v4610
      %4612 = vdwg.mxu0
      %v4613 = vadd.f32 %v4420, %v4594
      %v4614 = vadd.f32 %v4421, %v4596
      %v4615 = vadd.f32 %v4422, %v4599
      %v4616 = vadd.f32 %v4423, %v4601
      %v4617 = vadd.f32 %v4424, %v4604
      %v4618 = vadd.f32 %v4425, %v4606
      %v4619 = vadd.f32 %v4426, %v4609
      %v4620 = vadd.f32 %v4427, %v4611
      %v4621 = vld [vmem:[%s1190] sm:$0xf]
      %v4622 = vld [vmem:[%s1190 + $0x8] sm:$0xf]
      %v4623 = vld [vmem:[%s1190 + $0x10] sm:$0xf]
      %v4624 = vld [vmem:[%s1190 + $0x18] sm:$0xf]
      %v4625 = vld [vmem:[%s1190 + $0x20] sm:$0xf]
      %v4626 = vld [vmem:[%s1190 + $0x28] sm:$0xf]
      %v4627 = vld [vmem:[%s1190 + $0x30] sm:$0xf]
      %v4628 = vld [vmem:[%s1190 + $0x38] sm:$0xf]
      %v4629 = vld [vmem:[%s756] sm:$0x3]
      %v4638 = vunpack.c.l.b16 %v4621
      %v4639 = vunpack.c.l.b16 %v4622
      %v4640 = vunpack.c.l.b16 %v4623
      %v4641 = vunpack.c.l.b16 %v4624
      %v4642 = vunpack.c.l.b16 %v4625
      %v4643 = vunpack.c.l.b16 %v4626
      %v4644 = vunpack.c.l.b16 %v4627
      %v4645 = vunpack.c.l.b16 %v4628
      %v4646 = vpack.c.b16 %v4639, %v4638
      %v4647 = vpack.c.b16 %v4641, %v4640
      %v4648 = vpack.c.b16 %v4643, %v4642
      %v4649 = vpack.c.b16 %v4645, %v4644
      %v4651 = vsel %vm413, %v4646, 0
      %v4654 = vsel %vm413, %v4647, 0
      %v4657 = vsel %vm413, %v4648, 0
      %v4660 = vsel %vm413, %v4649, 0
      %v4663 = vsel %vm426, %v4629, 0
      %4665 = vmatpush.bf16.msra.mxu0 0
      %4666 = vmatpush.bf16.msra.mxu0 0
      %4667 = vmatpush.bf16.msra.mxu0 0
      %4668 = vmatpush.bf16.msra.mxu0 0
      %4669 = vmatpush.bf16.msra.mxu0 0
      %4670 = vmatpush.bf16.msra.mxu0 0
      %4671 = vmatpush.bf16.msra.mxu0 0
      %4672 = vmatpush.bf16.msra.mxu0 %v4663
      %4673 = vmatmul.bf16.gmra.mxu0 %v4651
      %v4674 = vpop.f32.mrf.mxu0
      %v4675 = vadd.f32 0.0, %v4674
      %v4676 = vpop.f32.mrf.mxu0
      %v4677 = vadd.f32 0.0, %v4676
      %4678 = vmatmul.bf16.gmra.mxu0 %v4654
      %v4679 = vpop.f32.mrf.mxu0
      %v4680 = vadd.f32 0.0, %v4679
      %v4681 = vpop.f32.mrf.mxu0
      %v4682 = vadd.f32 0.0, %v4681
      %4683 = vmatmul.bf16.gmra.mxu0 %v4657
      %v4684 = vpop.f32.mrf.mxu0
      %v4685 = vadd.f32 0.0, %v4684
      %v4686 = vpop.f32.mrf.mxu0
      %v4687 = vadd.f32 0.0, %v4686
      %4688 = vmatmul.bf16.gmra.mxu0 %v4660
      %v4689 = vpop.f32.mrf.mxu0
      %v4690 = vadd.f32 0.0, %v4689
      %v4691 = vpop.f32.mrf.mxu0
      %v4692 = vadd.f32 0.0, %v4691
      %4693 = vdwg.mxu0
      %v4694 = vadd.f32 %v4613, %v4675
      %v4695 = vadd.f32 %v4614, %v4677
      %v4696 = vadd.f32 %v4615, %v4680
      %v4697 = vadd.f32 %v4616, %v4682
      %v4698 = vadd.f32 %v4617, %v4685
      %v4699 = vadd.f32 %v4618, %v4687
      %v4700 = vadd.f32 %v4619, %v4690
      %v4701 = vadd.f32 %v4620, %v4692
      %v4702 = vld [vmem:[%s1107] sm:$0xf]
      %v4703 = vld [vmem:[%s1107 + $0x4] sm:$0x1]
      %v4704 = vld [vmem:[%s1107 + $0x8] sm:$0xf]
      %v4705 = vld [vmem:[%s1107 + $0xc] sm:$0x1]
      %v4706 = vld [vmem:[%s1107 + $0x10] sm:$0xf]
      %v4707 = vld [vmem:[%s1107 + $0x14] sm:$0x1]
      %v4708 = vld [vmem:[%s1107 + $0x18] sm:$0xf]
      %v4709 = vld [vmem:[%s1107 + $0x1c] sm:$0x1]
      %v4710 = vld [vmem:[%s1107 + $0x20] sm:$0xf]
      %v4711 = vld [vmem:[%s1107 + $0x24] sm:$0x1]
      %v4712 = vld [vmem:[%s1107 + $0x28] sm:$0xf]
      %v4713 = vld [vmem:[%s1107 + $0x2c] sm:$0x1]
      %v4714 = vld [vmem:[%s1107 + $0x30] sm:$0xf]
      %v4715 = vld [vmem:[%s1107 + $0x34] sm:$0x1]
      %v4716 = vld [vmem:[%s1107 + $0x38] sm:$0xf]
      %v4717 = vld [vmem:[%s1107 + $0x3c] sm:$0x1]
      %v4719 = vshrl.u32 %v4702, 16
      %v4721 = vrot.slane %v4719, 4
      %v4722 = vshll.u32 %v4702, 16
      %v4724 = vrot.slane %v4722, 5
      %v4725 = vor.u32 %v4721, %v4724
      %v4726 = vrot.slane %v4725, 4
      %v4728 = vshll.u32 %v4703, 16
      %v4730 = vrot.slane %v4728, 5
      %v4731 = vsel %vm568, %v4726, %v4730
      %v4733 = vshrl.u32 %v4704, 16
      %v4735 = vrot.slane %v4733, 4
      %v4736 = vshll.u32 %v4704, 16
      %v4738 = vrot.slane %v4736, 5
      %v4739 = vor.u32 %v4735, %v4738
      %v4740 = vrot.slane %v4739, 4
      %v4742 = vshll.u32 %v4705, 16
      %v4744 = vrot.slane %v4742, 5
      %v4745 = vsel %vm568, %v4740, %v4744
      %v4747 = vshrl.u32 %v4706, 16
      %v4749 = vrot.slane %v4747, 4
      %v4750 = vshll.u32 %v4706, 16
      %v4752 = vrot.slane %v4750, 5
      %v4753 = vor.u32 %v4749, %v4752
      %v4754 = vrot.slane %v4753, 4
      %v4756 = vshll.u32 %v4707, 16
      %v4758 = vrot.slane %v4756, 5
      %v4759 = vsel %vm568, %v4754, %v4758
      %v4761 = vshrl.u32 %v4708, 16
      %v4763 = vrot.slane %v4761, 4
      %v4764 = vshll.u32 %v4708, 16
      %v4766 = vrot.slane %v4764, 5
      %v4767 = vor.u32 %v4763, %v4766
      %v4768 = vrot.slane %v4767, 4
      %v4770 = vshll.u32 %v4709, 16
      %v4772 = vrot.slane %v4770, 5
      %v4773 = vsel %vm568, %v4768, %v4772
      %v4775 = vshrl.u32 %v4710, 16
      %v4777 = vrot.slane %v4775, 4
      %v4778 = vshll.u32 %v4710, 16
      %v4780 = vrot.slane %v4778, 5
      %v4781 = vor.u32 %v4777, %v4780
      %v4782 = vrot.slane %v4781, 4
      %v4784 = vshll.u32 %v4711, 16
      %v4786 = vrot.slane %v4784, 5
      %v4787 = vsel %vm568, %v4782, %v4786
      %v4789 = vshrl.u32 %v4712, 16
      %v4791 = vrot.slane %v4789, 4
      %v4792 = vshll.u32 %v4712, 16
      %v4794 = vrot.slane %v4792, 5
      %v4795 = vor.u32 %v4791, %v4794
      %v4796 = vrot.slane %v4795, 4
      %v4798 = vshll.u32 %v4713, 16
      %v4800 = vrot.slane %v4798, 5
      %v4801 = vsel %vm568, %v4796, %v4800
      %v4803 = vshrl.u32 %v4714, 16
      %v4805 = vrot.slane %v4803, 4
      %v4806 = vshll.u32 %v4714, 16
      %v4808 = vrot.slane %v4806, 5
      %v4809 = vor.u32 %v4805, %v4808
      %v4810 = vrot.slane %v4809, 4
      %v4812 = vshll.u32 %v4715, 16
      %v4814 = vrot.slane %v4812, 5
      %v4815 = vsel %vm568, %v4810, %v4814
      %v4817 = vshrl.u32 %v4716, 16
      %v4819 = vrot.slane %v4817, 4
      %v4820 = vshll.u32 %v4716, 16
      %v4822 = vrot.slane %v4820, 5
      %v4823 = vor.u32 %v4819, %v4822
      %v4824 = vrot.slane %v4823, 4
      %v4826 = vshll.u32 %v4717, 16
      %v4828 = vrot.slane %v4826, 5
      %v4829 = vsel %vm568, %v4824, %v4828
      %v4830 = vld [vmem:[%s839] sm:$0x3]
      %v4831 = vunpack.c.l.b16 %v4731
      %v4832 = vunpack.c.l.b16 %v4745
      %v4833 = vunpack.c.l.b16 %v4759
      %v4834 = vunpack.c.l.b16 %v4773
      %v4835 = vunpack.c.l.b16 %v4787
      %v4836 = vunpack.c.l.b16 %v4801
      %v4837 = vunpack.c.l.b16 %v4815
      %v4838 = vunpack.c.l.b16 %v4829
      %v4839 = vpack.c.b16 %v4832, %v4831
      %v4840 = vpack.c.b16 %v4834, %v4833
      %v4841 = vpack.c.b16 %v4836, %v4835
      %v4842 = vpack.c.b16 %v4838, %v4837
      %v4844 = vsel %vm413, %v4839, 0
      %v4847 = vsel %vm413, %v4840, 0
      %v4850 = vsel %vm413, %v4841, 0
      %v4853 = vsel %vm413, %v4842, 0
      %v4856 = vsel %vm426, %v4830, 0
      %4858 = vmatpush.bf16.msra.mxu0 0
      %4859 = vmatpush.bf16.msra.mxu0 0
      %4860 = vmatpush.bf16.msra.mxu0 0
      %4861 = vmatpush.bf16.msra.mxu0 0
      %4862 = vmatpush.bf16.msra.mxu0 0
      %4863 = vmatpush.bf16.msra.mxu0 0
      %4864 = vmatpush.bf16.msra.mxu0 0
      %4865 = vmatpush.bf16.msra.mxu0 %v4856
      %4866 = vmatmul.bf16.gmra.mxu0 %v4844
      %v4867 = vpop.f32.mrf.mxu0
      %v4868 = vadd.f32 0.0, %v4867
      %v4869 = vpop.f32.mrf.mxu0
      %v4870 = vadd.f32 0.0, %v4869
      %4871 = vmatmul.bf16.gmra.mxu0 %v4847
      %v4872 = vpop.f32.mrf.mxu0
      %v4873 = vadd.f32 0.0, %v4872
      %v4874 = vpop.f32.mrf.mxu0
      %v4875 = vadd.f32 0.0, %v4874
      %4876 = vmatmul.bf16.gmra.mxu0 %v4850
      %v4877 = vpop.f32.mrf.mxu0
      %v4878 = vadd.f32 0.0, %v4877
      %v4879 = vpop.f32.mrf.mxu0
      %v4880 = vadd.f32 0.0, %v4879
      %4881 = vmatmul.bf16.gmra.mxu0 %v4853
      %v4882 = vpop.f32.mrf.mxu0
      %v4883 = vadd.f32 0.0, %v4882
      %v4884 = vpop.f32.mrf.mxu0
      %v4885 = vadd.f32 0.0, %v4884
      %4886 = vdwg.mxu0
      %v4887 = vadd.f32 %v4694, %v4868
      %v4888 = vadd.f32 %v4695, %v4870
      %v4889 = vadd.f32 %v4696, %v4873
      %v4890 = vadd.f32 %v4697, %v4875
      %v4891 = vadd.f32 %v4698, %v4878
      %v4892 = vadd.f32 %v4699, %v4880
      %v4893 = vadd.f32 %v4700, %v4883
      %v4894 = vadd.f32 %v4701, %v4885
      %v4895 = vld [vmem:[%s1190] sm:$0xf]
      %v4896 = vld [vmem:[%s1190 + $0x4] sm:$0x1]
      %v4897 = vld [vmem:[%s1190 + $0x8] sm:$0xf]
      %v4898 = vld [vmem:[%s1190 + $0xc] sm:$0x1]
      %v4899 = vld [vmem:[%s1190 + $0x10] sm:$0xf]
      %v4900 = vld [vmem:[%s1190 + $0x14] sm:$0x1]
      %v4901 = vld [vmem:[%s1190 + $0x18] sm:$0xf]
      %v4902 = vld [vmem:[%s1190 + $0x1c] sm:$0x1]
      %v4903 = vld [vmem:[%s1190 + $0x20] sm:$0xf]
      %v4904 = vld [vmem:[%s1190 + $0x24] sm:$0x1]
      %v4905 = vld [vmem:[%s1190 + $0x28] sm:$0xf]
      %v4906 = vld [vmem:[%s1190 + $0x2c] sm:$0x1]
      %v4907 = vld [vmem:[%s1190 + $0x30] sm:$0xf]
      %v4908 = vld [vmem:[%s1190 + $0x34] sm:$0x1]
      %v4909 = vld [vmem:[%s1190 + $0x38] sm:$0xf]
      %v4910 = vld [vmem:[%s1190 + $0x3c] sm:$0x1]
      %v4912 = vshrl.u32 %v4895, 16
      %v4914 = vrot.slane %v4912, 4
      %v4915 = vshll.u32 %v4895, 16
      %v4917 = vrot.slane %v4915, 5
      %v4918 = vor.u32 %v4914, %v4917
      %v4919 = vrot.slane %v4918, 4
      %v4921 = vshll.u32 %v4896, 16
      %v4923 = vrot.slane %v4921, 5
      %v4924 = vsel %vm568, %v4919, %v4923
      %v4926 = vshrl.u32 %v4897, 16
      %v4928 = vrot.slane %v4926, 4
      %v4929 = vshll.u32 %v4897, 16
      %v4931 = vrot.slane %v4929, 5
      %v4932 = vor.u32 %v4928, %v4931
      %v4933 = vrot.slane %v4932, 4
      %v4935 = vshll.u32 %v4898, 16
      %v4937 = vrot.slane %v4935, 5
      %v4938 = vsel %vm568, %v4933, %v4937
      %v4940 = vshrl.u32 %v4899, 16
      %v4942 = vrot.slane %v4940, 4
      %v4943 = vshll.u32 %v4899, 16
      %v4945 = vrot.slane %v4943, 5
      %v4946 = vor.u32 %v4942, %v4945
      %v4947 = vrot.slane %v4946, 4
      %v4949 = vshll.u32 %v4900, 16
      %v4951 = vrot.slane %v4949, 5
      %v4952 = vsel %vm568, %v4947, %v4951
      %v4954 = vshrl.u32 %v4901, 16
      %v4956 = vrot.slane %v4954, 4
      %v4957 = vshll.u32 %v4901, 16
      %v4959 = vrot.slane %v4957, 5
      %v4960 = vor.u32 %v4956, %v4959
      %v4961 = vrot.slane %v4960, 4
      %v4963 = vshll.u32 %v4902, 16
      %v4965 = vrot.slane %v4963, 5
      %v4966 = vsel %vm568, %v4961, %v4965
      %v4968 = vshrl.u32 %v4903, 16
      %v4970 = vrot.slane %v4968, 4
      %v4971 = vshll.u32 %v4903, 16
      %v4973 = vrot.slane %v4971, 5
      %v4974 = vor.u32 %v4970, %v4973
      %v4975 = vrot.slane %v4974, 4
      %v4977 = vshll.u32 %v4904, 16
      %v4979 = vrot.slane %v4977, 5
      %v4980 = vsel %vm568, %v4975, %v4979
      %v4982 = vshrl.u32 %v4905, 16
      %v4984 = vrot.slane %v4982, 4
      %v4985 = vshll.u32 %v4905, 16
      %v4987 = vrot.slane %v4985, 5
      %v4988 = vor.u32 %v4984, %v4987
      %v4989 = vrot.slane %v4988, 4
      %v4991 = vshll.u32 %v4906, 16
      %v4993 = vrot.slane %v4991, 5
      %v4994 = vsel %vm568, %v4989, %v4993
      %v4996 = vshrl.u32 %v4907, 16
      %v4998 = vrot.slane %v4996, 4
      %v4999 = vshll.u32 %v4907, 16
      %v5001 = vrot.slane %v4999, 5
      %v5002 = vor.u32 %v4998, %v5001
      %v5003 = vrot.slane %v5002, 4
      %v5005 = vshll.u32 %v4908, 16
      %v5007 = vrot.slane %v5005, 5
      %v5008 = vsel %vm568, %v5003, %v5007
      %v5010 = vshrl.u32 %v4909, 16
      %v5012 = vrot.slane %v5010, 4
      %v5013 = vshll.u32 %v4909, 16
      %v5015 = vrot.slane %v5013, 5
      %v5016 = vor.u32 %v5012, %v5015
      %v5017 = vrot.slane %v5016, 4
      %v5019 = vshll.u32 %v4910, 16
      %v5021 = vrot.slane %v5019, 5
      %v5022 = vsel %vm568, %v5017, %v5021
      %v5023 = vld [vmem:[%s1041] sm:$0x3]
      %v5024 = vunpack.c.l.b16 %v4924
      %v5025 = vunpack.c.l.b16 %v4938
      %v5026 = vunpack.c.l.b16 %v4952
      %v5027 = vunpack.c.l.b16 %v4966
      %v5028 = vunpack.c.l.b16 %v4980
      %v5029 = vunpack.c.l.b16 %v4994
      %v5030 = vunpack.c.l.b16 %v5008
      %v5031 = vunpack.c.l.b16 %v5022
      %v5032 = vpack.c.b16 %v5025, %v5024
      %v5033 = vpack.c.b16 %v5027, %v5026
      %v5034 = vpack.c.b16 %v5029, %v5028
      %v5035 = vpack.c.b16 %v5031, %v5030
      %v5037 = vsel %vm413, %v5032, 0
      %v5040 = vsel %vm413, %v5033, 0
      %v5043 = vsel %vm413, %v5034, 0
      %v5046 = vsel %vm413, %v5035, 0
      %v5049 = vsel %vm426, %v5023, 0
      %5051 = vmatpush.bf16.msra.mxu0 0
      %5052 = vmatpush.bf16.msra.mxu0 0
      %5053 = vmatpush.bf16.msra.mxu0 0
      %5054 = vmatpush.bf16.msra.mxu0 0
      %5055 = vmatpush.bf16.msra.mxu0 0
      %5056 = vmatpush.bf16.msra.mxu0 0
      %5057 = vmatpush.bf16.msra.mxu0 0
      %5058 = vmatpush.bf16.msra.mxu0 %v5049
      %5059 = vmatmul.bf16.gmra.mxu0 %v5037
      %v5060 = vpop.f32.mrf.mxu0
      %v5061 = vadd.f32 0.0, %v5060
      %v5062 = vpop.f32.mrf.mxu0
      %v5063 = vadd.f32 0.0, %v5062
      %5064 = vmatmul.bf16.gmra.mxu0 %v5040
      %v5065 = vpop.f32.mrf.mxu0
      %v5066 = vadd.f32 0.0, %v5065
      %v5067 = vpop.f32.mrf.mxu0
      %v5068 = vadd.f32 0.0, %v5067
      %5069 = vmatmul.bf16.gmra.mxu0 %v5043
      %v5070 = vpop.f32.mrf.mxu0
      %v5071 = vadd.f32 0.0, %v5070
      %v5072 = vpop.f32.mrf.mxu0
      %v5073 = vadd.f32 0.0, %v5072
      %5074 = vmatmul.bf16.gmra.mxu0 %v5046
      %v5075 = vpop.f32.mrf.mxu0
      %v5076 = vadd.f32 0.0, %v5075
      %v5077 = vpop.f32.mrf.mxu0
      %v5078 = vadd.f32 0.0, %v5077
      %5079 = vdwg.mxu0
      %v5080 = vadd.f32 %v4887, %v5061
      %v5081 = vadd.f32 %v4888, %v5063
      %v5082 = vadd.f32 %v4889, %v5066
      %v5083 = vadd.f32 %v4890, %v5068
      %v5084 = vadd.f32 %v4891, %v5071
      %v5085 = vadd.f32 %v4892, %v5073
      %v5086 = vadd.f32 %v4893, %v5076
      %v5087 = vadd.f32 %v4894, %v5078
      %v5088 = vld [vmem:[%s3847] sm:$0xf]
      %v5089 = vld [vmem:[%s3847 + $0x8] sm:$0xf]
      %v5090 = vld [vmem:[%s3847 + $0x10] sm:$0xf]
      %v5091 = vld [vmem:[%s3847 + $0x18] sm:$0xf]
      %v5092 = vld [vmem:[%s3847 + $0x20] sm:$0xf]
      %v5093 = vld [vmem:[%s3847 + $0x28] sm:$0xf]
      %v5094 = vld [vmem:[%s3847 + $0x30] sm:$0xf]
      %v5095 = vld [vmem:[%s3847 + $0x38] sm:$0xf]
      %v5096 = vld [vmem:[%s1116] sm:$0x3]
      %v5105 = vunpack.c.l.b16 %v5088
      %v5106 = vunpack.c.l.b16 %v5089
      %v5107 = vunpack.c.l.b16 %v5090
      %v5108 = vunpack.c.l.b16 %v5091
      %v5109 = vunpack.c.l.b16 %v5092
      %v5110 = vunpack.c.l.b16 %v5093
      %v5111 = vunpack.c.l.b16 %v5094
      %v5112 = vunpack.c.l.b16 %v5095
      %v5113 = vpack.c.b16 %v5106, %v5105
      %v5114 = vpack.c.b16 %v5108, %v5107
      %v5115 = vpack.c.b16 %v5110, %v5109
      %v5116 = vpack.c.b16 %v5112, %v5111
      %v5118 = vsel %vm413, %v5113, 0
      %v5121 = vsel %vm413, %v5114, 0
      %v5124 = vsel %vm413, %v5115, 0
      %v5127 = vsel %vm413, %v5116, 0
      %v5130 = vsel %vm426, %v5096, 0
      %5132 = vmatpush.bf16.msra.mxu0 0
      %5133 = vmatpush.bf16.msra.mxu0 0
      %5134 = vmatpush.bf16.msra.mxu0 0
      %5135 = vmatpush.bf16.msra.mxu0 0
      %5136 = vmatpush.bf16.msra.mxu0 0
      %5137 = vmatpush.bf16.msra.mxu0 0
      %5138 = vmatpush.bf16.msra.mxu0 0
      %5139 = vmatpush.bf16.msra.mxu0 %v5130
      %5140 = vmatmul.bf16.gmra.mxu0 %v5118
      %v5141 = vpop.f32.mrf.mxu0
      %v5142 = vadd.f32 0.0, %v5141
      %v5143 = vpop.f32.mrf.mxu0
      %v5144 = vadd.f32 0.0, %v5143
      %5145 = vmatmul.bf16.gmra.mxu0 %v5121
      %v5146 = vpop.f32.mrf.mxu0
      %v5147 = vadd.f32 0.0, %v5146
      %v5148 = vpop.f32.mrf.mxu0
      %v5149 = vadd.f32 0.0, %v5148
      %5150 = vmatmul.bf16.gmra.mxu0 %v5124
      %v5151 = vpop.f32.mrf.mxu0
      %v5152 = vadd.f32 0.0, %v5151
      %v5153 = vpop.f32.mrf.mxu0
      %v5154 = vadd.f32 0.0, %v5153
      %5155 = vmatmul.bf16.gmra.mxu0 %v5127
      %v5156 = vpop.f32.mrf.mxu0
      %v5157 = vadd.f32 0.0, %v5156
      %v5158 = vpop.f32.mrf.mxu0
      %v5159 = vadd.f32 0.0, %v5158
      %5160 = vdwg.mxu0
      %v5161 = vadd.f32 %v5080, %v5142
      %v5162 = vadd.f32 %v5081, %v5144
      %v5163 = vadd.f32 %v5082, %v5147
      %v5164 = vadd.f32 %v5083, %v5149
      %v5165 = vadd.f32 %v5084, %v5152
      %v5166 = vadd.f32 %v5085, %v5154
      %v5167 = vadd.f32 %v5086, %v5157
      %v5168 = vadd.f32 %v5087, %v5159
      %v5169 = vld [vmem:[%s3765] sm:$0xf]
      %v5170 = vld [vmem:[%s3765 + $0x4] sm:$0x1]
      %v5171 = vld [vmem:[%s3765 + $0x8] sm:$0xf]
      %v5172 = vld [vmem:[%s3765 + $0xc] sm:$0x1]
      %v5173 = vld [vmem:[%s3765 + $0x10] sm:$0xf]
      %v5174 = vld [vmem:[%s3765 + $0x14] sm:$0x1]
      %v5175 = vld [vmem:[%s3765 + $0x18] sm:$0xf]
      %v5176 = vld [vmem:[%s3765 + $0x1c] sm:$0x1]
      %v5177 = vld [vmem:[%s3765 + $0x20] sm:$0xf]
      %v5178 = vld [vmem:[%s3765 + $0x24] sm:$0x1]
      %v5179 = vld [vmem:[%s3765 + $0x28] sm:$0xf]
      %v5180 = vld [vmem:[%s3765 + $0x2c] sm:$0x1]
      %v5181 = vld [vmem:[%s3765 + $0x30] sm:$0xf]
      %v5182 = vld [vmem:[%s3765 + $0x34] sm:$0x1]
      %v5183 = vld [vmem:[%s3765 + $0x38] sm:$0xf]
      %v5184 = vld [vmem:[%s3765 + $0x3c] sm:$0x1]
      %v5186 = vshrl.u32 %v5169, 16
      %v5188 = vrot.slane %v5186, 4
      %v5189 = vshll.u32 %v5169, 16
      %v5191 = vrot.slane %v5189, 5
      %v5192 = vor.u32 %v5188, %v5191
      %v5193 = vrot.slane %v5192, 4
      %v5195 = vshll.u32 %v5170, 16
      %v5197 = vrot.slane %v5195, 5
      %v5198 = vsel %vm568, %v5193, %v5197
      %v5200 = vshrl.u32 %v5171, 16
      %v5202 = vrot.slane %v5200, 4
      %v5203 = vshll.u32 %v5171, 16
      %v5205 = vrot.slane %v5203, 5
      %v5206 = vor.u32 %v5202, %v5205
      %v5207 = vrot.slane %v5206, 4
      %v5209 = vshll.u32 %v5172, 16
      %v5211 = vrot.slane %v5209, 5
      %v5212 = vsel %vm568, %v5207, %v5211
      %v5214 = vshrl.u32 %v5173, 16
      %v5216 = vrot.slane %v5214, 4
      %v5217 = vshll.u32 %v5173, 16
      %v5219 = vrot.slane %v5217, 5
      %v5220 = vor.u32 %v5216, %v5219
      %v5221 = vrot.slane %v5220, 4
      %v5223 = vshll.u32 %v5174, 16
      %v5225 = vrot.slane %v5223, 5
      %v5226 = vsel %vm568, %v5221, %v5225
      %v5228 = vshrl.u32 %v5175, 16
      %v5230 = vrot.slane %v5228, 4
      %v5231 = vshll.u32 %v5175, 16
      %v5233 = vrot.slane %v5231, 5
      %v5234 = vor.u32 %v5230, %v5233
      %v5235 = vrot.slane %v5234, 4
      %v5237 = vshll.u32 %v5176, 16
      %v5239 = vrot.slane %v5237, 5
      %v5240 = vsel %vm568, %v5235, %v5239
      %v5242 = vshrl.u32 %v5177, 16
      %v5244 = vrot.slane %v5242, 4
      %v5245 = vshll.u32 %v5177, 16
      %v5247 = vrot.slane %v5245, 5
      %v5248 = vor.u32 %v5244, %v5247
      %v5249 = vrot.slane %v5248, 4
      %v5251 = vshll.u32 %v5178, 16
      %v5253 = vrot.slane %v5251, 5
      %v5254 = vsel %vm568, %v5249, %v5253
      %v5256 = vshrl.u32 %v5179, 16
      %v5258 = vrot.slane %v5256, 4
      %v5259 = vshll.u32 %v5179, 16
      %v5261 = vrot.slane %v5259, 5
      %v5262 = vor.u32 %v5258, %v5261
      %v5263 = vrot.slane %v5262, 4
      %v5265 = vshll.u32 %v5180, 16
      %v5267 = vrot.slane %v5265, 5
      %v5268 = vsel %vm568, %v5263, %v5267
      %v5270 = vshrl.u32 %v5181, 16
      %v5272 = vrot.slane %v5270, 4
      %v5273 = vshll.u32 %v5181, 16
      %v5275 = vrot.slane %v5273, 5
      %v5276 = vor.u32 %v5272, %v5275
      %v5277 = vrot.slane %v5276, 4
      %v5279 = vshll.u32 %v5182, 16
      %v5281 = vrot.slane %v5279, 5
      %v5282 = vsel %vm568, %v5277, %v5281
      %v5284 = vshrl.u32 %v5183, 16
      %v5286 = vrot.slane %v5284, 4
      %v5287 = vshll.u32 %v5183, 16
      %v5289 = vrot.slane %v5287, 5
      %v5290 = vor.u32 %v5286, %v5289
      %v5291 = vrot.slane %v5290, 4
      %v5293 = vshll.u32 %v5184, 16
      %v5295 = vrot.slane %v5293, 5
      %v5296 = vsel %vm568, %v5291, %v5295
      %v5297 = vld [vmem:[%s1199] sm:$0x3]
      %v5298 = vunpack.c.l.b16 %v5198
      %v5299 = vunpack.c.l.b16 %v5212
      %v5300 = vunpack.c.l.b16 %v5226
      %v5301 = vunpack.c.l.b16 %v5240
      %v5302 = vunpack.c.l.b16 %v5254
      %v5303 = vunpack.c.l.b16 %v5268
      %v5304 = vunpack.c.l.b16 %v5282
      %v5305 = vunpack.c.l.b16 %v5296
      %v5306 = vpack.c.b16 %v5299, %v5298
      %v5307 = vpack.c.b16 %v5301, %v5300
      %v5308 = vpack.c.b16 %v5303, %v5302
      %v5309 = vpack.c.b16 %v5305, %v5304
      %v5311 = vsel %vm413, %v5306, 0
      %v5314 = vsel %vm413, %v5307, 0
      %v5317 = vsel %vm413, %v5308, 0
      %v5320 = vsel %vm413, %v5309, 0
      %v5323 = vsel %vm426, %v5297, 0
      %5325 = vmatpush.bf16.msra.mxu0 0
      %5326 = vmatpush.bf16.msra.mxu0 0
      %5327 = vmatpush.bf16.msra.mxu0 0
      %5328 = vmatpush.bf16.msra.mxu0 0
      %5329 = vmatpush.bf16.msra.mxu0 0
      %5330 = vmatpush.bf16.msra.mxu0 0
      %5331 = vmatpush.bf16.msra.mxu0 0
      %5332 = vmatpush.bf16.msra.mxu0 %v5323
      %5333 = vmatmul.bf16.gmra.mxu0 %v5311
      %v5334 = vpop.f32.mrf.mxu0
      %v5335 = vadd.f32 0.0, %v5334
      %v5336 = vpop.f32.mrf.mxu0
      %v5337 = vadd.f32 0.0, %v5336
      %5338 = vmatmul.bf16.gmra.mxu0 %v5314
      %v5339 = vpop.f32.mrf.mxu0
      %v5340 = vadd.f32 0.0, %v5339
      %v5341 = vpop.f32.mrf.mxu0
      %v5342 = vadd.f32 0.0, %v5341
      %5343 = vmatmul.bf16.gmra.mxu0 %v5317
      %v5344 = vpop.f32.mrf.mxu0
      %v5345 = vadd.f32 0.0, %v5344
      %v5346 = vpop.f32.mrf.mxu0
      %v5347 = vadd.f32 0.0, %v5346
      %5348 = vmatmul.bf16.gmra.mxu0 %v5320
      %v5349 = vpop.f32.mrf.mxu0
      %v5350 = vadd.f32 0.0, %v5349
      %v5351 = vpop.f32.mrf.mxu0
      %v5352 = vadd.f32 0.0, %v5351
      %5353 = vdwg.mxu0
      %v5354 = vadd.f32 %v5161, %v5335
      %v5355 = vadd.f32 %v5162, %v5337
      %v5356 = vadd.f32 %v5163, %v5340
      %v5357 = vadd.f32 %v5164, %v5342
      %v5358 = vadd.f32 %v5165, %v5345
      %v5359 = vadd.f32 %v5166, %v5347
      %v5360 = vadd.f32 %v5167, %v5350
      %v5361 = vadd.f32 %v5168, %v5352
      %v5362 = vld [vmem:[%s3847] sm:$0xf]
      %v5363 = vld [vmem:[%s3847 + $0x4] sm:$0x1]
      %v5364 = vld [vmem:[%s3847 + $0x8] sm:$0xf]
      %v5365 = vld [vmem:[%s3847 + $0xc] sm:$0x1]
      %v5366 = vld [vmem:[%s3847 + $0x10] sm:$0xf]
      %v5367 = vld [vmem:[%s3847 + $0x14] sm:$0x1]
      %v5368 = vld [vmem:[%s3847 + $0x18] sm:$0xf]
      %v5369 = vld [vmem:[%s3847 + $0x1c] sm:$0x1]
      %v5370 = vld [vmem:[%s3847 + $0x20] sm:$0xf]
      %v5371 = vld [vmem:[%s3847 + $0x24] sm:$0x1]
      %v5372 = vld [vmem:[%s3847 + $0x28] sm:$0xf]
      %v5373 = vld [vmem:[%s3847 + $0x2c] sm:$0x1]
      %v5374 = vld [vmem:[%s3847 + $0x30] sm:$0xf]
      %v5375 = vld [vmem:[%s3847 + $0x34] sm:$0x1]
      %v5376 = vld [vmem:[%s3847 + $0x38] sm:$0xf]
      %v5377 = vld [vmem:[%s3847 + $0x3c] sm:$0x1]
      %v5379 = vshrl.u32 %v5362, 16
      %v5381 = vrot.slane %v5379, 4
      %v5382 = vshll.u32 %v5362, 16
      %v5384 = vrot.slane %v5382, 5
      %v5385 = vor.u32 %v5381, %v5384
      %v5386 = vrot.slane %v5385, 4
      %v5388 = vshll.u32 %v5363, 16
      %v5390 = vrot.slane %v5388, 5
      %v5391 = vsel %vm568, %v5386, %v5390
      %v5393 = vshrl.u32 %v5364, 16
      %v5395 = vrot.slane %v5393, 4
      %v5396 = vshll.u32 %v5364, 16
      %v5398 = vrot.slane %v5396, 5
      %v5399 = vor.u32 %v5395, %v5398
      %v5400 = vrot.slane %v5399, 4
      %v5402 = vshll.u32 %v5365, 16
      %v5404 = vrot.slane %v5402, 5
      %v5405 = vsel %vm568, %v5400, %v5404
      %v5407 = vshrl.u32 %v5366, 16
      %v5409 = vrot.slane %v5407, 4
      %v5410 = vshll.u32 %v5366, 16
      %v5412 = vrot.slane %v5410, 5
      %v5413 = vor.u32 %v5409, %v5412
      %v5414 = vrot.slane %v5413, 4
      %v5416 = vshll.u32 %v5367, 16
      %v5418 = vrot.slane %v5416, 5
      %v5419 = vsel %vm568, %v5414, %v5418
      %v5421 = vshrl.u32 %v5368, 16
      %v5423 = vrot.slane %v5421, 4
      %v5424 = vshll.u32 %v5368, 16
      %v5426 = vrot.slane %v5424, 5
      %v5427 = vor.u32 %v5423, %v5426
      %v5428 = vrot.slane %v5427, 4
      %v5430 = vshll.u32 %v5369, 16
      %v5432 = vrot.slane %v5430, 5
      %v5433 = vsel %vm568, %v5428, %v5432
      %v5435 = vshrl.u32 %v5370, 16
      %v5437 = vrot.slane %v5435, 4
      %v5438 = vshll.u32 %v5370, 16
      %v5440 = vrot.slane %v5438, 5
      %v5441 = vor.u32 %v5437, %v5440
      %v5442 = vrot.slane %v5441, 4
      %v5444 = vshll.u32 %v5371, 16
      %v5446 = vrot.slane %v5444, 5
      %v5447 = vsel %vm568, %v5442, %v5446
      %v5449 = vshrl.u32 %v5372, 16
      %v5451 = vrot.slane %v5449, 4
      %v5452 = vshll.u32 %v5372, 16
      %v5454 = vrot.slane %v5452, 5
      %v5455 = vor.u32 %v5451, %v5454
      %v5456 = vrot.slane %v5455, 4
      %v5458 = vshll.u32 %v5373, 16
      %v5460 = vrot.slane %v5458, 5
      %v5461 = vsel %vm568, %v5456, %v5460
      %v5463 = vshrl.u32 %v5374, 16
      %v5465 = vrot.slane %v5463, 4
      %v5466 = vshll.u32 %v5374, 16
      %v5468 = vrot.slane %v5466, 5
      %v5469 = vor.u32 %v5465, %v5468
      %v5470 = vrot.slane %v5469, 4
      %v5472 = vshll.u32 %v5375, 16
      %v5474 = vrot.slane %v5472, 5
      %v5475 = vsel %vm568, %v5470, %v5474
      %v5477 = vshrl.u32 %v5376, 16
      %v5479 = vrot.slane %v5477, 4
      %v5480 = vshll.u32 %v5376, 16
      %v5482 = vrot.slane %v5480, 5
      %v5483 = vor.u32 %v5479, %v5482
      %v5484 = vrot.slane %v5483, 4
      %v5486 = vshll.u32 %v5377, 16
      %v5488 = vrot.slane %v5486, 5
      %v5489 = vsel %vm568, %v5484, %v5488
      %v5490 = vld [vmem:[%s1401] sm:$0x3]
      %v5491 = vunpack.c.l.b16 %v5391
      %v5492 = vunpack.c.l.b16 %v5405
      %v5493 = vunpack.c.l.b16 %v5419
      %v5494 = vunpack.c.l.b16 %v5433
      %v5495 = vunpack.c.l.b16 %v5447
      %v5496 = vunpack.c.l.b16 %v5461
      %v5497 = vunpack.c.l.b16 %v5475
      %v5498 = vunpack.c.l.b16 %v5489
      %v5499 = vpack.c.b16 %v5492, %v5491
      %v5500 = vpack.c.b16 %v5494, %v5493
      %v5501 = vpack.c.b16 %v5496, %v5495
      %v5502 = vpack.c.b16 %v5498, %v5497
      %v5504 = vsel %vm413, %v5499, 0
      %v5507 = vsel %vm413, %v5500, 0
      %v5510 = vsel %vm413, %v5501, 0
      %v5513 = vsel %vm413, %v5502, 0
      %v5516 = vsel %vm426, %v5490, 0
      %5518 = vmatpush.bf16.msra.mxu0 0
      %5519 = vmatpush.bf16.msra.mxu0 0
      %5520 = vmatpush.bf16.msra.mxu0 0
      %5521 = vmatpush.bf16.msra.mxu0 0
      %5522 = vmatpush.bf16.msra.mxu0 0
      %5523 = vmatpush.bf16.msra.mxu0 0
      %5524 = vmatpush.bf16.msra.mxu0 0
      %5525 = vmatpush.bf16.msra.mxu0 %v5516
      %5526 = vmatmul.bf16.gmra.mxu0 %v5504
      %v5527 = vpop.f32.mrf.mxu0
      %v5528 = vadd.f32 0.0, %v5527
      %v5529 = vpop.f32.mrf.mxu0
      %v5530 = vadd.f32 0.0, %v5529
      %5531 = vmatmul.bf16.gmra.mxu0 %v5507
      %v5532 = vpop.f32.mrf.mxu0
      %v5533 = vadd.f32 0.0, %v5532
      %v5534 = vpop.f32.mrf.mxu0
      %v5535 = vadd.f32 0.0, %v5534
      %5536 = vmatmul.bf16.gmra.mxu0 %v5510
      %v5537 = vpop.f32.mrf.mxu0
      %v5538 = vadd.f32 0.0, %v5537
      %v5539 = vpop.f32.mrf.mxu0
      %v5540 = vadd.f32 0.0, %v5539
      %5541 = vmatmul.bf16.gmra.mxu0 %v5513
      %v5542 = vpop.f32.mrf.mxu0
      %v5543 = vadd.f32 0.0, %v5542
      %v5544 = vpop.f32.mrf.mxu0
      %v5545 = vadd.f32 0.0, %v5544
      %5546 = vdwg.mxu0
      %v5547 = vadd.f32 %v5354, %v5528
      %v5548 = vadd.f32 %v5355, %v5530
      %v5549 = vadd.f32 %v5356, %v5533
      %v5550 = vadd.f32 %v5357, %v5535
      %v5551 = vadd.f32 %v5358, %v5538
      %v5552 = vadd.f32 %v5359, %v5540
      %v5553 = vadd.f32 %v5360, %v5543
      %v5554 = vadd.f32 %v5361, %v5545
      %v5555 = vmax.f32 %v5547, 0.0
      %v5556 = vmax.f32 %v5548, 0.0
      %v5557 = vmax.f32 %v5549, 0.0
      %v5558 = vmax.f32 %v5550, 0.0
      %v5559 = vmax.f32 %v5551, 0.0
      %v5560 = vmax.f32 %v5552, 0.0
      %v5561 = vmax.f32 %v5553, 0.0
      %v5562 = vmax.f32 %v5554, 0.0
      %v5563 = vpack.c.bf16 %v5555, %v5555
      %v5565 = vshrl.u32 %v5563, 16
      %v5567 = vrot.slane %v5565, 7
      %v5568 = vshll.u32 %v5563, 16
      %v5570 = vor.u32 %v5567, %v5568
      %v5571 = vrot.slane %v5567, 4
      %s5574 = scalar_lea.vmem [#allocation2], 8
      %v5575 = vld [vmem:[%s5574] sm:$0xf]
      %v5576 = vsel %vm2922, %v5570, %v5575
      %5577 = vst [vmem:[%s5574] sm:$0xf] %v5576
      %v5578 = vld [vmem:[%s5574 + $0x4] sm:$0x1]
      %v5579 = vsel %vm235, %v5571, %v5578
      %5580 = vst [vmem:[%s5574 + $0x4] sm:$0x1] %v5579
      %v5581 = vpack.c.bf16 %v5556, %v5556
      %v5583 = vshrl.u32 %v5581, 16
      %v5585 = vrot.slane %v5583, 7
      %v5586 = vshll.u32 %v5581, 16
      %v5588 = vor.u32 %v5585, %v5586
      %v5589 = vrot.slane %v5585, 4
      %s5592 = scalar_lea.vmem [#allocation2], 16
      %v5593 = vld [vmem:[%s5592] sm:$0xf]
      %v5594 = vsel %vm2922, %v5588, %v5593
      %5595 = vst [vmem:[%s5592] sm:$0xf] %v5594
      %v5596 = vld [vmem:[%s5592 + $0x4] sm:$0x1]
      %v5597 = vsel %vm235, %v5589, %v5596
      %5598 = vst [vmem:[%s5592 + $0x4] sm:$0x1] %v5597
      %v5599 = vpack.c.bf16 %v5557, %v5557
      %v5601 = vshrl.u32 %v5599, 16
      %v5603 = vrot.slane %v5601, 7
      %v5604 = vshll.u32 %v5599, 16
      %v5606 = vor.u32 %v5603, %v5604
      %v5607 = vrot.slane %v5603, 4
      %s5610 = scalar_lea.vmem [#allocation2], 24
      %v5611 = vld [vmem:[%s5610] sm:$0xf]
      %v5612 = vsel %vm2922, %v5606, %v5611
      %5613 = vst [vmem:[%s5610] sm:$0xf] %v5612
      %v5614 = vld [vmem:[%s5610 + $0x4] sm:$0x1]
      %v5615 = vsel %vm235, %v5607, %v5614
      %5616 = vst [vmem:[%s5610 + $0x4] sm:$0x1] %v5615
      %v5617 = vpack.c.bf16 %v5558, %v5558
      %v5619 = vshrl.u32 %v5617, 16
      %v5621 = vrot.slane %v5619, 7
      %v5622 = vshll.u32 %v5617, 16
      %v5624 = vor.u32 %v5621, %v5622
      %v5625 = vrot.slane %v5621, 4
      %s5628 = scalar_lea.vmem [#allocation2], 32
      %v5629 = vld [vmem:[%s5628] sm:$0xf]
      %v5630 = vsel %vm2922, %v5624, %v5629
      %5631 = vst [vmem:[%s5628] sm:$0xf] %v5630
      %v5632 = vld [vmem:[%s5628 + $0x4] sm:$0x1]
      %v5633 = vsel %vm235, %v5625, %v5632
      %5634 = vst [vmem:[%s5628 + $0x4] sm:$0x1] %v5633
      %v5635 = vpack.c.bf16 %v5559, %v5559
      %v5637 = vshrl.u32 %v5635, 16
      %v5639 = vrot.slane %v5637, 7
      %v5640 = vshll.u32 %v5635, 16
      %v5642 = vor.u32 %v5639, %v5640
      %v5643 = vrot.slane %v5639, 4
      %s5646 = scalar_lea.vmem [#allocation2], 40
      %v5647 = vld [vmem:[%s5646] sm:$0xf]
      %v5648 = vsel %vm2922, %v5642, %v5647
      %5649 = vst [vmem:[%s5646] sm:$0xf] %v5648
      %v5650 = vld [vmem:[%s5646 + $0x4] sm:$0x1]
      %v5651 = vsel %vm235, %v5643, %v5650
      %5652 = vst [vmem:[%s5646 + $0x4] sm:$0x1] %v5651
      %v5653 = vpack.c.bf16 %v5560, %v5560
      %v5655 = vshrl.u32 %v5653, 16
      %v5657 = vrot.slane %v5655, 7
      %v5658 = vshll.u32 %v5653, 16
      %v5660 = vor.u32 %v5657, %v5658
      %v5661 = vrot.slane %v5657, 4
      %s5664 = scalar_lea.vmem [#allocation2], 48
      %v5665 = vld [vmem:[%s5664] sm:$0xf]
      %v5666 = vsel %vm2922, %v5660, %v5665
      %5667 = vst [vmem:[%s5664] sm:$0xf] %v5666
      %v5668 = vld [vmem:[%s5664 + $0x4] sm:$0x1]
      %v5669 = vsel %vm235, %v5661, %v5668
      %5670 = vst [vmem:[%s5664 + $0x4] sm:$0x1] %v5669
      %v5671 = vpack.c.bf16 %v5561, %v5561
      %v5673 = vshrl.u32 %v5671, 16
      %v5675 = vrot.slane %v5673, 7
      %v5676 = vshll.u32 %v5671, 16
      %v5678 = vor.u32 %v5675, %v5676
      %v5679 = vrot.slane %v5675, 4
      %s5682 = scalar_lea.vmem [#allocation2], 56
      %v5683 = vld [vmem:[%s5682] sm:$0xf]
      %v5684 = vsel %vm2922, %v5678, %v5683
      %5685 = vst [vmem:[%s5682] sm:$0xf] %v5684
      %v5686 = vld [vmem:[%s5682 + $0x4] sm:$0x1]
      %v5687 = vsel %vm235, %v5679, %v5686
      %5688 = vst [vmem:[%s5682 + $0x4] sm:$0x1] %v5687
      %v5689 = vpack.c.bf16 %v5562, %v5562
      %v5691 = vshrl.u32 %v5689, 16
      %v5693 = vrot.slane %v5691, 7
      %v5694 = vshll.u32 %v5689, 16
      %v5696 = vor.u32 %v5693, %v5694
      %v5697 = vrot.slane %v5693, 4
      %s5700 = scalar_lea.vmem [#allocation2], 64
      %v5701 = vld [vmem:[%s5700] sm:$0xf]
      %v5702 = vsel %vm2922, %v5696, %v5701
      %5703 = vst [vmem:[%s5700] sm:$0xf] %v5702
      %v5704 = vld [vmem:[%s5700 + $0x4] sm:$0x1]
      %v5705 = vsel %vm235, %v5697, %v5704
      %5706 = vst [vmem:[%s5700 + $0x4] sm:$0x1] %v5705
      %v5707 = vld [vmem:[%s4] sm:$0x1]
      %v5709 = vperm.slane %v5707, 0
      %v5711 = vadd.f32 %v5709, 0.0
      %v5712 = vld [vmem:[#allocation2] sm:$0xf]
      %v5713 = vld [vmem:[#allocation2 + $0x8] sm:$0xf]
      %v5714 = vld [vmem:[#allocation2 + $0x10] sm:$0xf]
      %v5715 = vld [vmem:[#allocation2 + $0x18] sm:$0xf]
      %v5716 = vld [vmem:[#allocation2 + $0x20] sm:$0xf]
      %v5717 = vld [vmem:[#allocation2 + $0x28] sm:$0xf]
      %v5718 = vld [vmem:[#allocation2 + $0x30] sm:$0xf]
      %v5719 = vld [vmem:[#allocation2 + $0x38] sm:$0xf]
      %v5720 = vld [vmem:[%s3] sm:$0xf]
      %v5729 = vunpack.c.l.b16 %v5712
      %v5730 = vunpack.c.l.b16 %v5713
      %v5731 = vunpack.c.l.b16 %v5714
      %v5732 = vunpack.c.l.b16 %v5715
      %v5733 = vunpack.c.l.b16 %v5716
      %v5734 = vunpack.c.l.b16 %v5717
      %v5735 = vunpack.c.l.b16 %v5718
      %v5736 = vunpack.c.l.b16 %v5719
      %v5737 = vpack.c.b16 %v5730, %v5729
      %v5738 = vpack.c.b16 %v5732, %v5731
      %v5739 = vpack.c.b16 %v5734, %v5733
      %v5740 = vpack.c.b16 %v5736, %v5735
      %vm5741 = vcmask 64512
      %v5743 = vsel %vm5741, %v5737, 0
      %v5746 = vsel %vm5741, %v5738, 0
      %v5749 = vsel %vm5741, %v5739, 0
      %v5752 = vsel %vm5741, %v5740, 0
      %vm5754 = vcmask 1043456
      %v5756 = vsel %vm5754, %v5720, 0
      %5758 = vmatpush.bf16.msra.mxu0 0
      %5759 = vmatpush.bf16.msra.mxu0 0
      %5760 = vmatpush.bf16.msra.mxu0 0
      %5761 = vmatpush.bf16.msra.mxu0 0
      %5762 = vmatpush.bf16.msra.mxu0 0
      %5763 = vmatpush.bf16.msra.mxu0 0
      %5764 = vmatpush.bf16.msra.mxu0 0
      %5765 = vmatpush.bf16.msra.mxu0 %v5756
      %5766 = vmatmul.bf16.gmra.mxu0 %v5743
      %v5767 = vpop.f32.mrf.mxu0
      %v5768 = vadd.f32 0.0, %v5767
      %v5769 = vpop.f32.mrf.mxu0
      %v5770 = vadd.f32 0.0, %v5769
      %5771 = vmatmul.bf16.gmra.mxu0 %v5746
      %v5772 = vpop.f32.mrf.mxu0
      %v5773 = vadd.f32 0.0, %v5772
      %v5774 = vpop.f32.mrf.mxu0
      %v5775 = vadd.f32 0.0, %v5774
      %5776 = vmatmul.bf16.gmra.mxu0 %v5749
      %v5777 = vpop.f32.mrf.mxu0
      %v5778 = vadd.f32 0.0, %v5777
      %v5779 = vpop.f32.mrf.mxu0
      %v5780 = vadd.f32 0.0, %v5779
      %5781 = vmatmul.bf16.gmra.mxu0 %v5752
      %v5782 = vpop.f32.mrf.mxu0
      %v5783 = vadd.f32 0.0, %v5782
      %v5784 = vpop.f32.mrf.mxu0
      %v5785 = vadd.f32 0.0, %v5784
      %5786 = vdwg.mxu0
      %v5787 = vadd.f32 %v5711, %v5768
      %v5788 = vadd.f32 %v5711, %v5770
      %v5789 = vadd.f32 %v5711, %v5773
      %v5790 = vadd.f32 %v5711, %v5775
      %v5791 = vadd.f32 %v5711, %v5778
      %v5792 = vadd.f32 %v5711, %v5780
      %v5793 = vadd.f32 %v5711, %v5783
      %v5794 = vadd.f32 %v5711, %v5785
      %s5795 = scalar_lea.vmem [#allocation2], 72
      %v5796 = vld [vmem:[%s5795] sm:$0xf]
      %v5797 = vld [vmem:[%s5795 + $0x8] sm:$0xf]
      %v5798 = vld [vmem:[%s5795 + $0x10] sm:$0xf]
      %v5799 = vld [vmem:[%s5795 + $0x18] sm:$0xf]
      %v5800 = vld [vmem:[%s5795 + $0x20] sm:$0xf]
      %v5801 = vld [vmem:[%s5795 + $0x28] sm:$0xf]
      %v5802 = vld [vmem:[%s5795 + $0x30] sm:$0xf]
      %v5803 = vld [vmem:[%s5795 + $0x38] sm:$0xf]
      %s5804 = scalar_lea.vmem %s3, 4
      %v5805 = vld [vmem:[%s5804] sm:$0xf]
      %v5814 = vunpack.c.l.b16 %v5796
      %v5815 = vunpack.c.l.b16 %v5797
      %v5816 = vunpack.c.l.b16 %v5798
      %v5817 = vunpack.c.l.b16 %v5799
      %v5818 = vunpack.c.l.b16 %v5800
      %v5819 = vunpack.c.l.b16 %v5801
      %v5820 = vunpack.c.l.b16 %v5802
      %v5821 = vunpack.c.l.b16 %v5803
      %v5822 = vpack.c.b16 %v5815, %v5814
      %v5823 = vpack.c.b16 %v5817, %v5816
      %v5824 = vpack.c.b16 %v5819, %v5818
      %v5825 = vpack.c.b16 %v5821, %v5820
      %v5827 = vsel %vm5741, %v5822, 0
      %v5830 = vsel %vm5741, %v5823, 0
      %v5833 = vsel %vm5741, %v5824, 0
      %v5836 = vsel %vm5741, %v5825, 0
      %v5839 = vsel %vm5754, %v5805, 0
      %5841 = vmatpush.bf16.msra.mxu0 0
      %5842 = vmatpush.bf16.msra.mxu0 0
      %5843 = vmatpush.bf16.msra.mxu0 0
      %5844 = vmatpush.bf16.msra.mxu0 0
      %5845 = vmatpush.bf16.msra.mxu0 0
      %5846 = vmatpush.bf16.msra.mxu0 0
      %5847 = vmatpush.bf16.msra.mxu0 0
      %5848 = vmatpush.bf16.msra.mxu0 %v5839
      %5849 = vmatmul.bf16.gmra.mxu0 %v5827
      %v5850 = vpop.f32.mrf.mxu0
      %v5851 = vadd.f32 0.0, %v5850
      %v5852 = vpop.f32.mrf.mxu0
      %v5853 = vadd.f32 0.0, %v5852
      %5854 = vmatmul.bf16.gmra.mxu0 %v5830
      %v5855 = vpop.f32.mrf.mxu0
      %v5856 = vadd.f32 0.0, %v5855
      %v5857 = vpop.f32.mrf.mxu0
      %v5858 = vadd.f32 0.0, %v5857
      %5859 = vmatmul.bf16.gmra.mxu0 %v5833
      %v5860 = vpop.f32.mrf.mxu0
      %v5861 = vadd.f32 0.0, %v5860
      %v5862 = vpop.f32.mrf.mxu0
      %v5863 = vadd.f32 0.0, %v5862
      %5864 = vmatmul.bf16.gmra.mxu0 %v5836
      %v5865 = vpop.f32.mrf.mxu0
      %v5866 = vadd.f32 0.0, %v5865
      %v5867 = vpop.f32.mrf.mxu0
      %v5868 = vadd.f32 0.0, %v5867
      %5869 = vdwg.mxu0
      %v5870 = vadd.f32 %v5787, %v5851
      %v5871 = vadd.f32 %v5788, %v5853
      %v5872 = vadd.f32 %v5789, %v5856
      %v5873 = vadd.f32 %v5790, %v5858
      %v5874 = vadd.f32 %v5791, %v5861
      %v5875 = vadd.f32 %v5792, %v5863
      %v5876 = vadd.f32 %v5793, %v5866
      %v5877 = vadd.f32 %v5794, %v5868
      %v5878 = vld [vmem:[#allocation2] sm:$0xf]
      %v5879 = vld [vmem:[#allocation2 + $0x4] sm:$0x1]
      %v5880 = vld [vmem:[#allocation2 + $0x8] sm:$0xf]
      %v5881 = vld [vmem:[#allocation2 + $0xc] sm:$0x1]
      %v5882 = vld [vmem:[#allocation2 + $0x10] sm:$0xf]
      %v5883 = vld [vmem:[#allocation2 + $0x14] sm:$0x1]
      %v5884 = vld [vmem:[#allocation2 + $0x18] sm:$0xf]
      %v5885 = vld [vmem:[#allocation2 + $0x1c] sm:$0x1]
      %v5886 = vld [vmem:[#allocation2 + $0x20] sm:$0xf]
      %v5887 = vld [vmem:[#allocation2 + $0x24] sm:$0x1]
      %v5888 = vld [vmem:[#allocation2 + $0x28] sm:$0xf]
      %v5889 = vld [vmem:[#allocation2 + $0x2c] sm:$0x1]
      %v5890 = vld [vmem:[#allocation2 + $0x30] sm:$0xf]
      %v5891 = vld [vmem:[#allocation2 + $0x34] sm:$0x1]
      %v5892 = vld [vmem:[#allocation2 + $0x38] sm:$0xf]
      %v5893 = vld [vmem:[#allocation2 + $0x3c] sm:$0x1]
      %v5895 = vshrl.u32 %v5878, 16
      %v5897 = vrot.slane %v5895, 4
      %v5898 = vshll.u32 %v5878, 16
      %v5900 = vrot.slane %v5898, 5
      %v5901 = vor.u32 %v5897, %v5900
      %v5902 = vrot.slane %v5901, 4
      %v5904 = vshll.u32 %v5879, 16
      %v5906 = vrot.slane %v5904, 5
      %v5907 = vsel %vm568, %v5902, %v5906
      %v5909 = vshrl.u32 %v5880, 16
      %v5911 = vrot.slane %v5909, 4
      %v5912 = vshll.u32 %v5880, 16
      %v5914 = vrot.slane %v5912, 5
      %v5915 = vor.u32 %v5911, %v5914
      %v5916 = vrot.slane %v5915, 4
      %v5918 = vshll.u32 %v5881, 16
      %v5920 = vrot.slane %v5918, 5
      %v5921 = vsel %vm568, %v5916, %v5920
      %v5923 = vshrl.u32 %v5882, 16
      %v5925 = vrot.slane %v5923, 4
      %v5926 = vshll.u32 %v5882, 16
      %v5928 = vrot.slane %v5926, 5
      %v5929 = vor.u32 %v5925, %v5928
      %v5930 = vrot.slane %v5929, 4
      %v5932 = vshll.u32 %v5883, 16
      %v5934 = vrot.slane %v5932, 5
      %v5935 = vsel %vm568, %v5930, %v5934
      %v5937 = vshrl.u32 %v5884, 16
      %v5939 = vrot.slane %v5937, 4
      %v5940 = vshll.u32 %v5884, 16
      %v5942 = vrot.slane %v5940, 5
      %v5943 = vor.u32 %v5939, %v5942
      %v5944 = vrot.slane %v5943, 4
      %v5946 = vshll.u32 %v5885, 16
      %v5948 = vrot.slane %v5946, 5
      %v5949 = vsel %vm568, %v5944, %v5948
      %v5951 = vshrl.u32 %v5886, 16
      %v5953 = vrot.slane %v5951, 4
      %v5954 = vshll.u32 %v5886, 16
      %v5956 = vrot.slane %v5954, 5
      %v5957 = vor.u32 %v5953, %v5956
      %v5958 = vrot.slane %v5957, 4
      %v5960 = vshll.u32 %v5887, 16
      %v5962 = vrot.slane %v5960, 5
      %v5963 = vsel %vm568, %v5958, %v5962
      %v5965 = vshrl.u32 %v5888, 16
      %v5967 = vrot.slane %v5965, 4
      %v5968 = vshll.u32 %v5888, 16
      %v5970 = vrot.slane %v5968, 5
      %v5971 = vor.u32 %v5967, %v5970
      %v5972 = vrot.slane %v5971, 4
      %v5974 = vshll.u32 %v5889, 16
      %v5976 = vrot.slane %v5974, 5
      %v5977 = vsel %vm568, %v5972, %v5976
      %v5979 = vshrl.u32 %v5890, 16
      %v5981 = vrot.slane %v5979, 4
      %v5982 = vshll.u32 %v5890, 16
      %v5984 = vrot.slane %v5982, 5
      %v5985 = vor.u32 %v5981, %v5984
      %v5986 = vrot.slane %v5985, 4
      %v5988 = vshll.u32 %v5891, 16
      %v5990 = vrot.slane %v5988, 5
      %v5991 = vsel %vm568, %v5986, %v5990
      %v5993 = vshrl.u32 %v5892, 16
      %v5995 = vrot.slane %v5993, 4
      %v5996 = vshll.u32 %v5892, 16
      %v5998 = vrot.slane %v5996, 5
      %v5999 = vor.u32 %v5995, %v5998
      %v6000 = vrot.slane %v5999, 4
      %v6002 = vshll.u32 %v5893, 16
      %v6004 = vrot.slane %v6002, 5
      %v6005 = vsel %vm568, %v6000, %v6004
      %s6006 = scalar_lea.vmem %s3, 8
      %v6007 = vld [vmem:[%s6006] sm:$0xf]
      %v6008 = vunpack.c.l.b16 %v5907
      %v6009 = vunpack.c.l.b16 %v5921
      %v6010 = vunpack.c.l.b16 %v5935
      %v6011 = vunpack.c.l.b16 %v5949
      %v6012 = vunpack.c.l.b16 %v5963
      %v6013 = vunpack.c.l.b16 %v5977
      %v6014 = vunpack.c.l.b16 %v5991
      %v6015 = vunpack.c.l.b16 %v6005
      %v6016 = vpack.c.b16 %v6009, %v6008
      %v6017 = vpack.c.b16 %v6011, %v6010
      %v6018 = vpack.c.b16 %v6013, %v6012
      %v6019 = vpack.c.b16 %v6015, %v6014
      %v6021 = vsel %vm5741, %v6016, 0
      %v6024 = vsel %vm5741, %v6017, 0
      %v6027 = vsel %vm5741, %v6018, 0
      %v6030 = vsel %vm5741, %v6019, 0
      %v6033 = vsel %vm5754, %v6007, 0
      %6035 = vmatpush.bf16.msra.mxu0 0
      %6036 = vmatpush.bf16.msra.mxu0 0
      %6037 = vmatpush.bf16.msra.mxu0 0
      %6038 = vmatpush.bf16.msra.mxu0 0
      %6039 = vmatpush.bf16.msra.mxu0 0
      %6040 = vmatpush.bf16.msra.mxu0 0
      %6041 = vmatpush.bf16.msra.mxu0 0
      %6042 = vmatpush.bf16.msra.mxu0 %v6033
      %6043 = vmatmul.bf16.gmra.mxu0 %v6021
      %v6044 = vpop.f32.mrf.mxu0
      %v6045 = vadd.f32 0.0, %v6044
      %v6046 = vpop.f32.mrf.mxu0
      %v6047 = vadd.f32 0.0, %v6046
      %6048 = vmatmul.bf16.gmra.mxu0 %v6024
      %v6049 = vpop.f32.mrf.mxu0
      %v6050 = vadd.f32 0.0, %v6049
      %v6051 = vpop.f32.mrf.mxu0
      %v6052 = vadd.f32 0.0, %v6051
      %6053 = vmatmul.bf16.gmra.mxu0 %v6027
      %v6054 = vpop.f32.mrf.mxu0
      %v6055 = vadd.f32 0.0, %v6054
      %v6056 = vpop.f32.mrf.mxu0
      %v6057 = vadd.f32 0.0, %v6056
      %6058 = vmatmul.bf16.gmra.mxu0 %v6030
      %v6059 = vpop.f32.mrf.mxu0
      %v6060 = vadd.f32 0.0, %v6059
      %v6061 = vpop.f32.mrf.mxu0
      %v6062 = vadd.f32 0.0, %v6061
      %6063 = vdwg.mxu0
      %v6064 = vadd.f32 %v5870, %v6045
      %v6065 = vadd.f32 %v5871, %v6047
      %v6066 = vadd.f32 %v5872, %v6050
      %v6067 = vadd.f32 %v5873, %v6052
      %v6068 = vadd.f32 %v5874, %v6055
      %v6069 = vadd.f32 %v5875, %v6057
      %v6070 = vadd.f32 %v5876, %v6060
      %v6071 = vadd.f32 %v5877, %v6062
      %v6072 = vld [vmem:[%s2919] sm:$0xf]
      %v6073 = vld [vmem:[%s2919 + $0x8] sm:$0xf]
      %v6074 = vld [vmem:[%s2919 + $0x10] sm:$0xf]
      %v6075 = vld [vmem:[%s2919 + $0x18] sm:$0xf]
      %v6076 = vld [vmem:[%s2919 + $0x20] sm:$0xf]
      %v6077 = vld [vmem:[%s2919 + $0x28] sm:$0xf]
      %v6078 = vld [vmem:[%s2919 + $0x30] sm:$0xf]
      %v6079 = vld [vmem:[%s2919 + $0x38] sm:$0xf]
      %s6080 = scalar_lea.vmem %s3, 12
      %v6081 = vld [vmem:[%s6080] sm:$0xf]
      %v6090 = vunpack.c.l.b16 %v6072
      %v6091 = vunpack.c.l.b16 %v6073
      %v6092 = vunpack.c.l.b16 %v6074
      %v6093 = vunpack.c.l.b16 %v6075
      %v6094 = vunpack.c.l.b16 %v6076
      %v6095 = vunpack.c.l.b16 %v6077
      %v6096 = vunpack.c.l.b16 %v6078
      %v6097 = vunpack.c.l.b16 %v6079
      %v6098 = vpack.c.b16 %v6091, %v6090
      %v6099 = vpack.c.b16 %v6093, %v6092
      %v6100 = vpack.c.b16 %v6095, %v6094
      %v6101 = vpack.c.b16 %v6097, %v6096
      %v6103 = vsel %vm5741, %v6098, 0
      %v6106 = vsel %vm5741, %v6099, 0
      %v6109 = vsel %vm5741, %v6100, 0
      %v6112 = vsel %vm5741, %v6101, 0
      %v6115 = vsel %vm5754, %v6081, 0
      %6117 = vmatpush.bf16.msra.mxu0 0
      %6118 = vmatpush.bf16.msra.mxu0 0
      %6119 = vmatpush.bf16.msra.mxu0 0
      %6120 = vmatpush.bf16.msra.mxu0 0
      %6121 = vmatpush.bf16.msra.mxu0 0
      %6122 = vmatpush.bf16.msra.mxu0 0
      %6123 = vmatpush.bf16.msra.mxu0 0
      %6124 = vmatpush.bf16.msra.mxu0 %v6115
      %6125 = vmatmul.bf16.gmra.mxu0 %v6103
      %v6126 = vpop.f32.mrf.mxu0
      %v6127 = vadd.f32 0.0, %v6126
      %v6128 = vpop.f32.mrf.mxu0
      %v6129 = vadd.f32 0.0, %v6128
      %6130 = vmatmul.bf16.gmra.mxu0 %v6106
      %v6131 = vpop.f32.mrf.mxu0
      %v6132 = vadd.f32 0.0, %v6131
      %v6133 = vpop.f32.mrf.mxu0
      %v6134 = vadd.f32 0.0, %v6133
      %6135 = vmatmul.bf16.gmra.mxu0 %v6109
      %v6136 = vpop.f32.mrf.mxu0
      %v6137 = vadd.f32 0.0, %v6136
      %v6138 = vpop.f32.mrf.mxu0
      %v6139 = vadd.f32 0.0, %v6138
      %6140 = vmatmul.bf16.gmra.mxu0 %v6112
      %v6141 = vpop.f32.mrf.mxu0
      %v6142 = vadd.f32 0.0, %v6141
      %v6143 = vpop.f32.mrf.mxu0
      %v6144 = vadd.f32 0.0, %v6143
      %6145 = vdwg.mxu0
      %v6146 = vadd.f32 %v6064, %v6127
      %v6147 = vadd.f32 %v6065, %v6129
      %v6148 = vadd.f32 %v6066, %v6132
      %v6149 = vadd.f32 %v6067, %v6134
      %v6150 = vadd.f32 %v6068, %v6137
      %v6151 = vadd.f32 %v6069, %v6139
      %v6152 = vadd.f32 %v6070, %v6142
      %v6153 = vadd.f32 %v6071, %v6144
      %v6154 = vld [vmem:[%s1476] sm:$0xf]
      %v6155 = vld [vmem:[%s1476 + $0x8] sm:$0xf]
      %v6156 = vld [vmem:[%s1476 + $0x10] sm:$0xf]
      %v6157 = vld [vmem:[%s1476 + $0x18] sm:$0xf]
      %v6158 = vld [vmem:[%s1476 + $0x20] sm:$0xf]
      %v6159 = vld [vmem:[%s1476 + $0x28] sm:$0xf]
      %v6160 = vld [vmem:[%s1476 + $0x30] sm:$0xf]
      %v6161 = vld [vmem:[%s1476 + $0x38] sm:$0xf]
      %s6162 = scalar_lea.vmem %s3, 16
      %v6163 = vld [vmem:[%s6162] sm:$0xf]
      %v6172 = vunpack.c.l.b16 %v6154
      %v6173 = vunpack.c.l.b16 %v6155
      %v6174 = vunpack.c.l.b16 %v6156
      %v6175 = vunpack.c.l.b16 %v6157
      %v6176 = vunpack.c.l.b16 %v6158
      %v6177 = vunpack.c.l.b16 %v6159
      %v6178 = vunpack.c.l.b16 %v6160
      %v6179 = vunpack.c.l.b16 %v6161
      %v6180 = vpack.c.b16 %v6173, %v6172
      %v6181 = vpack.c.b16 %v6175, %v6174
      %v6182 = vpack.c.b16 %v6177, %v6176
      %v6183 = vpack.c.b16 %v6179, %v6178
      %v6185 = vsel %vm5741, %v6180, 0
      %v6188 = vsel %vm5741, %v6181, 0
      %v6191 = vsel %vm5741, %v6182, 0
      %v6194 = vsel %vm5741, %v6183, 0
      %v6197 = vsel %vm5754, %v6163, 0
      %6199 = vmatpush.bf16.msra.mxu0 0
      %6200 = vmatpush.bf16.msra.mxu0 0
      %6201 = vmatpush.bf16.msra.mxu0 0
      %6202 = vmatpush.bf16.msra.mxu0 0
      %6203 = vmatpush.bf16.msra.mxu0 0
      %6204 = vmatpush.bf16.msra.mxu0 0
      %6205 = vmatpush.bf16.msra.mxu0 0
      %6206 = vmatpush.bf16.msra.mxu0 %v6197
      %6207 = vmatmul.bf16.gmra.mxu0 %v6185
      %v6208 = vpop.f32.mrf.mxu0
      %v6209 = vadd.f32 0.0, %v6208
      %v6210 = vpop.f32.mrf.mxu0
      %v6211 = vadd.f32 0.0, %v6210
      %6212 = vmatmul.bf16.gmra.mxu0 %v6188
      %v6213 = vpop.f32.mrf.mxu0
      %v6214 = vadd.f32 0.0, %v6213
      %v6215 = vpop.f32.mrf.mxu0
      %v6216 = vadd.f32 0.0, %v6215
      %6217 = vmatmul.bf16.gmra.mxu0 %v6191
      %v6218 = vpop.f32.mrf.mxu0
      %v6219 = vadd.f32 0.0, %v6218
      %v6220 = vpop.f32.mrf.mxu0
      %v6221 = vadd.f32 0.0, %v6220
      %6222 = vmatmul.bf16.gmra.mxu0 %v6194
      %v6223 = vpop.f32.mrf.mxu0
      %v6224 = vadd.f32 0.0, %v6223
      %v6225 = vpop.f32.mrf.mxu0
      %v6226 = vadd.f32 0.0, %v6225
      %6227 = vdwg.mxu0
      %v6228 = vadd.f32 %v6146, %v6209
      %v6229 = vadd.f32 %v6147, %v6211
      %v6230 = vadd.f32 %v6148, %v6214
      %v6231 = vadd.f32 %v6149, %v6216
      %v6232 = vadd.f32 %v6150, %v6219
      %v6233 = vadd.f32 %v6151, %v6221
      %v6234 = vadd.f32 %v6152, %v6224
      %v6235 = vadd.f32 %v6153, %v6226
      %v6236 = vld [vmem:[%s2919] sm:$0xf]
      %v6237 = vld [vmem:[%s2919 + $0x4] sm:$0x1]
      %v6238 = vld [vmem:[%s2919 + $0x8] sm:$0xf]
      %v6239 = vld [vmem:[%s2919 + $0xc] sm:$0x1]
      %v6240 = vld [vmem:[%s2919 + $0x10] sm:$0xf]
      %v6241 = vld [vmem:[%s2919 + $0x14] sm:$0x1]
      %v6242 = vld [vmem:[%s2919 + $0x18] sm:$0xf]
      %v6243 = vld [vmem:[%s2919 + $0x1c] sm:$0x1]
      %v6244 = vld [vmem:[%s2919 + $0x20] sm:$0xf]
      %v6245 = vld [vmem:[%s2919 + $0x24] sm:$0x1]
      %v6246 = vld [vmem:[%s2919 + $0x28] sm:$0xf]
      %v6247 = vld [vmem:[%s2919 + $0x2c] sm:$0x1]
      %v6248 = vld [vmem:[%s2919 + $0x30] sm:$0xf]
      %v6249 = vld [vmem:[%s2919 + $0x34] sm:$0x1]
      %v6250 = vld [vmem:[%s2919 + $0x38] sm:$0xf]
      %v6251 = vld [vmem:[%s2919 + $0x3c] sm:$0x1]
      %v6253 = vshrl.u32 %v6236, 16
      %v6255 = vrot.slane %v6253, 4
      %v6256 = vshll.u32 %v6236, 16
      %v6258 = vrot.slane %v6256, 5
      %v6259 = vor.u32 %v6255, %v6258
      %v6260 = vrot.slane %v6259, 4
      %v6262 = vshll.u32 %v6237, 16
      %v6264 = vrot.slane %v6262, 5
      %v6265 = vsel %vm568, %v6260, %v6264
      %v6267 = vshrl.u32 %v6238, 16
      %v6269 = vrot.slane %v6267, 4
      %v6270 = vshll.u32 %v6238, 16
      %v6272 = vrot.slane %v6270, 5
      %v6273 = vor.u32 %v6269, %v6272
      %v6274 = vrot.slane %v6273, 4
      %v6276 = vshll.u32 %v6239, 16
      %v6278 = vrot.slane %v6276, 5
      %v6279 = vsel %vm568, %v6274, %v6278
      %v6281 = vshrl.u32 %v6240, 16
      %v6283 = vrot.slane %v6281, 4
      %v6284 = vshll.u32 %v6240, 16
      %v6286 = vrot.slane %v6284, 5
      %v6287 = vor.u32 %v6283, %v6286
      %v6288 = vrot.slane %v6287, 4
      %v6290 = vshll.u32 %v6241, 16
      %v6292 = vrot.slane %v6290, 5
      %v6293 = vsel %vm568, %v6288, %v6292
      %v6295 = vshrl.u32 %v6242, 16
      %v6297 = vrot.slane %v6295, 4
      %v6298 = vshll.u32 %v6242, 16
      %v6300 = vrot.slane %v6298, 5
      %v6301 = vor.u32 %v6297, %v6300
      %v6302 = vrot.slane %v6301, 4
      %v6304 = vshll.u32 %v6243, 16
      %v6306 = vrot.slane %v6304, 5
      %v6307 = vsel %vm568, %v6302, %v6306
      %v6309 = vshrl.u32 %v6244, 16
      %v6311 = vrot.slane %v6309, 4
      %v6312 = vshll.u32 %v6244, 16
      %v6314 = vrot.slane %v6312, 5
      %v6315 = vor.u32 %v6311, %v6314
      %v6316 = vrot.slane %v6315, 4
      %v6318 = vshll.u32 %v6245, 16
      %v6320 = vrot.slane %v6318, 5
      %v6321 = vsel %vm568, %v6316, %v6320
      %v6323 = vshrl.u32 %v6246, 16
      %v6325 = vrot.slane %v6323, 4
      %v6326 = vshll.u32 %v6246, 16
      %v6328 = vrot.slane %v6326, 5
      %v6329 = vor.u32 %v6325, %v6328
      %v6330 = vrot.slane %v6329, 4
      %v6332 = vshll.u32 %v6247, 16
      %v6334 = vrot.slane %v6332, 5
      %v6335 = vsel %vm568, %v6330, %v6334
      %v6337 = vshrl.u32 %v6248, 16
      %v6339 = vrot.slane %v6337, 4
      %v6340 = vshll.u32 %v6248, 16
      %v6342 = vrot.slane %v6340, 5
      %v6343 = vor.u32 %v6339, %v6342
      %v6344 = vrot.slane %v6343, 4
      %v6346 = vshll.u32 %v6249, 16
      %v6348 = vrot.slane %v6346, 5
      %v6349 = vsel %vm568, %v6344, %v6348
      %v6351 = vshrl.u32 %v6250, 16
      %v6353 = vrot.slane %v6351, 4
      %v6354 = vshll.u32 %v6250, 16
      %v6356 = vrot.slane %v6354, 5
      %v6357 = vor.u32 %v6353, %v6356
      %v6358 = vrot.slane %v6357, 4
      %v6360 = vshll.u32 %v6251, 16
      %v6362 = vrot.slane %v6360, 5
      %v6363 = vsel %vm568, %v6358, %v6362
      %s6364 = scalar_lea.vmem %s3, 20
      %v6365 = vld [vmem:[%s6364] sm:$0xf]
      %v6366 = vunpack.c.l.b16 %v6265
      %v6367 = vunpack.c.l.b16 %v6279
      %v6368 = vunpack.c.l.b16 %v6293
      %v6369 = vunpack.c.l.b16 %v6307
      %v6370 = vunpack.c.l.b16 %v6321
      %v6371 = vunpack.c.l.b16 %v6335
      %v6372 = vunpack.c.l.b16 %v6349
      %v6373 = vunpack.c.l.b16 %v6363
      %v6374 = vpack.c.b16 %v6367, %v6366
      %v6375 = vpack.c.b16 %v6369, %v6368
      %v6376 = vpack.c.b16 %v6371, %v6370
      %v6377 = vpack.c.b16 %v6373, %v6372
      %v6379 = vsel %vm5741, %v6374, 0
      %v6382 = vsel %vm5741, %v6375, 0
      %v6385 = vsel %vm5741, %v6376, 0
      %v6388 = vsel %vm5741, %v6377, 0
      %v6391 = vsel %vm5754, %v6365, 0
      %6393 = vmatpush.bf16.msra.mxu0 0
      %6394 = vmatpush.bf16.msra.mxu0 0
      %6395 = vmatpush.bf16.msra.mxu0 0
      %6396 = vmatpush.bf16.msra.mxu0 0
      %6397 = vmatpush.bf16.msra.mxu0 0
      %6398 = vmatpush.bf16.msra.mxu0 0
      %6399 = vmatpush.bf16.msra.mxu0 0
      %6400 = vmatpush.bf16.msra.mxu0 %v6391
      %6401 = vmatmul.bf16.gmra.mxu0 %v6379
      %v6402 = vpop.f32.mrf.mxu0
      %v6403 = vadd.f32 0.0, %v6402
      %v6404 = vpop.f32.mrf.mxu0
      %v6405 = vadd.f32 0.0, %v6404
      %6406 = vmatmul.bf16.gmra.mxu0 %v6382
      %v6407 = vpop.f32.mrf.mxu0
      %v6408 = vadd.f32 0.0, %v6407
      %v6409 = vpop.f32.mrf.mxu0
      %v6410 = vadd.f32 0.0, %v6409
      %6411 = vmatmul.bf16.gmra.mxu0 %v6385
      %v6412 = vpop.f32.mrf.mxu0
      %v6413 = vadd.f32 0.0, %v6412
      %v6414 = vpop.f32.mrf.mxu0
      %v6415 = vadd.f32 0.0, %v6414
      %6416 = vmatmul.bf16.gmra.mxu0 %v6388
      %v6417 = vpop.f32.mrf.mxu0
      %v6418 = vadd.f32 0.0, %v6417
      %v6419 = vpop.f32.mrf.mxu0
      %v6420 = vadd.f32 0.0, %v6419
      %6421 = vdwg.mxu0
      %v6422 = vadd.f32 %v6228, %v6403
      %v6423 = vadd.f32 %v6229, %v6405
      %v6424 = vadd.f32 %v6230, %v6408
      %v6425 = vadd.f32 %v6231, %v6410
      %v6426 = vadd.f32 %v6232, %v6413
      %v6427 = vadd.f32 %v6233, %v6415
      %v6428 = vadd.f32 %v6234, %v6418
      %v6429 = vadd.f32 %v6235, %v6420
      %v6430 = vld [vmem:[%s5574] sm:$0xf]
      %v6431 = vld [vmem:[%s5574 + $0x8] sm:$0xf]
      %v6432 = vld [vmem:[%s5574 + $0x10] sm:$0xf]
      %v6433 = vld [vmem:[%s5574 + $0x18] sm:$0xf]
      %v6434 = vld [vmem:[%s5574 + $0x20] sm:$0xf]
      %v6435 = vld [vmem:[%s5574 + $0x28] sm:$0xf]
      %v6436 = vld [vmem:[%s5574 + $0x30] sm:$0xf]
      %v6437 = vld [vmem:[%s5574 + $0x38] sm:$0xf]
      %s6438 = scalar_lea.vmem %s3, 24
      %v6439 = vld [vmem:[%s6438] sm:$0xf]
      %v6448 = vunpack.c.l.b16 %v6430
      %v6449 = vunpack.c.l.b16 %v6431
      %v6450 = vunpack.c.l.b16 %v6432
      %v6451 = vunpack.c.l.b16 %v6433
      %v6452 = vunpack.c.l.b16 %v6434
      %v6453 = vunpack.c.l.b16 %v6435
      %v6454 = vunpack.c.l.b16 %v6436
      %v6455 = vunpack.c.l.b16 %v6437
      %v6456 = vpack.c.b16 %v6449, %v6448
      %v6457 = vpack.c.b16 %v6451, %v6450
      %v6458 = vpack.c.b16 %v6453, %v6452
      %v6459 = vpack.c.b16 %v6455, %v6454
      %v6461 = vsel %vm5741, %v6456, 0
      %v6464 = vsel %vm5741, %v6457, 0
      %v6467 = vsel %vm5741, %v6458, 0
      %v6470 = vsel %vm5741, %v6459, 0
      %v6473 = vsel %vm5754, %v6439, 0
      %6475 = vmatpush.bf16.msra.mxu0 0
      %6476 = vmatpush.bf16.msra.mxu0 0
      %6477 = vmatpush.bf16.msra.mxu0 0
      %6478 = vmatpush.bf16.msra.mxu0 0
      %6479 = vmatpush.bf16.msra.mxu0 0
      %6480 = vmatpush.bf16.msra.mxu0 0
      %6481 = vmatpush.bf16.msra.mxu0 0
      %6482 = vmatpush.bf16.msra.mxu0 %v6473
      %6483 = vmatmul.bf16.gmra.mxu0 %v6461
      %v6484 = vpop.f32.mrf.mxu0
      %v6485 = vadd.f32 0.0, %v6484
      %v6486 = vpop.f32.mrf.mxu0
      %v6487 = vadd.f32 0.0, %v6486
      %6488 = vmatmul.bf16.gmra.mxu0 %v6464
      %v6489 = vpop.f32.mrf.mxu0
      %v6490 = vadd.f32 0.0, %v6489
      %v6491 = vpop.f32.mrf.mxu0
      %v6492 = vadd.f32 0.0, %v6491
      %6493 = vmatmul.bf16.gmra.mxu0 %v6467
      %v6494 = vpop.f32.mrf.mxu0
      %v6495 = vadd.f32 0.0, %v6494
      %v6496 = vpop.f32.mrf.mxu0
      %v6497 = vadd.f32 0.0, %v6496
      %6498 = vmatmul.bf16.gmra.mxu0 %v6470
      %v6499 = vpop.f32.mrf.mxu0
      %v6500 = vadd.f32 0.0, %v6499
      %v6501 = vpop.f32.mrf.mxu0
      %v6502 = vadd.f32 0.0, %v6501
      %6503 = vdwg.mxu0
      %v6504 = vadd.f32 %v6422, %v6485
      %v6505 = vadd.f32 %v6423, %v6487
      %v6506 = vadd.f32 %v6424, %v6490
      %v6507 = vadd.f32 %v6425, %v6492
      %v6508 = vadd.f32 %v6426, %v6495
      %v6509 = vadd.f32 %v6427, %v6497
      %v6510 = vadd.f32 %v6428, %v6500
      %v6511 = vadd.f32 %v6429, %v6502
      %v6512 = vld [vmem:[%s4131] sm:$0xf]
      %v6513 = vld [vmem:[%s4131 + $0x8] sm:$0xf]
      %v6514 = vld [vmem:[%s4131 + $0x10] sm:$0xf]
      %v6515 = vld [vmem:[%s4131 + $0x18] sm:$0xf]
      %v6516 = vld [vmem:[%s4131 + $0x20] sm:$0xf]
      %v6517 = vld [vmem:[%s4131 + $0x28] sm:$0xf]
      %v6518 = vld [vmem:[%s4131 + $0x30] sm:$0xf]
      %v6519 = vld [vmem:[%s4131 + $0x38] sm:$0xf]
      %s6520 = scalar_lea.vmem %s3, 28
      %v6521 = vld [vmem:[%s6520] sm:$0xf]
      %v6530 = vunpack.c.l.b16 %v6512
      %v6531 = vunpack.c.l.b16 %v6513
      %v6532 = vunpack.c.l.b16 %v6514
      %v6533 = vunpack.c.l.b16 %v6515
      %v6534 = vunpack.c.l.b16 %v6516
      %v6535 = vunpack.c.l.b16 %v6517
      %v6536 = vunpack.c.l.b16 %v6518
      %v6537 = vunpack.c.l.b16 %v6519
      %v6538 = vpack.c.b16 %v6531, %v6530
      %v6539 = vpack.c.b16 %v6533, %v6532
      %v6540 = vpack.c.b16 %v6535, %v6534
      %v6541 = vpack.c.b16 %v6537, %v6536
      %v6543 = vsel %vm5741, %v6538, 0
      %v6546 = vsel %vm5741, %v6539, 0
      %v6549 = vsel %vm5741, %v6540, 0
      %v6552 = vsel %vm5741, %v6541, 0
      %v6555 = vsel %vm5754, %v6521, 0
      %6557 = vmatpush.bf16.msra.mxu0 0
      %6558 = vmatpush.bf16.msra.mxu0 0
      %6559 = vmatpush.bf16.msra.mxu0 0
      %6560 = vmatpush.bf16.msra.mxu0 0
      %6561 = vmatpush.bf16.msra.mxu0 0
      %6562 = vmatpush.bf16.msra.mxu0 0
      %6563 = vmatpush.bf16.msra.mxu0 0
      %6564 = vmatpush.bf16.msra.mxu0 %v6555
      %6565 = vmatmul.bf16.gmra.mxu0 %v6543
      %v6566 = vpop.f32.mrf.mxu0
      %v6567 = vadd.f32 0.0, %v6566
      %v6568 = vpop.f32.mrf.mxu0
      %v6569 = vadd.f32 0.0, %v6568
      %6570 = vmatmul.bf16.gmra.mxu0 %v6546
      %v6571 = vpop.f32.mrf.mxu0
      %v6572 = vadd.f32 0.0, %v6571
      %v6573 = vpop.f32.mrf.mxu0
      %v6574 = vadd.f32 0.0, %v6573
      %6575 = vmatmul.bf16.gmra.mxu0 %v6549
      %v6576 = vpop.f32.mrf.mxu0
      %v6577 = vadd.f32 0.0, %v6576
      %v6578 = vpop.f32.mrf.mxu0
      %v6579 = vadd.f32 0.0, %v6578
      %6580 = vmatmul.bf16.gmra.mxu0 %v6552
      %v6581 = vpop.f32.mrf.mxu0
      %v6582 = vadd.f32 0.0, %v6581
      %v6583 = vpop.f32.mrf.mxu0
      %v6584 = vadd.f32 0.0, %v6583
      %6585 = vdwg.mxu0
      %v6586 = vadd.f32 %v6504, %v6567
      %v6587 = vadd.f32 %v6505, %v6569
      %v6588 = vadd.f32 %v6506, %v6572
      %v6589 = vadd.f32 %v6507, %v6574
      %v6590 = vadd.f32 %v6508, %v6577
      %v6591 = vadd.f32 %v6509, %v6579
      %v6592 = vadd.f32 %v6510, %v6582
      %v6593 = vadd.f32 %v6511, %v6584
      %v6594 = vld [vmem:[%s5574] sm:$0xf]
      %v6595 = vld [vmem:[%s5574 + $0x4] sm:$0x1]
      %v6596 = vld [vmem:[%s5574 + $0x8] sm:$0xf]
      %v6597 = vld [vmem:[%s5574 + $0xc] sm:$0x1]
      %v6598 = vld [vmem:[%s5574 + $0x10] sm:$0xf]
      %v6599 = vld [vmem:[%s5574 + $0x14] sm:$0x1]
      %v6600 = vld [vmem:[%s5574 + $0x18] sm:$0xf]
      %v6601 = vld [vmem:[%s5574 + $0x1c] sm:$0x1]
      %v6602 = vld [vmem:[%s5574 + $0x20] sm:$0xf]
      %v6603 = vld [vmem:[%s5574 + $0x24] sm:$0x1]
      %v6604 = vld [vmem:[%s5574 + $0x28] sm:$0xf]
      %v6605 = vld [vmem:[%s5574 + $0x2c] sm:$0x1]
      %v6606 = vld [vmem:[%s5574 + $0x30] sm:$0xf]
      %v6607 = vld [vmem:[%s5574 + $0x34] sm:$0x1]
      %v6608 = vld [vmem:[%s5574 + $0x38] sm:$0xf]
      %v6609 = vld [vmem:[%s5574 + $0x3c] sm:$0x1]
      %v6611 = vshrl.u32 %v6594, 16
      %v6613 = vrot.slane %v6611, 4
      %v6614 = vshll.u32 %v6594, 16
      %v6616 = vrot.slane %v6614, 5
      %v6617 = vor.u32 %v6613, %v6616
      %v6618 = vrot.slane %v6617, 4
      %v6620 = vshll.u32 %v6595, 16
      %v6622 = vrot.slane %v6620, 5
      %v6623 = vsel %vm568, %v6618, %v6622
      %v6625 = vshrl.u32 %v6596, 16
      %v6627 = vrot.slane %v6625, 4
      %v6628 = vshll.u32 %v6596, 16
      %v6630 = vrot.slane %v6628, 5
      %v6631 = vor.u32 %v6627, %v6630
      %v6632 = vrot.slane %v6631, 4
      %v6634 = vshll.u32 %v6597, 16
      %v6636 = vrot.slane %v6634, 5
      %v6637 = vsel %vm568, %v6632, %v6636
      %v6639 = vshrl.u32 %v6598, 16
      %v6641 = vrot.slane %v6639, 4
      %v6642 = vshll.u32 %v6598, 16
      %v6644 = vrot.slane %v6642, 5
      %v6645 = vor.u32 %v6641, %v6644
      %v6646 = vrot.slane %v6645, 4
      %v6648 = vshll.u32 %v6599, 16
      %v6650 = vrot.slane %v6648, 5
      %v6651 = vsel %vm568, %v6646, %v6650
      %v6653 = vshrl.u32 %v6600, 16
      %v6655 = vrot.slane %v6653, 4
      %v6656 = vshll.u32 %v6600, 16
      %v6658 = vrot.slane %v6656, 5
      %v6659 = vor.u32 %v6655, %v6658
      %v6660 = vrot.slane %v6659, 4
      %v6662 = vshll.u32 %v6601, 16
      %v6664 = vrot.slane %v6662, 5
      %v6665 = vsel %vm568, %v6660, %v6664
      %v6667 = vshrl.u32 %v6602, 16
      %v6669 = vrot.slane %v6667, 4
      %v6670 = vshll.u32 %v6602, 16
      %v6672 = vrot.slane %v6670, 5
      %v6673 = vor.u32 %v6669, %v6672
      %v6674 = vrot.slane %v6673, 4
      %v6676 = vshll.u32 %v6603, 16
      %v6678 = vrot.slane %v6676, 5
      %v6679 = vsel %vm568, %v6674, %v6678
      %v6681 = vshrl.u32 %v6604, 16
      %v6683 = vrot.slane %v6681, 4
      %v6684 = vshll.u32 %v6604, 16
      %v6686 = vrot.slane %v6684, 5
      %v6687 = vor.u32 %v6683, %v6686
      %v6688 = vrot.slane %v6687, 4
      %v6690 = vshll.u32 %v6605, 16
      %v6692 = vrot.slane %v6690, 5
      %v6693 = vsel %vm568, %v6688, %v6692
      %v6695 = vshrl.u32 %v6606, 16
      %v6697 = vrot.slane %v6695, 4
      %v6698 = vshll.u32 %v6606, 16
      %v6700 = vrot.slane %v6698, 5
      %v6701 = vor.u32 %v6697, %v6700
      %v6702 = vrot.slane %v6701, 4
      %v6704 = vshll.u32 %v6607, 16
      %v6706 = vrot.slane %v6704, 5
      %v6707 = vsel %vm568, %v6702, %v6706
      %v6709 = vshrl.u32 %v6608, 16
      %v6711 = vrot.slane %v6709, 4
      %v6712 = vshll.u32 %v6608, 16
      %v6714 = vrot.slane %v6712, 5
      %v6715 = vor.u32 %v6711, %v6714
      %v6716 = vrot.slane %v6715, 4
      %v6718 = vshll.u32 %v6609, 16
      %v6720 = vrot.slane %v6718, 5
      %v6721 = vsel %vm568, %v6716, %v6720
      %s6722 = scalar_lea.vmem %s3, 32
      %v6723 = vld [vmem:[%s6722] sm:$0xf]
      %v6724 = vunpack.c.l.b16 %v6623
      %v6725 = vunpack.c.l.b16 %v6637
      %v6726 = vunpack.c.l.b16 %v6651
      %v6727 = vunpack.c.l.b16 %v6665
      %v6728 = vunpack.c.l.b16 %v6679
      %v6729 = vunpack.c.l.b16 %v6693
      %v6730 = vunpack.c.l.b16 %v6707
      %v6731 = vunpack.c.l.b16 %v6721
      %v6732 = vpack.c.b16 %v6725, %v6724
      %v6733 = vpack.c.b16 %v6727, %v6726
      %v6734 = vpack.c.b16 %v6729, %v6728
      %v6735 = vpack.c.b16 %v6731, %v6730
      %v6737 = vsel %vm5741, %v6732, 0
      %v6740 = vsel %vm5741, %v6733, 0
      %v6743 = vsel %vm5741, %v6734, 0
      %v6746 = vsel %vm5741, %v6735, 0
      %v6749 = vsel %vm5754, %v6723, 0
      %6751 = vmatpush.bf16.msra.mxu0 0
      %6752 = vmatpush.bf16.msra.mxu0 0
      %6753 = vmatpush.bf16.msra.mxu0 0
      %6754 = vmatpush.bf16.msra.mxu0 0
      %6755 = vmatpush.bf16.msra.mxu0 0
      %6756 = vmatpush.bf16.msra.mxu0 0
      %6757 = vmatpush.bf16.msra.mxu0 0
      %6758 = vmatpush.bf16.msra.mxu0 %v6749
      %6759 = vmatmul.bf16.gmra.mxu0 %v6737
      %v6760 = vpop.f32.mrf.mxu0
      %v6761 = vadd.f32 0.0, %v6760
      %v6762 = vpop.f32.mrf.mxu0
      %v6763 = vadd.f32 0.0, %v6762
      %6764 = vmatmul.bf16.gmra.mxu0 %v6740
      %v6765 = vpop.f32.mrf.mxu0
      %v6766 = vadd.f32 0.0, %v6765
      %v6767 = vpop.f32.mrf.mxu0
      %v6768 = vadd.f32 0.0, %v6767
      %6769 = vmatmul.bf16.gmra.mxu0 %v6743
      %v6770 = vpop.f32.mrf.mxu0
      %v6771 = vadd.f32 0.0, %v6770
      %v6772 = vpop.f32.mrf.mxu0
      %v6773 = vadd.f32 0.0, %v6772
      %6774 = vmatmul.bf16.gmra.mxu0 %v6746
      %v6775 = vpop.f32.mrf.mxu0
      %v6776 = vadd.f32 0.0, %v6775
      %v6777 = vpop.f32.mrf.mxu0
      %v6778 = vadd.f32 0.0, %v6777
      %6779 = vdwg.mxu0
      %v6780 = vadd.f32 %v6586, %v6761
      %v6781 = vadd.f32 %v6587, %v6763
      %v6782 = vadd.f32 %v6588, %v6766
      %v6783 = vadd.f32 %v6589, %v6768
      %v6784 = vadd.f32 %v6590, %v6771
      %v6785 = vadd.f32 %v6591, %v6773
      %v6786 = vadd.f32 %v6592, %v6776
      %v6787 = vadd.f32 %v6593, %v6778
      %v6788 = vmax.f32 %v6780, 0.0
      %v6789 = vmax.f32 %v6781, 0.0
      %v6790 = vmax.f32 %v6782, 0.0
      %v6791 = vmax.f32 %v6783, 0.0
      %v6792 = vmax.f32 %v6784, 0.0
      %v6793 = vmax.f32 %v6785, 0.0
      %v6794 = vmax.f32 %v6786, 0.0
      %v6795 = vmax.f32 %v6787, 0.0
      %vm6796 = vcmask 130048
      %6797 = vst.msk [vmem:[%s229] sm:$0xff] %vm6796, %v6788
      %6798 = vst.msk [vmem:[%s229 + $0x8] sm:$0xff] %vm6796, %v6789
      %6799 = vst.msk [vmem:[%s229 + $0x10] sm:$0xff] %vm6796, %v6790
      %6800 = vst.msk [vmem:[%s229 + $0x18] sm:$0xff] %vm6796, %v6791
      %6801 = vst.msk [vmem:[%s229 + $0x20] sm:$0xff] %vm6796, %v6792
      %6802 = vst.msk [vmem:[%s229 + $0x28] sm:$0xff] %vm6796, %v6793
      %6803 = vst.msk [vmem:[%s229 + $0x30] sm:$0xff] %vm6796, %v6794
      %6804 = vst.msk [vmem:[%s229 + $0x38] sm:$0xff] %vm6796, %v6795
      %p6805 = scmp.lt.s32.totalorder %s16, 1
      %s6806 = scalar_select %p6805, %s16, 1
      %s6807 = smul.addr %s6806, 8
      %s6808 = smul.addr %s6807, 8
      %s6809 = scalar_lea.vmem %s5, %s6808
      // Predicated region
      $region41: #{_lambda_.1} parent=39 // pred_check
        %p6810 = pneg %p144
      $region42: #{_lambda_.1} parent=39 // pred_check_branch
        %6812 = sbr.rel (%p6810) target = $region44
      $region43: #{_lambda_.1} parent=39 // pred_region
        _
      $region44: #{_lambda_.1} parent=39 // pred_fallthru
        _
    $region40: #{_lambda_.1} parent=5 // pred_fallthru
      _
    %p6813 = scmp.le.s32.totalorder 2, %s11
    // Predicated region
    $region45: #{_lambda_.1} parent=5 // pred_check
      %p6814 = pneg %p6813
    $region46: #{_lambda_.1} parent=5 // pred_check_branch
      %6816 = sbr.rel (%p6814) target = $region48
    $region47: #{_lambda_.1} parent=5 // pred_region
      %s6817 = ssub.s32 %s11, 2
      // Predicated region
      $region49: #{_lambda_.1} parent=47 // pred_check
        %p6818 = pneg %p150
      $region50: #{_lambda_.1} parent=47 // pred_check_branch
        %6820 = sbr.rel (%p6818) target = $region52
      $region51: #{_lambda_.1} parent=47 // pred_region
        %p6821 = scmp.lt.s32.totalorder %s17, 1
        %s6822 = scalar_select %p6821, %s17, 1
        %s6823 = smul.addr %s6822, 8
        %s6824 = smul.addr %s6823, 8
        %s6825 = scalar_lea.vmem %s5, %s6824
      $region52: #{_lambda_.1} parent=47 // pred_fallthru
        _
    $region48: #{_lambda_.1} parent=5 // pred_fallthru
      _
  $region6: #{_lambda_.1} parent=0 // loop_footer
    %s15 = sadd.s32 1, %s11
  $region7: #{_lambda_.1} parent=0 // loop_footer_branch
    %10 = sbr.rel target = $region3
  $region8: #{_lambda_.1} parent=0 // loop_exit
    _

</llo_original>
